<compile_context>
chip_gen: v6e
topology: v6e:2x2x1
jax: 0.10.0
libtpu: 0.0.40
codegen_flags: <defaults>
</compile_context>

<pallas_src>
import math

import jax
import jax.numpy as jnp
from jax.experimental import pallas as pl
from jax.experimental.pallas import tpu as pltpu

HIDDEN = 32            # LSTM hidden size
NUM_LAYERS = 2
NUM_HEADS = 8
ATTN_DIM = 2 * HIDDEN  # 64 (bidirectional LSTM output dim)
N_CLASSES = 7
G8 = 8 * HIDDEN        # 256 = fused (2 directions x 4 gates) width

_VMEM = pl.BlockSpec(memory_space=pltpu.MemorySpace.VMEM)

# --- LSTM weight slab (bf16, lane width 256): row offsets --------------------
_OFF_WHH1 = 0          # (64, 256)
_OFF_WHH2 = 64         # (64, 256)
_OFF_WIH2F = 128       # (64, 256)
_OFF_WIH2B = 192       # (64, 256)
_OFF_WIH1F = 256       # rows 256:258 used (Din=2)
_OFF_WIH1B = 272       # rows 272:274 used
_LSTM_ROWS = 288

# --- head/attention weight slab (f32, lane width 192): row offsets ----------
_OFF_WQKV = 0          # (64, 192)  [Wq | Wk | Wv]
_OFF_WO = 64           # (64, 64)
_OFF_WDET = 128        # (7, 64)
_OFF_WC = 136          # (128, 128)
_OFF_W2 = 264          # (128, 64)
_OFF_W3 = 392          # (64, 32)
_OFF_W4U = 456         # (32, 14)   [W_fc4 | W_uncertainty]
_HEAD_ROWS = 488
_HEAD_COLS = 192

# --- bias slab (f32, lane width 256): one bias vector per row ----------------
(_BR_B1, _BR_B2, _BR_QKV, _BR_O, _BR_DET, _BR_C,
 _BR_F2, _BR_F3, _BR_F4U) = range(9)
_BIAS_ROWS = 9
_BIAS_COLS = 256


# -----------------------------------------------------------------------------
# In-kernel helper: one bidirectional LSTM layer, both directions fused.
# Gate-column layout over 8H=256 lanes: [i_f i_b | f_f f_b | g_f g_b | o_f o_b]
# so every 2H gate slice lines up with the fused [h_f|h_b] / [c_f|c_b] state.
# -----------------------------------------------------------------------------
def _bidir_lstm_layer(xp_f, xp_b, whh_bf16, out_ref, T, B):
    # xp_f / xp_b : (B, T, 8H) f32 hoisted input projections (fwd/bwd gate
    #               columns; combined bias already folded into xp_f).
    # whh_bf16    : (2H, 8H) bf16 combined hidden->gate matrix.
    # out_ref     : (B, T, 2H) VMEM scratch; written time-aligned [h_fwd|h_bwd].
    H = HIDDEN
    G = 2 * H
    hcat = jnp.zeros((B, G), jnp.float32)
    ccat = jnp.zeros((B, G), jnp.float32)
    for s in range(T):                     # fully unrolled, static indices only
        # bf16 MXU operands on the serial critical path; f32 accumulate.
        rec = jnp.dot(hcat.astype(jnp.bfloat16), whh_bf16,
                      preferred_element_type=jnp.float32)          # (B, 8H)
        gates = xp_f[:, s, :] + xp_b[:, T - 1 - s, :] + rec
        i_g = jax.nn.sigmoid(gates[:, 0 * G:1 * G])
        f_g = jax.nn.sigmoid(gates[:, 1 * G:2 * G])
        g_g = jnp.tanh(gates[:, 2 * G:3 * G])
        o_g = jax.nn.sigmoid(gates[:, 3 * G:4 * G])
        ccat = f_g * ccat + i_g * g_g
        hcat = o_g * jnp.tanh(ccat)
        # forward hidden belongs to time s; backward hidden to time T-1-s.
        out_ref[:, s:s + 1, 0:H] = hcat[:, 0:H].reshape(B, 1, H)
        out_ref[:, T - 1 - s:T - s, H:G] = hcat[:, H:G].reshape(B, 1, H)


# -----------------------------------------------------------------------------
# Single fused kernel: LSTM x2 -> attention -> MLP head.
# -----------------------------------------------------------------------------
def _fused_kernel(x_ref, det_ref, wlstm_ref, whead_ref, bias_ref,
                  au_ref, attnw_ref, out1_ref, xatt_ref):
    B = x_ref.shape[0]
    T = x_ref.shape[1]
    H = HIDDEN
    G = 2 * H
    D = ATTN_DIM
    hd = D // NUM_HEADS
    f32 = jnp.float32
    bf16 = jnp.bfloat16

    # ---- static slices of the packed weight / bias slabs --------------------
    whh1 = wlstm_ref[_OFF_WHH1:_OFF_WHH1 + G, :]
    whh2 = wlstm_ref[_OFF_WHH2:_OFF_WHH2 + G, :]
    wih2_f = wlstm_ref[_OFF_WIH2F:_OFF_WIH2F + G, :]
    wih2_b = wlstm_ref[_OFF_WIH2B:_OFF_WIH2B + G, :]
    wih1_f = wlstm_ref[_OFF_WIH1F:_OFF_WIH1F + 2, :]
    wih1_b = wlstm_ref[_OFF_WIH1B:_OFF_WIH1B + 2, :]

    b1 = bias_ref[_BR_B1:_BR_B1 + 1, 0:G8]
    b2 = bias_ref[_BR_B2:_BR_B2 + 1, 0:G8]

    # ---- LSTM layer 1 (bidirectional, directions fused) ---------------------
    x_flat = x_ref[...].reshape(B * T, 2).astype(bf16)        # rows = b*T + t
    xp1_f = (jnp.dot(x_flat, wih1_f, preferred_element_type=f32)
             + b1).reshape(B, T, G8)
    xp1_b = jnp.dot(x_flat, wih1_b,
                    preferred_element_type=f32).reshape(B, T, G8)
    _bidir_lstm_layer(xp1_f, xp1_b, whh1, out1_ref, T, B)

    # ---- LSTM layer 2 --------------------------------------------------------
    out1_flat = out1_ref[...].reshape(B * T, G).astype(bf16)
    xp2_f = (jnp.dot(out1_flat, wih2_f, preferred_element_type=f32)
             + b2).reshape(B, T, G8)
    xp2_b = jnp.dot(out1_flat, wih2_b,
                    preferred_element_type=f32).reshape(B, T, G8)
    _bidir_lstm_layer(xp2_f, xp2_b, whh2, xatt_ref, T, B)

    # ---- multi-head attention (8 heads over D=64) ----------------------------
    wqkv = whead_ref[_OFF_WQKV:_OFF_WQKV + D, 0:3 * D]
    wo = whead_ref[_OFF_WO:_OFF_WO + D, 0:D]
    bqkv = bias_ref[_BR_QKV:_BR_QKV + 1, 0:3 * D]
    bo = bias_ref[_BR_O:_BR_O + 1, 0:D]

    xf = xatt_ref[...].reshape(B * T, D)                       # (B*T, 64) f32
    qkv = jnp.dot(xf, wqkv, preferred_element_type=f32) + bqkv  # fused QKV
    q = qkv[:, 0:D].reshape(B, T, D)
    k = qkv[:, D:2 * D].reshape(B, T, D)
    v = qkv[:, 2 * D:3 * D].reshape(B, T, D)

    scale = 1.0 / (D ** 0.5)   # spec: scores / input_dim ** 0.5 (torch ref)
    out_acc = jnp.zeros((B * T, D), f32)
    for h in range(NUM_HEADS):                  # static unrolled head loop
        sl = slice(h * hd, (h + 1) * hd)
        s = jnp.einsum('bqd,bkd->bqk', q[:, :, sl], k[:, :, sl],
                       preferred_element_type=f32) * scale
        s = s - jnp.max(s, axis=-1, keepdims=True)
        e = jnp.exp(s)
        w = e / jnp.sum(e, axis=-1, keepdims=True)             # (B, T, T)
        # direct per-head store: nothing stays live past this iteration
        attnw_ref[:, h:h + 1, :, :] = w.reshape(B, 1, T, T)
        wsum = jnp.einsum('bqk,bkd->bqd', w, v[:, :, sl],
                          preferred_element_type=f32)
        # concat(head_outs) @ Wo == sum_h head_out_h @ Wo[h*hd:(h+1)*hd, :]
        out_acc = out_acc + jnp.dot(wsum.reshape(B * T, hd), wo[sl, :],
                                    preferred_element_type=f32)
    attn_out = (out_acc + bo).reshape(B, T, D)

    # ---- head: fcDetect + global average pool + fc stack ---------------------
    wdet = whead_ref[_OFF_WDET:_OFF_WDET + N_CLASSES, 0:64]
    wc_x = whead_ref[_OFF_WC:_OFF_WC + 64, 0:128]
    wc_d = whead_ref[_OFF_WC + 64:_OFF_WC + 128, 0:128]
    w2 = whead_ref[_OFF_W2:_OFF_W2 + 128, 0:64]
    w3 = whead_ref[_OFF_W3:_OFF_W3 + 64, 0:32]
    w4u = whead_ref[_OFF_W4U:_OFF_W4U + 32, 0:2 * N_CLASSES]

    bdet = bias_ref[_BR_DET:_BR_DET + 1, 0:64]
    bc = bias_ref[_BR_C:_BR_C + 1, 0:128]
    bf2 = bias_ref[_BR_F2:_BR_F2 + 1, 0:64]
    bf3 = bias_ref[_BR_F3:_BR_F3 + 1, 0:32]
    bf4u = bias_ref[_BR_F4U:_BR_F4U + 1, 0:2 * N_CLASSES]

    x_pool = jnp.mean(attn_out, axis=1)                         # (B, 64)
    det_feat = jnp.maximum(
        jnp.dot(det_ref[...], wdet, preferred_element_type=f32) + bdet, 0.0)

    # concat([x_pool, det_feat]) @ Wc  ==  x_pool @ Wc[:64] + det_feat @ Wc[64:]
    c = jnp.maximum(jnp.dot(x_pool, wc_x, preferred_element_type=f32)
                    + jnp.dot(det_feat, wc_d, preferred_element_type=f32)
                    + bc, 0.0)                                   # (B, 128)
    # nn.Dropout(0.5) -> identity (inference mode)
    c = jnp.maximum(jnp.dot(c, w2, preferred_element_type=f32) + bf2, 0.0)
    c = jnp.maximum(jnp.dot(c, w3, preferred_element_type=f32) + bf3, 0.0)

    # fc4 and fc_uncertainty fused into one (B,32)@(32,14) matmul.
    au = jnp.dot(c, w4u, preferred_element_type=f32) + bf4u      # (B, 14)
    logits = au[:, 0:N_CLASSES]
    m = jnp.max(logits, axis=-1, keepdims=True)
    e = jnp.exp(logits - m)
    au_ref[:, 0:N_CLASSES] = e / jnp.sum(e, axis=-1, keepdims=True)
    u = au[:, N_CLASSES:2 * N_CLASSES]
    # softplus(u) = max(u,0) + log(1 + exp(-|u|))   (stable)
    au_ref[:, N_CLASSES:2 * N_CLASSES] = (
        jnp.maximum(u, 0.0) + jnp.log(1.0 + jnp.exp(-jnp.abs(u))))


# -----------------------------------------------------------------------------
# Full forward: one pallas_call, 5 operands (x, detection, 3 weight slabs).
# -----------------------------------------------------------------------------
def abundance_forward(params, x, detection):
    # x: (B, T, 2) float32, detection: (B, 7) float32
    B, T, _ = x.shape
    au, attn_w = pl.pallas_call(
        _fused_kernel,
        out_shape=(jax.ShapeDtypeStruct((B, 2 * N_CLASSES), jnp.float32),
                   jax.ShapeDtypeStruct((B, NUM_HEADS, T, T), jnp.float32)),
        in_specs=[_VMEM] * 5,
        out_specs=(_VMEM, _VMEM),
        scratch_shapes=[pltpu.VMEM((B, T, 2 * HIDDEN), jnp.float32),   # layer-1 out
                        pltpu.VMEM((B, T, 2 * HIDDEN), jnp.float32)],  # layer-2 out
    )(x, detection, params['w_lstm'], params['w_head'], params['bias'])
    abundances = au[:, :N_CLASSES]
    uncertainties = au[:, N_CLASSES:]
    return abundances, uncertainties, attn_w


# -----------------------------------------------------------------------------
# Weight preparation (done once at init, outside the kernel).
# PyTorch layout: weight_ih (4H, Din), weight_hh (4H, H), gate order i,f,g,o.
# -----------------------------------------------------------------------------
def _pack_lstm_layer(wih_f, whh_f, bih_f, bhh_f, wih_b, whh_b, bih_b, bhh_b):
    H = HIDDEN
    din = wih_f.shape[1]
    whh_c = jnp.zeros((2 * H, 8 * H), jnp.float32)
    wihf_c = jnp.zeros((din, 8 * H), jnp.float32)   # fwd cols filled, bwd zero
    wihb_c = jnp.zeros((din, 8 * H), jnp.float32)   # bwd cols filled, fwd zero
    b_c = jnp.zeros((8 * H,), jnp.float32)
    bf = bih_f + bhh_f
    bb = bih_b + bhh_b
    for gate in range(4):
        rows = slice(gate * H, (gate + 1) * H)
        cf = slice(gate * 2 * H, gate * 2 * H + H)          # forward columns
        cb = slice(gate * 2 * H + H, (gate + 1) * 2 * H)    # backward columns
        wihf_c = wihf_c.at[:, cf].set(wih_f[rows, :].T)
        wihb_c = wihb_c.at[:, cb].set(wih_b[rows, :].T)
        whh_c = whh_c.at[0:H, cf].set(whh_f[rows, :].T)
        whh_c = whh_c.at[H:2 * H, cb].set(whh_b[rows, :].T)
        b_c = b_c.at[cf].set(bf[rows])
        b_c = b_c.at[cb].set(bb[rows])
    return wihf_c, wihb_c, whh_c, b_c


# -----------------------------------------------------------------------------
# Deterministic parameter init (PyTorch-default uniform bounds), packed into
# the three kernel slabs.
# -----------------------------------------------------------------------------
def init_params(seed=0):
    keys = iter(jax.random.split(jax.random.PRNGKey(seed), 64))

    def uniform(shape, bound):
        return jax.random.uniform(next(keys), shape, jnp.float32, -bound, bound)

    def linear_t(in_f, out_f):
        bound = 1.0 / math.sqrt(in_f)
        return uniform((out_f, in_f), bound).T, uniform((out_f,), bound)

    lb = 1.0 / math.sqrt(HIDDEN)
    packed = []
    for layer in range(NUM_LAYERS):
        din = 2 if layer == 0 else 2 * HIDDEN
        raw = []
        for _ in range(2):   # forward, backward (PyTorch gate order i,f,g,o)
            raw.append((uniform((4 * HIDDEN, din), lb),
                        uniform((4 * HIDDEN, HIDDEN), lb),
                        uniform((4 * HIDDEN,), lb),
                        uniform((4 * HIDDEN,), lb)))
        packed.append(_pack_lstm_layer(*raw[0], *raw[1]))
    (wih1f, wih1b, whh1, b1), (wih2f, wih2b, whh2, b2) = packed

    # ----- bf16 LSTM weight slab ------------------------------------------------
    w_lstm = jnp.zeros((_LSTM_ROWS, G8), jnp.float32)
    w_lstm = w_lstm.at[_OFF_WHH1:_OFF_WHH1 + 2 * HIDDEN].set(whh1)
    w_lstm = w_lstm.at[_OFF_WHH2:_OFF_WHH2 + 2 * HIDDEN].set(whh2)
    w_lstm = w_lstm.at[_OFF_WIH2F:_OFF_WIH2F + 2 * HIDDEN].set(wih2f)
    w_lstm = w_lstm.at[_OFF_WIH2B:_OFF_WIH2B + 2 * HIDDEN].set(wih2b)
    w_lstm = w_lstm.at[_OFF_WIH1F:_OFF_WIH1F + 2].set(wih1f)
    w_lstm = w_lstm.at[_OFF_WIH1B:_OFF_WIH1B + 2].set(wih1b)
    w_lstm = w_lstm.astype(jnp.bfloat16)

    # ----- attention / head weights --------------------------------------------
    wq, bq = linear_t(ATTN_DIM, ATTN_DIM)
    wk, bk = linear_t(ATTN_DIM, ATTN_DIM)
    wv, bv = linear_t(ATTN_DIM, ATTN_DIM)
    wo, bo = linear_t(ATTN_DIM, ATTN_DIM)
    wqkv = jnp.concatenate([wq, wk, wv], axis=1)         # (64, 192)
    bqkv = jnp.concatenate([bq, bk, bv], axis=0)         # (192,)

    wdet, bdet = linear_t(7, 64)
    wc, bc = linear_t(128, 128)
    w2, b2h = linear_t(128, 64)
    w3, b3 = linear_t(64, 32)
    w4, b4 = linear_t(32, 7)
    wu, bu = linear_t(32, 7)
    w4u = jnp.concatenate([w4, wu], axis=1)              # (32, 14)
    b4u = jnp.concatenate([b4, bu], axis=0)              # (14,)

    w_head = jnp.zeros((_HEAD_ROWS, _HEAD_COLS), jnp.float32)

    def put(slab, off, w):
        r, c = w.shape
        return slab.at[off:off + r, 0:c].set(w)

    w_head = put(w_head, _OFF_WQKV, wqkv)
    w_head = put(w_head, _OFF_WO, wo)
    w_head = put(w_head, _OFF_WDET, wdet)
    w_head = put(w_head, _OFF_WC, wc)
    w_head = put(w_head, _OFF_W2, w2)
    w_head = put(w_head, _OFF_W3, w3)
    w_head = put(w_head, _OFF_W4U, w4u)

    # ----- bias slab -------------------------------------------------------------
    bias = jnp.zeros((_BIAS_ROWS, _BIAS_COLS), jnp.float32)

    def putb(slab, row, b):
        return slab.at[row, 0:b.shape[0]].set(b)

    bias = putb(bias, _BR_B1, b1)
    bias = putb(bias, _BR_B2, b2)
    bias = putb(bias, _BR_QKV, bqkv)
    bias = putb(bias, _BR_O, bo)
    bias = putb(bias, _BR_DET, bdet)
    bias = putb(bias, _BR_C, bc)
    bias = putb(bias, _BR_F2, b2h)
    bias = putb(bias, _BR_F3, b3)
    bias = putb(bias, _BR_F4U, b4u)

    return {'w_lstm': w_lstm, 'w_head': w_head, 'bias': bias}


if __name__ == "__main__":
    B, T = 2, 8
    params = init_params(0)

    kx, kd = jax.random.split(jax.random.PRNGKey(0), 2)
    x = jax.random.normal(kx, (B, T, 2), jnp.float32)
    detection = jax.random.normal(kd, (B, N_CLASSES), jnp.float32)

    fwd = jax.jit(abundance_forward)
    abundances, uncertainties, attn_w = fwd(params, x, detection)
    jax.block_until_ready((abundances, uncertainties, attn_w))

    assert abundances.shape == (B, N_CLASSES)
    assert uncertainties.shape == (B, N_CLASSES)
    assert attn_w.shape == (B, NUM_HEADS, T, T)
    assert bool(jnp.all(jnp.isfinite(abundances)))
    assert bool(jnp.all(jnp.isfinite(uncertainties)))
    assert bool(jnp.all(jnp.isfinite(attn_w)))
    # softmax rows sum to 1
    assert bool(jnp.allclose(jnp.sum(abundances, axis=1), 1.0, atol=1e-5))
    assert bool(jnp.allclose(jnp.sum(attn_w, axis=-1), 1.0, atol=1e-5))
    # uncertainties are softplus outputs -> non-negative
    assert bool(jnp.all(uncertainties >= 0.0))

    print("KERNEL_OK")
</pallas_src>

<mosaic_0001>
module attributes {stable_mosaic.version = 11 : i64} {
  func.func @_fused_kernel(%arg0: memref<2x8x2xf32, #tpu.memory_space<vmem>>, %arg1: memref<2x7xf32, #tpu.memory_space<vmem>>, %arg2: memref<288x256xbf16, #tpu.memory_space<vmem>>, %arg3: memref<488x192xf32, #tpu.memory_space<vmem>>, %arg4: memref<9x256xf32, #tpu.memory_space<vmem>>, %arg5: memref<2x14xf32, #tpu.memory_space<vmem>>, %arg6: memref<2x8x8x8xf32, #tpu.memory_space<vmem>>, %arg7: memref<2x8x64xf32, #tpu.memory_space<vmem>>, %arg8: memref<2x8x64xf32, #tpu.memory_space<vmem>>) attributes {dimension_semantics = [], scalar_prefetch = 0 : i64, scratch_operands = 2 : i64, tpu.core_type = #tpu.core_type<tc>} {
    %c0 = arith.constant 0 : index
    %c0_0 = arith.constant 0 : index
    %0 = vector.load %arg2[%c0, %c0_0] : memref<288x256xbf16, #tpu.memory_space<vmem>>, vector<64x256xbf16>
    %c64 = arith.constant 64 : index
    %c0_1 = arith.constant 0 : index
    %1 = vector.load %arg2[%c64, %c0_1] : memref<288x256xbf16, #tpu.memory_space<vmem>>, vector<64x256xbf16>
    %c128 = arith.constant 128 : index
    %c0_2 = arith.constant 0 : index
    %2 = vector.load %arg2[%c128, %c0_2] : memref<288x256xbf16, #tpu.memory_space<vmem>>, vector<64x256xbf16>
    %c192 = arith.constant 192 : index
    %c0_3 = arith.constant 0 : index
    %3 = vector.load %arg2[%c192, %c0_3] : memref<288x256xbf16, #tpu.memory_space<vmem>>, vector<64x256xbf16>
    %c256 = arith.constant 256 : index
    %c0_4 = arith.constant 0 : index
    %4 = vector.load %arg2[%c256, %c0_4] : memref<288x256xbf16, #tpu.memory_space<vmem>>, vector<2x256xbf16>
    %c272 = arith.constant 272 : index
    %c0_5 = arith.constant 0 : index
    %5 = vector.load %arg2[%c272, %c0_5] : memref<288x256xbf16, #tpu.memory_space<vmem>>, vector<2x256xbf16>
    %c0_6 = arith.constant 0 : index
    %c0_7 = arith.constant 0 : index
    %6 = vector.load %arg4[%c0_6, %c0_7] : memref<9x256xf32, #tpu.memory_space<vmem>>, vector<1x256xf32>
    %c1 = arith.constant 1 : index
    %c0_8 = arith.constant 0 : index
    %7 = vector.load %arg4[%c1, %c0_8] : memref<9x256xf32, #tpu.memory_space<vmem>>, vector<1x256xf32>
    %c0_9 = arith.constant 0 : index
    %c0_10 = arith.constant 0 : index
    %c0_11 = arith.constant 0 : index
    %8 = vector.load %arg0[%c0_9, %c0_10, %c0_11] : memref<2x8x2xf32, #tpu.memory_space<vmem>>, vector<2x8x2xf32>
    %9 = vector.shape_cast %8 : vector<2x8x2xf32> to vector<16x2xf32>
    %10 = arith.truncf %9 : vector<16x2xf32> to vector<16x2xbf16>
    %cst = arith.constant dense<0.000000e+00> : vector<16x256xf32>
    %11 = tpu.matmul %10, %4, %cst {dimension_numbers = #tpu.dot_dimension_numbers<[1], [0], [0], [1], [0, 0, 1, 1], [], []>} : vector<16x2xbf16>, vector<2x256xbf16>, vector<16x256xf32> -> vector<16x256xf32>
    %12 = vector.broadcast %6 : vector<1x256xf32> to vector<16x256xf32>
    %13 = arith.addf %11, %12 : vector<16x256xf32>
    %14 = vector.shape_cast %13 : vector<16x256xf32> to vector<2x8x256xf32>
    %cst_12 = arith.constant dense<0.000000e+00> : vector<16x256xf32>
    %15 = tpu.matmul %10, %5, %cst_12 {dimension_numbers = #tpu.dot_dimension_numbers<[1], [0], [0], [1], [0, 0, 1, 1], [], []>} : vector<16x2xbf16>, vector<2x256xbf16>, vector<16x256xf32> -> vector<16x256xf32>
    %16 = vector.shape_cast %15 : vector<16x256xf32> to vector<2x8x256xf32>
    %cst_13 = arith.constant 0.000000e+00 : f32
    %17 = vector.broadcast %cst_13 : f32 to vector<2x64xf32>
    %cst_14 = arith.constant 0.000000e+00 : f32
    %18 = vector.broadcast %cst_14 : f32 to vector<2x64xf32>
    %19 = arith.truncf %17 : vector<2x64xf32> to vector<2x64xbf16>
    %cst_15 = arith.constant dense<0.000000e+00> : vector<2x256xf32>
    %20 = tpu.matmul %19, %0, %cst_15 {dimension_numbers = #tpu.dot_dimension_numbers<[1], [0], [0], [1], [0, 0, 1, 1], [], []>} : vector<2x64xbf16>, vector<64x256xbf16>, vector<2x256xf32> -> vector<2x256xf32>
    %21 = vector.extract_strided_slice %14 {offsets = [0, 0, 0], sizes = [2, 1, 256], strides = [1, 1, 1]} : vector<2x8x256xf32> to vector<2x1x256xf32>
    %22 = vector.shape_cast %21 : vector<2x1x256xf32> to vector<2x256xf32>
    %23 = vector.extract_strided_slice %16 {offsets = [0, 7, 0], sizes = [2, 1, 256], strides = [1, 1, 1]} : vector<2x8x256xf32> to vector<2x1x256xf32>
    %24 = vector.shape_cast %23 : vector<2x1x256xf32> to vector<2x256xf32>
    %25 = arith.addf %22, %24 : vector<2x256xf32>
    %26 = arith.addf %25, %20 : vector<2x256xf32>
    %27 = vector.extract_strided_slice %26 {offsets = [0, 0], sizes = [2, 64], strides = [1, 1]} : vector<2x256xf32> to vector<2x64xf32>
    %28 = arith.negf %27 : vector<2x64xf32>
    %29 = math.exp %28 : vector<2x64xf32>
    %cst_16 = arith.constant 1.000000e+00 : f32
    %30 = vector.broadcast %cst_16 : f32 to vector<2x64xf32>
    %31 = arith.addf %30, %29 : vector<2x64xf32>
    %32 = arith.divf %30, %31 : vector<2x64xf32>
    %33 = vector.extract_strided_slice %26 {offsets = [0, 64], sizes = [2, 64], strides = [1, 1]} : vector<2x256xf32> to vector<2x64xf32>
    %34 = arith.negf %33 : vector<2x64xf32>
    %35 = math.exp %34 : vector<2x64xf32>
    %cst_17 = arith.constant 1.000000e+00 : f32
    %36 = vector.broadcast %cst_17 : f32 to vector<2x64xf32>
    %37 = arith.addf %36, %35 : vector<2x64xf32>
    %38 = arith.divf %36, %37 : vector<2x64xf32>
    %39 = vector.extract_strided_slice %26 {offsets = [0, 128], sizes = [2, 64], strides = [1, 1]} : vector<2x256xf32> to vector<2x64xf32>
    %40 = math.tanh %39 : vector<2x64xf32>
    %41 = vector.extract_strided_slice %26 {offsets = [0, 192], sizes = [2, 64], strides = [1, 1]} : vector<2x256xf32> to vector<2x64xf32>
    %42 = arith.negf %41 : vector<2x64xf32>
    %43 = math.exp %42 : vector<2x64xf32>
    %cst_18 = arith.constant 1.000000e+00 : f32
    %44 = vector.broadcast %cst_18 : f32 to vector<2x64xf32>
    %45 = arith.addf %44, %43 : vector<2x64xf32>
    %46 = arith.divf %44, %45 : vector<2x64xf32>
    %47 = arith.mulf %38, %18 : vector<2x64xf32>
    %48 = arith.mulf %32, %40 : vector<2x64xf32>
    %49 = arith.addf %47, %48 : vector<2x64xf32>
    %50 = math.tanh %49 : vector<2x64xf32>
    %51 = arith.mulf %46, %50 : vector<2x64xf32>
    %52 = vector.extract_strided_slice %51 {offsets = [0, 0], sizes = [2, 32], strides = [1, 1]} : vector<2x64xf32> to vector<2x32xf32>
    %53 = vector.shape_cast %52 : vector<2x32xf32> to vector<2x1x32xf32>
    %c0_19 = arith.constant 0 : index
    %c0_20 = arith.constant 0 : index
    %c0_21 = arith.constant 0 : index
    %54 = vector.load %arg7[%c0_19, %c0_20, %c0_21] : memref<2x8x64xf32, #tpu.memory_space<vmem>>, vector<2x1x32xf32>
    tpu.vector_store %arg7[%c0_19, %c0_20, %c0_21], %53 {strides = array<i32>} : memref<2x8x64xf32, #tpu.memory_space<vmem>>, vector<2x1x32xf32>,
    %55 = vector.extract_strided_slice %51 {offsets = [0, 32], sizes = [2, 32], strides = [1, 1]} : vector<2x64xf32> to vector<2x32xf32>
    %56 = vector.shape_cast %55 : vector<2x32xf32> to vector<2x1x32xf32>
    %c0_22 = arith.constant 0 : index
    %c7 = arith.constant 7 : index
    %c32 = arith.constant 32 : index
    %57 = vector.load %arg7[%c0_22, %c7, %c32] : memref<2x8x64xf32, #tpu.memory_space<vmem>>, vector<2x1x32xf32>
    tpu.vector_store %arg7[%c0_22, %c7, %c32], %56 {strides = array<i32>} : memref<2x8x64xf32, #tpu.memory_space<vmem>>, vector<2x1x32xf32>,
    %58 = arith.truncf %51 : vector<2x64xf32> to vector<2x64xbf16>
    %cst_23 = arith.constant dense<0.000000e+00> : vector<2x256xf32>
    %59 = tpu.matmul %58, %0, %cst_23 {dimension_numbers = #tpu.dot_dimension_numbers<[1], [0], [0], [1], [0, 0, 1, 1], [], []>} : vector<2x64xbf16>, vector<64x256xbf16>, vector<2x256xf32> -> vector<2x256xf32>
    %60 = vector.extract_strided_slice %14 {offsets = [0, 1, 0], sizes = [2, 1, 256], strides = [1, 1, 1]} : vector<2x8x256xf32> to vector<2x1x256xf32>
    %61 = vector.shape_cast %60 : vector<2x1x256xf32> to vector<2x256xf32>
    %62 = vector.extract_strided_slice %16 {offsets = [0, 6, 0], sizes = [2, 1, 256], strides = [1, 1, 1]} : vector<2x8x256xf32> to vector<2x1x256xf32>
    %63 = vector.shape_cast %62 : vector<2x1x256xf32> to vector<2x256xf32>
    %64 = arith.addf %61, %63 : vector<2x256xf32>
    %65 = arith.addf %64, %59 : vector<2x256xf32>
    %66 = vector.extract_strided_slice %65 {offsets = [0, 0], sizes = [2, 64], strides = [1, 1]} : vector<2x256xf32> to vector<2x64xf32>
    %67 = arith.negf %66 : vector<2x64xf32>
    %68 = math.exp %67 : vector<2x64xf32>
    %cst_24 = arith.constant 1.000000e+00 : f32
    %69 = vector.broadcast %cst_24 : f32 to vector<2x64xf32>
    %70 = arith.addf %69, %68 : vector<2x64xf32>
    %71 = arith.divf %69, %70 : vector<2x64xf32>
    %72 = vector.extract_strided_slice %65 {offsets = [0, 64], sizes = [2, 64], strides = [1, 1]} : vector<2x256xf32> to vector<2x64xf32>
    %73 = arith.negf %72 : vector<2x64xf32>
    %74 = math.exp %73 : vector<2x64xf32>
    %cst_25 = arith.constant 1.000000e+00 : f32
    %75 = vector.broadcast %cst_25 : f32 to vector<2x64xf32>
    %76 = arith.addf %75, %74 : vector<2x64xf32>
    %77 = arith.divf %75, %76 : vector<2x64xf32>
    %78 = vector.extract_strided_slice %65 {offsets = [0, 128], sizes = [2, 64], strides = [1, 1]} : vector<2x256xf32> to vector<2x64xf32>
    %79 = math.tanh %78 : vector<2x64xf32>
    %80 = vector.extract_strided_slice %65 {offsets = [0, 192], sizes = [2, 64], strides = [1, 1]} : vector<2x256xf32> to vector<2x64xf32>
    %81 = arith.negf %80 : vector<2x64xf32>
    %82 = math.exp %81 : vector<2x64xf32>
    %cst_26 = arith.constant 1.000000e+00 : f32
    %83 = vector.broadcast %cst_26 : f32 to vector<2x64xf32>
    %84 = arith.addf %83, %82 : vector<2x64xf32>
    %85 = arith.divf %83, %84 : vector<2x64xf32>
    %86 = arith.mulf %77, %49 : vector<2x64xf32>
    %87 = arith.mulf %71, %79 : vector<2x64xf32>
    %88 = arith.addf %86, %87 : vector<2x64xf32>
    %89 = math.tanh %88 : vector<2x64xf32>
    %90 = arith.mulf %85, %89 : vector<2x64xf32>
    %91 = vector.extract_strided_slice %90 {offsets = [0, 0], sizes = [2, 32], strides = [1, 1]} : vector<2x64xf32> to vector<2x32xf32>
    %92 = vector.shape_cast %91 : vector<2x32xf32> to vector<2x1x32xf32>
    %c0_27 = arith.constant 0 : index
    %c1_28 = arith.constant 1 : index
    %c0_29 = arith.constant 0 : index
    %93 = vector.load %arg7[%c0_27, %c1_28, %c0_29] : memref<2x8x64xf32, #tpu.memory_space<vmem>>, vector<2x1x32xf32>
    tpu.vector_store %arg7[%c0_27, %c1_28, %c0_29], %92 {strides = array<i32>} : memref<2x8x64xf32, #tpu.memory_space<vmem>>, vector<2x1x32xf32>,
    %94 = vector.extract_strided_slice %90 {offsets = [0, 32], sizes = [2, 32], strides = [1, 1]} : vector<2x64xf32> to vector<2x32xf32>
    %95 = vector.shape_cast %94 : vector<2x32xf32> to vector<2x1x32xf32>
    %c0_30 = arith.constant 0 : index
    %c6 = arith.constant 6 : index
    %c32_31 = arith.constant 32 : index
    %96 = vector.load %arg7[%c0_30, %c6, %c32_31] : memref<2x8x64xf32, #tpu.memory_space<vmem>>, vector<2x1x32xf32>
    tpu.vector_store %arg7[%c0_30, %c6, %c32_31], %95 {strides = array<i32>} : memref<2x8x64xf32, #tpu.memory_space<vmem>>, vector<2x1x32xf32>,
    %97 = arith.truncf %90 : vector<2x64xf32> to vector<2x64xbf16>
    %cst_32 = arith.constant dense<0.000000e+00> : vector<2x256xf32>
    %98 = tpu.matmul %97, %0, %cst_32 {dimension_numbers = #tpu.dot_dimension_numbers<[1], [0], [0], [1], [0, 0, 1, 1], [], []>} : vector<2x64xbf16>, vector<64x256xbf16>, vector<2x256xf32> -> vector<2x256xf32>
    %99 = vector.extract_strided_slice %14 {offsets = [0, 2, 0], sizes = [2, 1, 256], strides = [1, 1, 1]} : vector<2x8x256xf32> to vector<2x1x256xf32>
    %100 = vector.shape_cast %99 : vector<2x1x256xf32> to vector<2x256xf32>
    %101 = vector.extract_strided_slice %16 {offsets = [0, 5, 0], sizes = [2, 1, 256], strides = [1, 1, 1]} : vector<2x8x256xf32> to vector<2x1x256xf32>
    %102 = vector.shape_cast %101 : vector<2x1x256xf32> to vector<2x256xf32>
    %103 = arith.addf %100, %102 : vector<2x256xf32>
    %104 = arith.addf %103, %98 : vector<2x256xf32>
    %105 = vector.extract_strided_slice %104 {offsets = [0, 0], sizes = [2, 64], strides = [1, 1]} : vector<2x256xf32> to vector<2x64xf32>
    %106 = arith.negf %105 : vector<2x64xf32>
    %107 = math.exp %106 : vector<2x64xf32>
    %cst_33 = arith.constant 1.000000e+00 : f32
    %108 = vector.broadcast %cst_33 : f32 to vector<2x64xf32>
    %109 = arith.addf %108, %107 : vector<2x64xf32>
    %110 = arith.divf %108, %109 : vector<2x64xf32>
    %111 = vector.extract_strided_slice %104 {offsets = [0, 64], sizes = [2, 64], strides = [1, 1]} : vector<2x256xf32> to vector<2x64xf32>
    %112 = arith.negf %111 : vector<2x64xf32>
    %113 = math.exp %112 : vector<2x64xf32>
    %cst_34 = arith.constant 1.000000e+00 : f32
    %114 = vector.broadcast %cst_34 : f32 to vector<2x64xf32>
    %115 = arith.addf %114, %113 : vector<2x64xf32>
    %116 = arith.divf %114, %115 : vector<2x64xf32>
    %117 = vector.extract_strided_slice %104 {offsets = [0, 128], sizes = [2, 64], strides = [1, 1]} : vector<2x256xf32> to vector<2x64xf32>
    %118 = math.tanh %117 : vector<2x64xf32>
    %119 = vector.extract_strided_slice %104 {offsets = [0, 192], sizes = [2, 64], strides = [1, 1]} : vector<2x256xf32> to vector<2x64xf32>
    %120 = arith.negf %119 : vector<2x64xf32>
    %121 = math.exp %120 : vector<2x64xf32>
    %cst_35 = arith.constant 1.000000e+00 : f32
    %122 = vector.broadcast %cst_35 : f32 to vector<2x64xf32>
    %123 = arith.addf %122, %121 : vector<2x64xf32>
    %124 = arith.divf %122, %123 : vector<2x64xf32>
    %125 = arith.mulf %116, %88 : vector<2x64xf32>
    %126 = arith.mulf %110, %118 : vector<2x64xf32>
    %127 = arith.addf %125, %126 : vector<2x64xf32>
    %128 = math.tanh %127 : vector<2x64xf32>
    %129 = arith.mulf %124, %128 : vector<2x64xf32>
    %130 = vector.extract_strided_slice %129 {offsets = [0, 0], sizes = [2, 32], strides = [1, 1]} : vector<2x64xf32> to vector<2x32xf32>
    %131 = vector.shape_cast %130 : vector<2x32xf32> to vector<2x1x32xf32>
    %c0_36 = arith.constant 0 : index
    %c2 = arith.constant 2 : index
    %c0_37 = arith.constant 0 : index
    %132 = vector.load %arg7[%c0_36, %c2, %c0_37] : memref<2x8x64xf32, #tpu.memory_space<vmem>>, vector<2x1x32xf32>
    tpu.vector_store %arg7[%c0_36, %c2, %c0_37], %131 {strides = array<i32>} : memref<2x8x64xf32, #tpu.memory_space<vmem>>, vector<2x1x32xf32>,
    %133 = vector.extract_strided_slice %129 {offsets = [0, 32], sizes = [2, 32], strides = [1, 1]} : vector<2x64xf32> to vector<2x32xf32>
    %134 = vector.shape_cast %133 : vector<2x32xf32> to vector<2x1x32xf32>
    %c0_38 = arith.constant 0 : index
    %c5 = arith.constant 5 : index
    %c32_39 = arith.constant 32 : index
    %135 = vector.load %arg7[%c0_38, %c5, %c32_39] : memref<2x8x64xf32, #tpu.memory_space<vmem>>, vector<2x1x32xf32>
    tpu.vector_store %arg7[%c0_38, %c5, %c32_39], %134 {strides = array<i32>} : memref<2x8x64xf32, #tpu.memory_space<vmem>>, vector<2x1x32xf32>,
    %136 = arith.truncf %129 : vector<2x64xf32> to vector<2x64xbf16>
    %cst_40 = arith.constant dense<0.000000e+00> : vector<2x256xf32>
    %137 = tpu.matmul %136, %0, %cst_40 {dimension_numbers = #tpu.dot_dimension_numbers<[1], [0], [0], [1], [0, 0, 1, 1], [], []>} : vector<2x64xbf16>, vector<64x256xbf16>, vector<2x256xf32> -> vector<2x256xf32>
    %138 = vector.extract_strided_slice %14 {offsets = [0, 3, 0], sizes = [2, 1, 256], strides = [1, 1, 1]} : vector<2x8x256xf32> to vector<2x1x256xf32>
    %139 = vector.shape_cast %138 : vector<2x1x256xf32> to vector<2x256xf32>
    %140 = vector.extract_strided_slice %16 {offsets = [0, 4, 0], sizes = [2, 1, 256], strides = [1, 1, 1]} : vector<2x8x256xf32> to vector<2x1x256xf32>
    %141 = vector.shape_cast %140 : vector<2x1x256xf32> to vector<2x256xf32>
    %142 = arith.addf %139, %141 : vector<2x256xf32>
    %143 = arith.addf %142, %137 : vector<2x256xf32>
    %144 = vector.extract_strided_slice %143 {offsets = [0, 0], sizes = [2, 64], strides = [1, 1]} : vector<2x256xf32> to vector<2x64xf32>
    %145 = arith.negf %144 : vector<2x64xf32>
    %146 = math.exp %145 : vector<2x64xf32>
    %cst_41 = arith.constant 1.000000e+00 : f32
    %147 = vector.broadcast %cst_41 : f32 to vector<2x64xf32>
    %148 = arith.addf %147, %146 : vector<2x64xf32>
    %149 = arith.divf %147, %148 : vector<2x64xf32>
    %150 = vector.extract_strided_slice %143 {offsets = [0, 64], sizes = [2, 64], strides = [1, 1]} : vector<2x256xf32> to vector<2x64xf32>
    %151 = arith.negf %150 : vector<2x64xf32>
    %152 = math.exp %151 : vector<2x64xf32>
    %cst_42 = arith.constant 1.000000e+00 : f32
    %153 = vector.broadcast %cst_42 : f32 to vector<2x64xf32>
    %154 = arith.addf %153, %152 : vector<2x64xf32>
    %155 = arith.divf %153, %154 : vector<2x64xf32>
    %156 = vector.extract_strided_slice %143 {offsets = [0, 128], sizes = [2, 64], strides = [1, 1]} : vector<2x256xf32> to vector<2x64xf32>
    %157 = math.tanh %156 : vector<2x64xf32>
    %158 = vector.extract_strided_slice %143 {offsets = [0, 192], sizes = [2, 64], strides = [1, 1]} : vector<2x256xf32> to vector<2x64xf32>
    %159 = arith.negf %158 : vector<2x64xf32>
    %160 = math.exp %159 : vector<2x64xf32>
    %cst_43 = arith.constant 1.000000e+00 : f32
    %161 = vector.broadcast %cst_43 : f32 to vector<2x64xf32>
    %162 = arith.addf %161, %160 : vector<2x64xf32>
    %163 = arith.divf %161, %162 : vector<2x64xf32>
    %164 = arith.mulf %155, %127 : vector<2x64xf32>
    %165 = arith.mulf %149, %157 : vector<2x64xf32>
    %166 = arith.addf %164, %165 : vector<2x64xf32>
    %167 = math.tanh %166 : vector<2x64xf32>
    %168 = arith.mulf %163, %167 : vector<2x64xf32>
    %169 = vector.extract_strided_slice %168 {offsets = [0, 0], sizes = [2, 32], strides = [1, 1]} : vector<2x64xf32> to vector<2x32xf32>
    %170 = vector.shape_cast %169 : vector<2x32xf32> to vector<2x1x32xf32>
    %c0_44 = arith.constant 0 : index
    %c3 = arith.constant 3 : index
    %c0_45 = arith.constant 0 : index
    %171 = vector.load %arg7[%c0_44, %c3, %c0_45] : memref<2x8x64xf32, #tpu.memory_space<vmem>>, vector<2x1x32xf32>
    tpu.vector_store %arg7[%c0_44, %c3, %c0_45], %170 {strides = array<i32>} : memref<2x8x64xf32, #tpu.memory_space<vmem>>, vector<2x1x32xf32>,
    %172 = vector.extract_strided_slice %168 {offsets = [0, 32], sizes = [2, 32], strides = [1, 1]} : vector<2x64xf32> to vector<2x32xf32>
    %173 = vector.shape_cast %172 : vector<2x32xf32> to vector<2x1x32xf32>
    %c0_46 = arith.constant 0 : index
    %c4 = arith.constant 4 : index
    %c32_47 = arith.constant 32 : index
    %174 = vector.load %arg7[%c0_46, %c4, %c32_47] : memref<2x8x64xf32, #tpu.memory_space<vmem>>, vector<2x1x32xf32>
    tpu.vector_store %arg7[%c0_46, %c4, %c32_47], %173 {strides = array<i32>} : memref<2x8x64xf32, #tpu.memory_space<vmem>>, vector<2x1x32xf32>,
    %175 = arith.truncf %168 : vector<2x64xf32> to vector<2x64xbf16>
    %cst_48 = arith.constant dense<0.000000e+00> : vector<2x256xf32>
    %176 = tpu.matmul %175, %0, %cst_48 {dimension_numbers = #tpu.dot_dimension_numbers<[1], [0], [0], [1], [0, 0, 1, 1], [], []>} : vector<2x64xbf16>, vector<64x256xbf16>, vector<2x256xf32> -> vector<2x256xf32>
    %177 = vector.extract_strided_slice %14 {offsets = [0, 4, 0], sizes = [2, 1, 256], strides = [1, 1, 1]} : vector<2x8x256xf32> to vector<2x1x256xf32>
    %178 = vector.shape_cast %177 : vector<2x1x256xf32> to vector<2x256xf32>
    %179 = vector.extract_strided_slice %16 {offsets = [0, 3, 0], sizes = [2, 1, 256], strides = [1, 1, 1]} : vector<2x8x256xf32> to vector<2x1x256xf32>
    %180 = vector.shape_cast %179 : vector<2x1x256xf32> to vector<2x256xf32>
    %181 = arith.addf %178, %180 : vector<2x256xf32>
    %182 = arith.addf %181, %176 : vector<2x256xf32>
    %183 = vector.extract_strided_slice %182 {offsets = [0, 0], sizes = [2, 64], strides = [1, 1]} : vector<2x256xf32> to vector<2x64xf32>
    %184 = arith.negf %183 : vector<2x64xf32>
    %185 = math.exp %184 : vector<2x64xf32>
    %cst_49 = arith.constant 1.000000e+00 : f32
    %186 = vector.broadcast %cst_49 : f32 to vector<2x64xf32>
    %187 = arith.addf %186, %185 : vector<2x64xf32>
    %188 = arith.divf %186, %187 : vector<2x64xf32>
    %189 = vector.extract_strided_slice %182 {offsets = [0, 64], sizes = [2, 64], strides = [1, 1]} : vector<2x256xf32> to vector<2x64xf32>
    %190 = arith.negf %189 : vector<2x64xf32>
    %191 = math.exp %190 : vector<2x64xf32>
    %cst_50 = arith.constant 1.000000e+00 : f32
    %192 = vector.broadcast %cst_50 : f32 to vector<2x64xf32>
    %193 = arith.addf %192, %191 : vector<2x64xf32>
    %194 = arith.divf %192, %193 : vector<2x64xf32>
    %195 = vector.extract_strided_slice %182 {offsets = [0, 128], sizes = [2, 64], strides = [1, 1]} : vector<2x256xf32> to vector<2x64xf32>
    %196 = math.tanh %195 : vector<2x64xf32>
    %197 = vector.extract_strided_slice %182 {offsets = [0, 192], sizes = [2, 64], strides = [1, 1]} : vector<2x256xf32> to vector<2x64xf32>
    %198 = arith.negf %197 : vector<2x64xf32>
    %199 = math.exp %198 : vector<2x64xf32>
    %cst_51 = arith.constant 1.000000e+00 : f32
    %200 = vector.broadcast %cst_51 : f32 to vector<2x64xf32>
    %201 = arith.addf %200, %199 : vector<2x64xf32>
    %202 = arith.divf %200, %201 : vector<2x64xf32>
    %203 = arith.mulf %194, %166 : vector<2x64xf32>
    %204 = arith.mulf %188, %196 : vector<2x64xf32>
    %205 = arith.addf %203, %204 : vector<2x64xf32>
    %206 = math.tanh %205 : vector<2x64xf32>
    %207 = arith.mulf %202, %206 : vector<2x64xf32>
    %208 = vector.extract_strided_slice %207 {offsets = [0, 0], sizes = [2, 32], strides = [1, 1]} : vector<2x64xf32> to vector<2x32xf32>
    %209 = vector.shape_cast %208 : vector<2x32xf32> to vector<2x1x32xf32>
    %c0_52 = arith.constant 0 : index
    %c4_53 = arith.constant 4 : index
    %c0_54 = arith.constant 0 : index
    %210 = vector.load %arg7[%c0_52, %c4_53, %c0_54] : memref<2x8x64xf32, #tpu.memory_space<vmem>>, vector<2x1x32xf32>
    tpu.vector_store %arg7[%c0_52, %c4_53, %c0_54], %209 {strides = array<i32>} : memref<2x8x64xf32, #tpu.memory_space<vmem>>, vector<2x1x32xf32>,
    %211 = vector.extract_strided_slice %207 {offsets = [0, 32], sizes = [2, 32], strides = [1, 1]} : vector<2x64xf32> to vector<2x32xf32>
    %212 = vector.shape_cast %211 : vector<2x32xf32> to vector<2x1x32xf32>
    %c0_55 = arith.constant 0 : index
    %c3_56 = arith.constant 3 : index
    %c32_57 = arith.constant 32 : index
    %213 = vector.load %arg7[%c0_55, %c3_56, %c32_57] : memref<2x8x64xf32, #tpu.memory_space<vmem>>, vector<2x1x32xf32>
    tpu.vector_store %arg7[%c0_55, %c3_56, %c32_57], %212 {strides = array<i32>} : memref<2x8x64xf32, #tpu.memory_space<vmem>>, vector<2x1x32xf32>,
    %214 = arith.truncf %207 : vector<2x64xf32> to vector<2x64xbf16>
    %cst_58 = arith.constant dense<0.000000e+00> : vector<2x256xf32>
    %215 = tpu.matmul %214, %0, %cst_58 {dimension_numbers = #tpu.dot_dimension_numbers<[1], [0], [0], [1], [0, 0, 1, 1], [], []>} : vector<2x64xbf16>, vector<64x256xbf16>, vector<2x256xf32> -> vector<2x256xf32>
    %216 = vector.extract_strided_slice %14 {offsets = [0, 5, 0], sizes = [2, 1, 256], strides = [1, 1, 1]} : vector<2x8x256xf32> to vector<2x1x256xf32>
    %217 = vector.shape_cast %216 : vector<2x1x256xf32> to vector<2x256xf32>
    %218 = vector.extract_strided_slice %16 {offsets = [0, 2, 0], sizes = [2, 1, 256], strides = [1, 1, 1]} : vector<2x8x256xf32> to vector<2x1x256xf32>
    %219 = vector.shape_cast %218 : vector<2x1x256xf32> to vector<2x256xf32>
    %220 = arith.addf %217, %219 : vector<2x256xf32>
    %221 = arith.addf %220, %215 : vector<2x256xf32>
    %222 = vector.extract_strided_slice %221 {offsets = [0, 0], sizes = [2, 64], strides = [1, 1]} : vector<2x256xf32> to vector<2x64xf32>
    %223 = arith.negf %222 : vector<2x64xf32>
    %224 = math.exp %223 : vector<2x64xf32>
    %cst_59 = arith.constant 1.000000e+00 : f32
    %225 = vector.broadcast %cst_59 : f32 to vector<2x64xf32>
    %226 = arith.addf %225, %224 : vector<2x64xf32>
    %227 = arith.divf %225, %226 : vector<2x64xf32>
    %228 = vector.extract_strided_slice %221 {offsets = [0, 64], sizes = [2, 64], strides = [1, 1]} : vector<2x256xf32> to vector<2x64xf32>
    %229 = arith.negf %228 : vector<2x64xf32>
    %230 = math.exp %229 : vector<2x64xf32>
    %cst_60 = arith.constant 1.000000e+00 : f32
    %231 = vector.broadcast %cst_60 : f32 to vector<2x64xf32>
    %232 = arith.addf %231, %230 : vector<2x64xf32>
    %233 = arith.divf %231, %232 : vector<2x64xf32>
    %234 = vector.extract_strided_slice %221 {offsets = [0, 128], sizes = [2, 64], strides = [1, 1]} : vector<2x256xf32> to vector<2x64xf32>
    %235 = math.tanh %234 : vector<2x64xf32>
    %236 = vector.extract_strided_slice %221 {offsets = [0, 192], sizes = [2, 64], strides = [1, 1]} : vector<2x256xf32> to vector<2x64xf32>
    %237 = arith.negf %236 : vector<2x64xf32>
    %238 = math.exp %237 : vector<2x64xf32>
    %cst_61 = arith.constant 1.000000e+00 : f32
    %239 = vector.broadcast %cst_61 : f32 to vector<2x64xf32>
    %240 = arith.addf %239, %238 : vector<2x64xf32>
    %241 = arith.divf %239, %240 : vector<2x64xf32>
    %242 = arith.mulf %233, %205 : vector<2x64xf32>
    %243 = arith.mulf %227, %235 : vector<2x64xf32>
    %244 = arith.addf %242, %243 : vector<2x64xf32>
    %245 = math.tanh %244 : vector<2x64xf32>
    %246 = arith.mulf %241, %245 : vector<2x64xf32>
    %247 = vector.extract_strided_slice %246 {offsets = [0, 0], sizes = [2, 32], strides = [1, 1]} : vector<2x64xf32> to vector<2x32xf32>
    %248 = vector.shape_cast %247 : vector<2x32xf32> to vector<2x1x32xf32>
    %c0_62 = arith.constant 0 : index
    %c5_63 = arith.constant 5 : index
    %c0_64 = arith.constant 0 : index
    %249 = vector.load %arg7[%c0_62, %c5_63, %c0_64] : memref<2x8x64xf32, #tpu.memory_space<vmem>>, vector<2x1x32xf32>
    tpu.vector_store %arg7[%c0_62, %c5_63, %c0_64], %248 {strides = array<i32>} : memref<2x8x64xf32, #tpu.memory_space<vmem>>, vector<2x1x32xf32>,
    %250 = vector.extract_strided_slice %246 {offsets = [0, 32], sizes = [2, 32], strides = [1, 1]} : vector<2x64xf32> to vector<2x32xf32>
    %251 = vector.shape_cast %250 : vector<2x32xf32> to vector<2x1x32xf32>
    %c0_65 = arith.constant 0 : index
    %c2_66 = arith.constant 2 : index
    %c32_67 = arith.constant 32 : index
    %252 = vector.load %arg7[%c0_65, %c2_66, %c32_67] : memref<2x8x64xf32, #tpu.memory_space<vmem>>, vector<2x1x32xf32>
    tpu.vector_store %arg7[%c0_65, %c2_66, %c32_67], %251 {strides = array<i32>} : memref<2x8x64xf32, #tpu.memory_space<vmem>>, vector<2x1x32xf32>,
    %253 = arith.truncf %246 : vector<2x64xf32> to vector<2x64xbf16>
    %cst_68 = arith.constant dense<0.000000e+00> : vector<2x256xf32>
    %254 = tpu.matmul %253, %0, %cst_68 {dimension_numbers = #tpu.dot_dimension_numbers<[1], [0], [0], [1], [0, 0, 1, 1], [], []>} : vector<2x64xbf16>, vector<64x256xbf16>, vector<2x256xf32> -> vector<2x256xf32>
    %255 = vector.extract_strided_slice %14 {offsets = [0, 6, 0], sizes = [2, 1, 256], strides = [1, 1, 1]} : vector<2x8x256xf32> to vector<2x1x256xf32>
    %256 = vector.shape_cast %255 : vector<2x1x256xf32> to vector<2x256xf32>
    %257 = vector.extract_strided_slice %16 {offsets = [0, 1, 0], sizes = [2, 1, 256], strides = [1, 1, 1]} : vector<2x8x256xf32> to vector<2x1x256xf32>
    %258 = vector.shape_cast %257 : vector<2x1x256xf32> to vector<2x256xf32>
    %259 = arith.addf %256, %258 : vector<2x256xf32>
    %260 = arith.addf %259, %254 : vector<2x256xf32>
    %261 = vector.extract_strided_slice %260 {offsets = [0, 0], sizes = [2, 64], strides = [1, 1]} : vector<2x256xf32> to vector<2x64xf32>
    %262 = arith.negf %261 : vector<2x64xf32>
    %263 = math.exp %262 : vector<2x64xf32>
    %cst_69 = arith.constant 1.000000e+00 : f32
    %264 = vector.broadcast %cst_69 : f32 to vector<2x64xf32>
    %265 = arith.addf %264, %263 : vector<2x64xf32>
    %266 = arith.divf %264, %265 : vector<2x64xf32>
    %267 = vector.extract_strided_slice %260 {offsets = [0, 64], sizes = [2, 64], strides = [1, 1]} : vector<2x256xf32> to vector<2x64xf32>
    %268 = arith.negf %267 : vector<2x64xf32>
    %269 = math.exp %268 : vector<2x64xf32>
    %cst_70 = arith.constant 1.000000e+00 : f32
    %270 = vector.broadcast %cst_70 : f32 to vector<2x64xf32>
    %271 = arith.addf %270, %269 : vector<2x64xf32>
    %272 = arith.divf %270, %271 : vector<2x64xf32>
    %273 = vector.extract_strided_slice %260 {offsets = [0, 128], sizes = [2, 64], strides = [1, 1]} : vector<2x256xf32> to vector<2x64xf32>
    %274 = math.tanh %273 : vector<2x64xf32>
    %275 = vector.extract_strided_slice %260 {offsets = [0, 192], sizes = [2, 64], strides = [1, 1]} : vector<2x256xf32> to vector<2x64xf32>
    %276 = arith.negf %275 : vector<2x64xf32>
    %277 = math.exp %276 : vector<2x64xf32>
    %cst_71 = arith.constant 1.000000e+00 : f32
    %278 = vector.broadcast %cst_71 : f32 to vector<2x64xf32>
    %279 = arith.addf %278, %277 : vector<2x64xf32>
    %280 = arith.divf %278, %279 : vector<2x64xf32>
    %281 = arith.mulf %272, %244 : vector<2x64xf32>
    %282 = arith.mulf %266, %274 : vector<2x64xf32>
    %283 = arith.addf %281, %282 : vector<2x64xf32>
    %284 = math.tanh %283 : vector<2x64xf32>
    %285 = arith.mulf %280, %284 : vector<2x64xf32>
    %286 = vector.extract_strided_slice %285 {offsets = [0, 0], sizes = [2, 32], strides = [1, 1]} : vector<2x64xf32> to vector<2x32xf32>
    %287 = vector.shape_cast %286 : vector<2x32xf32> to vector<2x1x32xf32>
    %c0_72 = arith.constant 0 : index
    %c6_73 = arith.constant 6 : index
    %c0_74 = arith.constant 0 : index
    %288 = vector.load %arg7[%c0_72, %c6_73, %c0_74] : memref<2x8x64xf32, #tpu.memory_space<vmem>>, vector<2x1x32xf32>
    tpu.vector_store %arg7[%c0_72, %c6_73, %c0_74], %287 {strides = array<i32>} : memref<2x8x64xf32, #tpu.memory_space<vmem>>, vector<2x1x32xf32>,
    %289 = vector.extract_strided_slice %285 {offsets = [0, 32], sizes = [2, 32], strides = [1, 1]} : vector<2x64xf32> to vector<2x32xf32>
    %290 = vector.shape_cast %289 : vector<2x32xf32> to vector<2x1x32xf32>
    %c0_75 = arith.constant 0 : index
    %c1_76 = arith.constant 1 : index
    %c32_77 = arith.constant 32 : index
    %291 = vector.load %arg7[%c0_75, %c1_76, %c32_77] : memref<2x8x64xf32, #tpu.memory_space<vmem>>, vector<2x1x32xf32>
    tpu.vector_store %arg7[%c0_75, %c1_76, %c32_77], %290 {strides = array<i32>} : memref<2x8x64xf32, #tpu.memory_space<vmem>>, vector<2x1x32xf32>,
    %292 = arith.truncf %285 : vector<2x64xf32> to vector<2x64xbf16>
    %cst_78 = arith.constant dense<0.000000e+00> : vector<2x256xf32>
    %293 = tpu.matmul %292, %0, %cst_78 {dimension_numbers = #tpu.dot_dimension_numbers<[1], [0], [0], [1], [0, 0, 1, 1], [], []>} : vector<2x64xbf16>, vector<64x256xbf16>, vector<2x256xf32> -> vector<2x256xf32>
    %294 = vector.extract_strided_slice %14 {offsets = [0, 7, 0], sizes = [2, 1, 256], strides = [1, 1, 1]} : vector<2x8x256xf32> to vector<2x1x256xf32>
    %295 = vector.shape_cast %294 : vector<2x1x256xf32> to vector<2x256xf32>
    %296 = vector.extract_strided_slice %16 {offsets = [0, 0, 0], sizes = [2, 1, 256], strides = [1, 1, 1]} : vector<2x8x256xf32> to vector<2x1x256xf32>
    %297 = vector.shape_cast %296 : vector<2x1x256xf32> to vector<2x256xf32>
    %298 = arith.addf %295, %297 : vector<2x256xf32>
    %299 = arith.addf %298, %293 : vector<2x256xf32>
    %300 = vector.extract_strided_slice %299 {offsets = [0, 0], sizes = [2, 64], strides = [1, 1]} : vector<2x256xf32> to vector<2x64xf32>
    %301 = arith.negf %300 : vector<2x64xf32>
    %302 = math.exp %301 : vector<2x64xf32>
    %cst_79 = arith.constant 1.000000e+00 : f32
    %303 = vector.broadcast %cst_79 : f32 to vector<2x64xf32>
    %304 = arith.addf %303, %302 : vector<2x64xf32>
    %305 = arith.divf %303, %304 : vector<2x64xf32>
    %306 = vector.extract_strided_slice %299 {offsets = [0, 64], sizes = [2, 64], strides = [1, 1]} : vector<2x256xf32> to vector<2x64xf32>
    %307 = arith.negf %306 : vector<2x64xf32>
    %308 = math.exp %307 : vector<2x64xf32>
    %cst_80 = arith.constant 1.000000e+00 : f32
    %309 = vector.broadcast %cst_80 : f32 to vector<2x64xf32>
    %310 = arith.addf %309, %308 : vector<2x64xf32>
    %311 = arith.divf %309, %310 : vector<2x64xf32>
    %312 = vector.extract_strided_slice %299 {offsets = [0, 128], sizes = [2, 64], strides = [1, 1]} : vector<2x256xf32> to vector<2x64xf32>
    %313 = math.tanh %312 : vector<2x64xf32>
    %314 = vector.extract_strided_slice %299 {offsets = [0, 192], sizes = [2, 64], strides = [1, 1]} : vector<2x256xf32> to vector<2x64xf32>
    %315 = arith.negf %314 : vector<2x64xf32>
    %316 = math.exp %315 : vector<2x64xf32>
    %cst_81 = arith.constant 1.000000e+00 : f32
    %317 = vector.broadcast %cst_81 : f32 to vector<2x64xf32>
    %318 = arith.addf %317, %316 : vector<2x64xf32>
    %319 = arith.divf %317, %318 : vector<2x64xf32>
    %320 = arith.mulf %311, %283 : vector<2x64xf32>
    %321 = arith.mulf %305, %313 : vector<2x64xf32>
    %322 = arith.addf %320, %321 : vector<2x64xf32>
    %323 = math.tanh %322 : vector<2x64xf32>
    %324 = arith.mulf %319, %323 : vector<2x64xf32>
    %325 = vector.extract_strided_slice %324 {offsets = [0, 0], sizes = [2, 32], strides = [1, 1]} : vector<2x64xf32> to vector<2x32xf32>
    %326 = vector.shape_cast %325 : vector<2x32xf32> to vector<2x1x32xf32>
    %c0_82 = arith.constant 0 : index
    %c7_83 = arith.constant 7 : index
    %c0_84 = arith.constant 0 : index
    %327 = vector.load %arg7[%c0_82, %c7_83, %c0_84] : memref<2x8x64xf32, #tpu.memory_space<vmem>>, vector<2x1x32xf32>
    tpu.vector_store %arg7[%c0_82, %c7_83, %c0_84], %326 {strides = array<i32>} : memref<2x8x64xf32, #tpu.memory_space<vmem>>, vector<2x1x32xf32>,
    %328 = vector.extract_strided_slice %324 {offsets = [0, 32], sizes = [2, 32], strides = [1, 1]} : vector<2x64xf32> to vector<2x32xf32>
    %329 = vector.shape_cast %328 : vector<2x32xf32> to vector<2x1x32xf32>
    %c0_85 = arith.constant 0 : index
    %c0_86 = arith.constant 0 : index
    %c32_87 = arith.constant 32 : index
    %330 = vector.load %arg7[%c0_85, %c0_86, %c32_87] : memref<2x8x64xf32, #tpu.memory_space<vmem>>, vector<2x1x32xf32>
    tpu.vector_store %arg7[%c0_85, %c0_86, %c32_87], %329 {strides = array<i32>} : memref<2x8x64xf32, #tpu.memory_space<vmem>>, vector<2x1x32xf32>,
    %c0_88 = arith.constant 0 : index
    %c0_89 = arith.constant 0 : index
    %c0_90 = arith.constant 0 : index
    %331 = vector.load %arg7[%c0_88, %c0_89, %c0_90] : memref<2x8x64xf32, #tpu.memory_space<vmem>>, vector<2x8x64xf32>
    %332 = vector.shape_cast %331 : vector<2x8x64xf32> to vector<16x64xf32>
    %333 = arith.truncf %332 : vector<16x64xf32> to vector<16x64xbf16>
    %cst_91 = arith.constant dense<0.000000e+00> : vector<16x256xf32>
    %334 = tpu.matmul %333, %2, %cst_91 {dimension_numbers = #tpu.dot_dimension_numbers<[1], [0], [0], [1], [0, 0, 1, 1], [], []>} : vector<16x64xbf16>, vector<64x256xbf16>, vector<16x256xf32> -> vector<16x256xf32>
    %335 = vector.broadcast %7 : vector<1x256xf32> to vector<16x256xf32>
    %336 = arith.addf %334, %335 : vector<16x256xf32>
    %337 = vector.shape_cast %336 : vector<16x256xf32> to vector<2x8x256xf32>
    %cst_92 = arith.constant dense<0.000000e+00> : vector<16x256xf32>
    %338 = tpu.matmul %333, %3, %cst_92 {dimension_numbers = #tpu.dot_dimension_numbers<[1], [0], [0], [1], [0, 0, 1, 1], [], []>} : vector<16x64xbf16>, vector<64x256xbf16>, vector<16x256xf32> -> vector<16x256xf32>
    %339 = vector.shape_cast %338 : vector<16x256xf32> to vector<2x8x256xf32>
    %cst_93 = arith.constant 0.000000e+00 : f32
    %340 = vector.broadcast %cst_93 : f32 to vector<2x64xf32>
    %cst_94 = arith.constant 0.000000e+00 : f32
    %341 = vector.broadcast %cst_94 : f32 to vector<2x64xf32>
    %342 = arith.truncf %340 : vector<2x64xf32> to vector<2x64xbf16>
    %cst_95 = arith.constant dense<0.000000e+00> : vector<2x256xf32>
    %343 = tpu.matmul %342, %1, %cst_95 {dimension_numbers = #tpu.dot_dimension_numbers<[1], [0], [0], [1], [0, 0, 1, 1], [], []>} : vector<2x64xbf16>, vector<64x256xbf16>, vector<2x256xf32> -> vector<2x256xf32>
    %344 = vector.extract_strided_slice %337 {offsets = [0, 0, 0], sizes = [2, 1, 256], strides = [1, 1, 1]} : vector<2x8x256xf32> to vector<2x1x256xf32>
    %345 = vector.shape_cast %344 : vector<2x1x256xf32> to vector<2x256xf32>
    %346 = vector.extract_strided_slice %339 {offsets = [0, 7, 0], sizes = [2, 1, 256], strides = [1, 1, 1]} : vector<2x8x256xf32> to vector<2x1x256xf32>
    %347 = vector.shape_cast %346 : vector<2x1x256xf32> to vector<2x256xf32>
    %348 = arith.addf %345, %347 : vector<2x256xf32>
    %349 = arith.addf %348, %343 : vector<2x256xf32>
    %350 = vector.extract_strided_slice %349 {offsets = [0, 0], sizes = [2, 64], strides = [1, 1]} : vector<2x256xf32> to vector<2x64xf32>
    %351 = arith.negf %350 : vector<2x64xf32>
    %352 = math.exp %351 : vector<2x64xf32>
    %cst_96 = arith.constant 1.000000e+00 : f32
    %353 = vector.broadcast %cst_96 : f32 to vector<2x64xf32>
    %354 = arith.addf %353, %352 : vector<2x64xf32>
    %355 = arith.divf %353, %354 : vector<2x64xf32>
    %356 = vector.extract_strided_slice %349 {offsets = [0, 64], sizes = [2, 64], strides = [1, 1]} : vector<2x256xf32> to vector<2x64xf32>
    %357 = arith.negf %356 : vector<2x64xf32>
    %358 = math.exp %357 : vector<2x64xf32>
    %cst_97 = arith.constant 1.000000e+00 : f32
    %359 = vector.broadcast %cst_97 : f32 to vector<2x64xf32>
    %360 = arith.addf %359, %358 : vector<2x64xf32>
    %361 = arith.divf %359, %360 : vector<2x64xf32>
    %362 = vector.extract_strided_slice %349 {offsets = [0, 128], sizes = [2, 64], strides = [1, 1]} : vector<2x256xf32> to vector<2x64xf32>
    %363 = math.tanh %362 : vector<2x64xf32>
    %364 = vector.extract_strided_slice %349 {offsets = [0, 192], sizes = [2, 64], strides = [1, 1]} : vector<2x256xf32> to vector<2x64xf32>
    %365 = arith.negf %364 : vector<2x64xf32>
    %366 = math.exp %365 : vector<2x64xf32>
    %cst_98 = arith.constant 1.000000e+00 : f32
    %367 = vector.broadcast %cst_98 : f32 to vector<2x64xf32>
    %368 = arith.addf %367, %366 : vector<2x64xf32>
    %369 = arith.divf %367, %368 : vector<2x64xf32>
    %370 = arith.mulf %361, %341 : vector<2x64xf32>
    %371 = arith.mulf %355, %363 : vector<2x64xf32>
    %372 = arith.addf %370, %371 : vector<2x64xf32>
    %373 = math.tanh %372 : vector<2x64xf32>
    %374 = arith.mulf %369, %373 : vector<2x64xf32>
    %375 = vector.extract_strided_slice %374 {offsets = [0, 0], sizes = [2, 32], strides = [1, 1]} : vector<2x64xf32> to vector<2x32xf32>
    %376 = vector.shape_cast %375 : vector<2x32xf32> to vector<2x1x32xf32>
    %c0_99 = arith.constant 0 : index
    %c0_100 = arith.constant 0 : index
    %c0_101 = arith.constant 0 : index
    %377 = vector.load %arg8[%c0_99, %c0_100, %c0_101] : memref<2x8x64xf32, #tpu.memory_space<vmem>>, vector<2x1x32xf32>
    tpu.vector_store %arg8[%c0_99, %c0_100, %c0_101], %376 {strides = array<i32>} : memref<2x8x64xf32, #tpu.memory_space<vmem>>, vector<2x1x32xf32>,
    %378 = vector.extract_strided_slice %374 {offsets = [0, 32], sizes = [2, 32], strides = [1, 1]} : vector<2x64xf32> to vector<2x32xf32>
    %379 = vector.shape_cast %378 : vector<2x32xf32> to vector<2x1x32xf32>
    %c0_102 = arith.constant 0 : index
    %c7_103 = arith.constant 7 : index
    %c32_104 = arith.constant 32 : index
    %380 = vector.load %arg8[%c0_102, %c7_103, %c32_104] : memref<2x8x64xf32, #tpu.memory_space<vmem>>, vector<2x1x32xf32>
    tpu.vector_store %arg8[%c0_102, %c7_103, %c32_104], %379 {strides = array<i32>} : memref<2x8x64xf32, #tpu.memory_space<vmem>>, vector<2x1x32xf32>,
    %381 = arith.truncf %374 : vector<2x64xf32> to vector<2x64xbf16>
    %cst_105 = arith.constant dense<0.000000e+00> : vector<2x256xf32>
    %382 = tpu.matmul %381, %1, %cst_105 {dimension_numbers = #tpu.dot_dimension_numbers<[1], [0], [0], [1], [0, 0, 1, 1], [], []>} : vector<2x64xbf16>, vector<64x256xbf16>, vector<2x256xf32> -> vector<2x256xf32>
    %383 = vector.extract_strided_slice %337 {offsets = [0, 1, 0], sizes = [2, 1, 256], strides = [1, 1, 1]} : vector<2x8x256xf32> to vector<2x1x256xf32>
    %384 = vector.shape_cast %383 : vector<2x1x256xf32> to vector<2x256xf32>
    %385 = vector.extract_strided_slice %339 {offsets = [0, 6, 0], sizes = [2, 1, 256], strides = [1, 1, 1]} : vector<2x8x256xf32> to vector<2x1x256xf32>
    %386 = vector.shape_cast %385 : vector<2x1x256xf32> to vector<2x256xf32>
    %387 = arith.addf %384, %386 : vector<2x256xf32>
    %388 = arith.addf %387, %382 : vector<2x256xf32>
    %389 = vector.extract_strided_slice %388 {offsets = [0, 0], sizes = [2, 64], strides = [1, 1]} : vector<2x256xf32> to vector<2x64xf32>
    %390 = arith.negf %389 : vector<2x64xf32>
    %391 = math.exp %390 : vector<2x64xf32>
    %cst_106 = arith.constant 1.000000e+00 : f32
    %392 = vector.broadcast %cst_106 : f32 to vector<2x64xf32>
    %393 = arith.addf %392, %391 : vector<2x64xf32>
    %394 = arith.divf %392, %393 : vector<2x64xf32>
    %395 = vector.extract_strided_slice %388 {offsets = [0, 64], sizes = [2, 64], strides = [1, 1]} : vector<2x256xf32> to vector<2x64xf32>
    %396 = arith.negf %395 : vector<2x64xf32>
    %397 = math.exp %396 : vector<2x64xf32>
    %cst_107 = arith.constant 1.000000e+00 : f32
    %398 = vector.broadcast %cst_107 : f32 to vector<2x64xf32>
    %399 = arith.addf %398, %397 : vector<2x64xf32>
    %400 = arith.divf %398, %399 : vector<2x64xf32>
    %401 = vector.extract_strided_slice %388 {offsets = [0, 128], sizes = [2, 64], strides = [1, 1]} : vector<2x256xf32> to vector<2x64xf32>
    %402 = math.tanh %401 : vector<2x64xf32>
    %403 = vector.extract_strided_slice %388 {offsets = [0, 192], sizes = [2, 64], strides = [1, 1]} : vector<2x256xf32> to vector<2x64xf32>
    %404 = arith.negf %403 : vector<2x64xf32>
    %405 = math.exp %404 : vector<2x64xf32>
    %cst_108 = arith.constant 1.000000e+00 : f32
    %406 = vector.broadcast %cst_108 : f32 to vector<2x64xf32>
    %407 = arith.addf %406, %405 : vector<2x64xf32>
    %408 = arith.divf %406, %407 : vector<2x64xf32>
    %409 = arith.mulf %400, %372 : vector<2x64xf32>
    %410 = arith.mulf %394, %402 : vector<2x64xf32>
    %411 = arith.addf %409, %410 : vector<2x64xf32>
    %412 = math.tanh %411 : vector<2x64xf32>
    %413 = arith.mulf %408, %412 : vector<2x64xf32>
    %414 = vector.extract_strided_slice %413 {offsets = [0, 0], sizes = [2, 32], strides = [1, 1]} : vector<2x64xf32> to vector<2x32xf32>
    %415 = vector.shape_cast %414 : vector<2x32xf32> to vector<2x1x32xf32>
    %c0_109 = arith.constant 0 : index
    %c1_110 = arith.constant 1 : index
    %c0_111 = arith.constant 0 : index
    %416 = vector.load %arg8[%c0_109, %c1_110, %c0_111] : memref<2x8x64xf32, #tpu.memory_space<vmem>>, vector<2x1x32xf32>
    tpu.vector_store %arg8[%c0_109, %c1_110, %c0_111], %415 {strides = array<i32>} : memref<2x8x64xf32, #tpu.memory_space<vmem>>, vector<2x1x32xf32>,
    %417 = vector.extract_strided_slice %413 {offsets = [0, 32], sizes = [2, 32], strides = [1, 1]} : vector<2x64xf32> to vector<2x32xf32>
    %418 = vector.shape_cast %417 : vector<2x32xf32> to vector<2x1x32xf32>
    %c0_112 = arith.constant 0 : index
    %c6_113 = arith.constant 6 : index
    %c32_114 = arith.constant 32 : index
    %419 = vector.load %arg8[%c0_112, %c6_113, %c32_114] : memref<2x8x64xf32, #tpu.memory_space<vmem>>, vector<2x1x32xf32>
    tpu.vector_store %arg8[%c0_112, %c6_113, %c32_114], %418 {strides = array<i32>} : memref<2x8x64xf32, #tpu.memory_space<vmem>>, vector<2x1x32xf32>,
    %420 = arith.truncf %413 : vector<2x64xf32> to vector<2x64xbf16>
    %cst_115 = arith.constant dense<0.000000e+00> : vector<2x256xf32>
    %421 = tpu.matmul %420, %1, %cst_115 {dimension_numbers = #tpu.dot_dimension_numbers<[1], [0], [0], [1], [0, 0, 1, 1], [], []>} : vector<2x64xbf16>, vector<64x256xbf16>, vector<2x256xf32> -> vector<2x256xf32>
    %422 = vector.extract_strided_slice %337 {offsets = [0, 2, 0], sizes = [2, 1, 256], strides = [1, 1, 1]} : vector<2x8x256xf32> to vector<2x1x256xf32>
    %423 = vector.shape_cast %422 : vector<2x1x256xf32> to vector<2x256xf32>
    %424 = vector.extract_strided_slice %339 {offsets = [0, 5, 0], sizes = [2, 1, 256], strides = [1, 1, 1]} : vector<2x8x256xf32> to vector<2x1x256xf32>
    %425 = vector.shape_cast %424 : vector<2x1x256xf32> to vector<2x256xf32>
    %426 = arith.addf %423, %425 : vector<2x256xf32>
    %427 = arith.addf %426, %421 : vector<2x256xf32>
    %428 = vector.extract_strided_slice %427 {offsets = [0, 0], sizes = [2, 64], strides = [1, 1]} : vector<2x256xf32> to vector<2x64xf32>
    %429 = arith.negf %428 : vector<2x64xf32>
    %430 = math.exp %429 : vector<2x64xf32>
    %cst_116 = arith.constant 1.000000e+00 : f32
    %431 = vector.broadcast %cst_116 : f32 to vector<2x64xf32>
    %432 = arith.addf %431, %430 : vector<2x64xf32>
    %433 = arith.divf %431, %432 : vector<2x64xf32>
    %434 = vector.extract_strided_slice %427 {offsets = [0, 64], sizes = [2, 64], strides = [1, 1]} : vector<2x256xf32> to vector<2x64xf32>
    %435 = arith.negf %434 : vector<2x64xf32>
    %436 = math.exp %435 : vector<2x64xf32>
    %cst_117 = arith.constant 1.000000e+00 : f32
    %437 = vector.broadcast %cst_117 : f32 to vector<2x64xf32>
    %438 = arith.addf %437, %436 : vector<2x64xf32>
    %439 = arith.divf %437, %438 : vector<2x64xf32>
    %440 = vector.extract_strided_slice %427 {offsets = [0, 128], sizes = [2, 64], strides = [1, 1]} : vector<2x256xf32> to vector<2x64xf32>
    %441 = math.tanh %440 : vector<2x64xf32>
    %442 = vector.extract_strided_slice %427 {offsets = [0, 192], sizes = [2, 64], strides = [1, 1]} : vector<2x256xf32> to vector<2x64xf32>
    %443 = arith.negf %442 : vector<2x64xf32>
    %444 = math.exp %443 : vector<2x64xf32>
    %cst_118 = arith.constant 1.000000e+00 : f32
    %445 = vector.broadcast %cst_118 : f32 to vector<2x64xf32>
    %446 = arith.addf %445, %444 : vector<2x64xf32>
    %447 = arith.divf %445, %446 : vector<2x64xf32>
    %448 = arith.mulf %439, %411 : vector<2x64xf32>
    %449 = arith.mulf %433, %441 : vector<2x64xf32>
    %450 = arith.addf %448, %449 : vector<2x64xf32>
    %451 = math.tanh %450 : vector<2x64xf32>
    %452 = arith.mulf %447, %451 : vector<2x64xf32>
    %453 = vector.extract_strided_slice %452 {offsets = [0, 0], sizes = [2, 32], strides = [1, 1]} : vector<2x64xf32> to vector<2x32xf32>
    %454 = vector.shape_cast %453 : vector<2x32xf32> to vector<2x1x32xf32>
    %c0_119 = arith.constant 0 : index
    %c2_120 = arith.constant 2 : index
    %c0_121 = arith.constant 0 : index
    %455 = vector.load %arg8[%c0_119, %c2_120, %c0_121] : memref<2x8x64xf32, #tpu.memory_space<vmem>>, vector<2x1x32xf32>
    tpu.vector_store %arg8[%c0_119, %c2_120, %c0_121], %454 {strides = array<i32>} : memref<2x8x64xf32, #tpu.memory_space<vmem>>, vector<2x1x32xf32>,
    %456 = vector.extract_strided_slice %452 {offsets = [0, 32], sizes = [2, 32], strides = [1, 1]} : vector<2x64xf32> to vector<2x32xf32>
    %457 = vector.shape_cast %456 : vector<2x32xf32> to vector<2x1x32xf32>
    %c0_122 = arith.constant 0 : index
    %c5_123 = arith.constant 5 : index
    %c32_124 = arith.constant 32 : index
    %458 = vector.load %arg8[%c0_122, %c5_123, %c32_124] : memref<2x8x64xf32, #tpu.memory_space<vmem>>, vector<2x1x32xf32>
    tpu.vector_store %arg8[%c0_122, %c5_123, %c32_124], %457 {strides = array<i32>} : memref<2x8x64xf32, #tpu.memory_space<vmem>>, vector<2x1x32xf32>,
    %459 = arith.truncf %452 : vector<2x64xf32> to vector<2x64xbf16>
    %cst_125 = arith.constant dense<0.000000e+00> : vector<2x256xf32>
    %460 = tpu.matmul %459, %1, %cst_125 {dimension_numbers = #tpu.dot_dimension_numbers<[1], [0], [0], [1], [0, 0, 1, 1], [], []>} : vector<2x64xbf16>, vector<64x256xbf16>, vector<2x256xf32> -> vector<2x256xf32>
    %461 = vector.extract_strided_slice %337 {offsets = [0, 3, 0], sizes = [2, 1, 256], strides = [1, 1, 1]} : vector<2x8x256xf32> to vector<2x1x256xf32>
    %462 = vector.shape_cast %461 : vector<2x1x256xf32> to vector<2x256xf32>
    %463 = vector.extract_strided_slice %339 {offsets = [0, 4, 0], sizes = [2, 1, 256], strides = [1, 1, 1]} : vector<2x8x256xf32> to vector<2x1x256xf32>
    %464 = vector.shape_cast %463 : vector<2x1x256xf32> to vector<2x256xf32>
    %465 = arith.addf %462, %464 : vector<2x256xf32>
    %466 = arith.addf %465, %460 : vector<2x256xf32>
    %467 = vector.extract_strided_slice %466 {offsets = [0, 0], sizes = [2, 64], strides = [1, 1]} : vector<2x256xf32> to vector<2x64xf32>
    %468 = arith.negf %467 : vector<2x64xf32>
    %469 = math.exp %468 : vector<2x64xf32>
    %cst_126 = arith.constant 1.000000e+00 : f32
    %470 = vector.broadcast %cst_126 : f32 to vector<2x64xf32>
    %471 = arith.addf %470, %469 : vector<2x64xf32>
    %472 = arith.divf %470, %471 : vector<2x64xf32>
    %473 = vector.extract_strided_slice %466 {offsets = [0, 64], sizes = [2, 64], strides = [1, 1]} : vector<2x256xf32> to vector<2x64xf32>
    %474 = arith.negf %473 : vector<2x64xf32>
    %475 = math.exp %474 : vector<2x64xf32>
    %cst_127 = arith.constant 1.000000e+00 : f32
    %476 = vector.broadcast %cst_127 : f32 to vector<2x64xf32>
    %477 = arith.addf %476, %475 : vector<2x64xf32>
    %478 = arith.divf %476, %477 : vector<2x64xf32>
    %479 = vector.extract_strided_slice %466 {offsets = [0, 128], sizes = [2, 64], strides = [1, 1]} : vector<2x256xf32> to vector<2x64xf32>
    %480 = math.tanh %479 : vector<2x64xf32>
    %481 = vector.extract_strided_slice %466 {offsets = [0, 192], sizes = [2, 64], strides = [1, 1]} : vector<2x256xf32> to vector<2x64xf32>
    %482 = arith.negf %481 : vector<2x64xf32>
    %483 = math.exp %482 : vector<2x64xf32>
    %cst_128 = arith.constant 1.000000e+00 : f32
    %484 = vector.broadcast %cst_128 : f32 to vector<2x64xf32>
    %485 = arith.addf %484, %483 : vector<2x64xf32>
    %486 = arith.divf %484, %485 : vector<2x64xf32>
    %487 = arith.mulf %478, %450 : vector<2x64xf32>
    %488 = arith.mulf %472, %480 : vector<2x64xf32>
    %489 = arith.addf %487, %488 : vector<2x64xf32>
    %490 = math.tanh %489 : vector<2x64xf32>
    %491 = arith.mulf %486, %490 : vector<2x64xf32>
    %492 = vector.extract_strided_slice %491 {offsets = [0, 0], sizes = [2, 32], strides = [1, 1]} : vector<2x64xf32> to vector<2x32xf32>
    %493 = vector.shape_cast %492 : vector<2x32xf32> to vector<2x1x32xf32>
    %c0_129 = arith.constant 0 : index
    %c3_130 = arith.constant 3 : index
    %c0_131 = arith.constant 0 : index
    %494 = vector.load %arg8[%c0_129, %c3_130, %c0_131] : memref<2x8x64xf32, #tpu.memory_space<vmem>>, vector<2x1x32xf32>
    tpu.vector_store %arg8[%c0_129, %c3_130, %c0_131], %493 {strides = array<i32>} : memref<2x8x64xf32, #tpu.memory_space<vmem>>, vector<2x1x32xf32>,
    %495 = vector.extract_strided_slice %491 {offsets = [0, 32], sizes = [2, 32], strides = [1, 1]} : vector<2x64xf32> to vector<2x32xf32>
    %496 = vector.shape_cast %495 : vector<2x32xf32> to vector<2x1x32xf32>
    %c0_132 = arith.constant 0 : index
    %c4_133 = arith.constant 4 : index
    %c32_134 = arith.constant 32 : index
    %497 = vector.load %arg8[%c0_132, %c4_133, %c32_134] : memref<2x8x64xf32, #tpu.memory_space<vmem>>, vector<2x1x32xf32>
    tpu.vector_store %arg8[%c0_132, %c4_133, %c32_134], %496 {strides = array<i32>} : memref<2x8x64xf32, #tpu.memory_space<vmem>>, vector<2x1x32xf32>,
    %498 = arith.truncf %491 : vector<2x64xf32> to vector<2x64xbf16>
    %cst_135 = arith.constant dense<0.000000e+00> : vector<2x256xf32>
    %499 = tpu.matmul %498, %1, %cst_135 {dimension_numbers = #tpu.dot_dimension_numbers<[1], [0], [0], [1], [0, 0, 1, 1], [], []>} : vector<2x64xbf16>, vector<64x256xbf16>, vector<2x256xf32> -> vector<2x256xf32>
    %500 = vector.extract_strided_slice %337 {offsets = [0, 4, 0], sizes = [2, 1, 256], strides = [1, 1, 1]} : vector<2x8x256xf32> to vector<2x1x256xf32>
    %501 = vector.shape_cast %500 : vector<2x1x256xf32> to vector<2x256xf32>
    %502 = vector.extract_strided_slice %339 {offsets = [0, 3, 0], sizes = [2, 1, 256], strides = [1, 1, 1]} : vector<2x8x256xf32> to vector<2x1x256xf32>
    %503 = vector.shape_cast %502 : vector<2x1x256xf32> to vector<2x256xf32>
    %504 = arith.addf %501, %503 : vector<2x256xf32>
    %505 = arith.addf %504, %499 : vector<2x256xf32>
    %506 = vector.extract_strided_slice %505 {offsets = [0, 0], sizes = [2, 64], strides = [1, 1]} : vector<2x256xf32> to vector<2x64xf32>
    %507 = arith.negf %506 : vector<2x64xf32>
    %508 = math.exp %507 : vector<2x64xf32>
    %cst_136 = arith.constant 1.000000e+00 : f32
    %509 = vector.broadcast %cst_136 : f32 to vector<2x64xf32>
    %510 = arith.addf %509, %508 : vector<2x64xf32>
    %511 = arith.divf %509, %510 : vector<2x64xf32>
    %512 = vector.extract_strided_slice %505 {offsets = [0, 64], sizes = [2, 64], strides = [1, 1]} : vector<2x256xf32> to vector<2x64xf32>
    %513 = arith.negf %512 : vector<2x64xf32>
    %514 = math.exp %513 : vector<2x64xf32>
    %cst_137 = arith.constant 1.000000e+00 : f32
    %515 = vector.broadcast %cst_137 : f32 to vector<2x64xf32>
    %516 = arith.addf %515, %514 : vector<2x64xf32>
    %517 = arith.divf %515, %516 : vector<2x64xf32>
    %518 = vector.extract_strided_slice %505 {offsets = [0, 128], sizes = [2, 64], strides = [1, 1]} : vector<2x256xf32> to vector<2x64xf32>
    %519 = math.tanh %518 : vector<2x64xf32>
    %520 = vector.extract_strided_slice %505 {offsets = [0, 192], sizes = [2, 64], strides = [1, 1]} : vector<2x256xf32> to vector<2x64xf32>
    %521 = arith.negf %520 : vector<2x64xf32>
    %522 = math.exp %521 : vector<2x64xf32>
    %cst_138 = arith.constant 1.000000e+00 : f32
    %523 = vector.broadcast %cst_138 : f32 to vector<2x64xf32>
    %524 = arith.addf %523, %522 : vector<2x64xf32>
    %525 = arith.divf %523, %524 : vector<2x64xf32>
    %526 = arith.mulf %517, %489 : vector<2x64xf32>
    %527 = arith.mulf %511, %519 : vector<2x64xf32>
    %528 = arith.addf %526, %527 : vector<2x64xf32>
    %529 = math.tanh %528 : vector<2x64xf32>
    %530 = arith.mulf %525, %529 : vector<2x64xf32>
    %531 = vector.extract_strided_slice %530 {offsets = [0, 0], sizes = [2, 32], strides = [1, 1]} : vector<2x64xf32> to vector<2x32xf32>
    %532 = vector.shape_cast %531 : vector<2x32xf32> to vector<2x1x32xf32>
    %c0_139 = arith.constant 0 : index
    %c4_140 = arith.constant 4 : index
    %c0_141 = arith.constant 0 : index
    %533 = vector.load %arg8[%c0_139, %c4_140, %c0_141] : memref<2x8x64xf32, #tpu.memory_space<vmem>>, vector<2x1x32xf32>
    tpu.vector_store %arg8[%c0_139, %c4_140, %c0_141], %532 {strides = array<i32>} : memref<2x8x64xf32, #tpu.memory_space<vmem>>, vector<2x1x32xf32>,
    %534 = vector.extract_strided_slice %530 {offsets = [0, 32], sizes = [2, 32], strides = [1, 1]} : vector<2x64xf32> to vector<2x32xf32>
    %535 = vector.shape_cast %534 : vector<2x32xf32> to vector<2x1x32xf32>
    %c0_142 = arith.constant 0 : index
    %c3_143 = arith.constant 3 : index
    %c32_144 = arith.constant 32 : index
    %536 = vector.load %arg8[%c0_142, %c3_143, %c32_144] : memref<2x8x64xf32, #tpu.memory_space<vmem>>, vector<2x1x32xf32>
    tpu.vector_store %arg8[%c0_142, %c3_143, %c32_144], %535 {strides = array<i32>} : memref<2x8x64xf32, #tpu.memory_space<vmem>>, vector<2x1x32xf32>,
    %537 = arith.truncf %530 : vector<2x64xf32> to vector<2x64xbf16>
    %cst_145 = arith.constant dense<0.000000e+00> : vector<2x256xf32>
    %538 = tpu.matmul %537, %1, %cst_145 {dimension_numbers = #tpu.dot_dimension_numbers<[1], [0], [0], [1], [0, 0, 1, 1], [], []>} : vector<2x64xbf16>, vector<64x256xbf16>, vector<2x256xf32> -> vector<2x256xf32>
    %539 = vector.extract_strided_slice %337 {offsets = [0, 5, 0], sizes = [2, 1, 256], strides = [1, 1, 1]} : vector<2x8x256xf32> to vector<2x1x256xf32>
    %540 = vector.shape_cast %539 : vector<2x1x256xf32> to vector<2x256xf32>
    %541 = vector.extract_strided_slice %339 {offsets = [0, 2, 0], sizes = [2, 1, 256], strides = [1, 1, 1]} : vector<2x8x256xf32> to vector<2x1x256xf32>
    %542 = vector.shape_cast %541 : vector<2x1x256xf32> to vector<2x256xf32>
    %543 = arith.addf %540, %542 : vector<2x256xf32>
    %544 = arith.addf %543, %538 : vector<2x256xf32>
    %545 = vector.extract_strided_slice %544 {offsets = [0, 0], sizes = [2, 64], strides = [1, 1]} : vector<2x256xf32> to vector<2x64xf32>
    %546 = arith.negf %545 : vector<2x64xf32>
    %547 = math.exp %546 : vector<2x64xf32>
    %cst_146 = arith.constant 1.000000e+00 : f32
    %548 = vector.broadcast %cst_146 : f32 to vector<2x64xf32>
    %549 = arith.addf %548, %547 : vector<2x64xf32>
    %550 = arith.divf %548, %549 : vector<2x64xf32>
    %551 = vector.extract_strided_slice %544 {offsets = [0, 64], sizes = [2, 64], strides = [1, 1]} : vector<2x256xf32> to vector<2x64xf32>
    %552 = arith.negf %551 : vector<2x64xf32>
    %553 = math.exp %552 : vector<2x64xf32>
    %cst_147 = arith.constant 1.000000e+00 : f32
    %554 = vector.broadcast %cst_147 : f32 to vector<2x64xf32>
    %555 = arith.addf %554, %553 : vector<2x64xf32>
    %556 = arith.divf %554, %555 : vector<2x64xf32>
    %557 = vector.extract_strided_slice %544 {offsets = [0, 128], sizes = [2, 64], strides = [1, 1]} : vector<2x256xf32> to vector<2x64xf32>
    %558 = math.tanh %557 : vector<2x64xf32>
    %559 = vector.extract_strided_slice %544 {offsets = [0, 192], sizes = [2, 64], strides = [1, 1]} : vector<2x256xf32> to vector<2x64xf32>
    %560 = arith.negf %559 : vector<2x64xf32>
    %561 = math.exp %560 : vector<2x64xf32>
    %cst_148 = arith.constant 1.000000e+00 : f32
    %562 = vector.broadcast %cst_148 : f32 to vector<2x64xf32>
    %563 = arith.addf %562, %561 : vector<2x64xf32>
    %564 = arith.divf %562, %563 : vector<2x64xf32>
    %565 = arith.mulf %556, %528 : vector<2x64xf32>
    %566 = arith.mulf %550, %558 : vector<2x64xf32>
    %567 = arith.addf %565, %566 : vector<2x64xf32>
    %568 = math.tanh %567 : vector<2x64xf32>
    %569 = arith.mulf %564, %568 : vector<2x64xf32>
    %570 = vector.extract_strided_slice %569 {offsets = [0, 0], sizes = [2, 32], strides = [1, 1]} : vector<2x64xf32> to vector<2x32xf32>
    %571 = vector.shape_cast %570 : vector<2x32xf32> to vector<2x1x32xf32>
    %c0_149 = arith.constant 0 : index
    %c5_150 = arith.constant 5 : index
    %c0_151 = arith.constant 0 : index
    %572 = vector.load %arg8[%c0_149, %c5_150, %c0_151] : memref<2x8x64xf32, #tpu.memory_space<vmem>>, vector<2x1x32xf32>
    tpu.vector_store %arg8[%c0_149, %c5_150, %c0_151], %571 {strides = array<i32>} : memref<2x8x64xf32, #tpu.memory_space<vmem>>, vector<2x1x32xf32>,
    %573 = vector.extract_strided_slice %569 {offsets = [0, 32], sizes = [2, 32], strides = [1, 1]} : vector<2x64xf32> to vector<2x32xf32>
    %574 = vector.shape_cast %573 : vector<2x32xf32> to vector<2x1x32xf32>
    %c0_152 = arith.constant 0 : index
    %c2_153 = arith.constant 2 : index
    %c32_154 = arith.constant 32 : index
    %575 = vector.load %arg8[%c0_152, %c2_153, %c32_154] : memref<2x8x64xf32, #tpu.memory_space<vmem>>, vector<2x1x32xf32>
    tpu.vector_store %arg8[%c0_152, %c2_153, %c32_154], %574 {strides = array<i32>} : memref<2x8x64xf32, #tpu.memory_space<vmem>>, vector<2x1x32xf32>,
    %576 = arith.truncf %569 : vector<2x64xf32> to vector<2x64xbf16>
    %cst_155 = arith.constant dense<0.000000e+00> : vector<2x256xf32>
    %577 = tpu.matmul %576, %1, %cst_155 {dimension_numbers = #tpu.dot_dimension_numbers<[1], [0], [0], [1], [0, 0, 1, 1], [], []>} : vector<2x64xbf16>, vector<64x256xbf16>, vector<2x256xf32> -> vector<2x256xf32>
    %578 = vector.extract_strided_slice %337 {offsets = [0, 6, 0], sizes = [2, 1, 256], strides = [1, 1, 1]} : vector<2x8x256xf32> to vector<2x1x256xf32>
    %579 = vector.shape_cast %578 : vector<2x1x256xf32> to vector<2x256xf32>
    %580 = vector.extract_strided_slice %339 {offsets = [0, 1, 0], sizes = [2, 1, 256], strides = [1, 1, 1]} : vector<2x8x256xf32> to vector<2x1x256xf32>
    %581 = vector.shape_cast %580 : vector<2x1x256xf32> to vector<2x256xf32>
    %582 = arith.addf %579, %581 : vector<2x256xf32>
    %583 = arith.addf %582, %577 : vector<2x256xf32>
    %584 = vector.extract_strided_slice %583 {offsets = [0, 0], sizes = [2, 64], strides = [1, 1]} : vector<2x256xf32> to vector<2x64xf32>
    %585 = arith.negf %584 : vector<2x64xf32>
    %586 = math.exp %585 : vector<2x64xf32>
    %cst_156 = arith.constant 1.000000e+00 : f32
    %587 = vector.broadcast %cst_156 : f32 to vector<2x64xf32>
    %588 = arith.addf %587, %586 : vector<2x64xf32>
    %589 = arith.divf %587, %588 : vector<2x64xf32>
    %590 = vector.extract_strided_slice %583 {offsets = [0, 64], sizes = [2, 64], strides = [1, 1]} : vector<2x256xf32> to vector<2x64xf32>
    %591 = arith.negf %590 : vector<2x64xf32>
    %592 = math.exp %591 : vector<2x64xf32>
    %cst_157 = arith.constant 1.000000e+00 : f32
    %593 = vector.broadcast %cst_157 : f32 to vector<2x64xf32>
    %594 = arith.addf %593, %592 : vector<2x64xf32>
    %595 = arith.divf %593, %594 : vector<2x64xf32>
    %596 = vector.extract_strided_slice %583 {offsets = [0, 128], sizes = [2, 64], strides = [1, 1]} : vector<2x256xf32> to vector<2x64xf32>
    %597 = math.tanh %596 : vector<2x64xf32>
    %598 = vector.extract_strided_slice %583 {offsets = [0, 192], sizes = [2, 64], strides = [1, 1]} : vector<2x256xf32> to vector<2x64xf32>
    %599 = arith.negf %598 : vector<2x64xf32>
    %600 = math.exp %599 : vector<2x64xf32>
    %cst_158 = arith.constant 1.000000e+00 : f32
    %601 = vector.broadcast %cst_158 : f32 to vector<2x64xf32>
    %602 = arith.addf %601, %600 : vector<2x64xf32>
    %603 = arith.divf %601, %602 : vector<2x64xf32>
    %604 = arith.mulf %595, %567 : vector<2x64xf32>
    %605 = arith.mulf %589, %597 : vector<2x64xf32>
    %606 = arith.addf %604, %605 : vector<2x64xf32>
    %607 = math.tanh %606 : vector<2x64xf32>
    %608 = arith.mulf %603, %607 : vector<2x64xf32>
    %609 = vector.extract_strided_slice %608 {offsets = [0, 0], sizes = [2, 32], strides = [1, 1]} : vector<2x64xf32> to vector<2x32xf32>
    %610 = vector.shape_cast %609 : vector<2x32xf32> to vector<2x1x32xf32>
    %c0_159 = arith.constant 0 : index
    %c6_160 = arith.constant 6 : index
    %c0_161 = arith.constant 0 : index
    %611 = vector.load %arg8[%c0_159, %c6_160, %c0_161] : memref<2x8x64xf32, #tpu.memory_space<vmem>>, vector<2x1x32xf32>
    tpu.vector_store %arg8[%c0_159, %c6_160, %c0_161], %610 {strides = array<i32>} : memref<2x8x64xf32, #tpu.memory_space<vmem>>, vector<2x1x32xf32>,
    %612 = vector.extract_strided_slice %608 {offsets = [0, 32], sizes = [2, 32], strides = [1, 1]} : vector<2x64xf32> to vector<2x32xf32>
    %613 = vector.shape_cast %612 : vector<2x32xf32> to vector<2x1x32xf32>
    %c0_162 = arith.constant 0 : index
    %c1_163 = arith.constant 1 : index
    %c32_164 = arith.constant 32 : index
    %614 = vector.load %arg8[%c0_162, %c1_163, %c32_164] : memref<2x8x64xf32, #tpu.memory_space<vmem>>, vector<2x1x32xf32>
    tpu.vector_store %arg8[%c0_162, %c1_163, %c32_164], %613 {strides = array<i32>} : memref<2x8x64xf32, #tpu.memory_space<vmem>>, vector<2x1x32xf32>,
    %615 = arith.truncf %608 : vector<2x64xf32> to vector<2x64xbf16>
    %cst_165 = arith.constant dense<0.000000e+00> : vector<2x256xf32>
    %616 = tpu.matmul %615, %1, %cst_165 {dimension_numbers = #tpu.dot_dimension_numbers<[1], [0], [0], [1], [0, 0, 1, 1], [], []>} : vector<2x64xbf16>, vector<64x256xbf16>, vector<2x256xf32> -> vector<2x256xf32>
    %617 = vector.extract_strided_slice %337 {offsets = [0, 7, 0], sizes = [2, 1, 256], strides = [1, 1, 1]} : vector<2x8x256xf32> to vector<2x1x256xf32>
    %618 = vector.shape_cast %617 : vector<2x1x256xf32> to vector<2x256xf32>
    %619 = vector.extract_strided_slice %339 {offsets = [0, 0, 0], sizes = [2, 1, 256], strides = [1, 1, 1]} : vector<2x8x256xf32> to vector<2x1x256xf32>
    %620 = vector.shape_cast %619 : vector<2x1x256xf32> to vector<2x256xf32>
    %621 = arith.addf %618, %620 : vector<2x256xf32>
    %622 = arith.addf %621, %616 : vector<2x256xf32>
    %623 = vector.extract_strided_slice %622 {offsets = [0, 0], sizes = [2, 64], strides = [1, 1]} : vector<2x256xf32> to vector<2x64xf32>
    %624 = arith.negf %623 : vector<2x64xf32>
    %625 = math.exp %624 : vector<2x64xf32>
    %cst_166 = arith.constant 1.000000e+00 : f32
    %626 = vector.broadcast %cst_166 : f32 to vector<2x64xf32>
    %627 = arith.addf %626, %625 : vector<2x64xf32>
    %628 = arith.divf %626, %627 : vector<2x64xf32>
    %629 = vector.extract_strided_slice %622 {offsets = [0, 64], sizes = [2, 64], strides = [1, 1]} : vector<2x256xf32> to vector<2x64xf32>
    %630 = arith.negf %629 : vector<2x64xf32>
    %631 = math.exp %630 : vector<2x64xf32>
    %cst_167 = arith.constant 1.000000e+00 : f32
    %632 = vector.broadcast %cst_167 : f32 to vector<2x64xf32>
    %633 = arith.addf %632, %631 : vector<2x64xf32>
    %634 = arith.divf %632, %633 : vector<2x64xf32>
    %635 = vector.extract_strided_slice %622 {offsets = [0, 128], sizes = [2, 64], strides = [1, 1]} : vector<2x256xf32> to vector<2x64xf32>
    %636 = math.tanh %635 : vector<2x64xf32>
    %637 = vector.extract_strided_slice %622 {offsets = [0, 192], sizes = [2, 64], strides = [1, 1]} : vector<2x256xf32> to vector<2x64xf32>
    %638 = arith.negf %637 : vector<2x64xf32>
    %639 = math.exp %638 : vector<2x64xf32>
    %cst_168 = arith.constant 1.000000e+00 : f32
    %640 = vector.broadcast %cst_168 : f32 to vector<2x64xf32>
    %641 = arith.addf %640, %639 : vector<2x64xf32>
    %642 = arith.divf %640, %641 : vector<2x64xf32>
    %643 = arith.mulf %634, %606 : vector<2x64xf32>
    %644 = arith.mulf %628, %636 : vector<2x64xf32>
    %645 = arith.addf %643, %644 : vector<2x64xf32>
    %646 = math.tanh %645 : vector<2x64xf32>
    %647 = arith.mulf %642, %646 : vector<2x64xf32>
    %648 = vector.extract_strided_slice %647 {offsets = [0, 0], sizes = [2, 32], strides = [1, 1]} : vector<2x64xf32> to vector<2x32xf32>
    %649 = vector.shape_cast %648 : vector<2x32xf32> to vector<2x1x32xf32>
    %c0_169 = arith.constant 0 : index
    %c7_170 = arith.constant 7 : index
    %c0_171 = arith.constant 0 : index
    %650 = vector.load %arg8[%c0_169, %c7_170, %c0_171] : memref<2x8x64xf32, #tpu.memory_space<vmem>>, vector<2x1x32xf32>
    tpu.vector_store %arg8[%c0_169, %c7_170, %c0_171], %649 {strides = array<i32>} : memref<2x8x64xf32, #tpu.memory_space<vmem>>, vector<2x1x32xf32>,
    %651 = vector.extract_strided_slice %647 {offsets = [0, 32], sizes = [2, 32], strides = [1, 1]} : vector<2x64xf32> to vector<2x32xf32>
    %652 = vector.shape_cast %651 : vector<2x32xf32> to vector<2x1x32xf32>
    %c0_172 = arith.constant 0 : index
    %c0_173 = arith.constant 0 : index
    %c32_174 = arith.constant 32 : index
    %653 = vector.load %arg8[%c0_172, %c0_173, %c32_174] : memref<2x8x64xf32, #tpu.memory_space<vmem>>, vector<2x1x32xf32>
    tpu.vector_store %arg8[%c0_172, %c0_173, %c32_174], %652 {strides = array<i32>} : memref<2x8x64xf32, #tpu.memory_space<vmem>>, vector<2x1x32xf32>,
    %c0_175 = arith.constant 0 : index
    %c0_176 = arith.constant 0 : index
    %654 = vector.load %arg3[%c0_175, %c0_176] : memref<488x192xf32, #tpu.memory_space<vmem>>, vector<64x192xf32>
    %c64_177 = arith.constant 64 : index
    %c0_178 = arith.constant 0 : index
    %655 = vector.load %arg3[%c64_177, %c0_178] : memref<488x192xf32, #tpu.memory_space<vmem>>, vector<64x64xf32>
    %c2_179 = arith.constant 2 : index
    %c0_180 = arith.constant 0 : index
    %656 = vector.load %arg4[%c2_179, %c0_180] : memref<9x256xf32, #tpu.memory_space<vmem>>, vector<1x192xf32>
    %c3_181 = arith.constant 3 : index
    %c0_182 = arith.constant 0 : index
    %657 = vector.load %arg4[%c3_181, %c0_182] : memref<9x256xf32, #tpu.memory_space<vmem>>, vector<1x64xf32>
    %c0_183 = arith.constant 0 : index
    %c0_184 = arith.constant 0 : index
    %c0_185 = arith.constant 0 : index
    %658 = vector.load %arg8[%c0_183, %c0_184, %c0_185] : memref<2x8x64xf32, #tpu.memory_space<vmem>>, vector<2x8x64xf32>
    %659 = vector.shape_cast %658 : vector<2x8x64xf32> to vector<16x64xf32>
    %cst_186 = arith.constant dense<0.000000e+00> : vector<16x192xf32>
    %660 = tpu.matmul %659, %654, %cst_186 {dimension_numbers = #tpu.dot_dimension_numbers<[1], [0], [0], [1], [0, 0, 1, 1], [], []>} : vector<16x64xf32>, vector<64x192xf32>, vector<16x192xf32> -> vector<16x192xf32>
    %661 = vector.broadcast %656 : vector<1x192xf32> to vector<16x192xf32>
    %662 = arith.addf %660, %661 : vector<16x192xf32>
    %663 = vector.extract_strided_slice %662 {offsets = [0, 0], sizes = [16, 64], strides = [1, 1]} : vector<16x192xf32> to vector<16x64xf32>
    %664 = vector.shape_cast %663 : vector<16x64xf32> to vector<2x8x64xf32>
    %665 = vector.extract_strided_slice %662 {offsets = [0, 64], sizes = [16, 64], strides = [1, 1]} : vector<16x192xf32> to vector<16x64xf32>
    %666 = vector.shape_cast %665 : vector<16x64xf32> to vector<2x8x64xf32>
    %667 = vector.extract_strided_slice %662 {offsets = [0, 128], sizes = [16, 64], strides = [1, 1]} : vector<16x192xf32> to vector<16x64xf32>
    %668 = vector.shape_cast %667 : vector<16x64xf32> to vector<2x8x64xf32>
    %cst_187 = arith.constant 0.000000e+00 : f32
    %669 = vector.broadcast %cst_187 : f32 to vector<16x64xf32>
    %670 = vector.extract_strided_slice %664 {offsets = [0, 0, 0], sizes = [2, 8, 8], strides = [1, 1, 1]} : vector<2x8x64xf32> to vector<2x8x8xf32>
    %671 = vector.extract_strided_slice %666 {offsets = [0, 0, 0], sizes = [2, 8, 8], strides = [1, 1, 1]} : vector<2x8x64xf32> to vector<2x8x8xf32>
    "tpu.trace_start"() <{level = 10 : i32, message = "bqd,bkd->bqk"}> : () -> ()
    %cst_188 = arith.constant dense<0.000000e+00> : vector<2x8x8xf32>
    %672 = tpu.matmul %670, %671, %cst_188 {dimension_numbers = #tpu.dot_dimension_numbers<[2], [2], [1], [1], [0, 0, 0, 1, 1, 1], [0], [0]>} : vector<2x8x8xf32>, vector<2x8x8xf32>, vector<2x8x8xf32> -> vector<2x8x8xf32>
    "tpu.trace_stop"() : () -> ()
    %cst_189 = arith.constant 1.250000e-01 : f32
    %673 = vector.broadcast %cst_189 : f32 to vector<2x8x8xf32>
    %674 = arith.mulf %672, %673 : vector<2x8x8xf32>
    %cst_190 = arith.constant dense<0xFF800000> : vector<2x8xf32>
    %675 = vector.multi_reduction <maximumf>, %674, %cst_190 [2] : vector<2x8x8xf32> to vector<2x8xf32>
    %676 = vector.shape_cast %675 : vector<2x8xf32> to vector<2x8x1xf32>
    %677 = vector.broadcast %676 : vector<2x8x1xf32> to vector<2x8x8xf32>
    %678 = arith.subf %674, %677 : vector<2x8x8xf32>
    %679 = math.exp %678 : vector<2x8x8xf32>
    %cst_191 = arith.constant dense<0.000000e+00> : vector<2x8xf32>
    %680 = vector.multi_reduction <add>, %679, %cst_191 [2] : vector<2x8x8xf32> to vector<2x8xf32>
    %681 = vector.shape_cast %680 : vector<2x8xf32> to vector<2x8x1xf32>
    %682 = vector.broadcast %681 : vector<2x8x1xf32> to vector<2x8x8xf32>
    %683 = arith.divf %679, %682 : vector<2x8x8xf32>
    %684 = vector.shape_cast %683 : vector<2x8x8xf32> to vector<2x1x8x8xf32>
    %c0_192 = arith.constant 0 : index
    %c0_193 = arith.constant 0 : index
    %c0_194 = arith.constant 0 : index
    %c0_195 = arith.constant 0 : index
    %685 = vector.load %arg6[%c0_192, %c0_193, %c0_194, %c0_195] : memref<2x8x8x8xf32, #tpu.memory_space<vmem>>, vector<2x1x8x8xf32>
    tpu.vector_store %arg6[%c0_192, %c0_193, %c0_194, %c0_195], %684 {strides = array<i32>} : memref<2x8x8x8xf32, #tpu.memory_space<vmem>>, vector<2x1x8x8xf32>,
    %686 = vector.extract_strided_slice %668 {offsets = [0, 0, 0], sizes = [2, 8, 8], strides = [1, 1, 1]} : vector<2x8x64xf32> to vector<2x8x8xf32>
    "tpu.trace_start"() <{level = 10 : i32, message = "bqk,bkd->bqd"}> : () -> ()
    %cst_196 = arith.constant dense<0.000000e+00> : vector<2x8x8xf32>
    %687 = tpu.matmul %683, %686, %cst_196 {dimension_numbers = #tpu.dot_dimension_numbers<[2], [1], [1], [2], [0, 0, 0, 1, 1, 2], [0], [0]>} : vector<2x8x8xf32>, vector<2x8x8xf32>, vector<2x8x8xf32> -> vector<2x8x8xf32>
    "tpu.trace_stop"() : () -> ()
    %688 = vector.shape_cast %687 : vector<2x8x8xf32> to vector<16x8xf32>
    %689 = vector.extract_strided_slice %655 {offsets = [0, 0], sizes = [8, 64], strides = [1, 1]} : vector<64x64xf32> to vector<8x64xf32>
    %cst_197 = arith.constant dense<0.000000e+00> : vector<16x64xf32>
    %690 = tpu.matmul %688, %689, %cst_197 {dimension_numbers = #tpu.dot_dimension_numbers<[1], [0], [0], [1], [0, 0, 1, 1], [], []>} : vector<16x8xf32>, vector<8x64xf32>, vector<16x64xf32> -> vector<16x64xf32>
    %691 = arith.addf %669, %690 : vector<16x64xf32>
    %692 = vector.extract_strided_slice %664 {offsets = [0, 0, 8], sizes = [2, 8, 8], strides = [1, 1, 1]} : vector<2x8x64xf32> to vector<2x8x8xf32>
    %693 = vector.extract_strided_slice %666 {offsets = [0, 0, 8], sizes = [2, 8, 8], strides = [1, 1, 1]} : vector<2x8x64xf32> to vector<2x8x8xf32>
    "tpu.trace_start"() <{level = 10 : i32, message = "bqd,bkd->bqk"}> : () -> ()
    %cst_198 = arith.constant dense<0.000000e+00> : vector<2x8x8xf32>
    %694 = tpu.matmul %692, %693, %cst_198 {dimension_numbers = #tpu.dot_dimension_numbers<[2], [2], [1], [1], [0, 0, 0, 1, 1, 1], [0], [0]>} : vector<2x8x8xf32>, vector<2x8x8xf32>, vector<2x8x8xf32> -> vector<2x8x8xf32>
    "tpu.trace_stop"() : () -> ()
    %cst_199 = arith.constant 1.250000e-01 : f32
    %695 = vector.broadcast %cst_199 : f32 to vector<2x8x8xf32>
    %696 = arith.mulf %694, %695 : vector<2x8x8xf32>
    %cst_200 = arith.constant dense<0xFF800000> : vector<2x8xf32>
    %697 = vector.multi_reduction <maximumf>, %696, %cst_200 [2] : vector<2x8x8xf32> to vector<2x8xf32>
    %698 = vector.shape_cast %697 : vector<2x8xf32> to vector<2x8x1xf32>
    %699 = vector.broadcast %698 : vector<2x8x1xf32> to vector<2x8x8xf32>
    %700 = arith.subf %696, %699 : vector<2x8x8xf32>
    %701 = math.exp %700 : vector<2x8x8xf32>
    %cst_201 = arith.constant dense<0.000000e+00> : vector<2x8xf32>
    %702 = vector.multi_reduction <add>, %701, %cst_201 [2] : vector<2x8x8xf32> to vector<2x8xf32>
    %703 = vector.shape_cast %702 : vector<2x8xf32> to vector<2x8x1xf32>
    %704 = vector.broadcast %703 : vector<2x8x1xf32> to vector<2x8x8xf32>
    %705 = arith.divf %701, %704 : vector<2x8x8xf32>
    %706 = vector.shape_cast %705 : vector<2x8x8xf32> to vector<2x1x8x8xf32>
    %c0_202 = arith.constant 0 : index
    %c1_203 = arith.constant 1 : index
    %c0_204 = arith.constant 0 : index
    %c0_205 = arith.constant 0 : index
    %707 = vector.load %arg6[%c0_202, %c1_203, %c0_204, %c0_205] : memref<2x8x8x8xf32, #tpu.memory_space<vmem>>, vector<2x1x8x8xf32>
    tpu.vector_store %arg6[%c0_202, %c1_203, %c0_204, %c0_205], %706 {strides = array<i32>} : memref<2x8x8x8xf32, #tpu.memory_space<vmem>>, vector<2x1x8x8xf32>,
    %708 = vector.extract_strided_slice %668 {offsets = [0, 0, 8], sizes = [2, 8, 8], strides = [1, 1, 1]} : vector<2x8x64xf32> to vector<2x8x8xf32>
    "tpu.trace_start"() <{level = 10 : i32, message = "bqk,bkd->bqd"}> : () -> ()
    %cst_206 = arith.constant dense<0.000000e+00> : vector<2x8x8xf32>
    %709 = tpu.matmul %705, %708, %cst_206 {dimension_numbers = #tpu.dot_dimension_numbers<[2], [1], [1], [2], [0, 0, 0, 1, 1, 2], [0], [0]>} : vector<2x8x8xf32>, vector<2x8x8xf32>, vector<2x8x8xf32> -> vector<2x8x8xf32>
    "tpu.trace_stop"() : () -> ()
    %710 = vector.shape_cast %709 : vector<2x8x8xf32> to vector<16x8xf32>
    %711 = vector.extract_strided_slice %655 {offsets = [8, 0], sizes = [8, 64], strides = [1, 1]} : vector<64x64xf32> to vector<8x64xf32>
    %cst_207 = arith.constant dense<0.000000e+00> : vector<16x64xf32>
    %712 = tpu.matmul %710, %711, %cst_207 {dimension_numbers = #tpu.dot_dimension_numbers<[1], [0], [0], [1], [0, 0, 1, 1], [], []>} : vector<16x8xf32>, vector<8x64xf32>, vector<16x64xf32> -> vector<16x64xf32>
    %713 = arith.addf %691, %712 : vector<16x64xf32>
    %714 = vector.extract_strided_slice %664 {offsets = [0, 0, 16], sizes = [2, 8, 8], strides = [1, 1, 1]} : vector<2x8x64xf32> to vector<2x8x8xf32>
    %715 = vector.extract_strided_slice %666 {offsets = [0, 0, 16], sizes = [2, 8, 8], strides = [1, 1, 1]} : vector<2x8x64xf32> to vector<2x8x8xf32>
    "tpu.trace_start"() <{level = 10 : i32, message = "bqd,bkd->bqk"}> : () -> ()
    %cst_208 = arith.constant dense<0.000000e+00> : vector<2x8x8xf32>
    %716 = tpu.matmul %714, %715, %cst_208 {dimension_numbers = #tpu.dot_dimension_numbers<[2], [2], [1], [1], [0, 0, 0, 1, 1, 1], [0], [0]>} : vector<2x8x8xf32>, vector<2x8x8xf32>, vector<2x8x8xf32> -> vector<2x8x8xf32>
    "tpu.trace_stop"() : () -> ()
    %cst_209 = arith.constant 1.250000e-01 : f32
    %717 = vector.broadcast %cst_209 : f32 to vector<2x8x8xf32>
    %718 = arith.mulf %716, %717 : vector<2x8x8xf32>
    %cst_210 = arith.constant dense<0xFF800000> : vector<2x8xf32>
    %719 = vector.multi_reduction <maximumf>, %718, %cst_210 [2] : vector<2x8x8xf32> to vector<2x8xf32>
    %720 = vector.shape_cast %719 : vector<2x8xf32> to vector<2x8x1xf32>
    %721 = vector.broadcast %720 : vector<2x8x1xf32> to vector<2x8x8xf32>
    %722 = arith.subf %718, %721 : vector<2x8x8xf32>
    %723 = math.exp %722 : vector<2x8x8xf32>
    %cst_211 = arith.constant dense<0.000000e+00> : vector<2x8xf32>
    %724 = vector.multi_reduction <add>, %723, %cst_211 [2] : vector<2x8x8xf32> to vector<2x8xf32>
    %725 = vector.shape_cast %724 : vector<2x8xf32> to vector<2x8x1xf32>
    %726 = vector.broadcast %725 : vector<2x8x1xf32> to vector<2x8x8xf32>
    %727 = arith.divf %723, %726 : vector<2x8x8xf32>
    %728 = vector.shape_cast %727 : vector<2x8x8xf32> to vector<2x1x8x8xf32>
    %c0_212 = arith.constant 0 : index
    %c2_213 = arith.constant 2 : index
    %c0_214 = arith.constant 0 : index
    %c0_215 = arith.constant 0 : index
    %729 = vector.load %arg6[%c0_212, %c2_213, %c0_214, %c0_215] : memref<2x8x8x8xf32, #tpu.memory_space<vmem>>, vector<2x1x8x8xf32>
    tpu.vector_store %arg6[%c0_212, %c2_213, %c0_214, %c0_215], %728 {strides = array<i32>} : memref<2x8x8x8xf32, #tpu.memory_space<vmem>>, vector<2x1x8x8xf32>,
    %730 = vector.extract_strided_slice %668 {offsets = [0, 0, 16], sizes = [2, 8, 8], strides = [1, 1, 1]} : vector<2x8x64xf32> to vector<2x8x8xf32>
    "tpu.trace_start"() <{level = 10 : i32, message = "bqk,bkd->bqd"}> : () -> ()
    %cst_216 = arith.constant dense<0.000000e+00> : vector<2x8x8xf32>
    %731 = tpu.matmul %727, %730, %cst_216 {dimension_numbers = #tpu.dot_dimension_numbers<[2], [1], [1], [2], [0, 0, 0, 1, 1, 2], [0], [0]>} : vector<2x8x8xf32>, vector<2x8x8xf32>, vector<2x8x8xf32> -> vector<2x8x8xf32>
    "tpu.trace_stop"() : () -> ()
    %732 = vector.shape_cast %731 : vector<2x8x8xf32> to vector<16x8xf32>
    %733 = vector.extract_strided_slice %655 {offsets = [16, 0], sizes = [8, 64], strides = [1, 1]} : vector<64x64xf32> to vector<8x64xf32>
    %cst_217 = arith.constant dense<0.000000e+00> : vector<16x64xf32>
    %734 = tpu.matmul %732, %733, %cst_217 {dimension_numbers = #tpu.dot_dimension_numbers<[1], [0], [0], [1], [0, 0, 1, 1], [], []>} : vector<16x8xf32>, vector<8x64xf32>, vector<16x64xf32> -> vector<16x64xf32>
    %735 = arith.addf %713, %734 : vector<16x64xf32>
    %736 = vector.extract_strided_slice %664 {offsets = [0, 0, 24], sizes = [2, 8, 8], strides = [1, 1, 1]} : vector<2x8x64xf32> to vector<2x8x8xf32>
    %737 = vector.extract_strided_slice %666 {offsets = [0, 0, 24], sizes = [2, 8, 8], strides = [1, 1, 1]} : vector<2x8x64xf32> to vector<2x8x8xf32>
    "tpu.trace_start"() <{level = 10 : i32, message = "bqd,bkd->bqk"}> : () -> ()
    %cst_218 = arith.constant dense<0.000000e+00> : vector<2x8x8xf32>
    %738 = tpu.matmul %736, %737, %cst_218 {dimension_numbers = #tpu.dot_dimension_numbers<[2], [2], [1], [1], [0, 0, 0, 1, 1, 1], [0], [0]>} : vector<2x8x8xf32>, vector<2x8x8xf32>, vector<2x8x8xf32> -> vector<2x8x8xf32>
    "tpu.trace_stop"() : () -> ()
    %cst_219 = arith.constant 1.250000e-01 : f32
    %739 = vector.broadcast %cst_219 : f32 to vector<2x8x8xf32>
    %740 = arith.mulf %738, %739 : vector<2x8x8xf32>
    %cst_220 = arith.constant dense<0xFF800000> : vector<2x8xf32>
    %741 = vector.multi_reduction <maximumf>, %740, %cst_220 [2] : vector<2x8x8xf32> to vector<2x8xf32>
    %742 = vector.shape_cast %741 : vector<2x8xf32> to vector<2x8x1xf32>
    %743 = vector.broadcast %742 : vector<2x8x1xf32> to vector<2x8x8xf32>
    %744 = arith.subf %740, %743 : vector<2x8x8xf32>
    %745 = math.exp %744 : vector<2x8x8xf32>
    %cst_221 = arith.constant dense<0.000000e+00> : vector<2x8xf32>
    %746 = vector.multi_reduction <add>, %745, %cst_221 [2] : vector<2x8x8xf32> to vector<2x8xf32>
    %747 = vector.shape_cast %746 : vector<2x8xf32> to vector<2x8x1xf32>
    %748 = vector.broadcast %747 : vector<2x8x1xf32> to vector<2x8x8xf32>
    %749 = arith.divf %745, %748 : vector<2x8x8xf32>
    %750 = vector.shape_cast %749 : vector<2x8x8xf32> to vector<2x1x8x8xf32>
    %c0_222 = arith.constant 0 : index
    %c3_223 = arith.constant 3 : index
    %c0_224 = arith.constant 0 : index
    %c0_225 = arith.constant 0 : index
    %751 = vector.load %arg6[%c0_222, %c3_223, %c0_224, %c0_225] : memref<2x8x8x8xf32, #tpu.memory_space<vmem>>, vector<2x1x8x8xf32>
    tpu.vector_store %arg6[%c0_222, %c3_223, %c0_224, %c0_225], %750 {strides = array<i32>} : memref<2x8x8x8xf32, #tpu.memory_space<vmem>>, vector<2x1x8x8xf32>,
    %752 = vector.extract_strided_slice %668 {offsets = [0, 0, 24], sizes = [2, 8, 8], strides = [1, 1, 1]} : vector<2x8x64xf32> to vector<2x8x8xf32>
    "tpu.trace_start"() <{level = 10 : i32, message = "bqk,bkd->bqd"}> : () -> ()
    %cst_226 = arith.constant dense<0.000000e+00> : vector<2x8x8xf32>
    %753 = tpu.matmul %749, %752, %cst_226 {dimension_numbers = #tpu.dot_dimension_numbers<[2], [1], [1], [2], [0, 0, 0, 1, 1, 2], [0], [0]>} : vector<2x8x8xf32>, vector<2x8x8xf32>, vector<2x8x8xf32> -> vector<2x8x8xf32>
    "tpu.trace_stop"() : () -> ()
    %754 = vector.shape_cast %753 : vector<2x8x8xf32> to vector<16x8xf32>
    %755 = vector.extract_strided_slice %655 {offsets = [24, 0], sizes = [8, 64], strides = [1, 1]} : vector<64x64xf32> to vector<8x64xf32>
    %cst_227 = arith.constant dense<0.000000e+00> : vector<16x64xf32>
    %756 = tpu.matmul %754, %755, %cst_227 {dimension_numbers = #tpu.dot_dimension_numbers<[1], [0], [0], [1], [0, 0, 1, 1], [], []>} : vector<16x8xf32>, vector<8x64xf32>, vector<16x64xf32> -> vector<16x64xf32>
    %757 = arith.addf %735, %756 : vector<16x64xf32>
    %758 = vector.extract_strided_slice %664 {offsets = [0, 0, 32], sizes = [2, 8, 8], strides = [1, 1, 1]} : vector<2x8x64xf32> to vector<2x8x8xf32>
    %759 = vector.extract_strided_slice %666 {offsets = [0, 0, 32], sizes = [2, 8, 8], strides = [1, 1, 1]} : vector<2x8x64xf32> to vector<2x8x8xf32>
    "tpu.trace_start"() <{level = 10 : i32, message = "bqd,bkd->bqk"}> : () -> ()
    %cst_228 = arith.constant dense<0.000000e+00> : vector<2x8x8xf32>
    %760 = tpu.matmul %758, %759, %cst_228 {dimension_numbers = #tpu.dot_dimension_numbers<[2], [2], [1], [1], [0, 0, 0, 1, 1, 1], [0], [0]>} : vector<2x8x8xf32>, vector<2x8x8xf32>, vector<2x8x8xf32> -> vector<2x8x8xf32>
    "tpu.trace_stop"() : () -> ()
    %cst_229 = arith.constant 1.250000e-01 : f32
    %761 = vector.broadcast %cst_229 : f32 to vector<2x8x8xf32>
    %762 = arith.mulf %760, %761 : vector<2x8x8xf32>
    %cst_230 = arith.constant dense<0xFF800000> : vector<2x8xf32>
    %763 = vector.multi_reduction <maximumf>, %762, %cst_230 [2] : vector<2x8x8xf32> to vector<2x8xf32>
    %764 = vector.shape_cast %763 : vector<2x8xf32> to vector<2x8x1xf32>
    %765 = vector.broadcast %764 : vector<2x8x1xf32> to vector<2x8x8xf32>
    %766 = arith.subf %762, %765 : vector<2x8x8xf32>
    %767 = math.exp %766 : vector<2x8x8xf32>
    %cst_231 = arith.constant dense<0.000000e+00> : vector<2x8xf32>
    %768 = vector.multi_reduction <add>, %767, %cst_231 [2] : vector<2x8x8xf32> to vector<2x8xf32>
    %769 = vector.shape_cast %768 : vector<2x8xf32> to vector<2x8x1xf32>
    %770 = vector.broadcast %769 : vector<2x8x1xf32> to vector<2x8x8xf32>
    %771 = arith.divf %767, %770 : vector<2x8x8xf32>
    %772 = vector.shape_cast %771 : vector<2x8x8xf32> to vector<2x1x8x8xf32>
    %c0_232 = arith.constant 0 : index
    %c4_233 = arith.constant 4 : index
    %c0_234 = arith.constant 0 : index
    %c0_235 = arith.constant 0 : index
    %773 = vector.load %arg6[%c0_232, %c4_233, %c0_234, %c0_235] : memref<2x8x8x8xf32, #tpu.memory_space<vmem>>, vector<2x1x8x8xf32>
    tpu.vector_store %arg6[%c0_232, %c4_233, %c0_234, %c0_235], %772 {strides = array<i32>} : memref<2x8x8x8xf32, #tpu.memory_space<vmem>>, vector<2x1x8x8xf32>,
    %774 = vector.extract_strided_slice %668 {offsets = [0, 0, 32], sizes = [2, 8, 8], strides = [1, 1, 1]} : vector<2x8x64xf32> to vector<2x8x8xf32>
    "tpu.trace_start"() <{level = 10 : i32, message = "bqk,bkd->bqd"}> : () -> ()
    %cst_236 = arith.constant dense<0.000000e+00> : vector<2x8x8xf32>
    %775 = tpu.matmul %771, %774, %cst_236 {dimension_numbers = #tpu.dot_dimension_numbers<[2], [1], [1], [2], [0, 0, 0, 1, 1, 2], [0], [0]>} : vector<2x8x8xf32>, vector<2x8x8xf32>, vector<2x8x8xf32> -> vector<2x8x8xf32>
    "tpu.trace_stop"() : () -> ()
    %776 = vector.shape_cast %775 : vector<2x8x8xf32> to vector<16x8xf32>
    %777 = vector.extract_strided_slice %655 {offsets = [32, 0], sizes = [8, 64], strides = [1, 1]} : vector<64x64xf32> to vector<8x64xf32>
    %cst_237 = arith.constant dense<0.000000e+00> : vector<16x64xf32>
    %778 = tpu.matmul %776, %777, %cst_237 {dimension_numbers = #tpu.dot_dimension_numbers<[1], [0], [0], [1], [0, 0, 1, 1], [], []>} : vector<16x8xf32>, vector<8x64xf32>, vector<16x64xf32> -> vector<16x64xf32>
    %779 = arith.addf %757, %778 : vector<16x64xf32>
    %780 = vector.extract_strided_slice %664 {offsets = [0, 0, 40], sizes = [2, 8, 8], strides = [1, 1, 1]} : vector<2x8x64xf32> to vector<2x8x8xf32>
    %781 = vector.extract_strided_slice %666 {offsets = [0, 0, 40], sizes = [2, 8, 8], strides = [1, 1, 1]} : vector<2x8x64xf32> to vector<2x8x8xf32>
    "tpu.trace_start"() <{level = 10 : i32, message = "bqd,bkd->bqk"}> : () -> ()
    %cst_238 = arith.constant dense<0.000000e+00> : vector<2x8x8xf32>
    %782 = tpu.matmul %780, %781, %cst_238 {dimension_numbers = #tpu.dot_dimension_numbers<[2], [2], [1], [1], [0, 0, 0, 1, 1, 1], [0], [0]>} : vector<2x8x8xf32>, vector<2x8x8xf32>, vector<2x8x8xf32> -> vector<2x8x8xf32>
    "tpu.trace_stop"() : () -> ()
    %cst_239 = arith.constant 1.250000e-01 : f32
    %783 = vector.broadcast %cst_239 : f32 to vector<2x8x8xf32>
    %784 = arith.mulf %782, %783 : vector<2x8x8xf32>
    %cst_240 = arith.constant dense<0xFF800000> : vector<2x8xf32>
    %785 = vector.multi_reduction <maximumf>, %784, %cst_240 [2] : vector<2x8x8xf32> to vector<2x8xf32>
    %786 = vector.shape_cast %785 : vector<2x8xf32> to vector<2x8x1xf32>
    %787 = vector.broadcast %786 : vector<2x8x1xf32> to vector<2x8x8xf32>
    %788 = arith.subf %784, %787 : vector<2x8x8xf32>
    %789 = math.exp %788 : vector<2x8x8xf32>
    %cst_241 = arith.constant dense<0.000000e+00> : vector<2x8xf32>
    %790 = vector.multi_reduction <add>, %789, %cst_241 [2] : vector<2x8x8xf32> to vector<2x8xf32>
    %791 = vector.shape_cast %790 : vector<2x8xf32> to vector<2x8x1xf32>
    %792 = vector.broadcast %791 : vector<2x8x1xf32> to vector<2x8x8xf32>
    %793 = arith.divf %789, %792 : vector<2x8x8xf32>
    %794 = vector.shape_cast %793 : vector<2x8x8xf32> to vector<2x1x8x8xf32>
    %c0_242 = arith.constant 0 : index
    %c5_243 = arith.constant 5 : index
    %c0_244 = arith.constant 0 : index
    %c0_245 = arith.constant 0 : index
    %795 = vector.load %arg6[%c0_242, %c5_243, %c0_244, %c0_245] : memref<2x8x8x8xf32, #tpu.memory_space<vmem>>, vector<2x1x8x8xf32>
    tpu.vector_store %arg6[%c0_242, %c5_243, %c0_244, %c0_245], %794 {strides = array<i32>} : memref<2x8x8x8xf32, #tpu.memory_space<vmem>>, vector<2x1x8x8xf32>,
    %796 = vector.extract_strided_slice %668 {offsets = [0, 0, 40], sizes = [2, 8, 8], strides = [1, 1, 1]} : vector<2x8x64xf32> to vector<2x8x8xf32>
    "tpu.trace_start"() <{level = 10 : i32, message = "bqk,bkd->bqd"}> : () -> ()
    %cst_246 = arith.constant dense<0.000000e+00> : vector<2x8x8xf32>
    %797 = tpu.matmul %793, %796, %cst_246 {dimension_numbers = #tpu.dot_dimension_numbers<[2], [1], [1], [2], [0, 0, 0, 1, 1, 2], [0], [0]>} : vector<2x8x8xf32>, vector<2x8x8xf32>, vector<2x8x8xf32> -> vector<2x8x8xf32>
    "tpu.trace_stop"() : () -> ()
    %798 = vector.shape_cast %797 : vector<2x8x8xf32> to vector<16x8xf32>
    %799 = vector.extract_strided_slice %655 {offsets = [40, 0], sizes = [8, 64], strides = [1, 1]} : vector<64x64xf32> to vector<8x64xf32>
    %cst_247 = arith.constant dense<0.000000e+00> : vector<16x64xf32>
    %800 = tpu.matmul %798, %799, %cst_247 {dimension_numbers = #tpu.dot_dimension_numbers<[1], [0], [0], [1], [0, 0, 1, 1], [], []>} : vector<16x8xf32>, vector<8x64xf32>, vector<16x64xf32> -> vector<16x64xf32>
    %801 = arith.addf %779, %800 : vector<16x64xf32>
    %802 = vector.extract_strided_slice %664 {offsets = [0, 0, 48], sizes = [2, 8, 8], strides = [1, 1, 1]} : vector<2x8x64xf32> to vector<2x8x8xf32>
    %803 = vector.extract_strided_slice %666 {offsets = [0, 0, 48], sizes = [2, 8, 8], strides = [1, 1, 1]} : vector<2x8x64xf32> to vector<2x8x8xf32>
    "tpu.trace_start"() <{level = 10 : i32, message = "bqd,bkd->bqk"}> : () -> ()
    %cst_248 = arith.constant dense<0.000000e+00> : vector<2x8x8xf32>
    %804 = tpu.matmul %802, %803, %cst_248 {dimension_numbers = #tpu.dot_dimension_numbers<[2], [2], [1], [1], [0, 0, 0, 1, 1, 1], [0], [0]>} : vector<2x8x8xf32>, vector<2x8x8xf32>, vector<2x8x8xf32> -> vector<2x8x8xf32>
    "tpu.trace_stop"() : () -> ()
    %cst_249 = arith.constant 1.250000e-01 : f32
    %805 = vector.broadcast %cst_249 : f32 to vector<2x8x8xf32>
    %806 = arith.mulf %804, %805 : vector<2x8x8xf32>
    %cst_250 = arith.constant dense<0xFF800000> : vector<2x8xf32>
    %807 = vector.multi_reduction <maximumf>, %806, %cst_250 [2] : vector<2x8x8xf32> to vector<2x8xf32>
    %808 = vector.shape_cast %807 : vector<2x8xf32> to vector<2x8x1xf32>
    %809 = vector.broadcast %808 : vector<2x8x1xf32> to vector<2x8x8xf32>
    %810 = arith.subf %806, %809 : vector<2x8x8xf32>
    %811 = math.exp %810 : vector<2x8x8xf32>
    %cst_251 = arith.constant dense<0.000000e+00> : vector<2x8xf32>
    %812 = vector.multi_reduction <add>, %811, %cst_251 [2] : vector<2x8x8xf32> to vector<2x8xf32>
    %813 = vector.shape_cast %812 : vector<2x8xf32> to vector<2x8x1xf32>
    %814 = vector.broadcast %813 : vector<2x8x1xf32> to vector<2x8x8xf32>
    %815 = arith.divf %811, %814 : vector<2x8x8xf32>
    %816 = vector.shape_cast %815 : vector<2x8x8xf32> to vector<2x1x8x8xf32>
    %c0_252 = arith.constant 0 : index
    %c6_253 = arith.constant 6 : index
    %c0_254 = arith.constant 0 : index
    %c0_255 = arith.constant 0 : index
    %817 = vector.load %arg6[%c0_252, %c6_253, %c0_254, %c0_255] : memref<2x8x8x8xf32, #tpu.memory_space<vmem>>, vector<2x1x8x8xf32>
    tpu.vector_store %arg6[%c0_252, %c6_253, %c0_254, %c0_255], %816 {strides = array<i32>} : memref<2x8x8x8xf32, #tpu.memory_space<vmem>>, vector<2x1x8x8xf32>,
    %818 = vector.extract_strided_slice %668 {offsets = [0, 0, 48], sizes = [2, 8, 8], strides = [1, 1, 1]} : vector<2x8x64xf32> to vector<2x8x8xf32>
    "tpu.trace_start"() <{level = 10 : i32, message = "bqk,bkd->bqd"}> : () -> ()
    %cst_256 = arith.constant dense<0.000000e+00> : vector<2x8x8xf32>
    %819 = tpu.matmul %815, %818, %cst_256 {dimension_numbers = #tpu.dot_dimension_numbers<[2], [1], [1], [2], [0, 0, 0, 1, 1, 2], [0], [0]>} : vector<2x8x8xf32>, vector<2x8x8xf32>, vector<2x8x8xf32> -> vector<2x8x8xf32>
    "tpu.trace_stop"() : () -> ()
    %820 = vector.shape_cast %819 : vector<2x8x8xf32> to vector<16x8xf32>
    %821 = vector.extract_strided_slice %655 {offsets = [48, 0], sizes = [8, 64], strides = [1, 1]} : vector<64x64xf32> to vector<8x64xf32>
    %cst_257 = arith.constant dense<0.000000e+00> : vector<16x64xf32>
    %822 = tpu.matmul %820, %821, %cst_257 {dimension_numbers = #tpu.dot_dimension_numbers<[1], [0], [0], [1], [0, 0, 1, 1], [], []>} : vector<16x8xf32>, vector<8x64xf32>, vector<16x64xf32> -> vector<16x64xf32>
    %823 = arith.addf %801, %822 : vector<16x64xf32>
    %824 = vector.extract_strided_slice %664 {offsets = [0, 0, 56], sizes = [2, 8, 8], strides = [1, 1, 1]} : vector<2x8x64xf32> to vector<2x8x8xf32>
    %825 = vector.extract_strided_slice %666 {offsets = [0, 0, 56], sizes = [2, 8, 8], strides = [1, 1, 1]} : vector<2x8x64xf32> to vector<2x8x8xf32>
    "tpu.trace_start"() <{level = 10 : i32, message = "bqd,bkd->bqk"}> : () -> ()
    %cst_258 = arith.constant dense<0.000000e+00> : vector<2x8x8xf32>
    %826 = tpu.matmul %824, %825, %cst_258 {dimension_numbers = #tpu.dot_dimension_numbers<[2], [2], [1], [1], [0, 0, 0, 1, 1, 1], [0], [0]>} : vector<2x8x8xf32>, vector<2x8x8xf32>, vector<2x8x8xf32> -> vector<2x8x8xf32>
    "tpu.trace_stop"() : () -> ()
    %cst_259 = arith.constant 1.250000e-01 : f32
    %827 = vector.broadcast %cst_259 : f32 to vector<2x8x8xf32>
    %828 = arith.mulf %826, %827 : vector<2x8x8xf32>
    %cst_260 = arith.constant dense<0xFF800000> : vector<2x8xf32>
    %829 = vector.multi_reduction <maximumf>, %828, %cst_260 [2] : vector<2x8x8xf32> to vector<2x8xf32>
    %830 = vector.shape_cast %829 : vector<2x8xf32> to vector<2x8x1xf32>
    %831 = vector.broadcast %830 : vector<2x8x1xf32> to vector<2x8x8xf32>
    %832 = arith.subf %828, %831 : vector<2x8x8xf32>
    %833 = math.exp %832 : vector<2x8x8xf32>
    %cst_261 = arith.constant dense<0.000000e+00> : vector<2x8xf32>
    %834 = vector.multi_reduction <add>, %833, %cst_261 [2] : vector<2x8x8xf32> to vector<2x8xf32>
    %835 = vector.shape_cast %834 : vector<2x8xf32> to vector<2x8x1xf32>
    %836 = vector.broadcast %835 : vector<2x8x1xf32> to vector<2x8x8xf32>
    %837 = arith.divf %833, %836 : vector<2x8x8xf32>
    %838 = vector.shape_cast %837 : vector<2x8x8xf32> to vector<2x1x8x8xf32>
    %c0_262 = arith.constant 0 : index
    %c7_263 = arith.constant 7 : index
    %c0_264 = arith.constant 0 : index
    %c0_265 = arith.constant 0 : index
    %839 = vector.load %arg6[%c0_262, %c7_263, %c0_264, %c0_265] : memref<2x8x8x8xf32, #tpu.memory_space<vmem>>, vector<2x1x8x8xf32>
    tpu.vector_store %arg6[%c0_262, %c7_263, %c0_264, %c0_265], %838 {strides = array<i32>} : memref<2x8x8x8xf32, #tpu.memory_space<vmem>>, vector<2x1x8x8xf32>,
    %840 = vector.extract_strided_slice %668 {offsets = [0, 0, 56], sizes = [2, 8, 8], strides = [1, 1, 1]} : vector<2x8x64xf32> to vector<2x8x8xf32>
    "tpu.trace_start"() <{level = 10 : i32, message = "bqk,bkd->bqd"}> : () -> ()
    %cst_266 = arith.constant dense<0.000000e+00> : vector<2x8x8xf32>
    %841 = tpu.matmul %837, %840, %cst_266 {dimension_numbers = #tpu.dot_dimension_numbers<[2], [1], [1], [2], [0, 0, 0, 1, 1, 2], [0], [0]>} : vector<2x8x8xf32>, vector<2x8x8xf32>, vector<2x8x8xf32> -> vector<2x8x8xf32>
    "tpu.trace_stop"() : () -> ()
    %842 = vector.shape_cast %841 : vector<2x8x8xf32> to vector<16x8xf32>
    %843 = vector.extract_strided_slice %655 {offsets = [56, 0], sizes = [8, 64], strides = [1, 1]} : vector<64x64xf32> to vector<8x64xf32>
    %cst_267 = arith.constant dense<0.000000e+00> : vector<16x64xf32>
    %844 = tpu.matmul %842, %843, %cst_267 {dimension_numbers = #tpu.dot_dimension_numbers<[1], [0], [0], [1], [0, 0, 1, 1], [], []>} : vector<16x8xf32>, vector<8x64xf32>, vector<16x64xf32> -> vector<16x64xf32>
    %845 = arith.addf %823, %844 : vector<16x64xf32>
    %846 = vector.broadcast %657 : vector<1x64xf32> to vector<16x64xf32>
    %847 = arith.addf %845, %846 : vector<16x64xf32>
    %848 = vector.shape_cast %847 : vector<16x64xf32> to vector<2x8x64xf32>
    %c128_268 = arith.constant 128 : index
    %c0_269 = arith.constant 0 : index
    %849 = vector.load %arg3[%c128_268, %c0_269] : memref<488x192xf32, #tpu.memory_space<vmem>>, vector<7x64xf32>
    %c136 = arith.constant 136 : index
    %c0_270 = arith.constant 0 : index
    %850 = vector.load %arg3[%c136, %c0_270] : memref<488x192xf32, #tpu.memory_space<vmem>>, vector<64x128xf32>
    %c200 = arith.constant 200 : index
    %c0_271 = arith.constant 0 : index
    %851 = vector.load %arg3[%c200, %c0_271] : memref<488x192xf32, #tpu.memory_space<vmem>>, vector<64x128xf32>
    %c264 = arith.constant 264 : index
    %c0_272 = arith.constant 0 : index
    %852 = vector.load %arg3[%c264, %c0_272] : memref<488x192xf32, #tpu.memory_space<vmem>>, vector<128x64xf32>
    %c392 = arith.constant 392 : index
    %c0_273 = arith.constant 0 : index
    %853 = vector.load %arg3[%c392, %c0_273] : memref<488x192xf32, #tpu.memory_space<vmem>>, vector<64x32xf32>
    %c456 = arith.constant 456 : index
    %c0_274 = arith.constant 0 : index
    %854 = vector.load %arg3[%c456, %c0_274] : memref<488x192xf32, #tpu.memory_space<vmem>>, vector<32x14xf32>
    %c4_275 = arith.constant 4 : index
    %c0_276 = arith.constant 0 : index
    %855 = vector.load %arg4[%c4_275, %c0_276] : memref<9x256xf32, #tpu.memory_space<vmem>>, vector<1x64xf32>
    %c5_277 = arith.constant 5 : index
    %c0_278 = arith.constant 0 : index
    %856 = vector.load %arg4[%c5_277, %c0_278] : memref<9x256xf32, #tpu.memory_space<vmem>>, vector<1x128xf32>
    %c6_279 = arith.constant 6 : index
    %c0_280 = arith.constant 0 : index
    %857 = vector.load %arg4[%c6_279, %c0_280] : memref<9x256xf32, #tpu.memory_space<vmem>>, vector<1x64xf32>
    %c7_281 = arith.constant 7 : index
    %c0_282 = arith.constant 0 : index
    %858 = vector.load %arg4[%c7_281, %c0_282] : memref<9x256xf32, #tpu.memory_space<vmem>>, vector<1x32xf32>
    %c8 = arith.constant 8 : index
    %c0_283 = arith.constant 0 : index
    %859 = vector.load %arg4[%c8, %c0_283] : memref<9x256xf32, #tpu.memory_space<vmem>>, vector<1x14xf32>
    %cst_284 = arith.constant dense<0.000000e+00> : vector<2x64xf32>
    %860 = vector.multi_reduction <add>, %848, %cst_284 [1] : vector<2x8x64xf32> to vector<2x64xf32>
    %cst_285 = arith.constant 8.000000e+00 : f32
    %861 = vector.broadcast %cst_285 : f32 to vector<2x64xf32>
    %862 = arith.divf %860, %861 : vector<2x64xf32>
    %c0_286 = arith.constant 0 : index
    %c0_287 = arith.constant 0 : index
    %863 = vector.load %arg1[%c0_286, %c0_287] : memref<2x7xf32, #tpu.memory_space<vmem>>, vector<2x7xf32>
    %cst_288 = arith.constant dense<0.000000e+00> : vector<2x64xf32>
    %864 = tpu.matmul %863, %849, %cst_288 {dimension_numbers = #tpu.dot_dimension_numbers<[1], [0], [0], [1], [0, 0, 1, 1], [], []>} : vector<2x7xf32>, vector<7x64xf32>, vector<2x64xf32> -> vector<2x64xf32>
    %865 = vector.broadcast %855 : vector<1x64xf32> to vector<2x64xf32>
    %866 = arith.addf %864, %865 : vector<2x64xf32>
    %cst_289 = arith.constant 0.000000e+00 : f32
    %867 = vector.broadcast %cst_289 : f32 to vector<2x64xf32>
    %868 = arith.maximumf %866, %867 : vector<2x64xf32>
    %cst_290 = arith.constant dense<0.000000e+00> : vector<2x128xf32>
    %869 = tpu.matmul %862, %850, %cst_290 {dimension_numbers = #tpu.dot_dimension_numbers<[1], [0], [0], [1], [0, 0, 1, 1], [], []>} : vector<2x64xf32>, vector<64x128xf32>, vector<2x128xf32> -> vector<2x128xf32>
    %cst_291 = arith.constant dense<0.000000e+00> : vector<2x128xf32>
    %870 = tpu.matmul %868, %851, %cst_291 {dimension_numbers = #tpu.dot_dimension_numbers<[1], [0], [0], [1], [0, 0, 1, 1], [], []>} : vector<2x64xf32>, vector<64x128xf32>, vector<2x128xf32> -> vector<2x128xf32>
    %871 = arith.addf %869, %870 : vector<2x128xf32>
    %872 = vector.broadcast %856 : vector<1x128xf32> to vector<2x128xf32>
    %873 = arith.addf %871, %872 : vector<2x128xf32>
    %cst_292 = arith.constant 0.000000e+00 : f32
    %874 = vector.broadcast %cst_292 : f32 to vector<2x128xf32>
    %875 = arith.maximumf %873, %874 : vector<2x128xf32>
    %cst_293 = arith.constant dense<0.000000e+00> : vector<2x64xf32>
    %876 = tpu.matmul %875, %852, %cst_293 {dimension_numbers = #tpu.dot_dimension_numbers<[1], [0], [0], [1], [0, 0, 1, 1], [], []>} : vector<2x128xf32>, vector<128x64xf32>, vector<2x64xf32> -> vector<2x64xf32>
    %877 = vector.broadcast %857 : vector<1x64xf32> to vector<2x64xf32>
    %878 = arith.addf %876, %877 : vector<2x64xf32>
    %cst_294 = arith.constant 0.000000e+00 : f32
    %879 = vector.broadcast %cst_294 : f32 to vector<2x64xf32>
    %880 = arith.maximumf %878, %879 : vector<2x64xf32>
    %cst_295 = arith.constant dense<0.000000e+00> : vector<2x32xf32>
    %881 = tpu.matmul %880, %853, %cst_295 {dimension_numbers = #tpu.dot_dimension_numbers<[1], [0], [0], [1], [0, 0, 1, 1], [], []>} : vector<2x64xf32>, vector<64x32xf32>, vector<2x32xf32> -> vector<2x32xf32>
    %882 = vector.broadcast %858 : vector<1x32xf32> to vector<2x32xf32>
    %883 = arith.addf %881, %882 : vector<2x32xf32>
    %cst_296 = arith.constant 0.000000e+00 : f32
    %884 = vector.broadcast %cst_296 : f32 to vector<2x32xf32>
    %885 = arith.maximumf %883, %884 : vector<2x32xf32>
    %cst_297 = arith.constant dense<0.000000e+00> : vector<2x14xf32>
    %886 = tpu.matmul %885, %854, %cst_297 {dimension_numbers = #tpu.dot_dimension_numbers<[1], [0], [0], [1], [0, 0, 1, 1], [], []>} : vector<2x32xf32>, vector<32x14xf32>, vector<2x14xf32> -> vector<2x14xf32>
    %887 = vector.broadcast %859 : vector<1x14xf32> to vector<2x14xf32>
    %888 = arith.addf %886, %887 : vector<2x14xf32>
    %889 = vector.extract_strided_slice %888 {offsets = [0, 0], sizes = [2, 7], strides = [1, 1]} : vector<2x14xf32> to vector<2x7xf32>
    %cst_298 = arith.constant dense<0xFF800000> : vector<2xf32>
    %890 = vector.multi_reduction <maximumf>, %889, %cst_298 [1] : vector<2x7xf32> to vector<2xf32>
    %891 = vector.shape_cast %890 : vector<2xf32> to vector<2x1xf32>
    %892 = vector.broadcast %891 : vector<2x1xf32> to vector<2x7xf32>
    %893 = arith.subf %889, %892 : vector<2x7xf32>
    %894 = math.exp %893 : vector<2x7xf32>
    %cst_299 = arith.constant dense<0.000000e+00> : vector<2xf32>
    %895 = vector.multi_reduction <add>, %894, %cst_299 [1] : vector<2x7xf32> to vector<2xf32>
    %896 = vector.shape_cast %895 : vector<2xf32> to vector<2x1xf32>
    %897 = vector.broadcast %896 : vector<2x1xf32> to vector<2x7xf32>
    %898 = arith.divf %894, %897 : vector<2x7xf32>
    %c0_300 = arith.constant 0 : index
    %c0_301 = arith.constant 0 : index
    %899 = vector.load %arg5[%c0_300, %c0_301] : memref<2x14xf32, #tpu.memory_space<vmem>>, vector<2x7xf32>
    tpu.vector_store %arg5[%c0_300, %c0_301], %898 {strides = array<i32>} : memref<2x14xf32, #tpu.memory_space<vmem>>, vector<2x7xf32>,
    %900 = vector.extract_strided_slice %888 {offsets = [0, 7], sizes = [2, 7], strides = [1, 1]} : vector<2x14xf32> to vector<2x7xf32>
    %cst_302 = arith.constant 0.000000e+00 : f32
    %901 = vector.broadcast %cst_302 : f32 to vector<2x7xf32>
    %902 = arith.maximumf %900, %901 : vector<2x7xf32>
    %903 = math.absf %900 : vector<2x7xf32>
    %cst_303 = arith.constant 0.000000e+00 : f32
    %904 = vector.broadcast %cst_303 : f32 to vector<2x7xf32>
    %905 = arith.subf %904, %903 : vector<2x7xf32>
    %906 = math.exp %905 : vector<2x7xf32>
    %cst_304 = arith.constant 1.000000e+00 : f32
    %907 = vector.broadcast %cst_304 : f32 to vector<2x7xf32>
    %908 = arith.addf %907, %906 : vector<2x7xf32>
    %909 = math.log %908 : vector<2x7xf32>
    %910 = arith.addf %902, %909 : vector<2x7xf32>
    %c0_305 = arith.constant 0 : index
    %c7_306 = arith.constant 7 : index
    %911 = vector.load %arg5[%c0_305, %c7_306] : memref<2x14xf32, #tpu.memory_space<vmem>>, vector<2x7xf32>
    tpu.vector_store %arg5[%c0_305, %c7_306], %910 {strides = array<i32>} : memref<2x14xf32, #tpu.memory_space<vmem>>, vector<2x7xf32>,
    return
  }
}

</mosaic_0001>

<llo_original>
// kernel: abundance_forward.1
$region0: #{abundance_forward.1}
  #allocation0 [shape = 'u32[]', space=smem, size = 0x4, offset = 0x4, fixed_abs, tag = 'smem constant byte address 0x4 - core index']
  #allocation1 [shape = 'u32[144,128]{1,0:T(1,128)}', space=vmem, size = 0x12000, scoped, tag = 'internal scratch']
  #allocation2 [shape = 'f32[2,8,64]{2,1,0:T(8,128)}', space=vmem, size = 0x2000, scoped, tag = 'scratch operand']
  #allocation3 [shape = 'f32[2,8,64]{2,1,0:T(8,128)}', space=vmem, size = 0x2000, scoped, tag = 'scratch operand']
  %s0 = inlined_call_operand.vmem [shape: f32[2,8,2], index: 0, kind: input, shape index: {}]
  %s1 = inlined_call_operand.vmem [shape: f32[2,7], index: 1, kind: input, shape index: {}]
  %s2 = inlined_call_operand.vmem [shape: bf16[288,256], index: 2, kind: input, shape index: {}]
  %s3 = inlined_call_operand.vmem [shape: f32[488,192], index: 3, kind: input, shape index: {}]
  %s4 = inlined_call_operand.vmem [shape: f32[9,256], index: 4, kind: input, shape index: {}]
  %s5 = inlined_call_operand.vmem [shape: f32[2,14], index: 5, kind: output, shape index: {0}]
  %s6 = inlined_call_operand.hbm [shape: f32[2,8,8,8], index: 6, kind: output, shape index: {1}]
  %7 = xla_tuple %s5, %s6
  %s8 = sld [smem:[#allocation0]]
  $region38: #{abundance_forward.1} parent=0
    _
  %s10 = ssub.s32 1, %s8
  %s11 = scalar_select 0, %s10, %s8
  $region1: #{abundance_forward.1} parent=0
    #allocation4 [shape = 'u8[65536]{0}', space=vmem, size = 0x10000, scoped, tag = 'output window, operand 1, single buffered']
    #allocation5 [shape = 's32[1]{0}', space=sflag, size = 0x4, scoped, tag = 'scoped memory for abundance_forward.1']
    %12 = vsyncpa [#allocation5], 0
    // Predicated region
    $region2: #{abundance_forward.1} parent=1 // pred_check
      _
    $region3: #{abundance_forward.1} parent=1 // pred_check_branch
      %14 = sbr.rel (0) target = $region5
    $region4: #{abundance_forward.1} parent=1 // pred_region
      _
    $region5: #{abundance_forward.1} parent=1 // pred_fallthru
      _
    // Predicated region
    $region6: #{abundance_forward.1} parent=1 // pred_check
      _
    $region7: #{abundance_forward.1} parent=1 // pred_check_branch
      %16 = sbr.rel (0) target = $region9
    $region8: #{abundance_forward.1} parent=1 // pred_region
      _
    $region9: #{abundance_forward.1} parent=1 // pred_fallthru
      _
    // Predicated region
    $region10: #{abundance_forward.1} parent=1 // pred_check
      _
    $region11: #{abundance_forward.1} parent=1 // pred_check_branch
      %18 = sbr.rel (0) target = $region13
    $region12: #{abundance_forward.1} parent=1 // pred_region
      _
    $region13: #{abundance_forward.1} parent=1 // pred_fallthru
      _
    // Predicated region
    $region14: #{abundance_forward.1} parent=1 // pred_check
      _
    $region15: #{abundance_forward.1} parent=1 // pred_check_branch
      %20 = sbr.rel (0) target = $region17
    $region16: #{abundance_forward.1} parent=1 // pred_region
      _
    $region17: #{abundance_forward.1} parent=1 // pred_fallthru
      _
    // Predicated region
    $region18: #{abundance_forward.1} parent=1 // pred_check
      _
    $region19: #{abundance_forward.1} parent=1 // pred_check_branch
      %22 = sbr.rel (0) target = $region21
    $region20: #{abundance_forward.1} parent=1 // pred_region
      _
    $region21: #{abundance_forward.1} parent=1 // pred_fallthru
      _
    %v24 = vld [vmem:[%s2] sm:$0xff]
    %v25 = vld [vmem:[%s2 + $0x8] sm:$0xff]
    %v26 = vld [vmem:[%s2 + $0x10] sm:$0xff]
    %v27 = vld [vmem:[%s2 + $0x18] sm:$0xff]
    %v28 = vld [vmem:[%s2 + $0x20] sm:$0xff]
    %v29 = vld [vmem:[%s2 + $0x28] sm:$0xff]
    %v30 = vld [vmem:[%s2 + $0x30] sm:$0xff]
    %v31 = vld [vmem:[%s2 + $0x38] sm:$0xff]
    %v32 = vld [vmem:[%s2 + $0x40] sm:$0xff]
    %v33 = vld [vmem:[%s2 + $0x48] sm:$0xff]
    %v34 = vld [vmem:[%s2 + $0x50] sm:$0xff]
    %v35 = vld [vmem:[%s2 + $0x58] sm:$0xff]
    %v36 = vld [vmem:[%s2 + $0x60] sm:$0xff]
    %v37 = vld [vmem:[%s2 + $0x68] sm:$0xff]
    %v38 = vld [vmem:[%s2 + $0x70] sm:$0xff]
    %v39 = vld [vmem:[%s2 + $0x78] sm:$0xff]
    %v40 = vld [vmem:[%s2 + $0x80] sm:$0xff]
    %v41 = vld [vmem:[%s2 + $0x88] sm:$0xff]
    %v42 = vld [vmem:[%s2 + $0x90] sm:$0xff]
    %v43 = vld [vmem:[%s2 + $0x98] sm:$0xff]
    %v44 = vld [vmem:[%s2 + $0xa0] sm:$0xff]
    %v45 = vld [vmem:[%s2 + $0xa8] sm:$0xff]
    %v46 = vld [vmem:[%s2 + $0xb0] sm:$0xff]
    %v47 = vld [vmem:[%s2 + $0xb8] sm:$0xff]
    %v48 = vld [vmem:[%s2 + $0xc0] sm:$0xff]
    %v49 = vld [vmem:[%s2 + $0xc8] sm:$0xff]
    %v50 = vld [vmem:[%s2 + $0xd0] sm:$0xff]
    %v51 = vld [vmem:[%s2 + $0xd8] sm:$0xff]
    %v52 = vld [vmem:[%s2 + $0xe0] sm:$0xff]
    %v53 = vld [vmem:[%s2 + $0xe8] sm:$0xff]
    %v54 = vld [vmem:[%s2 + $0xf0] sm:$0xff]
    %v55 = vld [vmem:[%s2 + $0xf8] sm:$0xff]
    %v56 = vld [vmem:[%s2 + $0x100] sm:$0x11]
    %v57 = vld [vmem:[%s2 + $0x110] sm:$0x11]
    %v58 = vld [vmem:[%s4] ss:$8 sm:$0x3]
    %s59 = scalar_lea.vmem %s4, 1
    %v60 = vld [vmem:[%s59] ss:$8 sm:$0x3]
    %v61 = vld [vmem:[%s0] sm:$0xff]
    %v62 = vld [vmem:[%s0 + $0x8] sm:$0xff]
    %v63 = vpack.c.bf16 %v62, %v61
    %v65 = vlaneseq
    %v66 = vshrl.u32 %v65, 7
    %v67 = vsub.s32 0, %v66
    %v68 = vrot.slane %v58, %v67
    %v69 = vlaneseq
    %v70 = vshrl.u32 %v69, 7
    %v71 = vsub.s32 1, %v70
    %v72 = vrot.slane %v58, %v71
    %v76 = vunpack.c.l.b16 %v56
    %v77 = vunpack.c.h.b16 %v56
    %v78 = vpack.c.b16 %v76, %v76
    %v79 = vpack.c.b16 %v77, %v77
    %vm80 = vcmask 15360
    %v82 = vsel %vm80, %v63, 0
    %vm84 = vcmask 1040384
    %v86 = vsel %vm84, %v78, 0
    %v89 = vsel %vm84, %v79, 0
    %91 = vmatprep.subr.bf16.mxu0 0
    %92 = vmatpush1.bf16.msra.mxu0 0
    %93 = vmatprep.subr.bf16.mxu0 0
    %94 = vmatpush1.bf16.msra.mxu0 0
    %95 = vmatprep.subr.bf16.mxu0 0
    %96 = vmatpush1.bf16.msra.mxu0 0
    %97 = vmatprep.subr.bf16.mxu0 0
    %98 = vmatpush1.bf16.msra.mxu0 0
    %99 = vmatprep.subr.bf16.mxu0 0
    %100 = vmatpush1.bf16.msra.mxu0 0
    %101 = vmatprep.subr.bf16.mxu0 0
    %102 = vmatpush1.bf16.msra.mxu0 0
    %103 = vmatprep.subr.bf16.mxu0 0
    %104 = vmatpush1.bf16.msra.mxu0 0
    %105 = vmatprep.subr.bf16.mxu0 %v89
    %106 = vmatpush1.bf16.msra.mxu0 %v86
    %107 = vmatprep.subr.bf16.mxu0 0
    %108 = vmatpush2.bf16.msra.mxu0 0
    %109 = vmatprep.subr.bf16.mxu0 0
    %110 = vmatpush2.bf16.msra.mxu0 0
    %111 = vmatprep.subr.bf16.mxu0 0
    %112 = vmatpush2.bf16.msra.mxu0 0
    %113 = vmatprep.subr.bf16.mxu0 0
    %114 = vmatpush2.bf16.msra.mxu0 0
    %115 = vmatprep.subr.bf16.mxu0 0
    %116 = vmatpush2.bf16.msra.mxu0 0
    %117 = vmatprep.subr.bf16.mxu0 0
    %118 = vmatpush2.bf16.msra.mxu0 0
    %119 = vmatprep.subr.bf16.mxu0 0
    %120 = vmatpush2.bf16.msra.mxu0 0
    %121 = vmatprep.subr.bf16.mxu0 0
    %122 = vmatpush2.bf16.msra.mxu0 0
    %123 = vmatprep.mubr.bf16.mxu0 0
    %124 = vmatmul.mubr.bf16.gmra.mxu0 %v82
    %v125 = vpop.f32.mrf.mxu0
    %v126 = vadd.f32 %v68, %v125
    %v127 = vpop.f32.mrf.mxu0
    %v128 = vadd.f32 %v72, %v127
    %v129 = vpop.f32.mrf.mxu0
    %v130 = vadd.f32 %v68, %v129
    %v131 = vpop.f32.mrf.mxu0
    %v132 = vadd.f32 %v72, %v131
    %133 = vdwg.mxu0
    %v135 = vunpack.c.l.b16 %v57
    %v136 = vunpack.c.h.b16 %v57
    %v137 = vpack.c.b16 %v135, %v135
    %v138 = vpack.c.b16 %v136, %v136
    %v140 = vsel %vm84, %v137, 0
    %v143 = vsel %vm84, %v138, 0
    %145 = vmatprep.subr.bf16.mxu0 0
    %146 = vmatpush1.bf16.msra.mxu0 0
    %147 = vmatprep.subr.bf16.mxu0 0
    %148 = vmatpush1.bf16.msra.mxu0 0
    %149 = vmatprep.subr.bf16.mxu0 0
    %150 = vmatpush1.bf16.msra.mxu0 0
    %151 = vmatprep.subr.bf16.mxu0 0
    %152 = vmatpush1.bf16.msra.mxu0 0
    %153 = vmatprep.subr.bf16.mxu0 0
    %154 = vmatpush1.bf16.msra.mxu0 0
    %155 = vmatprep.subr.bf16.mxu0 0
    %156 = vmatpush1.bf16.msra.mxu0 0
    %157 = vmatprep.subr.bf16.mxu0 0
    %158 = vmatpush1.bf16.msra.mxu0 0
    %159 = vmatprep.subr.bf16.mxu0 %v143
    %160 = vmatpush1.bf16.msra.mxu0 %v140
    %161 = vmatprep.subr.bf16.mxu0 0
    %162 = vmatpush2.bf16.msra.mxu0 0
    %163 = vmatprep.subr.bf16.mxu0 0
    %164 = vmatpush2.bf16.msra.mxu0 0
    %165 = vmatprep.subr.bf16.mxu0 0
    %166 = vmatpush2.bf16.msra.mxu0 0
    %167 = vmatprep.subr.bf16.mxu0 0
    %168 = vmatpush2.bf16.msra.mxu0 0
    %169 = vmatprep.subr.bf16.mxu0 0
    %170 = vmatpush2.bf16.msra.mxu0 0
    %171 = vmatprep.subr.bf16.mxu0 0
    %172 = vmatpush2.bf16.msra.mxu0 0
    %173 = vmatprep.subr.bf16.mxu0 0
    %174 = vmatpush2.bf16.msra.mxu0 0
    %175 = vmatprep.subr.bf16.mxu0 0
    %176 = vmatpush2.bf16.msra.mxu0 0
    %177 = vmatprep.mubr.bf16.mxu0 0
    %178 = vmatmul.mubr.bf16.gmra.mxu0 %v82
    %v179 = vpop.f32.mrf.mxu0
    %v180 = vadd.f32 0.0, %v179
    %v181 = vpop.f32.mrf.mxu0
    %v182 = vadd.f32 0.0, %v181
    %v183 = vpop.f32.mrf.mxu0
    %v184 = vadd.f32 0.0, %v183
    %v185 = vpop.f32.mrf.mxu0
    %v186 = vadd.f32 0.0, %v185
    %187 = vdwg.mxu0
    %v196 = vunpack.c.l.b16 %v24
    %v197 = vunpack.c.h.b16 %v24
    %v198 = vunpack.c.l.b16 %v25
    %v199 = vunpack.c.h.b16 %v25
    %v200 = vunpack.c.l.b16 %v26
    %v201 = vunpack.c.h.b16 %v26
    %v202 = vunpack.c.l.b16 %v27
    %v203 = vunpack.c.h.b16 %v27
    %v204 = vunpack.c.l.b16 %v28
    %v205 = vunpack.c.h.b16 %v28
    %v206 = vunpack.c.l.b16 %v29
    %v207 = vunpack.c.h.b16 %v29
    %v208 = vunpack.c.l.b16 %v30
    %v209 = vunpack.c.h.b16 %v30
    %v210 = vunpack.c.l.b16 %v31
    %v211 = vunpack.c.h.b16 %v31
    %v212 = vpack.c.b16 %v198, %v196
    %v213 = vpack.c.b16 %v199, %v197
    %v214 = vpack.c.b16 %v202, %v200
    %v215 = vpack.c.b16 %v203, %v201
    %v216 = vpack.c.b16 %v206, %v204
    %v217 = vpack.c.b16 %v207, %v205
    %v218 = vpack.c.b16 %v210, %v208
    %v219 = vpack.c.b16 %v211, %v209
    %vm228 = vcmask 523264
    %v230 = vsel %vm228, 0, 0
    %232 = vmatprep.subr.bf16.mxu0 0
    %233 = vmatpush1.bf16.msra.mxu0 0
    %234 = vmatprep.subr.bf16.mxu0 0
    %235 = vmatpush1.bf16.msra.mxu0 0
    %236 = vmatprep.subr.bf16.mxu0 0
    %237 = vmatpush1.bf16.msra.mxu0 0
    %238 = vmatprep.subr.bf16.mxu0 0
    %239 = vmatpush1.bf16.msra.mxu0 0
    %240 = vmatprep.subr.bf16.mxu0 %v219
    %241 = vmatpush1.bf16.msra.mxu0 %v218
    %242 = vmatprep.subr.bf16.mxu0 %v217
    %243 = vmatpush1.bf16.msra.mxu0 %v216
    %244 = vmatprep.subr.bf16.mxu0 %v215
    %245 = vmatpush1.bf16.msra.mxu0 %v214
    %246 = vmatprep.subr.bf16.mxu0 %v213
    %247 = vmatpush1.bf16.msra.mxu0 %v212
    %248 = vmatprep.subr.bf16.mxu0 0
    %249 = vmatpush2.bf16.msra.mxu0 0
    %250 = vmatprep.subr.bf16.mxu0 0
    %251 = vmatpush2.bf16.msra.mxu0 0
    %252 = vmatprep.subr.bf16.mxu0 0
    %253 = vmatpush2.bf16.msra.mxu0 0
    %254 = vmatprep.subr.bf16.mxu0 0
    %255 = vmatpush2.bf16.msra.mxu0 0
    %256 = vmatprep.subr.bf16.mxu0 0
    %257 = vmatpush2.bf16.msra.mxu0 0
    %258 = vmatprep.subr.bf16.mxu0 0
    %259 = vmatpush2.bf16.msra.mxu0 0
    %260 = vmatprep.subr.bf16.mxu0 0
    %261 = vmatpush2.bf16.msra.mxu0 0
    %262 = vmatprep.subr.bf16.mxu0 0
    %263 = vmatpush2.bf16.msra.mxu0 0
    %264 = vmatprep.mubr.bf16.mxu0 0
    %265 = vmatmul.mubr.bf16.gmra.mxu0 %v230
    %v266 = vpop.f32.mrf.mxu0
    %v267 = vadd.f32 0.0, %v266
    %v268 = vpop.f32.mrf.mxu0
    %v269 = vadd.f32 0.0, %v268
    %v270 = vpop.f32.mrf.mxu0
    %v271 = vpop.f32.mrf.mxu0
    %272 = vdwg.mxu0
    %v277 = vrot.slane %v180, 7
    %v278 = vrot.slane %v182, 7
    %v279 = vrot.slane %v184, 7
    %v280 = vrot.slane %v186, 7
    %v285 = vadd.f32 %v126, %v277
    %v286 = vadd.f32 %v128, %v278
    %v287 = vadd.f32 %v130, %v279
    %v288 = vadd.f32 %v132, %v280
    %v291 = vrot.slane %v267, 1
    %v292 = vrot.slane %v269, 1
    %v297 = vadd.f32 %v285, %v267
    %v298 = vadd.f32 %v286, %v269
    %v299 = vadd.f32 %v287, %v291
    %v300 = vadd.f32 %v288, %v292
    %v301 = vxor.u32 %v297, 2147483648
    %v302 = vxor.u32 %v299, 2147483648
    %v303 = vmul.f32 %v301, 1.442695
    %v304 = vpow.pop %v303
    %v305 = vmul.f32 %v302, 1.442695
    %v306 = vpow.pop %v305
    %v307 = vadd.f32 %v304, 1.0
    %v308 = vadd.f32 %v306, 1.0
    %v309 = vrcp.pop %v307
    %v310 = vmul.f32 1.0, %v309
    %v311 = vrcp.pop %v308
    %v312 = vmul.f32 1.0, %v311
    %v313 = vtanh.pop %v298
    %v314 = vtanh.pop %v300
    %v315 = vxor.u32 %v298, 2147483648
    %v316 = vxor.u32 %v300, 2147483648
    %v317 = vmul.f32 %v315, 1.442695
    %v318 = vpow.pop %v317
    %v319 = vmul.f32 %v316, 1.442695
    %v320 = vpow.pop %v319
    %v321 = vadd.f32 %v318, 1.0
    %v322 = vadd.f32 %v320, 1.0
    %v323 = vrcp.pop %v321
    %v324 = vmul.f32 1.0, %v323
    %v325 = vrcp.pop %v322
    %v326 = vmul.f32 1.0, %v325
    %v327 = vmul.f32 %v310, 0.0
    %v328 = vmul.f32 %v312, 0.0
    %v329 = vmul.f32 %v310, %v313
    %v330 = vmul.f32 %v312, %v314
    %333 = vrot.lane.b32.xlu0 %v329, 64
    %v334 = vpop.permute.xlu0 %333
    %335 = vrot.lane.b32.xlu0 %v330, 64
    %v336 = vpop.permute.xlu0 %335
    %v339 = vadd.f32 %v327, %v334
    %v340 = vadd.f32 %v328, %v336
    %v341 = vtanh.pop %v339
    %v342 = vtanh.pop %v340
    %v343 = vmul.f32 %v324, %v341
    %v344 = vmul.f32 %v326, %v342
    %347 = vrot.lane.b32.xlu0 %v343, 64
    %v348 = vpop.permute.xlu0 %347
    %349 = vrot.lane.b32.xlu0 %v344, 64
    %v350 = vpop.permute.xlu0 %349
    %vm353 = vcmask 253952
    %354 = vst.msk [vmem:[#allocation2] sm:$0x1] %vm353, %v348
    %355 = vst.msk [vmem:[#allocation2 + $0x8] sm:$0x1] %vm353, %v350
    %vm356 = vcmask 516352
    %357 = vst.msk [vmem:[#allocation2 + $0x7] sm:$0x1] %vm356, %v348
    %358 = vst.msk [vmem:[#allocation2 + $0xf] sm:$0x1] %vm356, %v350
    %v359 = vpack.c.bf16 %v343, %v343
    %v360 = vpack.c.bf16 %v344, %v344
    %v363 = vunpack.c.l.b16 %v359
    %v364 = vunpack.c.l.b16 %v360
    %v365 = vrot.slane %v364, 7
    %vm366 = vcmask 1041409
    %v367 = vsel %vm366, %v365, %v363
    %v368 = vpack.c.b16 %v367, %v367
    %369 = vrot.lane.b32.xlu0 %v368, 64
    %v370 = vpop.permute.xlu0 %369
    %v372 = vsel %vm228, %v370, 0
    %374 = vmatprep.subr.bf16.mxu0 0
    %375 = vmatpush1.bf16.msra.mxu0 0
    %376 = vmatprep.subr.bf16.mxu0 0
    %377 = vmatpush1.bf16.msra.mxu0 0
    %378 = vmatprep.subr.bf16.mxu0 0
    %379 = vmatpush1.bf16.msra.mxu0 0
    %380 = vmatprep.subr.bf16.mxu0 0
    %381 = vmatpush1.bf16.msra.mxu0 0
    %382 = vmatprep.subr.bf16.mxu0 %v219
    %383 = vmatpush1.bf16.msra.mxu0 %v218
    %384 = vmatprep.subr.bf16.mxu0 %v217
    %385 = vmatpush1.bf16.msra.mxu0 %v216
    %386 = vmatprep.subr.bf16.mxu0 %v215
    %387 = vmatpush1.bf16.msra.mxu0 %v214
    %388 = vmatprep.subr.bf16.mxu0 %v213
    %389 = vmatpush1.bf16.msra.mxu0 %v212
    %390 = vmatprep.subr.bf16.mxu0 0
    %391 = vmatpush2.bf16.msra.mxu0 0
    %392 = vmatprep.subr.bf16.mxu0 0
    %393 = vmatpush2.bf16.msra.mxu0 0
    %394 = vmatprep.subr.bf16.mxu0 0
    %395 = vmatpush2.bf16.msra.mxu0 0
    %396 = vmatprep.subr.bf16.mxu0 0
    %397 = vmatpush2.bf16.msra.mxu0 0
    %398 = vmatprep.subr.bf16.mxu0 0
    %399 = vmatpush2.bf16.msra.mxu0 0
    %400 = vmatprep.subr.bf16.mxu0 0
    %401 = vmatpush2.bf16.msra.mxu0 0
    %402 = vmatprep.subr.bf16.mxu0 0
    %403 = vmatpush2.bf16.msra.mxu0 0
    %404 = vmatprep.subr.bf16.mxu0 0
    %405 = vmatpush2.bf16.msra.mxu0 0
    %406 = vmatprep.mubr.bf16.mxu0 0
    %407 = vmatmul.mubr.bf16.gmra.mxu0 %v372
    %v408 = vpop.f32.mrf.mxu0
    %v409 = vadd.f32 0.0, %v408
    %v410 = vpop.f32.mrf.mxu0
    %v411 = vadd.f32 0.0, %v410
    %v412 = vpop.f32.mrf.mxu0
    %v413 = vpop.f32.mrf.mxu0
    %414 = vdwg.mxu0
    %v415 = vrot.slane %v180, 5
    %v416 = vrot.slane %v182, 5
    %v417 = vrot.slane %v184, 5
    %v418 = vrot.slane %v186, 5
    %v423 = vadd.f32 %v126, %v415
    %v424 = vadd.f32 %v128, %v416
    %v425 = vadd.f32 %v130, %v417
    %v426 = vadd.f32 %v132, %v418
    %v429 = vrot.slane %v409, 7
    %v430 = vrot.slane %v411, 7
    %v435 = vadd.f32 %v423, %v429
    %v436 = vadd.f32 %v424, %v430
    %v437 = vadd.f32 %v425, %v409
    %v438 = vadd.f32 %v426, %v411
    %v439 = vxor.u32 %v435, 2147483648
    %v440 = vxor.u32 %v437, 2147483648
    %v441 = vmul.f32 %v439, 1.442695
    %v442 = vpow.pop %v441
    %v443 = vmul.f32 %v440, 1.442695
    %v444 = vpow.pop %v443
    %v445 = vadd.f32 %v442, 1.0
    %v446 = vadd.f32 %v444, 1.0
    %v447 = vrcp.pop %v445
    %v448 = vmul.f32 1.0, %v447
    %v449 = vrcp.pop %v446
    %v450 = vmul.f32 1.0, %v449
    %v451 = vtanh.pop %v436
    %v452 = vtanh.pop %v438
    %v453 = vxor.u32 %v436, 2147483648
    %v454 = vxor.u32 %v438, 2147483648
    %v455 = vmul.f32 %v453, 1.442695
    %v456 = vpow.pop %v455
    %v457 = vmul.f32 %v454, 1.442695
    %v458 = vpow.pop %v457
    %v459 = vadd.f32 %v456, 1.0
    %v460 = vadd.f32 %v458, 1.0
    %v461 = vrcp.pop %v459
    %v462 = vmul.f32 1.0, %v461
    %v463 = vrcp.pop %v460
    %v464 = vmul.f32 1.0, %v463
    %v467 = vrot.slane %v339, 7
    %v468 = vrot.slane %v340, 7
    %v471 = vmul.f32 %v448, %v467
    %v472 = vmul.f32 %v450, %v468
    %v473 = vmul.f32 %v448, %v451
    %v474 = vmul.f32 %v450, %v452
    %477 = vrot.lane.b32.xlu0 %v473, 64
    %v478 = vpop.permute.xlu0 %477
    %479 = vrot.lane.b32.xlu0 %v474, 64
    %v480 = vpop.permute.xlu0 %479
    %v483 = vadd.f32 %v471, %v478
    %v484 = vadd.f32 %v472, %v480
    %v485 = vtanh.pop %v483
    %v486 = vtanh.pop %v484
    %v487 = vmul.f32 %v462, %v485
    %v488 = vmul.f32 %v464, %v486
    %491 = vrot.lane.b32.xlu0 %v487, 64
    %v492 = vpop.permute.xlu0 %491
    %493 = vrot.lane.b32.xlu0 %v488, 64
    %v494 = vpop.permute.xlu0 %493
    %vm497 = vcmask 254977
    %498 = vst.msk [vmem:[#allocation2] sm:$0x2] %vm497, %v492
    %499 = vst.msk [vmem:[#allocation2 + $0x8] sm:$0x2] %vm497, %v494
    %vm500 = vcmask 517377
    %501 = vst.msk [vmem:[#allocation2 + $0x5] sm:$0x2] %vm500, %v492
    %502 = vst.msk [vmem:[#allocation2 + $0xd] sm:$0x2] %vm500, %v494
    %v503 = vpack.c.bf16 %v487, %v487
    %v504 = vpack.c.bf16 %v488, %v488
    %v507 = vunpack.c.l.b16 %v503
    %v508 = vunpack.c.l.b16 %v504
    %v509 = vrot.slane %v507, 1
    %v510 = vsel %vm366, %v508, %v509
    %v511 = vpack.c.b16 %v510, %v510
    %512 = vrot.lane.b32.xlu0 %v511, 64
    %v513 = vpop.permute.xlu0 %512
    %v515 = vsel %vm228, %v513, 0
    %517 = vmatprep.subr.bf16.mxu0 0
    %518 = vmatpush1.bf16.msra.mxu0 0
    %519 = vmatprep.subr.bf16.mxu0 0
    %520 = vmatpush1.bf16.msra.mxu0 0
    %521 = vmatprep.subr.bf16.mxu0 0
    %522 = vmatpush1.bf16.msra.mxu0 0
    %523 = vmatprep.subr.bf16.mxu0 0
    %524 = vmatpush1.bf16.msra.mxu0 0
    %525 = vmatprep.subr.bf16.mxu0 %v219
    %526 = vmatpush1.bf16.msra.mxu0 %v218
    %527 = vmatprep.subr.bf16.mxu0 %v217
    %528 = vmatpush1.bf16.msra.mxu0 %v216
    %529 = vmatprep.subr.bf16.mxu0 %v215
    %530 = vmatpush1.bf16.msra.mxu0 %v214
    %531 = vmatprep.subr.bf16.mxu0 %v213
    %532 = vmatpush1.bf16.msra.mxu0 %v212
    %533 = vmatprep.subr.bf16.mxu0 0
    %534 = vmatpush2.bf16.msra.mxu0 0
    %535 = vmatprep.subr.bf16.mxu0 0
    %536 = vmatpush2.bf16.msra.mxu0 0
    %537 = vmatprep.subr.bf16.mxu0 0
    %538 = vmatpush2.bf16.msra.mxu0 0
    %539 = vmatprep.subr.bf16.mxu0 0
    %540 = vmatpush2.bf16.msra.mxu0 0
    %541 = vmatprep.subr.bf16.mxu0 0
    %542 = vmatpush2.bf16.msra.mxu0 0
    %543 = vmatprep.subr.bf16.mxu0 0
    %544 = vmatpush2.bf16.msra.mxu0 0
    %545 = vmatprep.subr.bf16.mxu0 0
    %546 = vmatpush2.bf16.msra.mxu0 0
    %547 = vmatprep.subr.bf16.mxu0 0
    %548 = vmatpush2.bf16.msra.mxu0 0
    %549 = vmatprep.mubr.bf16.mxu0 0
    %550 = vmatmul.mubr.bf16.gmra.mxu0 %v515
    %v551 = vpop.f32.mrf.mxu0
    %v552 = vadd.f32 0.0, %v551
    %v553 = vpop.f32.mrf.mxu0
    %v554 = vadd.f32 0.0, %v553
    %v555 = vpop.f32.mrf.mxu0
    %v556 = vpop.f32.mrf.mxu0
    %557 = vdwg.mxu0
    %v558 = vrot.slane %v180, 3
    %v559 = vrot.slane %v182, 3
    %v560 = vrot.slane %v184, 3
    %v561 = vrot.slane %v186, 3
    %v566 = vadd.f32 %v126, %v558
    %v567 = vadd.f32 %v128, %v559
    %v568 = vadd.f32 %v130, %v560
    %v569 = vadd.f32 %v132, %v561
    %v572 = vrot.slane %v552, 6
    %v573 = vrot.slane %v554, 6
    %v574 = vrot.slane %v552, 7
    %v575 = vrot.slane %v554, 7
    %v580 = vadd.f32 %v566, %v572
    %v581 = vadd.f32 %v567, %v573
    %v582 = vadd.f32 %v568, %v574
    %v583 = vadd.f32 %v569, %v575
    %v584 = vxor.u32 %v580, 2147483648
    %v585 = vxor.u32 %v582, 2147483648
    %v586 = vmul.f32 %v584, 1.442695
    %v587 = vpow.pop %v586
    %v588 = vmul.f32 %v585, 1.442695
    %v589 = vpow.pop %v588
    %v590 = vadd.f32 %v587, 1.0
    %v591 = vadd.f32 %v589, 1.0
    %v592 = vrcp.pop %v590
    %v593 = vmul.f32 1.0, %v592
    %v594 = vrcp.pop %v591
    %v595 = vmul.f32 1.0, %v594
    %v596 = vtanh.pop %v581
    %v597 = vtanh.pop %v583
    %v598 = vxor.u32 %v581, 2147483648
    %v599 = vxor.u32 %v583, 2147483648
    %v600 = vmul.f32 %v598, 1.442695
    %v601 = vpow.pop %v600
    %v602 = vmul.f32 %v599, 1.442695
    %v603 = vpow.pop %v602
    %v604 = vadd.f32 %v601, 1.0
    %v605 = vadd.f32 %v603, 1.0
    %v606 = vrcp.pop %v604
    %v607 = vmul.f32 1.0, %v606
    %v608 = vrcp.pop %v605
    %v609 = vmul.f32 1.0, %v608
    %v612 = vrot.slane %v483, 7
    %v613 = vrot.slane %v484, 7
    %v616 = vmul.f32 %v593, %v612
    %v617 = vmul.f32 %v595, %v613
    %v618 = vmul.f32 %v593, %v596
    %v619 = vmul.f32 %v595, %v597
    %622 = vrot.lane.b32.xlu0 %v618, 64
    %v623 = vpop.permute.xlu0 %622
    %624 = vrot.lane.b32.xlu0 %v619, 64
    %v625 = vpop.permute.xlu0 %624
    %v628 = vadd.f32 %v616, %v623
    %v629 = vadd.f32 %v617, %v625
    %v630 = vtanh.pop %v628
    %v631 = vtanh.pop %v629
    %v632 = vmul.f32 %v607, %v630
    %v633 = vmul.f32 %v609, %v631
    %636 = vrot.lane.b32.xlu0 %v632, 64
    %v637 = vpop.permute.xlu0 %636
    %638 = vrot.lane.b32.xlu0 %v633, 64
    %v639 = vpop.permute.xlu0 %638
    %vm642 = vcmask 256002
    %643 = vst.msk [vmem:[#allocation2] sm:$0x4] %vm642, %v637
    %644 = vst.msk [vmem:[#allocation2 + $0x8] sm:$0x4] %vm642, %v639
    %vm645 = vcmask 518402
    %646 = vst.msk [vmem:[#allocation2 + $0x3] sm:$0x4] %vm645, %v637
    %647 = vst.msk [vmem:[#allocation2 + $0xb] sm:$0x4] %vm645, %v639
    %v648 = vpack.c.bf16 %v632, %v632
    %v649 = vpack.c.bf16 %v633, %v633
    %v652 = vunpack.c.l.b16 %v648
    %v653 = vunpack.c.l.b16 %v649
    %v654 = vrot.slane %v652, 2
    %v655 = vrot.slane %v653, 1
    %v656 = vsel %vm366, %v655, %v654
    %v657 = vpack.c.b16 %v656, %v656
    %658 = vrot.lane.b32.xlu0 %v657, 64
    %v659 = vpop.permute.xlu0 %658
    %v661 = vsel %vm228, %v659, 0
    %663 = vmatprep.subr.bf16.mxu0 0
    %664 = vmatpush1.bf16.msra.mxu0 0
    %665 = vmatprep.subr.bf16.mxu0 0
    %666 = vmatpush1.bf16.msra.mxu0 0
    %667 = vmatprep.subr.bf16.mxu0 0
    %668 = vmatpush1.bf16.msra.mxu0 0
    %669 = vmatprep.subr.bf16.mxu0 0
    %670 = vmatpush1.bf16.msra.mxu0 0
    %671 = vmatprep.subr.bf16.mxu0 %v219
    %672 = vmatpush1.bf16.msra.mxu0 %v218
    %673 = vmatprep.subr.bf16.mxu0 %v217
    %674 = vmatpush1.bf16.msra.mxu0 %v216
    %675 = vmatprep.subr.bf16.mxu0 %v215
    %676 = vmatpush1.bf16.msra.mxu0 %v214
    %677 = vmatprep.subr.bf16.mxu0 %v213
    %678 = vmatpush1.bf16.msra.mxu0 %v212
    %679 = vmatprep.subr.bf16.mxu0 0
    %680 = vmatpush2.bf16.msra.mxu0 0
    %681 = vmatprep.subr.bf16.mxu0 0
    %682 = vmatpush2.bf16.msra.mxu0 0
    %683 = vmatprep.subr.bf16.mxu0 0
    %684 = vmatpush2.bf16.msra.mxu0 0
    %685 = vmatprep.subr.bf16.mxu0 0
    %686 = vmatpush2.bf16.msra.mxu0 0
    %687 = vmatprep.subr.bf16.mxu0 0
    %688 = vmatpush2.bf16.msra.mxu0 0
    %689 = vmatprep.subr.bf16.mxu0 0
    %690 = vmatpush2.bf16.msra.mxu0 0
    %691 = vmatprep.subr.bf16.mxu0 0
    %692 = vmatpush2.bf16.msra.mxu0 0
    %693 = vmatprep.subr.bf16.mxu0 0
    %694 = vmatpush2.bf16.msra.mxu0 0
    %695 = vmatprep.mubr.bf16.mxu0 0
    %696 = vmatmul.mubr.bf16.gmra.mxu0 %v661
    %v697 = vpop.f32.mrf.mxu0
    %v698 = vadd.f32 0.0, %v697
    %v699 = vpop.f32.mrf.mxu0
    %v700 = vadd.f32 0.0, %v699
    %v701 = vpop.f32.mrf.mxu0
    %v702 = vpop.f32.mrf.mxu0
    %703 = vdwg.mxu0
    %v704 = vrot.slane %v180, 1
    %v705 = vrot.slane %v182, 1
    %v706 = vrot.slane %v184, 1
    %v707 = vrot.slane %v186, 1
    %v712 = vadd.f32 %v126, %v704
    %v713 = vadd.f32 %v128, %v705
    %v714 = vadd.f32 %v130, %v706
    %v715 = vadd.f32 %v132, %v707
    %v718 = vrot.slane %v698, 5
    %v719 = vrot.slane %v700, 5
    %v720 = vrot.slane %v698, 6
    %v721 = vrot.slane %v700, 6
    %v726 = vadd.f32 %v712, %v718
    %v727 = vadd.f32 %v713, %v719
    %v728 = vadd.f32 %v714, %v720
    %v729 = vadd.f32 %v715, %v721
    %v730 = vxor.u32 %v726, 2147483648
    %v731 = vxor.u32 %v728, 2147483648
    %v732 = vmul.f32 %v730, 1.442695
    %v733 = vpow.pop %v732
    %v734 = vmul.f32 %v731, 1.442695
    %v735 = vpow.pop %v734
    %v736 = vadd.f32 %v733, 1.0
    %v737 = vadd.f32 %v735, 1.0
    %v738 = vrcp.pop %v736
    %v739 = vmul.f32 1.0, %v738
    %v740 = vrcp.pop %v737
    %v741 = vmul.f32 1.0, %v740
    %v742 = vtanh.pop %v727
    %v743 = vtanh.pop %v729
    %v744 = vxor.u32 %v727, 2147483648
    %v745 = vxor.u32 %v729, 2147483648
    %v746 = vmul.f32 %v744, 1.442695
    %v747 = vpow.pop %v746
    %v748 = vmul.f32 %v745, 1.442695
    %v749 = vpow.pop %v748
    %v750 = vadd.f32 %v747, 1.0
    %v751 = vadd.f32 %v749, 1.0
    %v752 = vrcp.pop %v750
    %v753 = vmul.f32 1.0, %v752
    %v754 = vrcp.pop %v751
    %v755 = vmul.f32 1.0, %v754
    %v758 = vrot.slane %v628, 7
    %v759 = vrot.slane %v629, 7
    %v762 = vmul.f32 %v739, %v758
    %v763 = vmul.f32 %v741, %v759
    %v764 = vmul.f32 %v739, %v742
    %v765 = vmul.f32 %v741, %v743
    %768 = vrot.lane.b32.xlu0 %v764, 64
    %v769 = vpop.permute.xlu0 %768
    %770 = vrot.lane.b32.xlu0 %v765, 64
    %v771 = vpop.permute.xlu0 %770
    %v774 = vadd.f32 %v762, %v769
    %v775 = vadd.f32 %v763, %v771
    %v776 = vtanh.pop %v774
    %v777 = vtanh.pop %v775
    %v778 = vmul.f32 %v753, %v776
    %v779 = vmul.f32 %v755, %v777
    %782 = vrot.lane.b32.xlu0 %v778, 64
    %v783 = vpop.permute.xlu0 %782
    %784 = vrot.lane.b32.xlu0 %v779, 64
    %v785 = vpop.permute.xlu0 %784
    %vm788 = vcmask 257027
    %789 = vst.msk [vmem:[#allocation2] sm:$0x8] %vm788, %v783
    %790 = vst.msk [vmem:[#allocation2 + $0x8] sm:$0x8] %vm788, %v785
    %vm791 = vcmask 519427
    %792 = vst.msk [vmem:[#allocation2 + $0x1] sm:$0x8] %vm791, %v783
    %793 = vst.msk [vmem:[#allocation2 + $0x9] sm:$0x8] %vm791, %v785
    %v794 = vpack.c.bf16 %v778, %v778
    %v795 = vpack.c.bf16 %v779, %v779
    %v798 = vunpack.c.l.b16 %v794
    %v799 = vunpack.c.l.b16 %v795
    %v800 = vrot.slane %v798, 3
    %v801 = vrot.slane %v799, 2
    %v802 = vsel %vm366, %v801, %v800
    %v803 = vpack.c.b16 %v802, %v802
    %804 = vrot.lane.b32.xlu0 %v803, 64
    %v805 = vpop.permute.xlu0 %804
    %v807 = vsel %vm228, %v805, 0
    %809 = vmatprep.subr.bf16.mxu0 0
    %810 = vmatpush1.bf16.msra.mxu0 0
    %811 = vmatprep.subr.bf16.mxu0 0
    %812 = vmatpush1.bf16.msra.mxu0 0
    %813 = vmatprep.subr.bf16.mxu0 0
    %814 = vmatpush1.bf16.msra.mxu0 0
    %815 = vmatprep.subr.bf16.mxu0 0
    %816 = vmatpush1.bf16.msra.mxu0 0
    %817 = vmatprep.subr.bf16.mxu0 %v219
    %818 = vmatpush1.bf16.msra.mxu0 %v218
    %819 = vmatprep.subr.bf16.mxu0 %v217
    %820 = vmatpush1.bf16.msra.mxu0 %v216
    %821 = vmatprep.subr.bf16.mxu0 %v215
    %822 = vmatpush1.bf16.msra.mxu0 %v214
    %823 = vmatprep.subr.bf16.mxu0 %v213
    %824 = vmatpush1.bf16.msra.mxu0 %v212
    %825 = vmatprep.subr.bf16.mxu0 0
    %826 = vmatpush2.bf16.msra.mxu0 0
    %827 = vmatprep.subr.bf16.mxu0 0
    %828 = vmatpush2.bf16.msra.mxu0 0
    %829 = vmatprep.subr.bf16.mxu0 0
    %830 = vmatpush2.bf16.msra.mxu0 0
    %831 = vmatprep.subr.bf16.mxu0 0
    %832 = vmatpush2.bf16.msra.mxu0 0
    %833 = vmatprep.subr.bf16.mxu0 0
    %834 = vmatpush2.bf16.msra.mxu0 0
    %835 = vmatprep.subr.bf16.mxu0 0
    %836 = vmatpush2.bf16.msra.mxu0 0
    %837 = vmatprep.subr.bf16.mxu0 0
    %838 = vmatpush2.bf16.msra.mxu0 0
    %839 = vmatprep.subr.bf16.mxu0 0
    %840 = vmatpush2.bf16.msra.mxu0 0
    %841 = vmatprep.mubr.bf16.mxu0 0
    %842 = vmatmul.mubr.bf16.gmra.mxu0 %v807
    %v843 = vpop.f32.mrf.mxu0
    %v844 = vadd.f32 0.0, %v843
    %v845 = vpop.f32.mrf.mxu0
    %v846 = vadd.f32 0.0, %v845
    %v847 = vpop.f32.mrf.mxu0
    %v848 = vpop.f32.mrf.mxu0
    %849 = vdwg.mxu0
    %v852 = vrot.slane %v844, 4
    %v853 = vrot.slane %v846, 4
    %v854 = vrot.slane %v844, 5
    %v855 = vrot.slane %v846, 5
    %v860 = vadd.f32 %v285, %v852
    %v861 = vadd.f32 %v286, %v853
    %v862 = vadd.f32 %v287, %v854
    %v863 = vadd.f32 %v288, %v855
    %v864 = vxor.u32 %v860, 2147483648
    %v865 = vxor.u32 %v862, 2147483648
    %v866 = vmul.f32 %v864, 1.442695
    %v867 = vpow.pop %v866
    %v868 = vmul.f32 %v865, 1.442695
    %v869 = vpow.pop %v868
    %v870 = vadd.f32 %v867, 1.0
    %v871 = vadd.f32 %v869, 1.0
    %v872 = vrcp.pop %v870
    %v873 = vmul.f32 1.0, %v872
    %v874 = vrcp.pop %v871
    %v875 = vmul.f32 1.0, %v874
    %v876 = vtanh.pop %v861
    %v877 = vtanh.pop %v863
    %v878 = vxor.u32 %v861, 2147483648
    %v879 = vxor.u32 %v863, 2147483648
    %v880 = vmul.f32 %v878, 1.442695
    %v881 = vpow.pop %v880
    %v882 = vmul.f32 %v879, 1.442695
    %v883 = vpow.pop %v882
    %v884 = vadd.f32 %v881, 1.0
    %v885 = vadd.f32 %v883, 1.0
    %v886 = vrcp.pop %v884
    %v887 = vmul.f32 1.0, %v886
    %v888 = vrcp.pop %v885
    %v889 = vmul.f32 1.0, %v888
    %v892 = vrot.slane %v774, 7
    %v893 = vrot.slane %v775, 7
    %v896 = vmul.f32 %v873, %v892
    %v897 = vmul.f32 %v875, %v893
    %v898 = vmul.f32 %v873, %v876
    %v899 = vmul.f32 %v875, %v877
    %902 = vrot.lane.b32.xlu0 %v898, 64
    %v903 = vpop.permute.xlu0 %902
    %904 = vrot.lane.b32.xlu0 %v899, 64
    %v905 = vpop.permute.xlu0 %904
    %v908 = vadd.f32 %v896, %v903
    %v909 = vadd.f32 %v897, %v905
    %v910 = vtanh.pop %v908
    %v911 = vtanh.pop %v909
    %v912 = vmul.f32 %v887, %v910
    %v913 = vmul.f32 %v889, %v911
    %916 = vrot.lane.b32.xlu0 %v912, 64
    %v917 = vpop.permute.xlu0 %916
    %918 = vrot.lane.b32.xlu0 %v913, 64
    %v919 = vpop.permute.xlu0 %918
    %vm922 = vcmask 258052
    %923 = vst.msk [vmem:[#allocation2] sm:$0x10] %vm922, %v917
    %924 = vst.msk [vmem:[#allocation2 + $0x8] sm:$0x10] %vm922, %v919
    %vm925 = vcmask 520452
    %926 = vst.msk [vmem:[#allocation2 - $0x1] sm:$0x10] %vm925, %v917
    %927 = vst.msk [vmem:[#allocation2 + $0x7] sm:$0x10] %vm925, %v919
    %v928 = vpack.c.bf16 %v912, %v912
    %v929 = vpack.c.bf16 %v913, %v913
    %v932 = vunpack.c.l.b16 %v928
    %v933 = vunpack.c.l.b16 %v929
    %v934 = vrot.slane %v932, 4
    %v935 = vrot.slane %v933, 3
    %v936 = vsel %vm366, %v935, %v934
    %v937 = vpack.c.b16 %v936, %v936
    %938 = vrot.lane.b32.xlu0 %v937, 64
    %v939 = vpop.permute.xlu0 %938
    %v941 = vsel %vm228, %v939, 0
    %943 = vmatprep.subr.bf16.mxu0 0
    %944 = vmatpush1.bf16.msra.mxu0 0
    %945 = vmatprep.subr.bf16.mxu0 0
    %946 = vmatpush1.bf16.msra.mxu0 0
    %947 = vmatprep.subr.bf16.mxu0 0
    %948 = vmatpush1.bf16.msra.mxu0 0
    %949 = vmatprep.subr.bf16.mxu0 0
    %950 = vmatpush1.bf16.msra.mxu0 0
    %951 = vmatprep.subr.bf16.mxu0 %v219
    %952 = vmatpush1.bf16.msra.mxu0 %v218
    %953 = vmatprep.subr.bf16.mxu0 %v217
    %954 = vmatpush1.bf16.msra.mxu0 %v216
    %955 = vmatprep.subr.bf16.mxu0 %v215
    %956 = vmatpush1.bf16.msra.mxu0 %v214
    %957 = vmatprep.subr.bf16.mxu0 %v213
    %958 = vmatpush1.bf16.msra.mxu0 %v212
    %959 = vmatprep.subr.bf16.mxu0 0
    %960 = vmatpush2.bf16.msra.mxu0 0
    %961 = vmatprep.subr.bf16.mxu0 0
    %962 = vmatpush2.bf16.msra.mxu0 0
    %963 = vmatprep.subr.bf16.mxu0 0
    %964 = vmatpush2.bf16.msra.mxu0 0
    %965 = vmatprep.subr.bf16.mxu0 0
    %966 = vmatpush2.bf16.msra.mxu0 0
    %967 = vmatprep.subr.bf16.mxu0 0
    %968 = vmatpush2.bf16.msra.mxu0 0
    %969 = vmatprep.subr.bf16.mxu0 0
    %970 = vmatpush2.bf16.msra.mxu0 0
    %971 = vmatprep.subr.bf16.mxu0 0
    %972 = vmatpush2.bf16.msra.mxu0 0
    %973 = vmatprep.subr.bf16.mxu0 0
    %974 = vmatpush2.bf16.msra.mxu0 0
    %975 = vmatprep.mubr.bf16.mxu0 0
    %976 = vmatmul.mubr.bf16.gmra.mxu0 %v941
    %v977 = vpop.f32.mrf.mxu0
    %v978 = vadd.f32 0.0, %v977
    %v979 = vpop.f32.mrf.mxu0
    %v980 = vadd.f32 0.0, %v979
    %v981 = vpop.f32.mrf.mxu0
    %v982 = vpop.f32.mrf.mxu0
    %983 = vdwg.mxu0
    %v986 = vrot.slane %v978, 3
    %v987 = vrot.slane %v980, 3
    %v988 = vrot.slane %v978, 4
    %v989 = vrot.slane %v980, 4
    %v994 = vadd.f32 %v423, %v986
    %v995 = vadd.f32 %v424, %v987
    %v996 = vadd.f32 %v425, %v988
    %v997 = vadd.f32 %v426, %v989
    %v998 = vxor.u32 %v994, 2147483648
    %v999 = vxor.u32 %v996, 2147483648
    %v1000 = vmul.f32 %v998, 1.442695
    %v1001 = vpow.pop %v1000
    %v1002 = vmul.f32 %v999, 1.442695
    %v1003 = vpow.pop %v1002
    %v1004 = vadd.f32 %v1001, 1.0
    %v1005 = vadd.f32 %v1003, 1.0
    %v1006 = vrcp.pop %v1004
    %v1007 = vmul.f32 1.0, %v1006
    %v1008 = vrcp.pop %v1005
    %v1009 = vmul.f32 1.0, %v1008
    %v1010 = vtanh.pop %v995
    %v1011 = vtanh.pop %v997
    %v1012 = vxor.u32 %v995, 2147483648
    %v1013 = vxor.u32 %v997, 2147483648
    %v1014 = vmul.f32 %v1012, 1.442695
    %v1015 = vpow.pop %v1014
    %v1016 = vmul.f32 %v1013, 1.442695
    %v1017 = vpow.pop %v1016
    %v1018 = vadd.f32 %v1015, 1.0
    %v1019 = vadd.f32 %v1017, 1.0
    %v1020 = vrcp.pop %v1018
    %v1021 = vmul.f32 1.0, %v1020
    %v1022 = vrcp.pop %v1019
    %v1023 = vmul.f32 1.0, %v1022
    %v1026 = vrot.slane %v908, 7
    %v1027 = vrot.slane %v909, 7
    %v1030 = vmul.f32 %v1007, %v1026
    %v1031 = vmul.f32 %v1009, %v1027
    %v1032 = vmul.f32 %v1007, %v1010
    %v1033 = vmul.f32 %v1009, %v1011
    %1036 = vrot.lane.b32.xlu0 %v1032, 64
    %v1037 = vpop.permute.xlu0 %1036
    %1038 = vrot.lane.b32.xlu0 %v1033, 64
    %v1039 = vpop.permute.xlu0 %1038
    %v1042 = vadd.f32 %v1030, %v1037
    %v1043 = vadd.f32 %v1031, %v1039
    %v1044 = vtanh.pop %v1042
    %v1045 = vtanh.pop %v1043
    %v1046 = vmul.f32 %v1021, %v1044
    %v1047 = vmul.f32 %v1023, %v1045
    %1050 = vrot.lane.b32.xlu0 %v1046, 64
    %v1051 = vpop.permute.xlu0 %1050
    %1052 = vrot.lane.b32.xlu0 %v1047, 64
    %v1053 = vpop.permute.xlu0 %1052
    %vm1056 = vcmask 259077
    %1057 = vst.msk [vmem:[#allocation2] sm:$0x20] %vm1056, %v1051
    %1058 = vst.msk [vmem:[#allocation2 + $0x8] sm:$0x20] %vm1056, %v1053
    %vm1059 = vcmask 521477
    %1060 = vst.msk [vmem:[#allocation2 - $0x3] sm:$0x20] %vm1059, %v1051
    %1061 = vst.msk [vmem:[#allocation2 + $0x5] sm:$0x20] %vm1059, %v1053
    %v1062 = vpack.c.bf16 %v1046, %v1046
    %v1063 = vpack.c.bf16 %v1047, %v1047
    %v1066 = vunpack.c.l.b16 %v1062
    %v1067 = vunpack.c.l.b16 %v1063
    %v1068 = vrot.slane %v1066, 5
    %v1069 = vrot.slane %v1067, 4
    %v1070 = vsel %vm366, %v1069, %v1068
    %v1071 = vpack.c.b16 %v1070, %v1070
    %1072 = vrot.lane.b32.xlu0 %v1071, 64
    %v1073 = vpop.permute.xlu0 %1072
    %v1075 = vsel %vm228, %v1073, 0
    %1077 = vmatprep.subr.bf16.mxu0 0
    %1078 = vmatpush1.bf16.msra.mxu0 0
    %1079 = vmatprep.subr.bf16.mxu0 0
    %1080 = vmatpush1.bf16.msra.mxu0 0
    %1081 = vmatprep.subr.bf16.mxu0 0
    %1082 = vmatpush1.bf16.msra.mxu0 0
    %1083 = vmatprep.subr.bf16.mxu0 0
    %1084 = vmatpush1.bf16.msra.mxu0 0
    %1085 = vmatprep.subr.bf16.mxu0 %v219
    %1086 = vmatpush1.bf16.msra.mxu0 %v218
    %1087 = vmatprep.subr.bf16.mxu0 %v217
    %1088 = vmatpush1.bf16.msra.mxu0 %v216
    %1089 = vmatprep.subr.bf16.mxu0 %v215
    %1090 = vmatpush1.bf16.msra.mxu0 %v214
    %1091 = vmatprep.subr.bf16.mxu0 %v213
    %1092 = vmatpush1.bf16.msra.mxu0 %v212
    %1093 = vmatprep.subr.bf16.mxu0 0
    %1094 = vmatpush2.bf16.msra.mxu0 0
    %1095 = vmatprep.subr.bf16.mxu0 0
    %1096 = vmatpush2.bf16.msra.mxu0 0
    %1097 = vmatprep.subr.bf16.mxu0 0
    %1098 = vmatpush2.bf16.msra.mxu0 0
    %1099 = vmatprep.subr.bf16.mxu0 0
    %1100 = vmatpush2.bf16.msra.mxu0 0
    %1101 = vmatprep.subr.bf16.mxu0 0
    %1102 = vmatpush2.bf16.msra.mxu0 0
    %1103 = vmatprep.subr.bf16.mxu0 0
    %1104 = vmatpush2.bf16.msra.mxu0 0
    %1105 = vmatprep.subr.bf16.mxu0 0
    %1106 = vmatpush2.bf16.msra.mxu0 0
    %1107 = vmatprep.subr.bf16.mxu0 0
    %1108 = vmatpush2.bf16.msra.mxu0 0
    %1109 = vmatprep.mubr.bf16.mxu0 0
    %1110 = vmatmul.mubr.bf16.gmra.mxu0 %v1075
    %v1111 = vpop.f32.mrf.mxu0
    %v1112 = vadd.f32 0.0, %v1111
    %v1113 = vpop.f32.mrf.mxu0
    %v1114 = vadd.f32 0.0, %v1113
    %v1115 = vpop.f32.mrf.mxu0
    %v1116 = vpop.f32.mrf.mxu0
    %1117 = vdwg.mxu0
    %v1120 = vrot.slane %v1112, 2
    %v1121 = vrot.slane %v1114, 2
    %v1122 = vrot.slane %v1112, 3
    %v1123 = vrot.slane %v1114, 3
    %v1128 = vadd.f32 %v566, %v1120
    %v1129 = vadd.f32 %v567, %v1121
    %v1130 = vadd.f32 %v568, %v1122
    %v1131 = vadd.f32 %v569, %v1123
    %v1132 = vxor.u32 %v1128, 2147483648
    %v1133 = vxor.u32 %v1130, 2147483648
    %v1134 = vmul.f32 %v1132, 1.442695
    %v1135 = vpow.pop %v1134
    %v1136 = vmul.f32 %v1133, 1.442695
    %v1137 = vpow.pop %v1136
    %v1138 = vadd.f32 %v1135, 1.0
    %v1139 = vadd.f32 %v1137, 1.0
    %v1140 = vrcp.pop %v1138
    %v1141 = vmul.f32 1.0, %v1140
    %v1142 = vrcp.pop %v1139
    %v1143 = vmul.f32 1.0, %v1142
    %v1144 = vtanh.pop %v1129
    %v1145 = vtanh.pop %v1131
    %v1146 = vxor.u32 %v1129, 2147483648
    %v1147 = vxor.u32 %v1131, 2147483648
    %v1148 = vmul.f32 %v1146, 1.442695
    %v1149 = vpow.pop %v1148
    %v1150 = vmul.f32 %v1147, 1.442695
    %v1151 = vpow.pop %v1150
    %v1152 = vadd.f32 %v1149, 1.0
    %v1153 = vadd.f32 %v1151, 1.0
    %v1154 = vrcp.pop %v1152
    %v1155 = vmul.f32 1.0, %v1154
    %v1156 = vrcp.pop %v1153
    %v1157 = vmul.f32 1.0, %v1156
    %v1160 = vrot.slane %v1042, 7
    %v1161 = vrot.slane %v1043, 7
    %v1164 = vmul.f32 %v1141, %v1160
    %v1165 = vmul.f32 %v1143, %v1161
    %v1166 = vmul.f32 %v1141, %v1144
    %v1167 = vmul.f32 %v1143, %v1145
    %1170 = vrot.lane.b32.xlu0 %v1166, 64
    %v1171 = vpop.permute.xlu0 %1170
    %1172 = vrot.lane.b32.xlu0 %v1167, 64
    %v1173 = vpop.permute.xlu0 %1172
    %v1176 = vadd.f32 %v1164, %v1171
    %v1177 = vadd.f32 %v1165, %v1173
    %v1178 = vtanh.pop %v1176
    %v1179 = vtanh.pop %v1177
    %v1180 = vmul.f32 %v1155, %v1178
    %v1181 = vmul.f32 %v1157, %v1179
    %1184 = vrot.lane.b32.xlu0 %v1180, 64
    %v1185 = vpop.permute.xlu0 %1184
    %1186 = vrot.lane.b32.xlu0 %v1181, 64
    %v1187 = vpop.permute.xlu0 %1186
    %vm1190 = vcmask 260102
    %1191 = vst.msk [vmem:[#allocation2] sm:$0x40] %vm1190, %v1185
    %1192 = vst.msk [vmem:[#allocation2 + $0x8] sm:$0x40] %vm1190, %v1187
    %vm1193 = vcmask 522502
    %1194 = vst.msk [vmem:[#allocation2 - $0x5] sm:$0x40] %vm1193, %v1185
    %1195 = vst.msk [vmem:[#allocation2 + $0x3] sm:$0x40] %vm1193, %v1187
    %v1196 = vpack.c.bf16 %v1180, %v1180
    %v1197 = vpack.c.bf16 %v1181, %v1181
    %v1200 = vunpack.c.l.b16 %v1196
    %v1201 = vunpack.c.l.b16 %v1197
    %v1202 = vrot.slane %v1200, 6
    %v1203 = vrot.slane %v1201, 5
    %v1204 = vsel %vm366, %v1203, %v1202
    %v1205 = vpack.c.b16 %v1204, %v1204
    %1206 = vrot.lane.b32.xlu0 %v1205, 64
    %v1207 = vpop.permute.xlu0 %1206
    %v1209 = vsel %vm228, %v1207, 0
    %1211 = vmatprep.subr.bf16.mxu0 0
    %1212 = vmatpush1.bf16.msra.mxu0 0
    %1213 = vmatprep.subr.bf16.mxu0 0
    %1214 = vmatpush1.bf16.msra.mxu0 0
    %1215 = vmatprep.subr.bf16.mxu0 0
    %1216 = vmatpush1.bf16.msra.mxu0 0
    %1217 = vmatprep.subr.bf16.mxu0 0
    %1218 = vmatpush1.bf16.msra.mxu0 0
    %1219 = vmatprep.subr.bf16.mxu0 %v219
    %1220 = vmatpush1.bf16.msra.mxu0 %v218
    %1221 = vmatprep.subr.bf16.mxu0 %v217
    %1222 = vmatpush1.bf16.msra.mxu0 %v216
    %1223 = vmatprep.subr.bf16.mxu0 %v215
    %1224 = vmatpush1.bf16.msra.mxu0 %v214
    %1225 = vmatprep.subr.bf16.mxu0 %v213
    %1226 = vmatpush1.bf16.msra.mxu0 %v212
    %1227 = vmatprep.subr.bf16.mxu0 0
    %1228 = vmatpush2.bf16.msra.mxu0 0
    %1229 = vmatprep.subr.bf16.mxu0 0
    %1230 = vmatpush2.bf16.msra.mxu0 0
    %1231 = vmatprep.subr.bf16.mxu0 0
    %1232 = vmatpush2.bf16.msra.mxu0 0
    %1233 = vmatprep.subr.bf16.mxu0 0
    %1234 = vmatpush2.bf16.msra.mxu0 0
    %1235 = vmatprep.subr.bf16.mxu0 0
    %1236 = vmatpush2.bf16.msra.mxu0 0
    %1237 = vmatprep.subr.bf16.mxu0 0
    %1238 = vmatpush2.bf16.msra.mxu0 0
    %1239 = vmatprep.subr.bf16.mxu0 0
    %1240 = vmatpush2.bf16.msra.mxu0 0
    %1241 = vmatprep.subr.bf16.mxu0 0
    %1242 = vmatpush2.bf16.msra.mxu0 0
    %1243 = vmatprep.mubr.bf16.mxu0 0
    %1244 = vmatmul.mubr.bf16.gmra.mxu0 %v1209
    %v1245 = vpop.f32.mrf.mxu0
    %v1246 = vadd.f32 0.0, %v1245
    %v1247 = vpop.f32.mrf.mxu0
    %v1248 = vadd.f32 0.0, %v1247
    %v1249 = vpop.f32.mrf.mxu0
    %v1250 = vpop.f32.mrf.mxu0
    %1251 = vdwg.mxu0
    %v1254 = vrot.slane %v1246, 1
    %v1255 = vrot.slane %v1248, 1
    %v1256 = vrot.slane %v1246, 2
    %v1257 = vrot.slane %v1248, 2
    %v1262 = vadd.f32 %v712, %v1254
    %v1263 = vadd.f32 %v713, %v1255
    %v1264 = vadd.f32 %v714, %v1256
    %v1265 = vadd.f32 %v715, %v1257
    %v1266 = vxor.u32 %v1262, 2147483648
    %v1267 = vxor.u32 %v1264, 2147483648
    %v1268 = vmul.f32 %v1266, 1.442695
    %v1269 = vpow.pop %v1268
    %v1270 = vmul.f32 %v1267, 1.442695
    %v1271 = vpow.pop %v1270
    %v1272 = vadd.f32 %v1269, 1.0
    %v1273 = vadd.f32 %v1271, 1.0
    %v1274 = vrcp.pop %v1272
    %v1275 = vmul.f32 1.0, %v1274
    %v1276 = vrcp.pop %v1273
    %v1277 = vmul.f32 1.0, %v1276
    %v1278 = vtanh.pop %v1263
    %v1279 = vtanh.pop %v1265
    %v1280 = vxor.u32 %v1263, 2147483648
    %v1281 = vxor.u32 %v1265, 2147483648
    %v1282 = vmul.f32 %v1280, 1.442695
    %v1283 = vpow.pop %v1282
    %v1284 = vmul.f32 %v1281, 1.442695
    %v1285 = vpow.pop %v1284
    %v1286 = vadd.f32 %v1283, 1.0
    %v1287 = vadd.f32 %v1285, 1.0
    %v1288 = vrcp.pop %v1286
    %v1289 = vmul.f32 1.0, %v1288
    %v1290 = vrcp.pop %v1287
    %v1291 = vmul.f32 1.0, %v1290
    %v1294 = vrot.slane %v1176, 7
    %v1295 = vrot.slane %v1177, 7
    %v1298 = vmul.f32 %v1275, %v1294
    %v1299 = vmul.f32 %v1277, %v1295
    %v1300 = vmul.f32 %v1275, %v1278
    %v1301 = vmul.f32 %v1277, %v1279
    %1304 = vrot.lane.b32.xlu0 %v1300, 64
    %v1305 = vpop.permute.xlu0 %1304
    %1306 = vrot.lane.b32.xlu0 %v1301, 64
    %v1307 = vpop.permute.xlu0 %1306
    %v1310 = vadd.f32 %v1298, %v1305
    %v1311 = vadd.f32 %v1299, %v1307
    %v1312 = vtanh.pop %v1310
    %v1313 = vtanh.pop %v1311
    %v1314 = vmul.f32 %v1289, %v1312
    %v1315 = vmul.f32 %v1291, %v1313
    %1318 = vrot.lane.b32.xlu0 %v1314, 64
    %v1319 = vpop.permute.xlu0 %1318
    %1320 = vrot.lane.b32.xlu0 %v1315, 64
    %v1321 = vpop.permute.xlu0 %1320
    %vm1324 = vcmask 261127
    %1325 = vst.msk [vmem:[#allocation2] sm:$0x80] %vm1324, %v1319
    %1326 = vst.msk [vmem:[#allocation2 + $0x8] sm:$0x80] %vm1324, %v1321
    %vm1327 = vcmask 523527
    %1328 = vst.msk [vmem:[#allocation2 - $0x7] sm:$0x80] %vm1327, %v1319
    %1329 = vst.msk [vmem:[#allocation2 + $0x1] sm:$0x80] %vm1327, %v1321
    %v1330 = vld [vmem:[#allocation2] sm:$0xff]
    %v1331 = vld [vmem:[#allocation2 + $0x8] sm:$0xff]
    %v1332 = vpack.c.bf16 %v1331, %v1330
    %v1334 = vlaneseq
    %v1335 = vshrl.u32 %v1334, 7
    %v1336 = vsub.s32 0, %v1335
    %v1337 = vrot.slane %v60, %v1336
    %v1338 = vlaneseq
    %v1339 = vshrl.u32 %v1338, 7
    %v1340 = vsub.s32 1, %v1339
    %v1341 = vrot.slane %v60, %v1340
    %v1352 = vunpack.c.l.b16 %v40
    %v1353 = vunpack.c.h.b16 %v40
    %v1354 = vunpack.c.l.b16 %v41
    %v1355 = vunpack.c.h.b16 %v41
    %v1356 = vunpack.c.l.b16 %v42
    %v1357 = vunpack.c.h.b16 %v42
    %v1358 = vunpack.c.l.b16 %v43
    %v1359 = vunpack.c.h.b16 %v43
    %v1360 = vunpack.c.l.b16 %v44
    %v1361 = vunpack.c.h.b16 %v44
    %v1362 = vunpack.c.l.b16 %v45
    %v1363 = vunpack.c.h.b16 %v45
    %v1364 = vunpack.c.l.b16 %v46
    %v1365 = vunpack.c.h.b16 %v46
    %v1366 = vunpack.c.l.b16 %v47
    %v1367 = vunpack.c.h.b16 %v47
    %v1368 = vpack.c.b16 %v1354, %v1352
    %v1369 = vpack.c.b16 %v1355, %v1353
    %v1370 = vpack.c.b16 %v1358, %v1356
    %v1371 = vpack.c.b16 %v1359, %v1357
    %v1372 = vpack.c.b16 %v1362, %v1360
    %v1373 = vpack.c.b16 %v1363, %v1361
    %v1374 = vpack.c.b16 %v1366, %v1364
    %v1375 = vpack.c.b16 %v1367, %v1365
    %v1385 = vsel %vm228, %v1332, 0
    %1387 = vmatprep.subr.bf16.mxu0 0
    %1388 = vmatpush1.bf16.msra.mxu0 0
    %1389 = vmatprep.subr.bf16.mxu0 0
    %1390 = vmatpush1.bf16.msra.mxu0 0
    %1391 = vmatprep.subr.bf16.mxu0 0
    %1392 = vmatpush1.bf16.msra.mxu0 0
    %1393 = vmatprep.subr.bf16.mxu0 0
    %1394 = vmatpush1.bf16.msra.mxu0 0
    %1395 = vmatprep.subr.bf16.mxu0 %v1375
    %1396 = vmatpush1.bf16.msra.mxu0 %v1374
    %1397 = vmatprep.subr.bf16.mxu0 %v1373
    %1398 = vmatpush1.bf16.msra.mxu0 %v1372
    %1399 = vmatprep.subr.bf16.mxu0 %v1371
    %1400 = vmatpush1.bf16.msra.mxu0 %v1370
    %1401 = vmatprep.subr.bf16.mxu0 %v1369
    %1402 = vmatpush1.bf16.msra.mxu0 %v1368
    %1403 = vmatprep.subr.bf16.mxu0 0
    %1404 = vmatpush2.bf16.msra.mxu0 0
    %1405 = vmatprep.subr.bf16.mxu0 0
    %1406 = vmatpush2.bf16.msra.mxu0 0
    %1407 = vmatprep.subr.bf16.mxu0 0
    %1408 = vmatpush2.bf16.msra.mxu0 0
    %1409 = vmatprep.subr.bf16.mxu0 0
    %1410 = vmatpush2.bf16.msra.mxu0 0
    %1411 = vmatprep.subr.bf16.mxu0 0
    %1412 = vmatpush2.bf16.msra.mxu0 0
    %1413 = vmatprep.subr.bf16.mxu0 0
    %1414 = vmatpush2.bf16.msra.mxu0 0
    %1415 = vmatprep.subr.bf16.mxu0 0
    %1416 = vmatpush2.bf16.msra.mxu0 0
    %1417 = vmatprep.subr.bf16.mxu0 0
    %1418 = vmatpush2.bf16.msra.mxu0 0
    %1419 = vmatprep.mubr.bf16.mxu0 0
    %1420 = vmatmul.mubr.bf16.gmra.mxu0 %v1385
    %v1421 = vpop.f32.mrf.mxu0
    %v1422 = vadd.f32 %v1337, %v1421
    %v1423 = vpop.f32.mrf.mxu0
    %v1424 = vadd.f32 %v1341, %v1423
    %v1425 = vpop.f32.mrf.mxu0
    %v1426 = vadd.f32 %v1337, %v1425
    %v1427 = vpop.f32.mrf.mxu0
    %v1428 = vadd.f32 %v1341, %v1427
    %1429 = vdwg.mxu0
    %v1438 = vunpack.c.l.b16 %v48
    %v1439 = vunpack.c.h.b16 %v48
    %v1440 = vunpack.c.l.b16 %v49
    %v1441 = vunpack.c.h.b16 %v49
    %v1442 = vunpack.c.l.b16 %v50
    %v1443 = vunpack.c.h.b16 %v50
    %v1444 = vunpack.c.l.b16 %v51
    %v1445 = vunpack.c.h.b16 %v51
    %v1446 = vunpack.c.l.b16 %v52
    %v1447 = vunpack.c.h.b16 %v52
    %v1448 = vunpack.c.l.b16 %v53
    %v1449 = vunpack.c.h.b16 %v53
    %v1450 = vunpack.c.l.b16 %v54
    %v1451 = vunpack.c.h.b16 %v54
    %v1452 = vunpack.c.l.b16 %v55
    %v1453 = vunpack.c.h.b16 %v55
    %v1454 = vpack.c.b16 %v1440, %v1438
    %v1455 = vpack.c.b16 %v1441, %v1439
    %v1456 = vpack.c.b16 %v1444, %v1442
    %v1457 = vpack.c.b16 %v1445, %v1443
    %v1458 = vpack.c.b16 %v1448, %v1446
    %v1459 = vpack.c.b16 %v1449, %v1447
    %v1460 = vpack.c.b16 %v1452, %v1450
    %v1461 = vpack.c.b16 %v1453, %v1451
    %1470 = vmatprep.subr.bf16.mxu0 0
    %1471 = vmatpush1.bf16.msra.mxu0 0
    %1472 = vmatprep.subr.bf16.mxu0 0
    %1473 = vmatpush1.bf16.msra.mxu0 0
    %1474 = vmatprep.subr.bf16.mxu0 0
    %1475 = vmatpush1.bf16.msra.mxu0 0
    %1476 = vmatprep.subr.bf16.mxu0 0
    %1477 = vmatpush1.bf16.msra.mxu0 0
    %1478 = vmatprep.subr.bf16.mxu0 %v1461
    %1479 = vmatpush1.bf16.msra.mxu0 %v1460
    %1480 = vmatprep.subr.bf16.mxu0 %v1459
    %1481 = vmatpush1.bf16.msra.mxu0 %v1458
    %1482 = vmatprep.subr.bf16.mxu0 %v1457
    %1483 = vmatpush1.bf16.msra.mxu0 %v1456
    %1484 = vmatprep.subr.bf16.mxu0 %v1455
    %1485 = vmatpush1.bf16.msra.mxu0 %v1454
    %1486 = vmatprep.subr.bf16.mxu0 0
    %1487 = vmatpush2.bf16.msra.mxu0 0
    %1488 = vmatprep.subr.bf16.mxu0 0
    %1489 = vmatpush2.bf16.msra.mxu0 0
    %1490 = vmatprep.subr.bf16.mxu0 0
    %1491 = vmatpush2.bf16.msra.mxu0 0
    %1492 = vmatprep.subr.bf16.mxu0 0
    %1493 = vmatpush2.bf16.msra.mxu0 0
    %1494 = vmatprep.subr.bf16.mxu0 0
    %1495 = vmatpush2.bf16.msra.mxu0 0
    %1496 = vmatprep.subr.bf16.mxu0 0
    %1497 = vmatpush2.bf16.msra.mxu0 0
    %1498 = vmatprep.subr.bf16.mxu0 0
    %1499 = vmatpush2.bf16.msra.mxu0 0
    %1500 = vmatprep.subr.bf16.mxu0 0
    %1501 = vmatpush2.bf16.msra.mxu0 0
    %1502 = vmatprep.mubr.bf16.mxu0 0
    %1503 = vmatmul.mubr.bf16.gmra.mxu0 %v1385
    %v1504 = vpop.f32.mrf.mxu0
    %v1505 = vadd.f32 0.0, %v1504
    %v1506 = vpop.f32.mrf.mxu0
    %v1507 = vadd.f32 0.0, %v1506
    %v1508 = vpop.f32.mrf.mxu0
    %v1509 = vadd.f32 0.0, %v1508
    %v1510 = vpop.f32.mrf.mxu0
    %v1511 = vadd.f32 0.0, %v1510
    %1512 = vdwg.mxu0
    %v1521 = vunpack.c.l.b16 %v32
    %v1522 = vunpack.c.h.b16 %v32
    %v1523 = vunpack.c.l.b16 %v33
    %v1524 = vunpack.c.h.b16 %v33
    %v1525 = vunpack.c.l.b16 %v34
    %v1526 = vunpack.c.h.b16 %v34
    %v1527 = vunpack.c.l.b16 %v35
    %v1528 = vunpack.c.h.b16 %v35
    %v1529 = vunpack.c.l.b16 %v36
    %v1530 = vunpack.c.h.b16 %v36
    %v1531 = vunpack.c.l.b16 %v37
    %v1532 = vunpack.c.h.b16 %v37
    %v1533 = vunpack.c.l.b16 %v38
    %v1534 = vunpack.c.h.b16 %v38
    %v1535 = vunpack.c.l.b16 %v39
    %v1536 = vunpack.c.h.b16 %v39
    %v1537 = vpack.c.b16 %v1523, %v1521
    %v1538 = vpack.c.b16 %v1524, %v1522
    %v1539 = vpack.c.b16 %v1527, %v1525
    %v1540 = vpack.c.b16 %v1528, %v1526
    %v1541 = vpack.c.b16 %v1531, %v1529
    %v1542 = vpack.c.b16 %v1532, %v1530
    %v1543 = vpack.c.b16 %v1535, %v1533
    %v1544 = vpack.c.b16 %v1536, %v1534
    %1553 = vmatprep.subr.bf16.mxu0 0
    %1554 = vmatpush1.bf16.msra.mxu0 0
    %1555 = vmatprep.subr.bf16.mxu0 0
    %1556 = vmatpush1.bf16.msra.mxu0 0
    %1557 = vmatprep.subr.bf16.mxu0 0
    %1558 = vmatpush1.bf16.msra.mxu0 0
    %1559 = vmatprep.subr.bf16.mxu0 0
    %1560 = vmatpush1.bf16.msra.mxu0 0
    %1561 = vmatprep.subr.bf16.mxu0 %v1544
    %1562 = vmatpush1.bf16.msra.mxu0 %v1543
    %1563 = vmatprep.subr.bf16.mxu0 %v1542
    %1564 = vmatpush1.bf16.msra.mxu0 %v1541
    %1565 = vmatprep.subr.bf16.mxu0 %v1540
    %1566 = vmatpush1.bf16.msra.mxu0 %v1539
    %1567 = vmatprep.subr.bf16.mxu0 %v1538
    %1568 = vmatpush1.bf16.msra.mxu0 %v1537
    %1569 = vmatprep.subr.bf16.mxu0 0
    %1570 = vmatpush2.bf16.msra.mxu0 0
    %1571 = vmatprep.subr.bf16.mxu0 0
    %1572 = vmatpush2.bf16.msra.mxu0 0
    %1573 = vmatprep.subr.bf16.mxu0 0
    %1574 = vmatpush2.bf16.msra.mxu0 0
    %1575 = vmatprep.subr.bf16.mxu0 0
    %1576 = vmatpush2.bf16.msra.mxu0 0
    %1577 = vmatprep.subr.bf16.mxu0 0
    %1578 = vmatpush2.bf16.msra.mxu0 0
    %1579 = vmatprep.subr.bf16.mxu0 0
    %1580 = vmatpush2.bf16.msra.mxu0 0
    %1581 = vmatprep.subr.bf16.mxu0 0
    %1582 = vmatpush2.bf16.msra.mxu0 0
    %1583 = vmatprep.subr.bf16.mxu0 0
    %1584 = vmatpush2.bf16.msra.mxu0 0
    %1585 = vmatprep.mubr.bf16.mxu0 0
    %1586 = vmatmul.mubr.bf16.gmra.mxu0 %v230
    %v1587 = vpop.f32.mrf.mxu0
    %v1588 = vadd.f32 0.0, %v1587
    %v1589 = vpop.f32.mrf.mxu0
    %v1590 = vadd.f32 0.0, %v1589
    %v1591 = vpop.f32.mrf.mxu0
    %v1592 = vpop.f32.mrf.mxu0
    %1593 = vdwg.mxu0
    %v1598 = vrot.slane %v1505, 7
    %v1599 = vrot.slane %v1507, 7
    %v1600 = vrot.slane %v1509, 7
    %v1601 = vrot.slane %v1511, 7
    %v1606 = vadd.f32 %v1422, %v1598
    %v1607 = vadd.f32 %v1424, %v1599
    %v1608 = vadd.f32 %v1426, %v1600
    %v1609 = vadd.f32 %v1428, %v1601
    %v1612 = vrot.slane %v1588, 1
    %v1613 = vrot.slane %v1590, 1
    %v1618 = vadd.f32 %v1606, %v1588
    %v1619 = vadd.f32 %v1607, %v1590
    %v1620 = vadd.f32 %v1608, %v1612
    %v1621 = vadd.f32 %v1609, %v1613
    %v1622 = vxor.u32 %v1618, 2147483648
    %v1623 = vxor.u32 %v1620, 2147483648
    %v1624 = vmul.f32 %v1622, 1.442695
    %v1625 = vpow.pop %v1624
    %v1626 = vmul.f32 %v1623, 1.442695
    %v1627 = vpow.pop %v1626
    %v1628 = vadd.f32 %v1625, 1.0
    %v1629 = vadd.f32 %v1627, 1.0
    %v1630 = vrcp.pop %v1628
    %v1631 = vmul.f32 1.0, %v1630
    %v1632 = vrcp.pop %v1629
    %v1633 = vmul.f32 1.0, %v1632
    %v1634 = vtanh.pop %v1619
    %v1635 = vtanh.pop %v1621
    %v1636 = vxor.u32 %v1619, 2147483648
    %v1637 = vxor.u32 %v1621, 2147483648
    %v1638 = vmul.f32 %v1636, 1.442695
    %v1639 = vpow.pop %v1638
    %v1640 = vmul.f32 %v1637, 1.442695
    %v1641 = vpow.pop %v1640
    %v1642 = vadd.f32 %v1639, 1.0
    %v1643 = vadd.f32 %v1641, 1.0
    %v1644 = vrcp.pop %v1642
    %v1645 = vmul.f32 1.0, %v1644
    %v1646 = vrcp.pop %v1643
    %v1647 = vmul.f32 1.0, %v1646
    %v1648 = vmul.f32 %v1631, 0.0
    %v1649 = vmul.f32 %v1633, 0.0
    %v1650 = vmul.f32 %v1631, %v1634
    %v1651 = vmul.f32 %v1633, %v1635
    %1654 = vrot.lane.b32.xlu0 %v1650, 64
    %v1655 = vpop.permute.xlu0 %1654
    %1656 = vrot.lane.b32.xlu0 %v1651, 64
    %v1657 = vpop.permute.xlu0 %1656
    %v1660 = vadd.f32 %v1648, %v1655
    %v1661 = vadd.f32 %v1649, %v1657
    %v1662 = vtanh.pop %v1660
    %v1663 = vtanh.pop %v1661
    %v1664 = vmul.f32 %v1645, %v1662
    %v1665 = vmul.f32 %v1647, %v1663
    %1668 = vrot.lane.b32.xlu0 %v1664, 64
    %v1669 = vpop.permute.xlu0 %1668
    %1670 = vrot.lane.b32.xlu0 %v1665, 64
    %v1671 = vpop.permute.xlu0 %1670
    %1674 = vst.msk [vmem:[#allocation3] sm:$0x1] %vm353, %v1669
    %1675 = vst.msk [vmem:[#allocation3 + $0x8] sm:$0x1] %vm353, %v1671
    %1676 = vst.msk [vmem:[#allocation3 + $0x7] sm:$0x1] %vm356, %v1669
    %1677 = vst.msk [vmem:[#allocation3 + $0xf] sm:$0x1] %vm356, %v1671
    %v1678 = vpack.c.bf16 %v1664, %v1664
    %v1679 = vpack.c.bf16 %v1665, %v1665
    %v1682 = vunpack.c.l.b16 %v1678
    %v1683 = vunpack.c.l.b16 %v1679
    %v1684 = vrot.slane %v1683, 7
    %v1685 = vsel %vm366, %v1684, %v1682
    %v1686 = vpack.c.b16 %v1685, %v1685
    %1687 = vrot.lane.b32.xlu0 %v1686, 64
    %v1688 = vpop.permute.xlu0 %1687
    %v1690 = vsel %vm228, %v1688, 0
    %1692 = vmatprep.subr.bf16.mxu0 0
    %1693 = vmatpush1.bf16.msra.mxu0 0
    %1694 = vmatprep.subr.bf16.mxu0 0
    %1695 = vmatpush1.bf16.msra.mxu0 0
    %1696 = vmatprep.subr.bf16.mxu0 0
    %1697 = vmatpush1.bf16.msra.mxu0 0
    %1698 = vmatprep.subr.bf16.mxu0 0
    %1699 = vmatpush1.bf16.msra.mxu0 0
    %1700 = vmatprep.subr.bf16.mxu0 %v1544
    %1701 = vmatpush1.bf16.msra.mxu0 %v1543
    %1702 = vmatprep.subr.bf16.mxu0 %v1542
    %1703 = vmatpush1.bf16.msra.mxu0 %v1541
    %1704 = vmatprep.subr.bf16.mxu0 %v1540
    %1705 = vmatpush1.bf16.msra.mxu0 %v1539
    %1706 = vmatprep.subr.bf16.mxu0 %v1538
    %1707 = vmatpush1.bf16.msra.mxu0 %v1537
    %1708 = vmatprep.subr.bf16.mxu0 0
    %1709 = vmatpush2.bf16.msra.mxu0 0
    %1710 = vmatprep.subr.bf16.mxu0 0
    %1711 = vmatpush2.bf16.msra.mxu0 0
    %1712 = vmatprep.subr.bf16.mxu0 0
    %1713 = vmatpush2.bf16.msra.mxu0 0
    %1714 = vmatprep.subr.bf16.mxu0 0
    %1715 = vmatpush2.bf16.msra.mxu0 0
    %1716 = vmatprep.subr.bf16.mxu0 0
    %1717 = vmatpush2.bf16.msra.mxu0 0
    %1718 = vmatprep.subr.bf16.mxu0 0
    %1719 = vmatpush2.bf16.msra.mxu0 0
    %1720 = vmatprep.subr.bf16.mxu0 0
    %1721 = vmatpush2.bf16.msra.mxu0 0
    %1722 = vmatprep.subr.bf16.mxu0 0
    %1723 = vmatpush2.bf16.msra.mxu0 0
    %1724 = vmatprep.mubr.bf16.mxu0 0
    %1725 = vmatmul.mubr.bf16.gmra.mxu0 %v1690
    %v1726 = vpop.f32.mrf.mxu0
    %v1727 = vadd.f32 0.0, %v1726
    %v1728 = vpop.f32.mrf.mxu0
    %v1729 = vadd.f32 0.0, %v1728
    %v1730 = vpop.f32.mrf.mxu0
    %v1731 = vpop.f32.mrf.mxu0
    %1732 = vdwg.mxu0
    %v1733 = vrot.slane %v1505, 5
    %v1734 = vrot.slane %v1507, 5
    %v1735 = vrot.slane %v1509, 5
    %v1736 = vrot.slane %v1511, 5
    %v1741 = vadd.f32 %v1422, %v1733
    %v1742 = vadd.f32 %v1424, %v1734
    %v1743 = vadd.f32 %v1426, %v1735
    %v1744 = vadd.f32 %v1428, %v1736
    %v1747 = vrot.slane %v1727, 7
    %v1748 = vrot.slane %v1729, 7
    %v1753 = vadd.f32 %v1741, %v1747
    %v1754 = vadd.f32 %v1742, %v1748
    %v1755 = vadd.f32 %v1743, %v1727
    %v1756 = vadd.f32 %v1744, %v1729
    %v1757 = vxor.u32 %v1753, 2147483648
    %v1758 = vxor.u32 %v1755, 2147483648
    %v1759 = vmul.f32 %v1757, 1.442695
    %v1760 = vpow.pop %v1759
    %v1761 = vmul.f32 %v1758, 1.442695
    %v1762 = vpow.pop %v1761
    %v1763 = vadd.f32 %v1760, 1.0
    %v1764 = vadd.f32 %v1762, 1.0
    %v1765 = vrcp.pop %v1763
    %v1766 = vmul.f32 1.0, %v1765
    %v1767 = vrcp.pop %v1764
    %v1768 = vmul.f32 1.0, %v1767
    %v1769 = vtanh.pop %v1754
    %v1770 = vtanh.pop %v1756
    %v1771 = vxor.u32 %v1754, 2147483648
    %v1772 = vxor.u32 %v1756, 2147483648
    %v1773 = vmul.f32 %v1771, 1.442695
    %v1774 = vpow.pop %v1773
    %v1775 = vmul.f32 %v1772, 1.442695
    %v1776 = vpow.pop %v1775
    %v1777 = vadd.f32 %v1774, 1.0
    %v1778 = vadd.f32 %v1776, 1.0
    %v1779 = vrcp.pop %v1777
    %v1780 = vmul.f32 1.0, %v1779
    %v1781 = vrcp.pop %v1778
    %v1782 = vmul.f32 1.0, %v1781
    %v1785 = vrot.slane %v1660, 7
    %v1786 = vrot.slane %v1661, 7
    %v1789 = vmul.f32 %v1766, %v1785
    %v1790 = vmul.f32 %v1768, %v1786
    %v1791 = vmul.f32 %v1766, %v1769
    %v1792 = vmul.f32 %v1768, %v1770
    %1795 = vrot.lane.b32.xlu0 %v1791, 64
    %v1796 = vpop.permute.xlu0 %1795
    %1797 = vrot.lane.b32.xlu0 %v1792, 64
    %v1798 = vpop.permute.xlu0 %1797
    %v1801 = vadd.f32 %v1789, %v1796
    %v1802 = vadd.f32 %v1790, %v1798
    %v1803 = vtanh.pop %v1801
    %v1804 = vtanh.pop %v1802
    %v1805 = vmul.f32 %v1780, %v1803
    %v1806 = vmul.f32 %v1782, %v1804
    %1809 = vrot.lane.b32.xlu0 %v1805, 64
    %v1810 = vpop.permute.xlu0 %1809
    %1811 = vrot.lane.b32.xlu0 %v1806, 64
    %v1812 = vpop.permute.xlu0 %1811
    %1815 = vst.msk [vmem:[#allocation3] sm:$0x2] %vm497, %v1810
    %1816 = vst.msk [vmem:[#allocation3 + $0x8] sm:$0x2] %vm497, %v1812
    %1817 = vst.msk [vmem:[#allocation3 + $0x5] sm:$0x2] %vm500, %v1810
    %1818 = vst.msk [vmem:[#allocation3 + $0xd] sm:$0x2] %vm500, %v1812
    %v1819 = vpack.c.bf16 %v1805, %v1805
    %v1820 = vpack.c.bf16 %v1806, %v1806
    %v1823 = vunpack.c.l.b16 %v1819
    %v1824 = vunpack.c.l.b16 %v1820
    %v1825 = vrot.slane %v1823, 1
    %v1826 = vsel %vm366, %v1824, %v1825
    %v1827 = vpack.c.b16 %v1826, %v1826
    %1828 = vrot.lane.b32.xlu0 %v1827, 64
    %v1829 = vpop.permute.xlu0 %1828
    %v1831 = vsel %vm228, %v1829, 0
    %1833 = vmatprep.subr.bf16.mxu0 0
    %1834 = vmatpush1.bf16.msra.mxu0 0
    %1835 = vmatprep.subr.bf16.mxu0 0
    %1836 = vmatpush1.bf16.msra.mxu0 0
    %1837 = vmatprep.subr.bf16.mxu0 0
    %1838 = vmatpush1.bf16.msra.mxu0 0
    %1839 = vmatprep.subr.bf16.mxu0 0
    %1840 = vmatpush1.bf16.msra.mxu0 0
    %1841 = vmatprep.subr.bf16.mxu0 %v1544
    %1842 = vmatpush1.bf16.msra.mxu0 %v1543
    %1843 = vmatprep.subr.bf16.mxu0 %v1542
    %1844 = vmatpush1.bf16.msra.mxu0 %v1541
    %1845 = vmatprep.subr.bf16.mxu0 %v1540
    %1846 = vmatpush1.bf16.msra.mxu0 %v1539
    %1847 = vmatprep.subr.bf16.mxu0 %v1538
    %1848 = vmatpush1.bf16.msra.mxu0 %v1537
    %1849 = vmatprep.subr.bf16.mxu0 0
    %1850 = vmatpush2.bf16.msra.mxu0 0
    %1851 = vmatprep.subr.bf16.mxu0 0
    %1852 = vmatpush2.bf16.msra.mxu0 0
    %1853 = vmatprep.subr.bf16.mxu0 0
    %1854 = vmatpush2.bf16.msra.mxu0 0
    %1855 = vmatprep.subr.bf16.mxu0 0
    %1856 = vmatpush2.bf16.msra.mxu0 0
    %1857 = vmatprep.subr.bf16.mxu0 0
    %1858 = vmatpush2.bf16.msra.mxu0 0
    %1859 = vmatprep.subr.bf16.mxu0 0
    %1860 = vmatpush2.bf16.msra.mxu0 0
    %1861 = vmatprep.subr.bf16.mxu0 0
    %1862 = vmatpush2.bf16.msra.mxu0 0
    %1863 = vmatprep.subr.bf16.mxu0 0
    %1864 = vmatpush2.bf16.msra.mxu0 0
    %1865 = vmatprep.mubr.bf16.mxu0 0
    %1866 = vmatmul.mubr.bf16.gmra.mxu0 %v1831
    %v1867 = vpop.f32.mrf.mxu0
    %v1868 = vadd.f32 0.0, %v1867
    %v1869 = vpop.f32.mrf.mxu0
    %v1870 = vadd.f32 0.0, %v1869
    %v1871 = vpop.f32.mrf.mxu0
    %v1872 = vpop.f32.mrf.mxu0
    %1873 = vdwg.mxu0
    %v1874 = vrot.slane %v1505, 3
    %v1875 = vrot.slane %v1507, 3
    %v1876 = vrot.slane %v1509, 3
    %v1877 = vrot.slane %v1511, 3
    %v1882 = vadd.f32 %v1422, %v1874
    %v1883 = vadd.f32 %v1424, %v1875
    %v1884 = vadd.f32 %v1426, %v1876
    %v1885 = vadd.f32 %v1428, %v1877
    %v1888 = vrot.slane %v1868, 6
    %v1889 = vrot.slane %v1870, 6
    %v1890 = vrot.slane %v1868, 7
    %v1891 = vrot.slane %v1870, 7
    %v1896 = vadd.f32 %v1882, %v1888
    %v1897 = vadd.f32 %v1883, %v1889
    %v1898 = vadd.f32 %v1884, %v1890
    %v1899 = vadd.f32 %v1885, %v1891
    %v1900 = vxor.u32 %v1896, 2147483648
    %v1901 = vxor.u32 %v1898, 2147483648
    %v1902 = vmul.f32 %v1900, 1.442695
    %v1903 = vpow.pop %v1902
    %v1904 = vmul.f32 %v1901, 1.442695
    %v1905 = vpow.pop %v1904
    %v1906 = vadd.f32 %v1903, 1.0
    %v1907 = vadd.f32 %v1905, 1.0
    %v1908 = vrcp.pop %v1906
    %v1909 = vmul.f32 1.0, %v1908
    %v1910 = vrcp.pop %v1907
    %v1911 = vmul.f32 1.0, %v1910
    %v1912 = vtanh.pop %v1897
    %v1913 = vtanh.pop %v1899
    %v1914 = vxor.u32 %v1897, 2147483648
    %v1915 = vxor.u32 %v1899, 2147483648
    %v1916 = vmul.f32 %v1914, 1.442695
    %v1917 = vpow.pop %v1916
    %v1918 = vmul.f32 %v1915, 1.442695
    %v1919 = vpow.pop %v1918
    %v1920 = vadd.f32 %v1917, 1.0
    %v1921 = vadd.f32 %v1919, 1.0
    %v1922 = vrcp.pop %v1920
    %v1923 = vmul.f32 1.0, %v1922
    %v1924 = vrcp.pop %v1921
    %v1925 = vmul.f32 1.0, %v1924
    %v1928 = vrot.slane %v1801, 7
    %v1929 = vrot.slane %v1802, 7
    %v1932 = vmul.f32 %v1909, %v1928
    %v1933 = vmul.f32 %v1911, %v1929
    %v1934 = vmul.f32 %v1909, %v1912
    %v1935 = vmul.f32 %v1911, %v1913
    %1938 = vrot.lane.b32.xlu0 %v1934, 64
    %v1939 = vpop.permute.xlu0 %1938
    %1940 = vrot.lane.b32.xlu0 %v1935, 64
    %v1941 = vpop.permute.xlu0 %1940
    %v1944 = vadd.f32 %v1932, %v1939
    %v1945 = vadd.f32 %v1933, %v1941
    %v1946 = vtanh.pop %v1944
    %v1947 = vtanh.pop %v1945
    %v1948 = vmul.f32 %v1923, %v1946
    %v1949 = vmul.f32 %v1925, %v1947
    %1952 = vrot.lane.b32.xlu0 %v1948, 64
    %v1953 = vpop.permute.xlu0 %1952
    %1954 = vrot.lane.b32.xlu0 %v1949, 64
    %v1955 = vpop.permute.xlu0 %1954
    %1958 = vst.msk [vmem:[#allocation3] sm:$0x4] %vm642, %v1953
    %1959 = vst.msk [vmem:[#allocation3 + $0x8] sm:$0x4] %vm642, %v1955
    %1960 = vst.msk [vmem:[#allocation3 + $0x3] sm:$0x4] %vm645, %v1953
    %1961 = vst.msk [vmem:[#allocation3 + $0xb] sm:$0x4] %vm645, %v1955
    %v1962 = vpack.c.bf16 %v1948, %v1948
    %v1963 = vpack.c.bf16 %v1949, %v1949
    %v1966 = vunpack.c.l.b16 %v1962
    %v1967 = vunpack.c.l.b16 %v1963
    %v1968 = vrot.slane %v1966, 2
    %v1969 = vrot.slane %v1967, 1
    %v1970 = vsel %vm366, %v1969, %v1968
    %v1971 = vpack.c.b16 %v1970, %v1970
    %1972 = vrot.lane.b32.xlu0 %v1971, 64
    %v1973 = vpop.permute.xlu0 %1972
    %v1975 = vsel %vm228, %v1973, 0
    %1977 = vmatprep.subr.bf16.mxu0 0
    %1978 = vmatpush1.bf16.msra.mxu0 0
    %1979 = vmatprep.subr.bf16.mxu0 0
    %1980 = vmatpush1.bf16.msra.mxu0 0
    %1981 = vmatprep.subr.bf16.mxu0 0
    %1982 = vmatpush1.bf16.msra.mxu0 0
    %1983 = vmatprep.subr.bf16.mxu0 0
    %1984 = vmatpush1.bf16.msra.mxu0 0
    %1985 = vmatprep.subr.bf16.mxu0 %v1544
    %1986 = vmatpush1.bf16.msra.mxu0 %v1543
    %1987 = vmatprep.subr.bf16.mxu0 %v1542
    %1988 = vmatpush1.bf16.msra.mxu0 %v1541
    %1989 = vmatprep.subr.bf16.mxu0 %v1540
    %1990 = vmatpush1.bf16.msra.mxu0 %v1539
    %1991 = vmatprep.subr.bf16.mxu0 %v1538
    %1992 = vmatpush1.bf16.msra.mxu0 %v1537
    %1993 = vmatprep.subr.bf16.mxu0 0
    %1994 = vmatpush2.bf16.msra.mxu0 0
    %1995 = vmatprep.subr.bf16.mxu0 0
    %1996 = vmatpush2.bf16.msra.mxu0 0
    %1997 = vmatprep.subr.bf16.mxu0 0
    %1998 = vmatpush2.bf16.msra.mxu0 0
    %1999 = vmatprep.subr.bf16.mxu0 0
    %2000 = vmatpush2.bf16.msra.mxu0 0
    %2001 = vmatprep.subr.bf16.mxu0 0
    %2002 = vmatpush2.bf16.msra.mxu0 0
    %2003 = vmatprep.subr.bf16.mxu0 0
    %2004 = vmatpush2.bf16.msra.mxu0 0
    %2005 = vmatprep.subr.bf16.mxu0 0
    %2006 = vmatpush2.bf16.msra.mxu0 0
    %2007 = vmatprep.subr.bf16.mxu0 0
    %2008 = vmatpush2.bf16.msra.mxu0 0
    %2009 = vmatprep.mubr.bf16.mxu0 0
    %2010 = vmatmul.mubr.bf16.gmra.mxu0 %v1975
    %v2011 = vpop.f32.mrf.mxu0
    %v2012 = vadd.f32 0.0, %v2011
    %v2013 = vpop.f32.mrf.mxu0
    %v2014 = vadd.f32 0.0, %v2013
    %v2015 = vpop.f32.mrf.mxu0
    %v2016 = vpop.f32.mrf.mxu0
    %2017 = vdwg.mxu0
    %v2018 = vrot.slane %v1505, 1
    %v2019 = vrot.slane %v1507, 1
    %v2020 = vrot.slane %v1509, 1
    %v2021 = vrot.slane %v1511, 1
    %v2026 = vadd.f32 %v1422, %v2018
    %v2027 = vadd.f32 %v1424, %v2019
    %v2028 = vadd.f32 %v1426, %v2020
    %v2029 = vadd.f32 %v1428, %v2021
    %v2032 = vrot.slane %v2012, 5
    %v2033 = vrot.slane %v2014, 5
    %v2034 = vrot.slane %v2012, 6
    %v2035 = vrot.slane %v2014, 6
    %v2040 = vadd.f32 %v2026, %v2032
    %v2041 = vadd.f32 %v2027, %v2033
    %v2042 = vadd.f32 %v2028, %v2034
    %v2043 = vadd.f32 %v2029, %v2035
    %v2044 = vxor.u32 %v2040, 2147483648
    %v2045 = vxor.u32 %v2042, 2147483648
    %v2046 = vmul.f32 %v2044, 1.442695
    %v2047 = vpow.pop %v2046
    %v2048 = vmul.f32 %v2045, 1.442695
    %v2049 = vpow.pop %v2048
    %v2050 = vadd.f32 %v2047, 1.0
    %v2051 = vadd.f32 %v2049, 1.0
    %v2052 = vrcp.pop %v2050
    %v2053 = vmul.f32 1.0, %v2052
    %v2054 = vrcp.pop %v2051
    %v2055 = vmul.f32 1.0, %v2054
    %v2056 = vtanh.pop %v2041
    %v2057 = vtanh.pop %v2043
    %v2058 = vxor.u32 %v2041, 2147483648
    %v2059 = vxor.u32 %v2043, 2147483648
    %v2060 = vmul.f32 %v2058, 1.442695
    %v2061 = vpow.pop %v2060
    %v2062 = vmul.f32 %v2059, 1.442695
    %v2063 = vpow.pop %v2062
    %v2064 = vadd.f32 %v2061, 1.0
    %v2065 = vadd.f32 %v2063, 1.0
    %v2066 = vrcp.pop %v2064
    %v2067 = vmul.f32 1.0, %v2066
    %v2068 = vrcp.pop %v2065
    %v2069 = vmul.f32 1.0, %v2068
    %v2072 = vrot.slane %v1944, 7
    %v2073 = vrot.slane %v1945, 7
    %v2076 = vmul.f32 %v2053, %v2072
    %v2077 = vmul.f32 %v2055, %v2073
    %v2078 = vmul.f32 %v2053, %v2056
    %v2079 = vmul.f32 %v2055, %v2057
    %2082 = vrot.lane.b32.xlu0 %v2078, 64
    %v2083 = vpop.permute.xlu0 %2082
    %2084 = vrot.lane.b32.xlu0 %v2079, 64
    %v2085 = vpop.permute.xlu0 %2084
    %v2088 = vadd.f32 %v2076, %v2083
    %v2089 = vadd.f32 %v2077, %v2085
    %v2090 = vtanh.pop %v2088
    %v2091 = vtanh.pop %v2089
    %v2092 = vmul.f32 %v2067, %v2090
    %v2093 = vmul.f32 %v2069, %v2091
    %2096 = vrot.lane.b32.xlu0 %v2092, 64
    %v2097 = vpop.permute.xlu0 %2096
    %2098 = vrot.lane.b32.xlu0 %v2093, 64
    %v2099 = vpop.permute.xlu0 %2098
    %2102 = vst.msk [vmem:[#allocation3] sm:$0x8] %vm788, %v2097
    %2103 = vst.msk [vmem:[#allocation3 + $0x8] sm:$0x8] %vm788, %v2099
    %2104 = vst.msk [vmem:[#allocation3 + $0x1] sm:$0x8] %vm791, %v2097
    %2105 = vst.msk [vmem:[#allocation3 + $0x9] sm:$0x8] %vm791, %v2099
    %v2106 = vpack.c.bf16 %v2092, %v2092
    %v2107 = vpack.c.bf16 %v2093, %v2093
    %v2110 = vunpack.c.l.b16 %v2106
    %v2111 = vunpack.c.l.b16 %v2107
    %v2112 = vrot.slane %v2110, 3
    %v2113 = vrot.slane %v2111, 2
    %v2114 = vsel %vm366, %v2113, %v2112
    %v2115 = vpack.c.b16 %v2114, %v2114
    %2116 = vrot.lane.b32.xlu0 %v2115, 64
    %v2117 = vpop.permute.xlu0 %2116
    %v2119 = vsel %vm228, %v2117, 0
    %2121 = vmatprep.subr.bf16.mxu0 0
    %2122 = vmatpush1.bf16.msra.mxu0 0
    %2123 = vmatprep.subr.bf16.mxu0 0
    %2124 = vmatpush1.bf16.msra.mxu0 0
    %2125 = vmatprep.subr.bf16.mxu0 0
    %2126 = vmatpush1.bf16.msra.mxu0 0
    %2127 = vmatprep.subr.bf16.mxu0 0
    %2128 = vmatpush1.bf16.msra.mxu0 0
    %2129 = vmatprep.subr.bf16.mxu0 %v1544
    %2130 = vmatpush1.bf16.msra.mxu0 %v1543
    %2131 = vmatprep.subr.bf16.mxu0 %v1542
    %2132 = vmatpush1.bf16.msra.mxu0 %v1541
    %2133 = vmatprep.subr.bf16.mxu0 %v1540
    %2134 = vmatpush1.bf16.msra.mxu0 %v1539
    %2135 = vmatprep.subr.bf16.mxu0 %v1538
    %2136 = vmatpush1.bf16.msra.mxu0 %v1537
    %2137 = vmatprep.subr.bf16.mxu0 0
    %2138 = vmatpush2.bf16.msra.mxu0 0
    %2139 = vmatprep.subr.bf16.mxu0 0
    %2140 = vmatpush2.bf16.msra.mxu0 0
    %2141 = vmatprep.subr.bf16.mxu0 0
    %2142 = vmatpush2.bf16.msra.mxu0 0
    %2143 = vmatprep.subr.bf16.mxu0 0
    %2144 = vmatpush2.bf16.msra.mxu0 0
    %2145 = vmatprep.subr.bf16.mxu0 0
    %2146 = vmatpush2.bf16.msra.mxu0 0
    %2147 = vmatprep.subr.bf16.mxu0 0
    %2148 = vmatpush2.bf16.msra.mxu0 0
    %2149 = vmatprep.subr.bf16.mxu0 0
    %2150 = vmatpush2.bf16.msra.mxu0 0
    %2151 = vmatprep.subr.bf16.mxu0 0
    %2152 = vmatpush2.bf16.msra.mxu0 0
    %2153 = vmatprep.mubr.bf16.mxu0 0
    %2154 = vmatmul.mubr.bf16.gmra.mxu0 %v2119
    %v2155 = vpop.f32.mrf.mxu0
    %v2156 = vadd.f32 0.0, %v2155
    %v2157 = vpop.f32.mrf.mxu0
    %v2158 = vadd.f32 0.0, %v2157
    %v2159 = vpop.f32.mrf.mxu0
    %v2160 = vpop.f32.mrf.mxu0
    %2161 = vdwg.mxu0
    %v2164 = vrot.slane %v2156, 4
    %v2165 = vrot.slane %v2158, 4
    %v2166 = vrot.slane %v2156, 5
    %v2167 = vrot.slane %v2158, 5
    %v2172 = vadd.f32 %v1606, %v2164
    %v2173 = vadd.f32 %v1607, %v2165
    %v2174 = vadd.f32 %v1608, %v2166
    %v2175 = vadd.f32 %v1609, %v2167
    %v2176 = vxor.u32 %v2172, 2147483648
    %v2177 = vxor.u32 %v2174, 2147483648
    %v2178 = vmul.f32 %v2176, 1.442695
    %v2179 = vpow.pop %v2178
    %v2180 = vmul.f32 %v2177, 1.442695
    %v2181 = vpow.pop %v2180
    %v2182 = vadd.f32 %v2179, 1.0
    %v2183 = vadd.f32 %v2181, 1.0
    %v2184 = vrcp.pop %v2182
    %v2185 = vmul.f32 1.0, %v2184
    %v2186 = vrcp.pop %v2183
    %v2187 = vmul.f32 1.0, %v2186
    %v2188 = vtanh.pop %v2173
    %v2189 = vtanh.pop %v2175
    %v2190 = vxor.u32 %v2173, 2147483648
    %v2191 = vxor.u32 %v2175, 2147483648
    %v2192 = vmul.f32 %v2190, 1.442695
    %v2193 = vpow.pop %v2192
    %v2194 = vmul.f32 %v2191, 1.442695
    %v2195 = vpow.pop %v2194
    %v2196 = vadd.f32 %v2193, 1.0
    %v2197 = vadd.f32 %v2195, 1.0
    %v2198 = vrcp.pop %v2196
    %v2199 = vmul.f32 1.0, %v2198
    %v2200 = vrcp.pop %v2197
    %v2201 = vmul.f32 1.0, %v2200
    %v2204 = vrot.slane %v2088, 7
    %v2205 = vrot.slane %v2089, 7
    %v2208 = vmul.f32 %v2185, %v2204
    %v2209 = vmul.f32 %v2187, %v2205
    %v2210 = vmul.f32 %v2185, %v2188
    %v2211 = vmul.f32 %v2187, %v2189
    %2214 = vrot.lane.b32.xlu0 %v2210, 64
    %v2215 = vpop.permute.xlu0 %2214
    %2216 = vrot.lane.b32.xlu0 %v2211, 64
    %v2217 = vpop.permute.xlu0 %2216
    %v2220 = vadd.f32 %v2208, %v2215
    %v2221 = vadd.f32 %v2209, %v2217
    %v2222 = vtanh.pop %v2220
    %v2223 = vtanh.pop %v2221
    %v2224 = vmul.f32 %v2199, %v2222
    %v2225 = vmul.f32 %v2201, %v2223
    %2228 = vrot.lane.b32.xlu0 %v2224, 64
    %v2229 = vpop.permute.xlu0 %2228
    %2230 = vrot.lane.b32.xlu0 %v2225, 64
    %v2231 = vpop.permute.xlu0 %2230
    %2234 = vst.msk [vmem:[#allocation3] sm:$0x10] %vm922, %v2229
    %2235 = vst.msk [vmem:[#allocation3 + $0x8] sm:$0x10] %vm922, %v2231
    %2236 = vst.msk [vmem:[#allocation3 - $0x1] sm:$0x10] %vm925, %v2229
    %2237 = vst.msk [vmem:[#allocation3 + $0x7] sm:$0x10] %vm925, %v2231
    %v2238 = vpack.c.bf16 %v2224, %v2224
    %v2239 = vpack.c.bf16 %v2225, %v2225
    %v2242 = vunpack.c.l.b16 %v2238
    %v2243 = vunpack.c.l.b16 %v2239
    %v2244 = vrot.slane %v2242, 4
    %v2245 = vrot.slane %v2243, 3
    %v2246 = vsel %vm366, %v2245, %v2244
    %v2247 = vpack.c.b16 %v2246, %v2246
    %2248 = vrot.lane.b32.xlu0 %v2247, 64
    %v2249 = vpop.permute.xlu0 %2248
    %v2251 = vsel %vm228, %v2249, 0
    %2253 = vmatprep.subr.bf16.mxu0 0
    %2254 = vmatpush1.bf16.msra.mxu0 0
    %2255 = vmatprep.subr.bf16.mxu0 0
    %2256 = vmatpush1.bf16.msra.mxu0 0
    %2257 = vmatprep.subr.bf16.mxu0 0
    %2258 = vmatpush1.bf16.msra.mxu0 0
    %2259 = vmatprep.subr.bf16.mxu0 0
    %2260 = vmatpush1.bf16.msra.mxu0 0
    %2261 = vmatprep.subr.bf16.mxu0 %v1544
    %2262 = vmatpush1.bf16.msra.mxu0 %v1543
    %2263 = vmatprep.subr.bf16.mxu0 %v1542
    %2264 = vmatpush1.bf16.msra.mxu0 %v1541
    %2265 = vmatprep.subr.bf16.mxu0 %v1540
    %2266 = vmatpush1.bf16.msra.mxu0 %v1539
    %2267 = vmatprep.subr.bf16.mxu0 %v1538
    %2268 = vmatpush1.bf16.msra.mxu0 %v1537
    %2269 = vmatprep.subr.bf16.mxu0 0
    %2270 = vmatpush2.bf16.msra.mxu0 0
    %2271 = vmatprep.subr.bf16.mxu0 0
    %2272 = vmatpush2.bf16.msra.mxu0 0
    %2273 = vmatprep.subr.bf16.mxu0 0
    %2274 = vmatpush2.bf16.msra.mxu0 0
    %2275 = vmatprep.subr.bf16.mxu0 0
    %2276 = vmatpush2.bf16.msra.mxu0 0
    %2277 = vmatprep.subr.bf16.mxu0 0
    %2278 = vmatpush2.bf16.msra.mxu0 0
    %2279 = vmatprep.subr.bf16.mxu0 0
    %2280 = vmatpush2.bf16.msra.mxu0 0
    %2281 = vmatprep.subr.bf16.mxu0 0
    %2282 = vmatpush2.bf16.msra.mxu0 0
    %2283 = vmatprep.subr.bf16.mxu0 0
    %2284 = vmatpush2.bf16.msra.mxu0 0
    %2285 = vmatprep.mubr.bf16.mxu0 0
    %2286 = vmatmul.mubr.bf16.gmra.mxu0 %v2251
    %v2287 = vpop.f32.mrf.mxu0
    %v2288 = vadd.f32 0.0, %v2287
    %v2289 = vpop.f32.mrf.mxu0
    %v2290 = vadd.f32 0.0, %v2289
    %v2291 = vpop.f32.mrf.mxu0
    %v2292 = vpop.f32.mrf.mxu0
    %2293 = vdwg.mxu0
    %v2296 = vrot.slane %v2288, 3
    %v2297 = vrot.slane %v2290, 3
    %v2298 = vrot.slane %v2288, 4
    %v2299 = vrot.slane %v2290, 4
    %v2304 = vadd.f32 %v1741, %v2296
    %v2305 = vadd.f32 %v1742, %v2297
    %v2306 = vadd.f32 %v1743, %v2298
    %v2307 = vadd.f32 %v1744, %v2299
    %v2308 = vxor.u32 %v2304, 2147483648
    %v2309 = vxor.u32 %v2306, 2147483648
    %v2310 = vmul.f32 %v2308, 1.442695
    %v2311 = vpow.pop %v2310
    %v2312 = vmul.f32 %v2309, 1.442695
    %v2313 = vpow.pop %v2312
    %v2314 = vadd.f32 %v2311, 1.0
    %v2315 = vadd.f32 %v2313, 1.0
    %v2316 = vrcp.pop %v2314
    %v2317 = vmul.f32 1.0, %v2316
    %v2318 = vrcp.pop %v2315
    %v2319 = vmul.f32 1.0, %v2318
    %v2320 = vtanh.pop %v2305
    %v2321 = vtanh.pop %v2307
    %v2322 = vxor.u32 %v2305, 2147483648
    %v2323 = vxor.u32 %v2307, 2147483648
    %v2324 = vmul.f32 %v2322, 1.442695
    %v2325 = vpow.pop %v2324
    %v2326 = vmul.f32 %v2323, 1.442695
    %v2327 = vpow.pop %v2326
    %v2328 = vadd.f32 %v2325, 1.0
    %v2329 = vadd.f32 %v2327, 1.0
    %v2330 = vrcp.pop %v2328
    %v2331 = vmul.f32 1.0, %v2330
    %v2332 = vrcp.pop %v2329
    %v2333 = vmul.f32 1.0, %v2332
    %v2336 = vrot.slane %v2220, 7
    %v2337 = vrot.slane %v2221, 7
    %v2340 = vmul.f32 %v2317, %v2336
    %v2341 = vmul.f32 %v2319, %v2337
    %v2342 = vmul.f32 %v2317, %v2320
    %v2343 = vmul.f32 %v2319, %v2321
    %2346 = vrot.lane.b32.xlu0 %v2342, 64
    %v2347 = vpop.permute.xlu0 %2346
    %2348 = vrot.lane.b32.xlu0 %v2343, 64
    %v2349 = vpop.permute.xlu0 %2348
    %v2352 = vadd.f32 %v2340, %v2347
    %v2353 = vadd.f32 %v2341, %v2349
    %v2354 = vtanh.pop %v2352
    %v2355 = vtanh.pop %v2353
    %v2356 = vmul.f32 %v2331, %v2354
    %v2357 = vmul.f32 %v2333, %v2355
    %2360 = vrot.lane.b32.xlu0 %v2356, 64
    %v2361 = vpop.permute.xlu0 %2360
    %2362 = vrot.lane.b32.xlu0 %v2357, 64
    %v2363 = vpop.permute.xlu0 %2362
    %2366 = vst.msk [vmem:[#allocation3] sm:$0x20] %vm1056, %v2361
    %2367 = vst.msk [vmem:[#allocation3 + $0x8] sm:$0x20] %vm1056, %v2363
    %2368 = vst.msk [vmem:[#allocation3 - $0x3] sm:$0x20] %vm1059, %v2361
    %2369 = vst.msk [vmem:[#allocation3 + $0x5] sm:$0x20] %vm1059, %v2363
    %v2370 = vpack.c.bf16 %v2356, %v2356
    %v2371 = vpack.c.bf16 %v2357, %v2357
    %v2374 = vunpack.c.l.b16 %v2370
    %v2375 = vunpack.c.l.b16 %v2371
    %v2376 = vrot.slane %v2374, 5
    %v2377 = vrot.slane %v2375, 4
    %v2378 = vsel %vm366, %v2377, %v2376
    %v2379 = vpack.c.b16 %v2378, %v2378
    %2380 = vrot.lane.b32.xlu0 %v2379, 64
    %v2381 = vpop.permute.xlu0 %2380
    %v2383 = vsel %vm228, %v2381, 0
    %2385 = vmatprep.subr.bf16.mxu0 0
    %2386 = vmatpush1.bf16.msra.mxu0 0
    %2387 = vmatprep.subr.bf16.mxu0 0
    %2388 = vmatpush1.bf16.msra.mxu0 0
    %2389 = vmatprep.subr.bf16.mxu0 0
    %2390 = vmatpush1.bf16.msra.mxu0 0
    %2391 = vmatprep.subr.bf16.mxu0 0
    %2392 = vmatpush1.bf16.msra.mxu0 0
    %2393 = vmatprep.subr.bf16.mxu0 %v1544
    %2394 = vmatpush1.bf16.msra.mxu0 %v1543
    %2395 = vmatprep.subr.bf16.mxu0 %v1542
    %2396 = vmatpush1.bf16.msra.mxu0 %v1541
    %2397 = vmatprep.subr.bf16.mxu0 %v1540
    %2398 = vmatpush1.bf16.msra.mxu0 %v1539
    %2399 = vmatprep.subr.bf16.mxu0 %v1538
    %2400 = vmatpush1.bf16.msra.mxu0 %v1537
    %2401 = vmatprep.subr.bf16.mxu0 0
    %2402 = vmatpush2.bf16.msra.mxu0 0
    %2403 = vmatprep.subr.bf16.mxu0 0
    %2404 = vmatpush2.bf16.msra.mxu0 0
    %2405 = vmatprep.subr.bf16.mxu0 0
    %2406 = vmatpush2.bf16.msra.mxu0 0
    %2407 = vmatprep.subr.bf16.mxu0 0
    %2408 = vmatpush2.bf16.msra.mxu0 0
    %2409 = vmatprep.subr.bf16.mxu0 0
    %2410 = vmatpush2.bf16.msra.mxu0 0
    %2411 = vmatprep.subr.bf16.mxu0 0
    %2412 = vmatpush2.bf16.msra.mxu0 0
    %2413 = vmatprep.subr.bf16.mxu0 0
    %2414 = vmatpush2.bf16.msra.mxu0 0
    %2415 = vmatprep.subr.bf16.mxu0 0
    %2416 = vmatpush2.bf16.msra.mxu0 0
    %2417 = vmatprep.mubr.bf16.mxu0 0
    %2418 = vmatmul.mubr.bf16.gmra.mxu0 %v2383
    %v2419 = vpop.f32.mrf.mxu0
    %v2420 = vadd.f32 0.0, %v2419
    %v2421 = vpop.f32.mrf.mxu0
    %v2422 = vadd.f32 0.0, %v2421
    %v2423 = vpop.f32.mrf.mxu0
    %v2424 = vpop.f32.mrf.mxu0
    %2425 = vdwg.mxu0
    %v2428 = vrot.slane %v2420, 2
    %v2429 = vrot.slane %v2422, 2
    %v2430 = vrot.slane %v2420, 3
    %v2431 = vrot.slane %v2422, 3
    %v2436 = vadd.f32 %v1882, %v2428
    %v2437 = vadd.f32 %v1883, %v2429
    %v2438 = vadd.f32 %v1884, %v2430
    %v2439 = vadd.f32 %v1885, %v2431
    %v2440 = vxor.u32 %v2436, 2147483648
    %v2441 = vxor.u32 %v2438, 2147483648
    %v2442 = vmul.f32 %v2440, 1.442695
    %v2443 = vpow.pop %v2442
    %v2444 = vmul.f32 %v2441, 1.442695
    %v2445 = vpow.pop %v2444
    %v2446 = vadd.f32 %v2443, 1.0
    %v2447 = vadd.f32 %v2445, 1.0
    %v2448 = vrcp.pop %v2446
    %v2449 = vmul.f32 1.0, %v2448
    %v2450 = vrcp.pop %v2447
    %v2451 = vmul.f32 1.0, %v2450
    %v2452 = vtanh.pop %v2437
    %v2453 = vtanh.pop %v2439
    %v2454 = vxor.u32 %v2437, 2147483648
    %v2455 = vxor.u32 %v2439, 2147483648
    %v2456 = vmul.f32 %v2454, 1.442695
    %v2457 = vpow.pop %v2456
    %v2458 = vmul.f32 %v2455, 1.442695
    %v2459 = vpow.pop %v2458
    %v2460 = vadd.f32 %v2457, 1.0
    %v2461 = vadd.f32 %v2459, 1.0
    %v2462 = vrcp.pop %v2460
    %v2463 = vmul.f32 1.0, %v2462
    %v2464 = vrcp.pop %v2461
    %v2465 = vmul.f32 1.0, %v2464
    %v2468 = vrot.slane %v2352, 7
    %v2469 = vrot.slane %v2353, 7
    %v2472 = vmul.f32 %v2449, %v2468
    %v2473 = vmul.f32 %v2451, %v2469
    %v2474 = vmul.f32 %v2449, %v2452
    %v2475 = vmul.f32 %v2451, %v2453
    %2478 = vrot.lane.b32.xlu0 %v2474, 64
    %v2479 = vpop.permute.xlu0 %2478
    %2480 = vrot.lane.b32.xlu0 %v2475, 64
    %v2481 = vpop.permute.xlu0 %2480
    %v2484 = vadd.f32 %v2472, %v2479
    %v2485 = vadd.f32 %v2473, %v2481
    %v2486 = vtanh.pop %v2484
    %v2487 = vtanh.pop %v2485
    %v2488 = vmul.f32 %v2463, %v2486
    %v2489 = vmul.f32 %v2465, %v2487
    %2492 = vrot.lane.b32.xlu0 %v2488, 64
    %v2493 = vpop.permute.xlu0 %2492
    %2494 = vrot.lane.b32.xlu0 %v2489, 64
    %v2495 = vpop.permute.xlu0 %2494
    %2498 = vst.msk [vmem:[#allocation3] sm:$0x40] %vm1190, %v2493
    %2499 = vst.msk [vmem:[#allocation3 + $0x8] sm:$0x40] %vm1190, %v2495
    %2500 = vst.msk [vmem:[#allocation3 - $0x5] sm:$0x40] %vm1193, %v2493
    %2501 = vst.msk [vmem:[#allocation3 + $0x3] sm:$0x40] %vm1193, %v2495
    %v2502 = vpack.c.bf16 %v2488, %v2488
    %v2503 = vpack.c.bf16 %v2489, %v2489
    %v2506 = vunpack.c.l.b16 %v2502
    %v2507 = vunpack.c.l.b16 %v2503
    %v2508 = vrot.slane %v2506, 6
    %v2509 = vrot.slane %v2507, 5
    %v2510 = vsel %vm366, %v2509, %v2508
    %v2511 = vpack.c.b16 %v2510, %v2510
    %2512 = vrot.lane.b32.xlu0 %v2511, 64
    %v2513 = vpop.permute.xlu0 %2512
    %v2515 = vsel %vm228, %v2513, 0
    %2517 = vmatprep.subr.bf16.mxu0 0
    %2518 = vmatpush1.bf16.msra.mxu0 0
    %2519 = vmatprep.subr.bf16.mxu0 0
    %2520 = vmatpush1.bf16.msra.mxu0 0
    %2521 = vmatprep.subr.bf16.mxu0 0
    %2522 = vmatpush1.bf16.msra.mxu0 0
    %2523 = vmatprep.subr.bf16.mxu0 0
    %2524 = vmatpush1.bf16.msra.mxu0 0
    %2525 = vmatprep.subr.bf16.mxu0 %v1544
    %2526 = vmatpush1.bf16.msra.mxu0 %v1543
    %2527 = vmatprep.subr.bf16.mxu0 %v1542
    %2528 = vmatpush1.bf16.msra.mxu0 %v1541
    %2529 = vmatprep.subr.bf16.mxu0 %v1540
    %2530 = vmatpush1.bf16.msra.mxu0 %v1539
    %2531 = vmatprep.subr.bf16.mxu0 %v1538
    %2532 = vmatpush1.bf16.msra.mxu0 %v1537
    %2533 = vmatprep.subr.bf16.mxu0 0
    %2534 = vmatpush2.bf16.msra.mxu0 0
    %2535 = vmatprep.subr.bf16.mxu0 0
    %2536 = vmatpush2.bf16.msra.mxu0 0
    %2537 = vmatprep.subr.bf16.mxu0 0
    %2538 = vmatpush2.bf16.msra.mxu0 0
    %2539 = vmatprep.subr.bf16.mxu0 0
    %2540 = vmatpush2.bf16.msra.mxu0 0
    %2541 = vmatprep.subr.bf16.mxu0 0
    %2542 = vmatpush2.bf16.msra.mxu0 0
    %2543 = vmatprep.subr.bf16.mxu0 0
    %2544 = vmatpush2.bf16.msra.mxu0 0
    %2545 = vmatprep.subr.bf16.mxu0 0
    %2546 = vmatpush2.bf16.msra.mxu0 0
    %2547 = vmatprep.subr.bf16.mxu0 0
    %2548 = vmatpush2.bf16.msra.mxu0 0
    %2549 = vmatprep.mubr.bf16.mxu0 0
    %2550 = vmatmul.mubr.bf16.gmra.mxu0 %v2515
    %v2551 = vpop.f32.mrf.mxu0
    %v2552 = vadd.f32 0.0, %v2551
    %v2553 = vpop.f32.mrf.mxu0
    %v2554 = vadd.f32 0.0, %v2553
    %v2555 = vpop.f32.mrf.mxu0
    %v2556 = vpop.f32.mrf.mxu0
    %2557 = vdwg.mxu0
    %v2560 = vrot.slane %v2552, 1
    %v2561 = vrot.slane %v2554, 1
    %v2562 = vrot.slane %v2552, 2
    %v2563 = vrot.slane %v2554, 2
    %v2568 = vadd.f32 %v2026, %v2560
    %v2569 = vadd.f32 %v2027, %v2561
    %v2570 = vadd.f32 %v2028, %v2562
    %v2571 = vadd.f32 %v2029, %v2563
    %v2572 = vxor.u32 %v2568, 2147483648
    %v2573 = vxor.u32 %v2570, 2147483648
    %v2574 = vmul.f32 %v2572, 1.442695
    %v2575 = vpow.pop %v2574
    %v2576 = vmul.f32 %v2573, 1.442695
    %v2577 = vpow.pop %v2576
    %v2578 = vadd.f32 %v2575, 1.0
    %v2579 = vadd.f32 %v2577, 1.0
    %v2580 = vrcp.pop %v2578
    %v2581 = vmul.f32 1.0, %v2580
    %v2582 = vrcp.pop %v2579
    %v2583 = vmul.f32 1.0, %v2582
    %v2584 = vtanh.pop %v2569
    %v2585 = vtanh.pop %v2571
    %v2586 = vxor.u32 %v2569, 2147483648
    %v2587 = vxor.u32 %v2571, 2147483648
    %v2588 = vmul.f32 %v2586, 1.442695
    %v2589 = vpow.pop %v2588
    %v2590 = vmul.f32 %v2587, 1.442695
    %v2591 = vpow.pop %v2590
    %v2592 = vadd.f32 %v2589, 1.0
    %v2593 = vadd.f32 %v2591, 1.0
    %v2594 = vrcp.pop %v2592
    %v2595 = vmul.f32 1.0, %v2594
    %v2596 = vrcp.pop %v2593
    %v2597 = vmul.f32 1.0, %v2596
    %v2600 = vrot.slane %v2484, 7
    %v2601 = vrot.slane %v2485, 7
    %v2604 = vmul.f32 %v2581, %v2600
    %v2605 = vmul.f32 %v2583, %v2601
    %v2606 = vmul.f32 %v2581, %v2584
    %v2607 = vmul.f32 %v2583, %v2585
    %2610 = vrot.lane.b32.xlu0 %v2606, 64
    %v2611 = vpop.permute.xlu0 %2610
    %2612 = vrot.lane.b32.xlu0 %v2607, 64
    %v2613 = vpop.permute.xlu0 %2612
    %v2616 = vadd.f32 %v2604, %v2611
    %v2617 = vadd.f32 %v2605, %v2613
    %v2618 = vtanh.pop %v2616
    %v2619 = vtanh.pop %v2617
    %v2620 = vmul.f32 %v2595, %v2618
    %v2621 = vmul.f32 %v2597, %v2619
    %2624 = vrot.lane.b32.xlu0 %v2620, 64
    %v2625 = vpop.permute.xlu0 %2624
    %2626 = vrot.lane.b32.xlu0 %v2621, 64
    %v2627 = vpop.permute.xlu0 %2626
    %2630 = vst.msk [vmem:[#allocation3] sm:$0x80] %vm1324, %v2625
    %2631 = vst.msk [vmem:[#allocation3 + $0x8] sm:$0x80] %vm1324, %v2627
    %2632 = vst.msk [vmem:[#allocation3 - $0x7] sm:$0x80] %vm1327, %v2625
    %2633 = vst.msk [vmem:[#allocation3 + $0x1] sm:$0x80] %vm1327, %v2627
    %v2634 = vld [vmem:[%s3] sm:$0xff]
    %v2635 = vld [vmem:[%s3 + $0x8] sm:$0xff]
    %v2636 = vld [vmem:[%s3 + $0x10] sm:$0xff]
    %v2637 = vld [vmem:[%s3 + $0x18] sm:$0xff]
    %v2638 = vld [vmem:[%s3 + $0x20] sm:$0xff]
    %v2639 = vld [vmem:[%s3 + $0x28] sm:$0xff]
    %v2640 = vld [vmem:[%s3 + $0x30] sm:$0xff]
    %v2641 = vld [vmem:[%s3 + $0x38] sm:$0xff]
    %v2642 = vld [vmem:[%s3 + $0x40] sm:$0xff]
    %v2643 = vld [vmem:[%s3 + $0x48] sm:$0xff]
    %v2644 = vld [vmem:[%s3 + $0x50] sm:$0xff]
    %v2645 = vld [vmem:[%s3 + $0x58] sm:$0xff]
    %v2646 = vld [vmem:[%s3 + $0x60] sm:$0xff]
    %v2647 = vld [vmem:[%s3 + $0x68] sm:$0xff]
    %v2648 = vld [vmem:[%s3 + $0x70] sm:$0xff]
    %v2649 = vld [vmem:[%s3 + $0x78] sm:$0xff]
    %v2650 = vld [vmem:[%s3 + $0x80] sm:$0xff]
    %v2651 = vld [vmem:[%s3 + $0x90] sm:$0xff]
    %v2652 = vld [vmem:[%s3 + $0xa0] sm:$0xff]
    %v2653 = vld [vmem:[%s3 + $0xb0] sm:$0xff]
    %v2654 = vld [vmem:[%s3 + $0xc0] sm:$0xff]
    %v2655 = vld [vmem:[%s3 + $0xd0] sm:$0xff]
    %v2656 = vld [vmem:[%s3 + $0xe0] sm:$0xff]
    %v2657 = vld [vmem:[%s3 + $0xf0] sm:$0xff]
    %s2658 = scalar_lea.vmem %s4, 2
    %v2659 = vld [vmem:[%s2658] ss:$8 sm:$0x3]
    %v2660 = vld [vmem:[%s4 + $0x3] ss:$0 sm:$0xff]
    %v2661 = vld [vmem:[#allocation3] sm:$0xff]
    %v2662 = vld [vmem:[#allocation3 + $0x8] sm:$0xff]
    %v2664 = vlaneseq
    %v2665 = vshrl.u32 %v2664, 7
    %v2666 = vsub.s32 0, %v2665
    %v2667 = vrot.slane %v2659, %v2666
    %v2668 = vlaneseq
    %v2669 = vshrl.u32 %v2668, 7
    %v2670 = vsub.s32 1, %v2669
    %v2671 = vrot.slane %v2659, %v2670
    %v2675 = vsel %vm228, %v2661, 0
    %v2678 = vsel %vm228, %v2662, 0
    %2680 = vmatprep.subr.mxu0 0.0
    %2681 = vmatpush1.msra.mxu0 0.0
    %2682 = vmatprep.subr.mxu0 0.0
    %2683 = vmatpush1.msra.mxu0 0.0
    %2684 = vmatprep.subr.mxu0 0.0
    %2685 = vmatpush1.msra.mxu0 0.0
    %2686 = vmatprep.subr.mxu0 0.0
    %2687 = vmatpush1.msra.mxu0 0.0
    %2688 = vmatprep.subr.mxu0 0.0
    %2689 = vmatpush1.msra.mxu0 0.0
    %2690 = vmatprep.subr.mxu0 0.0
    %2691 = vmatpush1.msra.mxu0 0.0
    %2692 = vmatprep.subr.mxu0 0.0
    %2693 = vmatpush1.msra.mxu0 0.0
    %2694 = vmatprep.subr.mxu0 0.0
    %2695 = vmatpush1.msra.mxu0 0.0
    %2696 = vmatprep.subr.mxu0 %v2649
    %2697 = vmatpush1.msra.mxu0 %v2648
    %2698 = vmatprep.subr.mxu0 %v2647
    %2699 = vmatpush1.msra.mxu0 %v2646
    %2700 = vmatprep.subr.mxu0 %v2645
    %2701 = vmatpush1.msra.mxu0 %v2644
    %2702 = vmatprep.subr.mxu0 %v2643
    %2703 = vmatpush1.msra.mxu0 %v2642
    %2704 = vmatprep.subr.mxu0 %v2641
    %2705 = vmatpush1.msra.mxu0 %v2640
    %2706 = vmatprep.subr.mxu0 %v2639
    %2707 = vmatpush1.msra.mxu0 %v2638
    %2708 = vmatprep.subr.mxu0 %v2637
    %2709 = vmatpush1.msra.mxu0 %v2636
    %2710 = vmatprep.subr.mxu0 %v2635
    %2711 = vmatpush1.msra.mxu0 %v2634
    %2712 = vmatprep.subr.mxu0 0.0
    %2713 = vmatpush2.msra.mxu0 0.0
    %2714 = vmatprep.subr.mxu0 0.0
    %2715 = vmatpush2.msra.mxu0 0.0
    %2716 = vmatprep.subr.mxu0 0.0
    %2717 = vmatpush2.msra.mxu0 0.0
    %2718 = vmatprep.subr.mxu0 0.0
    %2719 = vmatpush2.msra.mxu0 0.0
    %2720 = vmatprep.subr.mxu0 0.0
    %2721 = vmatpush2.msra.mxu0 0.0
    %2722 = vmatprep.subr.mxu0 0.0
    %2723 = vmatpush2.msra.mxu0 0.0
    %2724 = vmatprep.subr.mxu0 0.0
    %2725 = vmatpush2.msra.mxu0 0.0
    %2726 = vmatprep.subr.mxu0 0.0
    %2727 = vmatpush2.msra.mxu0 0.0
    %2728 = vmatprep.subr.mxu0 0.0
    %2729 = vmatpush2.msra.mxu0 0.0
    %2730 = vmatprep.subr.mxu0 0.0
    %2731 = vmatpush2.msra.mxu0 0.0
    %2732 = vmatprep.subr.mxu0 0.0
    %2733 = vmatpush2.msra.mxu0 0.0
    %2734 = vmatprep.subr.mxu0 0.0
    %2735 = vmatpush2.msra.mxu0 0.0
    %2736 = vmatprep.subr.mxu0 0.0
    %2737 = vmatpush2.msra.mxu0 0.0
    %2738 = vmatprep.subr.mxu0 0.0
    %2739 = vmatpush2.msra.mxu0 0.0
    %2740 = vmatprep.subr.mxu0 0.0
    %2741 = vmatpush2.msra.mxu0 0.0
    %2742 = vmatprep.subr.mxu0 0.0
    %2743 = vmatpush2.msra.mxu0 0.0
    %2744 = vmatprep.mubr.f32.mxu0 0.0
    %2745 = vmatmul.mubr.f32.gmra.mxu0 %v2675
    %v2746 = vpop.f32.mrf.mxu0
    %v2747 = vadd.f32 %v2667, %v2746
    %v2748 = vpop.f32.mrf.mxu0
    %v2749 = vadd.f32 %v2671, %v2748
    %2750 = vmatprep.mubr.f32.mxu0 0.0
    %2751 = vmatmul.mubr.f32.gmra.mxu0 %v2678
    %v2752 = vpop.f32.mrf.mxu0
    %v2753 = vadd.f32 %v2667, %v2752
    %v2754 = vpop.f32.mrf.mxu0
    %v2755 = vadd.f32 %v2671, %v2754
    %2756 = vdwg.mxu0
    %2758 = vrot.lane.b32.xlu0 %v2747, 64
    %v2759 = vpop.permute.xlu0 %2758
    %vm2760 = vcmask 64512
    %v2761 = vsel %vm2760, %v2747, 0
    %v2763 = vsel %vm2760, %v2759, 0
    %2765 = vmatprep.subr.mxu0 0.0
    %2766 = vmatpush1.xpose.msra.mxu0 0.0
    %2767 = vmatprep.subr.mxu0 0.0
    %2768 = vmatpush1.xpose.msra.mxu0 0.0
    %2769 = vmatprep.subr.mxu0 0.0
    %2770 = vmatpush1.xpose.msra.mxu0 0.0
    %2771 = vmatprep.subr.mxu0 0.0
    %2772 = vmatpush1.xpose.msra.mxu0 0.0
    %2773 = vmatprep.subr.mxu0 0.0
    %2774 = vmatpush1.xpose.msra.mxu0 0.0
    %2775 = vmatprep.subr.mxu0 0.0
    %2776 = vmatpush1.xpose.msra.mxu0 0.0
    %2777 = vmatprep.subr.mxu0 0.0
    %2778 = vmatpush1.xpose.msra.mxu0 0.0
    %2779 = vmatprep.subr.mxu0 0.0
    %2780 = vmatpush1.xpose.msra.mxu0 0.0
    %2781 = vmatprep.subr.mxu0 0.0
    %2782 = vmatpush1.xpose.msra.mxu0 0.0
    %2783 = vmatprep.subr.mxu0 0.0
    %2784 = vmatpush1.xpose.msra.mxu0 0.0
    %2785 = vmatprep.subr.mxu0 0.0
    %2786 = vmatpush1.xpose.msra.mxu0 0.0
    %2787 = vmatprep.subr.mxu0 0.0
    %2788 = vmatpush1.xpose.msra.mxu0 0.0
    %2789 = vmatprep.subr.mxu0 0.0
    %2790 = vmatpush1.xpose.msra.mxu0 0.0
    %2791 = vmatprep.subr.mxu0 0.0
    %2792 = vmatpush1.xpose.msra.mxu0 0.0
    %2793 = vmatprep.subr.mxu0 0.0
    %2794 = vmatpush1.xpose.msra.mxu0 0.0
    %2795 = vmatprep.subr.mxu0 0.0
    %2796 = vmatpush1.xpose.msra.mxu0 %v2763
    %2797 = vmatprep.subr.mxu0 0.0
    %2798 = vmatpush2.xpose.msra.mxu0 0.0
    %2799 = vmatprep.subr.mxu0 0.0
    %2800 = vmatpush2.xpose.msra.mxu0 0.0
    %2801 = vmatprep.subr.mxu0 0.0
    %2802 = vmatpush2.xpose.msra.mxu0 0.0
    %2803 = vmatprep.subr.mxu0 0.0
    %2804 = vmatpush2.xpose.msra.mxu0 0.0
    %2805 = vmatprep.subr.mxu0 0.0
    %2806 = vmatpush2.xpose.msra.mxu0 0.0
    %2807 = vmatprep.subr.mxu0 0.0
    %2808 = vmatpush2.xpose.msra.mxu0 0.0
    %2809 = vmatprep.subr.mxu0 0.0
    %2810 = vmatpush2.xpose.msra.mxu0 0.0
    %2811 = vmatprep.subr.mxu0 0.0
    %2812 = vmatpush2.xpose.msra.mxu0 0.0
    %2813 = vmatprep.subr.mxu0 0.0
    %2814 = vmatpush2.xpose.msra.mxu0 0.0
    %2815 = vmatprep.subr.mxu0 0.0
    %2816 = vmatpush2.xpose.msra.mxu0 0.0
    %2817 = vmatprep.subr.mxu0 0.0
    %2818 = vmatpush2.xpose.msra.mxu0 0.0
    %2819 = vmatprep.subr.mxu0 0.0
    %2820 = vmatpush2.xpose.msra.mxu0 0.0
    %2821 = vmatprep.subr.mxu0 0.0
    %2822 = vmatpush2.xpose.msra.mxu0 0.0
    %2823 = vmatprep.subr.mxu0 0.0
    %2824 = vmatpush2.xpose.msra.mxu0 0.0
    %2825 = vmatprep.subr.mxu0 0.0
    %2826 = vmatpush2.xpose.msra.mxu0 0.0
    %2827 = vmatprep.subr.mxu0 0.0
    %2828 = vmatpush2.xpose.msra.mxu0 0.0
    %2829 = vmatprep.mubr.f32.mxu0 0.0
    %2830 = vmatmul.mubr.f32.gmra.mxu0 %v2761
    %v2831 = vpop.f32.mrf.mxu0
    %v2832 = vadd.f32 0.0, %v2831
    %v2833 = vpop.f32.mrf.mxu0
    %2834 = vdwg.mxu0
    %2836 = vrot.lane.b32.xlu0 %v2753, 64
    %v2837 = vpop.permute.xlu0 %2836
    %v2838 = vsel %vm2760, %v2753, 0
    %v2840 = vsel %vm2760, %v2837, 0
    %2842 = vmatprep.subr.mxu0 0.0
    %2843 = vmatpush1.xpose.msra.mxu0 0.0
    %2844 = vmatprep.subr.mxu0 0.0
    %2845 = vmatpush1.xpose.msra.mxu0 0.0
    %2846 = vmatprep.subr.mxu0 0.0
    %2847 = vmatpush1.xpose.msra.mxu0 0.0
    %2848 = vmatprep.subr.mxu0 0.0
    %2849 = vmatpush1.xpose.msra.mxu0 0.0
    %2850 = vmatprep.subr.mxu0 0.0
    %2851 = vmatpush1.xpose.msra.mxu0 0.0
    %2852 = vmatprep.subr.mxu0 0.0
    %2853 = vmatpush1.xpose.msra.mxu0 0.0
    %2854 = vmatprep.subr.mxu0 0.0
    %2855 = vmatpush1.xpose.msra.mxu0 0.0
    %2856 = vmatprep.subr.mxu0 0.0
    %2857 = vmatpush1.xpose.msra.mxu0 0.0
    %2858 = vmatprep.subr.mxu0 0.0
    %2859 = vmatpush1.xpose.msra.mxu0 0.0
    %2860 = vmatprep.subr.mxu0 0.0
    %2861 = vmatpush1.xpose.msra.mxu0 0.0
    %2862 = vmatprep.subr.mxu0 0.0
    %2863 = vmatpush1.xpose.msra.mxu0 0.0
    %2864 = vmatprep.subr.mxu0 0.0
    %2865 = vmatpush1.xpose.msra.mxu0 0.0
    %2866 = vmatprep.subr.mxu0 0.0
    %2867 = vmatpush1.xpose.msra.mxu0 0.0
    %2868 = vmatprep.subr.mxu0 0.0
    %2869 = vmatpush1.xpose.msra.mxu0 0.0
    %2870 = vmatprep.subr.mxu0 0.0
    %2871 = vmatpush1.xpose.msra.mxu0 0.0
    %2872 = vmatprep.subr.mxu0 0.0
    %2873 = vmatpush1.xpose.msra.mxu0 %v2840
    %2874 = vmatprep.subr.mxu0 0.0
    %2875 = vmatpush2.xpose.msra.mxu0 0.0
    %2876 = vmatprep.subr.mxu0 0.0
    %2877 = vmatpush2.xpose.msra.mxu0 0.0
    %2878 = vmatprep.subr.mxu0 0.0
    %2879 = vmatpush2.xpose.msra.mxu0 0.0
    %2880 = vmatprep.subr.mxu0 0.0
    %2881 = vmatpush2.xpose.msra.mxu0 0.0
    %2882 = vmatprep.subr.mxu0 0.0
    %2883 = vmatpush2.xpose.msra.mxu0 0.0
    %2884 = vmatprep.subr.mxu0 0.0
    %2885 = vmatpush2.xpose.msra.mxu0 0.0
    %2886 = vmatprep.subr.mxu0 0.0
    %2887 = vmatpush2.xpose.msra.mxu0 0.0
    %2888 = vmatprep.subr.mxu0 0.0
    %2889 = vmatpush2.xpose.msra.mxu0 0.0
    %2890 = vmatprep.subr.mxu0 0.0
    %2891 = vmatpush2.xpose.msra.mxu0 0.0
    %2892 = vmatprep.subr.mxu0 0.0
    %2893 = vmatpush2.xpose.msra.mxu0 0.0
    %2894 = vmatprep.subr.mxu0 0.0
    %2895 = vmatpush2.xpose.msra.mxu0 0.0
    %2896 = vmatprep.subr.mxu0 0.0
    %2897 = vmatpush2.xpose.msra.mxu0 0.0
    %2898 = vmatprep.subr.mxu0 0.0
    %2899 = vmatpush2.xpose.msra.mxu0 0.0
    %2900 = vmatprep.subr.mxu0 0.0
    %2901 = vmatpush2.xpose.msra.mxu0 0.0
    %2902 = vmatprep.subr.mxu0 0.0
    %2903 = vmatpush2.xpose.msra.mxu0 0.0
    %2904 = vmatprep.subr.mxu0 0.0
    %2905 = vmatpush2.xpose.msra.mxu0 0.0
    %2906 = vmatprep.mubr.f32.mxu0 0.0
    %2907 = vmatmul.mubr.f32.gmra.mxu0 %v2838
    %v2908 = vpop.f32.mrf.mxu0
    %v2909 = vadd.f32 0.0, %v2908
    %v2910 = vpop.f32.mrf.mxu0
    %2911 = vdwg.mxu0
    %v2912 = vmul.f32 %v2832, 0.125
    %v2913 = vmul.f32 %v2909, 0.125
    %v2914 = vsel %vm2760, %v2912, -inf
    %2915 = vmax.xlane.f32.xlu0 %v2914
    %v2916 = vpop.xlane.xlu0 %2915
    %v2917 = vsel %vm2760, %v2913, -inf
    %2918 = vmax.xlane.f32.xlu0 %v2917
    %v2919 = vpop.xlane.xlu0 %2918
    %v2920 = vsub.f32 %v2912, %v2916
    %v2921 = vsub.f32 %v2913, %v2919
    %v2922 = vmul.f32 %v2920, 1.442695
    %v2923 = vpow.pop %v2922
    %v2924 = vmul.f32 %v2921, 1.442695
    %v2925 = vpow.pop %v2924
    %v2926 = vsel %vm2760, %v2923, 0.0
    %2927 = vadd.xlane.f32.xlu0 %v2926
    %v2928 = vpop.xlane.xlu0 %2927
    %v2929 = vsel %vm2760, %v2925, 0.0
    %2930 = vadd.xlane.f32.xlu0 %v2929
    %v2931 = vpop.xlane.xlu0 %2930
    %v2932 = vrcp.pop %v2928
    %v2933 = vmul.f32 %v2923, %v2932
    %v2934 = vrcp.pop %v2931
    %v2935 = vmul.f32 %v2925, %v2934
    %2936 = vst.msk [vmem:[#allocation4] sm:$0xff] %vm2760, %v2933
    %2937 = vst.msk [vmem:[#allocation4 + $0x40] sm:$0xff] %vm2760, %v2935
    %v2939 = vsel %vm2760, %v2933, 0
    %2941 = vmatprep.subr.mxu0 0.0
    %2942 = vmatpush1.msra.mxu0 0.0
    %2943 = vmatprep.subr.mxu0 0.0
    %2944 = vmatpush1.msra.mxu0 0.0
    %2945 = vmatprep.subr.mxu0 0.0
    %2946 = vmatpush1.msra.mxu0 0.0
    %2947 = vmatprep.subr.mxu0 0.0
    %2948 = vmatpush1.msra.mxu0 0.0
    %2949 = vmatprep.subr.mxu0 0.0
    %2950 = vmatpush1.msra.mxu0 0.0
    %2951 = vmatprep.subr.mxu0 0.0
    %2952 = vmatpush1.msra.mxu0 0.0
    %2953 = vmatprep.subr.mxu0 0.0
    %2954 = vmatpush1.msra.mxu0 0.0
    %2955 = vmatprep.subr.mxu0 0.0
    %2956 = vmatpush1.msra.mxu0 0.0
    %2957 = vmatprep.subr.mxu0 0.0
    %2958 = vmatpush1.msra.mxu0 0.0
    %2959 = vmatprep.subr.mxu0 0.0
    %2960 = vmatpush1.msra.mxu0 0.0
    %2961 = vmatprep.subr.mxu0 0.0
    %2962 = vmatpush1.msra.mxu0 0.0
    %2963 = vmatprep.subr.mxu0 0.0
    %2964 = vmatpush1.msra.mxu0 0.0
    %2965 = vmatprep.subr.mxu0 0.0
    %2966 = vmatpush1.msra.mxu0 0.0
    %2967 = vmatprep.subr.mxu0 0.0
    %2968 = vmatpush1.msra.mxu0 0.0
    %2969 = vmatprep.subr.mxu0 0.0
    %2970 = vmatpush1.msra.mxu0 0.0
    %2971 = vmatprep.subr.mxu0 0.0
    %2972 = vmatpush1.msra.mxu0 %v2749
    %2973 = vmatprep.subr.mxu0 0.0
    %2974 = vmatpush2.msra.mxu0 0.0
    %2975 = vmatprep.subr.mxu0 0.0
    %2976 = vmatpush2.msra.mxu0 0.0
    %2977 = vmatprep.subr.mxu0 0.0
    %2978 = vmatpush2.msra.mxu0 0.0
    %2979 = vmatprep.subr.mxu0 0.0
    %2980 = vmatpush2.msra.mxu0 0.0
    %2981 = vmatprep.subr.mxu0 0.0
    %2982 = vmatpush2.msra.mxu0 0.0
    %2983 = vmatprep.subr.mxu0 0.0
    %2984 = vmatpush2.msra.mxu0 0.0
    %2985 = vmatprep.subr.mxu0 0.0
    %2986 = vmatpush2.msra.mxu0 0.0
    %2987 = vmatprep.subr.mxu0 0.0
    %2988 = vmatpush2.msra.mxu0 0.0
    %2989 = vmatprep.subr.mxu0 0.0
    %2990 = vmatpush2.msra.mxu0 0.0
    %2991 = vmatprep.subr.mxu0 0.0
    %2992 = vmatpush2.msra.mxu0 0.0
    %2993 = vmatprep.subr.mxu0 0.0
    %2994 = vmatpush2.msra.mxu0 0.0
    %2995 = vmatprep.subr.mxu0 0.0
    %2996 = vmatpush2.msra.mxu0 0.0
    %2997 = vmatprep.subr.mxu0 0.0
    %2998 = vmatpush2.msra.mxu0 0.0
    %2999 = vmatprep.subr.mxu0 0.0
    %3000 = vmatpush2.msra.mxu0 0.0
    %3001 = vmatprep.subr.mxu0 0.0
    %3002 = vmatpush2.msra.mxu0 0.0
    %3003 = vmatprep.subr.mxu0 0.0
    %3004 = vmatpush2.msra.mxu0 0.0
    %3005 = vmatprep.mubr.f32.mxu0 0.0
    %3006 = vmatmul.mubr.f32.gmra.mxu0 %v2939
    %v3007 = vpop.f32.mrf.mxu0
    %v3008 = vadd.f32 0.0, %v3007
    %v3009 = vpop.f32.mrf.mxu0
    %3010 = vdwg.mxu0
    %v3012 = vsel %vm2760, %v2935, 0
    %3014 = vmatprep.subr.mxu0 0.0
    %3015 = vmatpush1.msra.mxu0 0.0
    %3016 = vmatprep.subr.mxu0 0.0
    %3017 = vmatpush1.msra.mxu0 0.0
    %3018 = vmatprep.subr.mxu0 0.0
    %3019 = vmatpush1.msra.mxu0 0.0
    %3020 = vmatprep.subr.mxu0 0.0
    %3021 = vmatpush1.msra.mxu0 0.0
    %3022 = vmatprep.subr.mxu0 0.0
    %3023 = vmatpush1.msra.mxu0 0.0
    %3024 = vmatprep.subr.mxu0 0.0
    %3025 = vmatpush1.msra.mxu0 0.0
    %3026 = vmatprep.subr.mxu0 0.0
    %3027 = vmatpush1.msra.mxu0 0.0
    %3028 = vmatprep.subr.mxu0 0.0
    %3029 = vmatpush1.msra.mxu0 0.0
    %3030 = vmatprep.subr.mxu0 0.0
    %3031 = vmatpush1.msra.mxu0 0.0
    %3032 = vmatprep.subr.mxu0 0.0
    %3033 = vmatpush1.msra.mxu0 0.0
    %3034 = vmatprep.subr.mxu0 0.0
    %3035 = vmatpush1.msra.mxu0 0.0
    %3036 = vmatprep.subr.mxu0 0.0
    %3037 = vmatpush1.msra.mxu0 0.0
    %3038 = vmatprep.subr.mxu0 0.0
    %3039 = vmatpush1.msra.mxu0 0.0
    %3040 = vmatprep.subr.mxu0 0.0
    %3041 = vmatpush1.msra.mxu0 0.0
    %3042 = vmatprep.subr.mxu0 0.0
    %3043 = vmatpush1.msra.mxu0 0.0
    %3044 = vmatprep.subr.mxu0 0.0
    %3045 = vmatpush1.msra.mxu0 %v2755
    %3046 = vmatprep.subr.mxu0 0.0
    %3047 = vmatpush2.msra.mxu0 0.0
    %3048 = vmatprep.subr.mxu0 0.0
    %3049 = vmatpush2.msra.mxu0 0.0
    %3050 = vmatprep.subr.mxu0 0.0
    %3051 = vmatpush2.msra.mxu0 0.0
    %3052 = vmatprep.subr.mxu0 0.0
    %3053 = vmatpush2.msra.mxu0 0.0
    %3054 = vmatprep.subr.mxu0 0.0
    %3055 = vmatpush2.msra.mxu0 0.0
    %3056 = vmatprep.subr.mxu0 0.0
    %3057 = vmatpush2.msra.mxu0 0.0
    %3058 = vmatprep.subr.mxu0 0.0
    %3059 = vmatpush2.msra.mxu0 0.0
    %3060 = vmatprep.subr.mxu0 0.0
    %3061 = vmatpush2.msra.mxu0 0.0
    %3062 = vmatprep.subr.mxu0 0.0
    %3063 = vmatpush2.msra.mxu0 0.0
    %3064 = vmatprep.subr.mxu0 0.0
    %3065 = vmatpush2.msra.mxu0 0.0
    %3066 = vmatprep.subr.mxu0 0.0
    %3067 = vmatpush2.msra.mxu0 0.0
    %3068 = vmatprep.subr.mxu0 0.0
    %3069 = vmatpush2.msra.mxu0 0.0
    %3070 = vmatprep.subr.mxu0 0.0
    %3071 = vmatpush2.msra.mxu0 0.0
    %3072 = vmatprep.subr.mxu0 0.0
    %3073 = vmatpush2.msra.mxu0 0.0
    %3074 = vmatprep.subr.mxu0 0.0
    %3075 = vmatpush2.msra.mxu0 0.0
    %3076 = vmatprep.subr.mxu0 0.0
    %3077 = vmatpush2.msra.mxu0 0.0
    %3078 = vmatprep.mubr.f32.mxu0 0.0
    %3079 = vmatmul.mubr.f32.gmra.mxu0 %v3012
    %v3080 = vpop.f32.mrf.mxu0
    %v3081 = vadd.f32 0.0, %v3080
    %v3082 = vpop.f32.mrf.mxu0
    %3083 = vdwg.mxu0
    %3084 = vrot.lane.b32.xlu0 %v2747, 120
    %v3085 = vpop.permute.xlu0 %3084
    %3086 = vrot.lane.b32.xlu0 %v2747, 56
    %v3087 = vpop.permute.xlu0 %3086
    %v3088 = vsel %vm2760, %v3085, 0
    %v3090 = vsel %vm2760, %v3087, 0
    %3092 = vmatprep.subr.mxu0 0.0
    %3093 = vmatpush1.xpose.msra.mxu0 0.0
    %3094 = vmatprep.subr.mxu0 0.0
    %3095 = vmatpush1.xpose.msra.mxu0 0.0
    %3096 = vmatprep.subr.mxu0 0.0
    %3097 = vmatpush1.xpose.msra.mxu0 0.0
    %3098 = vmatprep.subr.mxu0 0.0
    %3099 = vmatpush1.xpose.msra.mxu0 0.0
    %3100 = vmatprep.subr.mxu0 0.0
    %3101 = vmatpush1.xpose.msra.mxu0 0.0
    %3102 = vmatprep.subr.mxu0 0.0
    %3103 = vmatpush1.xpose.msra.mxu0 0.0
    %3104 = vmatprep.subr.mxu0 0.0
    %3105 = vmatpush1.xpose.msra.mxu0 0.0
    %3106 = vmatprep.subr.mxu0 0.0
    %3107 = vmatpush1.xpose.msra.mxu0 0.0
    %3108 = vmatprep.subr.mxu0 0.0
    %3109 = vmatpush1.xpose.msra.mxu0 0.0
    %3110 = vmatprep.subr.mxu0 0.0
    %3111 = vmatpush1.xpose.msra.mxu0 0.0
    %3112 = vmatprep.subr.mxu0 0.0
    %3113 = vmatpush1.xpose.msra.mxu0 0.0
    %3114 = vmatprep.subr.mxu0 0.0
    %3115 = vmatpush1.xpose.msra.mxu0 0.0
    %3116 = vmatprep.subr.mxu0 0.0
    %3117 = vmatpush1.xpose.msra.mxu0 0.0
    %3118 = vmatprep.subr.mxu0 0.0
    %3119 = vmatpush1.xpose.msra.mxu0 0.0
    %3120 = vmatprep.subr.mxu0 0.0
    %3121 = vmatpush1.xpose.msra.mxu0 0.0
    %3122 = vmatprep.subr.mxu0 0.0
    %3123 = vmatpush1.xpose.msra.mxu0 %v3090
    %3124 = vmatprep.subr.mxu0 0.0
    %3125 = vmatpush2.xpose.msra.mxu0 0.0
    %3126 = vmatprep.subr.mxu0 0.0
    %3127 = vmatpush2.xpose.msra.mxu0 0.0
    %3128 = vmatprep.subr.mxu0 0.0
    %3129 = vmatpush2.xpose.msra.mxu0 0.0
    %3130 = vmatprep.subr.mxu0 0.0
    %3131 = vmatpush2.xpose.msra.mxu0 0.0
    %3132 = vmatprep.subr.mxu0 0.0
    %3133 = vmatpush2.xpose.msra.mxu0 0.0
    %3134 = vmatprep.subr.mxu0 0.0
    %3135 = vmatpush2.xpose.msra.mxu0 0.0
    %3136 = vmatprep.subr.mxu0 0.0
    %3137 = vmatpush2.xpose.msra.mxu0 0.0
    %3138 = vmatprep.subr.mxu0 0.0
    %3139 = vmatpush2.xpose.msra.mxu0 0.0
    %3140 = vmatprep.subr.mxu0 0.0
    %3141 = vmatpush2.xpose.msra.mxu0 0.0
    %3142 = vmatprep.subr.mxu0 0.0
    %3143 = vmatpush2.xpose.msra.mxu0 0.0
    %3144 = vmatprep.subr.mxu0 0.0
    %3145 = vmatpush2.xpose.msra.mxu0 0.0
    %3146 = vmatprep.subr.mxu0 0.0
    %3147 = vmatpush2.xpose.msra.mxu0 0.0
    %3148 = vmatprep.subr.mxu0 0.0
    %3149 = vmatpush2.xpose.msra.mxu0 0.0
    %3150 = vmatprep.subr.mxu0 0.0
    %3151 = vmatpush2.xpose.msra.mxu0 0.0
    %3152 = vmatprep.subr.mxu0 0.0
    %3153 = vmatpush2.xpose.msra.mxu0 0.0
    %3154 = vmatprep.subr.mxu0 0.0
    %3155 = vmatpush2.xpose.msra.mxu0 0.0
    %3156 = vmatprep.mubr.f32.mxu0 0.0
    %3157 = vmatmul.mubr.f32.gmra.mxu0 %v3088
    %v3158 = vpop.f32.mrf.mxu0
    %v3159 = vadd.f32 0.0, %v3158
    %v3160 = vpop.f32.mrf.mxu0
    %3161 = vdwg.mxu0
    %3162 = vrot.lane.b32.xlu0 %v2753, 120
    %v3163 = vpop.permute.xlu0 %3162
    %3164 = vrot.lane.b32.xlu0 %v2753, 56
    %v3165 = vpop.permute.xlu0 %3164
    %v3166 = vsel %vm2760, %v3163, 0
    %v3168 = vsel %vm2760, %v3165, 0
    %3170 = vmatprep.subr.mxu0 0.0
    %3171 = vmatpush1.xpose.msra.mxu0 0.0
    %3172 = vmatprep.subr.mxu0 0.0
    %3173 = vmatpush1.xpose.msra.mxu0 0.0
    %3174 = vmatprep.subr.mxu0 0.0
    %3175 = vmatpush1.xpose.msra.mxu0 0.0
    %3176 = vmatprep.subr.mxu0 0.0
    %3177 = vmatpush1.xpose.msra.mxu0 0.0
    %3178 = vmatprep.subr.mxu0 0.0
    %3179 = vmatpush1.xpose.msra.mxu0 0.0
    %3180 = vmatprep.subr.mxu0 0.0
    %3181 = vmatpush1.xpose.msra.mxu0 0.0
    %3182 = vmatprep.subr.mxu0 0.0
    %3183 = vmatpush1.xpose.msra.mxu0 0.0
    %3184 = vmatprep.subr.mxu0 0.0
    %3185 = vmatpush1.xpose.msra.mxu0 0.0
    %3186 = vmatprep.subr.mxu0 0.0
    %3187 = vmatpush1.xpose.msra.mxu0 0.0
    %3188 = vmatprep.subr.mxu0 0.0
    %3189 = vmatpush1.xpose.msra.mxu0 0.0
    %3190 = vmatprep.subr.mxu0 0.0
    %3191 = vmatpush1.xpose.msra.mxu0 0.0
    %3192 = vmatprep.subr.mxu0 0.0
    %3193 = vmatpush1.xpose.msra.mxu0 0.0
    %3194 = vmatprep.subr.mxu0 0.0
    %3195 = vmatpush1.xpose.msra.mxu0 0.0
    %3196 = vmatprep.subr.mxu0 0.0
    %3197 = vmatpush1.xpose.msra.mxu0 0.0
    %3198 = vmatprep.subr.mxu0 0.0
    %3199 = vmatpush1.xpose.msra.mxu0 0.0
    %3200 = vmatprep.subr.mxu0 0.0
    %3201 = vmatpush1.xpose.msra.mxu0 %v3168
    %3202 = vmatprep.subr.mxu0 0.0
    %3203 = vmatpush2.xpose.msra.mxu0 0.0
    %3204 = vmatprep.subr.mxu0 0.0
    %3205 = vmatpush2.xpose.msra.mxu0 0.0
    %3206 = vmatprep.subr.mxu0 0.0
    %3207 = vmatpush2.xpose.msra.mxu0 0.0
    %3208 = vmatprep.subr.mxu0 0.0
    %3209 = vmatpush2.xpose.msra.mxu0 0.0
    %3210 = vmatprep.subr.mxu0 0.0
    %3211 = vmatpush2.xpose.msra.mxu0 0.0
    %3212 = vmatprep.subr.mxu0 0.0
    %3213 = vmatpush2.xpose.msra.mxu0 0.0
    %3214 = vmatprep.subr.mxu0 0.0
    %3215 = vmatpush2.xpose.msra.mxu0 0.0
    %3216 = vmatprep.subr.mxu0 0.0
    %3217 = vmatpush2.xpose.msra.mxu0 0.0
    %3218 = vmatprep.subr.mxu0 0.0
    %3219 = vmatpush2.xpose.msra.mxu0 0.0
    %3220 = vmatprep.subr.mxu0 0.0
    %3221 = vmatpush2.xpose.msra.mxu0 0.0
    %3222 = vmatprep.subr.mxu0 0.0
    %3223 = vmatpush2.xpose.msra.mxu0 0.0
    %3224 = vmatprep.subr.mxu0 0.0
    %3225 = vmatpush2.xpose.msra.mxu0 0.0
    %3226 = vmatprep.subr.mxu0 0.0
    %3227 = vmatpush2.xpose.msra.mxu0 0.0
    %3228 = vmatprep.subr.mxu0 0.0
    %3229 = vmatpush2.xpose.msra.mxu0 0.0
    %3230 = vmatprep.subr.mxu0 0.0
    %3231 = vmatpush2.xpose.msra.mxu0 0.0
    %3232 = vmatprep.subr.mxu0 0.0
    %3233 = vmatpush2.xpose.msra.mxu0 0.0
    %3234 = vmatprep.mubr.f32.mxu0 0.0
    %3235 = vmatmul.mubr.f32.gmra.mxu0 %v3166
    %v3236 = vpop.f32.mrf.mxu0
    %v3237 = vadd.f32 0.0, %v3236
    %v3238 = vpop.f32.mrf.mxu0
    %3239 = vdwg.mxu0
    %v3240 = vmul.f32 %v3159, 0.125
    %v3241 = vmul.f32 %v3237, 0.125
    %v3242 = vsel %vm2760, %v3240, -inf
    %3243 = vmax.xlane.f32.xlu0 %v3242
    %v3244 = vpop.xlane.xlu0 %3243
    %v3245 = vsel %vm2760, %v3241, -inf
    %3246 = vmax.xlane.f32.xlu0 %v3245
    %v3247 = vpop.xlane.xlu0 %3246
    %v3248 = vsub.f32 %v3240, %v3244
    %v3249 = vsub.f32 %v3241, %v3247
    %v3250 = vmul.f32 %v3248, 1.442695
    %v3251 = vpow.pop %v3250
    %v3252 = vmul.f32 %v3249, 1.442695
    %v3253 = vpow.pop %v3252
    %v3254 = vsel %vm2760, %v3251, 0.0
    %3255 = vadd.xlane.f32.xlu0 %v3254
    %v3256 = vpop.xlane.xlu0 %3255
    %v3257 = vsel %vm2760, %v3253, 0.0
    %3258 = vadd.xlane.f32.xlu0 %v3257
    %v3259 = vpop.xlane.xlu0 %3258
    %v3260 = vrcp.pop %v3256
    %v3261 = vmul.f32 %v3251, %v3260
    %v3262 = vrcp.pop %v3259
    %v3263 = vmul.f32 %v3253, %v3262
    %s3264 = scalar_lea.vmem [#allocation4], 8
    %3265 = vst.msk [vmem:[%s3264] sm:$0xff] %vm2760, %v3261
    %3266 = vst.msk [vmem:[%s3264 + $0x40] sm:$0xff] %vm2760, %v3263
    %3268 = vrot.lane.b32.xlu0 %v2749, 120
    %v3269 = vpop.permute.xlu0 %3268
    %v3272 = vsel %vm2760, %v3261, 0
    %3274 = vmatprep.subr.mxu0 0.0
    %3275 = vmatpush1.msra.mxu0 0.0
    %3276 = vmatprep.subr.mxu0 0.0
    %3277 = vmatpush1.msra.mxu0 0.0
    %3278 = vmatprep.subr.mxu0 0.0
    %3279 = vmatpush1.msra.mxu0 0.0
    %3280 = vmatprep.subr.mxu0 0.0
    %3281 = vmatpush1.msra.mxu0 0.0
    %3282 = vmatprep.subr.mxu0 0.0
    %3283 = vmatpush1.msra.mxu0 0.0
    %3284 = vmatprep.subr.mxu0 0.0
    %3285 = vmatpush1.msra.mxu0 0.0
    %3286 = vmatprep.subr.mxu0 0.0
    %3287 = vmatpush1.msra.mxu0 0.0
    %3288 = vmatprep.subr.mxu0 0.0
    %3289 = vmatpush1.msra.mxu0 0.0
    %3290 = vmatprep.subr.mxu0 0.0
    %3291 = vmatpush1.msra.mxu0 0.0
    %3292 = vmatprep.subr.mxu0 0.0
    %3293 = vmatpush1.msra.mxu0 0.0
    %3294 = vmatprep.subr.mxu0 0.0
    %3295 = vmatpush1.msra.mxu0 0.0
    %3296 = vmatprep.subr.mxu0 0.0
    %3297 = vmatpush1.msra.mxu0 0.0
    %3298 = vmatprep.subr.mxu0 0.0
    %3299 = vmatpush1.msra.mxu0 0.0
    %3300 = vmatprep.subr.mxu0 0.0
    %3301 = vmatpush1.msra.mxu0 0.0
    %3302 = vmatprep.subr.mxu0 0.0
    %3303 = vmatpush1.msra.mxu0 0.0
    %3304 = vmatprep.subr.mxu0 0.0
    %3305 = vmatpush1.msra.mxu0 %v3269
    %3306 = vmatprep.subr.mxu0 0.0
    %3307 = vmatpush2.msra.mxu0 0.0
    %3308 = vmatprep.subr.mxu0 0.0
    %3309 = vmatpush2.msra.mxu0 0.0
    %3310 = vmatprep.subr.mxu0 0.0
    %3311 = vmatpush2.msra.mxu0 0.0
    %3312 = vmatprep.subr.mxu0 0.0
    %3313 = vmatpush2.msra.mxu0 0.0
    %3314 = vmatprep.subr.mxu0 0.0
    %3315 = vmatpush2.msra.mxu0 0.0
    %3316 = vmatprep.subr.mxu0 0.0
    %3317 = vmatpush2.msra.mxu0 0.0
    %3318 = vmatprep.subr.mxu0 0.0
    %3319 = vmatpush2.msra.mxu0 0.0
    %3320 = vmatprep.subr.mxu0 0.0
    %3321 = vmatpush2.msra.mxu0 0.0
    %3322 = vmatprep.subr.mxu0 0.0
    %3323 = vmatpush2.msra.mxu0 0.0
    %3324 = vmatprep.subr.mxu0 0.0
    %3325 = vmatpush2.msra.mxu0 0.0
    %3326 = vmatprep.subr.mxu0 0.0
    %3327 = vmatpush2.msra.mxu0 0.0
    %3328 = vmatprep.subr.mxu0 0.0
    %3329 = vmatpush2.msra.mxu0 0.0
    %3330 = vmatprep.subr.mxu0 0.0
    %3331 = vmatpush2.msra.mxu0 0.0
    %3332 = vmatprep.subr.mxu0 0.0
    %3333 = vmatpush2.msra.mxu0 0.0
    %3334 = vmatprep.subr.mxu0 0.0
    %3335 = vmatpush2.msra.mxu0 0.0
    %3336 = vmatprep.subr.mxu0 0.0
    %3337 = vmatpush2.msra.mxu0 0.0
    %3338 = vmatprep.mubr.f32.mxu0 0.0
    %3339 = vmatmul.mubr.f32.gmra.mxu0 %v3272
    %v3340 = vpop.f32.mrf.mxu0
    %v3341 = vadd.f32 0.0, %v3340
    %v3342 = vpop.f32.mrf.mxu0
    %3343 = vdwg.mxu0
    %3345 = vrot.lane.b32.xlu0 %v2755, 120
    %v3346 = vpop.permute.xlu0 %3345
    %v3349 = vsel %vm2760, %v3263, 0
    %3351 = vmatprep.subr.mxu0 0.0
    %3352 = vmatpush1.msra.mxu0 0.0
    %3353 = vmatprep.subr.mxu0 0.0
    %3354 = vmatpush1.msra.mxu0 0.0
    %3355 = vmatprep.subr.mxu0 0.0
    %3356 = vmatpush1.msra.mxu0 0.0
    %3357 = vmatprep.subr.mxu0 0.0
    %3358 = vmatpush1.msra.mxu0 0.0
    %3359 = vmatprep.subr.mxu0 0.0
    %3360 = vmatpush1.msra.mxu0 0.0
    %3361 = vmatprep.subr.mxu0 0.0
    %3362 = vmatpush1.msra.mxu0 0.0
    %3363 = vmatprep.subr.mxu0 0.0
    %3364 = vmatpush1.msra.mxu0 0.0
    %3365 = vmatprep.subr.mxu0 0.0
    %3366 = vmatpush1.msra.mxu0 0.0
    %3367 = vmatprep.subr.mxu0 0.0
    %3368 = vmatpush1.msra.mxu0 0.0
    %3369 = vmatprep.subr.mxu0 0.0
    %3370 = vmatpush1.msra.mxu0 0.0
    %3371 = vmatprep.subr.mxu0 0.0
    %3372 = vmatpush1.msra.mxu0 0.0
    %3373 = vmatprep.subr.mxu0 0.0
    %3374 = vmatpush1.msra.mxu0 0.0
    %3375 = vmatprep.subr.mxu0 0.0
    %3376 = vmatpush1.msra.mxu0 0.0
    %3377 = vmatprep.subr.mxu0 0.0
    %3378 = vmatpush1.msra.mxu0 0.0
    %3379 = vmatprep.subr.mxu0 0.0
    %3380 = vmatpush1.msra.mxu0 0.0
    %3381 = vmatprep.subr.mxu0 0.0
    %3382 = vmatpush1.msra.mxu0 %v3346
    %3383 = vmatprep.subr.mxu0 0.0
    %3384 = vmatpush2.msra.mxu0 0.0
    %3385 = vmatprep.subr.mxu0 0.0
    %3386 = vmatpush2.msra.mxu0 0.0
    %3387 = vmatprep.subr.mxu0 0.0
    %3388 = vmatpush2.msra.mxu0 0.0
    %3389 = vmatprep.subr.mxu0 0.0
    %3390 = vmatpush2.msra.mxu0 0.0
    %3391 = vmatprep.subr.mxu0 0.0
    %3392 = vmatpush2.msra.mxu0 0.0
    %3393 = vmatprep.subr.mxu0 0.0
    %3394 = vmatpush2.msra.mxu0 0.0
    %3395 = vmatprep.subr.mxu0 0.0
    %3396 = vmatpush2.msra.mxu0 0.0
    %3397 = vmatprep.subr.mxu0 0.0
    %3398 = vmatpush2.msra.mxu0 0.0
    %3399 = vmatprep.subr.mxu0 0.0
    %3400 = vmatpush2.msra.mxu0 0.0
    %3401 = vmatprep.subr.mxu0 0.0
    %3402 = vmatpush2.msra.mxu0 0.0
    %3403 = vmatprep.subr.mxu0 0.0
    %3404 = vmatpush2.msra.mxu0 0.0
    %3405 = vmatprep.subr.mxu0 0.0
    %3406 = vmatpush2.msra.mxu0 0.0
    %3407 = vmatprep.subr.mxu0 0.0
    %3408 = vmatpush2.msra.mxu0 0.0
    %3409 = vmatprep.subr.mxu0 0.0
    %3410 = vmatpush2.msra.mxu0 0.0
    %3411 = vmatprep.subr.mxu0 0.0
    %3412 = vmatpush2.msra.mxu0 0.0
    %3413 = vmatprep.subr.mxu0 0.0
    %3414 = vmatpush2.msra.mxu0 0.0
    %3415 = vmatprep.mubr.f32.mxu0 0.0
    %3416 = vmatmul.mubr.f32.gmra.mxu0 %v3349
    %v3417 = vpop.f32.mrf.mxu0
    %v3418 = vadd.f32 0.0, %v3417
    %v3419 = vpop.f32.mrf.mxu0
    %3420 = vdwg.mxu0
    %v3422 = vsel %vm2760, %v3341, 0
    %v3425 = vsel %vm2760, %v3418, 0
    %3427 = vmatprep.subr.mxu0 0.0
    %3428 = vmatpush1.msra.mxu0 0.0
    %3429 = vmatprep.subr.mxu0 0.0
    %3430 = vmatpush1.msra.mxu0 0.0
    %3431 = vmatprep.subr.mxu0 0.0
    %3432 = vmatpush1.msra.mxu0 0.0
    %3433 = vmatprep.subr.mxu0 0.0
    %3434 = vmatpush1.msra.mxu0 0.0
    %3435 = vmatprep.subr.mxu0 0.0
    %3436 = vmatpush1.msra.mxu0 0.0
    %3437 = vmatprep.subr.mxu0 0.0
    %3438 = vmatpush1.msra.mxu0 0.0
    %3439 = vmatprep.subr.mxu0 0.0
    %3440 = vmatpush1.msra.mxu0 0.0
    %3441 = vmatprep.subr.mxu0 0.0
    %3442 = vmatpush1.msra.mxu0 0.0
    %3443 = vmatprep.subr.mxu0 0.0
    %3444 = vmatpush1.msra.mxu0 0.0
    %3445 = vmatprep.subr.mxu0 0.0
    %3446 = vmatpush1.msra.mxu0 0.0
    %3447 = vmatprep.subr.mxu0 0.0
    %3448 = vmatpush1.msra.mxu0 0.0
    %3449 = vmatprep.subr.mxu0 0.0
    %3450 = vmatpush1.msra.mxu0 0.0
    %3451 = vmatprep.subr.mxu0 0.0
    %3452 = vmatpush1.msra.mxu0 0.0
    %3453 = vmatprep.subr.mxu0 0.0
    %3454 = vmatpush1.msra.mxu0 0.0
    %3455 = vmatprep.subr.mxu0 0.0
    %3456 = vmatpush1.msra.mxu0 0.0
    %3457 = vmatprep.subr.mxu0 0.0
    %3458 = vmatpush1.msra.mxu0 %v2651
    %3459 = vmatprep.subr.mxu0 0.0
    %3460 = vmatpush2.msra.mxu0 0.0
    %3461 = vmatprep.subr.mxu0 0.0
    %3462 = vmatpush2.msra.mxu0 0.0
    %3463 = vmatprep.subr.mxu0 0.0
    %3464 = vmatpush2.msra.mxu0 0.0
    %3465 = vmatprep.subr.mxu0 0.0
    %3466 = vmatpush2.msra.mxu0 0.0
    %3467 = vmatprep.subr.mxu0 0.0
    %3468 = vmatpush2.msra.mxu0 0.0
    %3469 = vmatprep.subr.mxu0 0.0
    %3470 = vmatpush2.msra.mxu0 0.0
    %3471 = vmatprep.subr.mxu0 0.0
    %3472 = vmatpush2.msra.mxu0 0.0
    %3473 = vmatprep.subr.mxu0 0.0
    %3474 = vmatpush2.msra.mxu0 0.0
    %3475 = vmatprep.subr.mxu0 0.0
    %3476 = vmatpush2.msra.mxu0 0.0
    %3477 = vmatprep.subr.mxu0 0.0
    %3478 = vmatpush2.msra.mxu0 0.0
    %3479 = vmatprep.subr.mxu0 0.0
    %3480 = vmatpush2.msra.mxu0 0.0
    %3481 = vmatprep.subr.mxu0 0.0
    %3482 = vmatpush2.msra.mxu0 0.0
    %3483 = vmatprep.subr.mxu0 0.0
    %3484 = vmatpush2.msra.mxu0 0.0
    %3485 = vmatprep.subr.mxu0 0.0
    %3486 = vmatpush2.msra.mxu0 0.0
    %3487 = vmatprep.subr.mxu0 0.0
    %3488 = vmatpush2.msra.mxu0 0.0
    %3489 = vmatprep.subr.mxu0 0.0
    %3490 = vmatpush2.msra.mxu0 0.0
    %3491 = vmatprep.mubr.f32.mxu0 0.0
    %3492 = vmatmul.mubr.f32.gmra.mxu0 %v3422
    %v3493 = vpop.f32.mrf.mxu0
    %v3494 = vadd.f32 0.0, %v3493
    %v3495 = vpop.f32.mrf.mxu0
    %3496 = vmatprep.mubr.f32.mxu0 0.0
    %3497 = vmatmul.mubr.f32.gmra.mxu0 %v3425
    %v3498 = vpop.f32.mrf.mxu0
    %v3499 = vadd.f32 0.0, %v3498
    %v3500 = vpop.f32.mrf.mxu0
    %3501 = vdwg.mxu0
    %v3503 = vsel %vm2760, %v3008, 0
    %v3506 = vsel %vm2760, %v3081, 0
    %3508 = vmatprep.subr.mxu0 0.0
    %3509 = vmatpush1.msra.mxu0 0.0
    %3510 = vmatprep.subr.mxu0 0.0
    %3511 = vmatpush1.msra.mxu0 0.0
    %3512 = vmatprep.subr.mxu0 0.0
    %3513 = vmatpush1.msra.mxu0 0.0
    %3514 = vmatprep.subr.mxu0 0.0
    %3515 = vmatpush1.msra.mxu0 0.0
    %3516 = vmatprep.subr.mxu0 0.0
    %3517 = vmatpush1.msra.mxu0 0.0
    %3518 = vmatprep.subr.mxu0 0.0
    %3519 = vmatpush1.msra.mxu0 0.0
    %3520 = vmatprep.subr.mxu0 0.0
    %3521 = vmatpush1.msra.mxu0 0.0
    %3522 = vmatprep.subr.mxu0 0.0
    %3523 = vmatpush1.msra.mxu0 0.0
    %3524 = vmatprep.subr.mxu0 0.0
    %3525 = vmatpush1.msra.mxu0 0.0
    %3526 = vmatprep.subr.mxu0 0.0
    %3527 = vmatpush1.msra.mxu0 0.0
    %3528 = vmatprep.subr.mxu0 0.0
    %3529 = vmatpush1.msra.mxu0 0.0
    %3530 = vmatprep.subr.mxu0 0.0
    %3531 = vmatpush1.msra.mxu0 0.0
    %3532 = vmatprep.subr.mxu0 0.0
    %3533 = vmatpush1.msra.mxu0 0.0
    %3534 = vmatprep.subr.mxu0 0.0
    %3535 = vmatpush1.msra.mxu0 0.0
    %3536 = vmatprep.subr.mxu0 0.0
    %3537 = vmatpush1.msra.mxu0 0.0
    %3538 = vmatprep.subr.mxu0 0.0
    %3539 = vmatpush1.msra.mxu0 %v2650
    %3540 = vmatprep.subr.mxu0 0.0
    %3541 = vmatpush2.msra.mxu0 0.0
    %3542 = vmatprep.subr.mxu0 0.0
    %3543 = vmatpush2.msra.mxu0 0.0
    %3544 = vmatprep.subr.mxu0 0.0
    %3545 = vmatpush2.msra.mxu0 0.0
    %3546 = vmatprep.subr.mxu0 0.0
    %3547 = vmatpush2.msra.mxu0 0.0
    %3548 = vmatprep.subr.mxu0 0.0
    %3549 = vmatpush2.msra.mxu0 0.0
    %3550 = vmatprep.subr.mxu0 0.0
    %3551 = vmatpush2.msra.mxu0 0.0
    %3552 = vmatprep.subr.mxu0 0.0
    %3553 = vmatpush2.msra.mxu0 0.0
    %3554 = vmatprep.subr.mxu0 0.0
    %3555 = vmatpush2.msra.mxu0 0.0
    %3556 = vmatprep.subr.mxu0 0.0
    %3557 = vmatpush2.msra.mxu0 0.0
    %3558 = vmatprep.subr.mxu0 0.0
    %3559 = vmatpush2.msra.mxu0 0.0
    %3560 = vmatprep.subr.mxu0 0.0
    %3561 = vmatpush2.msra.mxu0 0.0
    %3562 = vmatprep.subr.mxu0 0.0
    %3563 = vmatpush2.msra.mxu0 0.0
    %3564 = vmatprep.subr.mxu0 0.0
    %3565 = vmatpush2.msra.mxu0 0.0
    %3566 = vmatprep.subr.mxu0 0.0
    %3567 = vmatpush2.msra.mxu0 0.0
    %3568 = vmatprep.subr.mxu0 0.0
    %3569 = vmatpush2.msra.mxu0 0.0
    %3570 = vmatprep.subr.mxu0 0.0
    %3571 = vmatpush2.msra.mxu0 0.0
    %3572 = vmatprep.mubr.f32.mxu0 0.0
    %3573 = vmatmul.mubr.f32.gmra.mxu0 %v3503
    %v3574 = vpop.f32.mrf.mxu0
    %v3575 = vadd.f32 %v3494, %v3574
    %v3576 = vpop.f32.mrf.mxu0
    %3577 = vmatprep.mubr.f32.mxu0 0.0
    %3578 = vmatmul.mubr.f32.gmra.mxu0 %v3506
    %v3579 = vpop.f32.mrf.mxu0
    %v3580 = vadd.f32 %v3499, %v3579
    %v3581 = vpop.f32.mrf.mxu0
    %3582 = vdwg.mxu0
    %3583 = vrot.lane.b32.xlu0 %v2747, 112
    %v3584 = vpop.permute.xlu0 %3583
    %3585 = vrot.lane.b32.xlu0 %v2747, 48
    %v3586 = vpop.permute.xlu0 %3585
    %v3587 = vsel %vm2760, %v3584, 0
    %v3589 = vsel %vm2760, %v3586, 0
    %3591 = vmatprep.subr.mxu0 0.0
    %3592 = vmatpush1.xpose.msra.mxu0 0.0
    %3593 = vmatprep.subr.mxu0 0.0
    %3594 = vmatpush1.xpose.msra.mxu0 0.0
    %3595 = vmatprep.subr.mxu0 0.0
    %3596 = vmatpush1.xpose.msra.mxu0 0.0
    %3597 = vmatprep.subr.mxu0 0.0
    %3598 = vmatpush1.xpose.msra.mxu0 0.0
    %3599 = vmatprep.subr.mxu0 0.0
    %3600 = vmatpush1.xpose.msra.mxu0 0.0
    %3601 = vmatprep.subr.mxu0 0.0
    %3602 = vmatpush1.xpose.msra.mxu0 0.0
    %3603 = vmatprep.subr.mxu0 0.0
    %3604 = vmatpush1.xpose.msra.mxu0 0.0
    %3605 = vmatprep.subr.mxu0 0.0
    %3606 = vmatpush1.xpose.msra.mxu0 0.0
    %3607 = vmatprep.subr.mxu0 0.0
    %3608 = vmatpush1.xpose.msra.mxu0 0.0
    %3609 = vmatprep.subr.mxu0 0.0
    %3610 = vmatpush1.xpose.msra.mxu0 0.0
    %3611 = vmatprep.subr.mxu0 0.0
    %3612 = vmatpush1.xpose.msra.mxu0 0.0
    %3613 = vmatprep.subr.mxu0 0.0
    %3614 = vmatpush1.xpose.msra.mxu0 0.0
    %3615 = vmatprep.subr.mxu0 0.0
    %3616 = vmatpush1.xpose.msra.mxu0 0.0
    %3617 = vmatprep.subr.mxu0 0.0
    %3618 = vmatpush1.xpose.msra.mxu0 0.0
    %3619 = vmatprep.subr.mxu0 0.0
    %3620 = vmatpush1.xpose.msra.mxu0 0.0
    %3621 = vmatprep.subr.mxu0 0.0
    %3622 = vmatpush1.xpose.msra.mxu0 %v3589
    %3623 = vmatprep.subr.mxu0 0.0
    %3624 = vmatpush2.xpose.msra.mxu0 0.0
    %3625 = vmatprep.subr.mxu0 0.0
    %3626 = vmatpush2.xpose.msra.mxu0 0.0
    %3627 = vmatprep.subr.mxu0 0.0
    %3628 = vmatpush2.xpose.msra.mxu0 0.0
    %3629 = vmatprep.subr.mxu0 0.0
    %3630 = vmatpush2.xpose.msra.mxu0 0.0
    %3631 = vmatprep.subr.mxu0 0.0
    %3632 = vmatpush2.xpose.msra.mxu0 0.0
    %3633 = vmatprep.subr.mxu0 0.0
    %3634 = vmatpush2.xpose.msra.mxu0 0.0
    %3635 = vmatprep.subr.mxu0 0.0
    %3636 = vmatpush2.xpose.msra.mxu0 0.0
    %3637 = vmatprep.subr.mxu0 0.0
    %3638 = vmatpush2.xpose.msra.mxu0 0.0
    %3639 = vmatprep.subr.mxu0 0.0
    %3640 = vmatpush2.xpose.msra.mxu0 0.0
    %3641 = vmatprep.subr.mxu0 0.0
    %3642 = vmatpush2.xpose.msra.mxu0 0.0
    %3643 = vmatprep.subr.mxu0 0.0
    %3644 = vmatpush2.xpose.msra.mxu0 0.0
    %3645 = vmatprep.subr.mxu0 0.0
    %3646 = vmatpush2.xpose.msra.mxu0 0.0
    %3647 = vmatprep.subr.mxu0 0.0
    %3648 = vmatpush2.xpose.msra.mxu0 0.0
    %3649 = vmatprep.subr.mxu0 0.0
    %3650 = vmatpush2.xpose.msra.mxu0 0.0
    %3651 = vmatprep.subr.mxu0 0.0
    %3652 = vmatpush2.xpose.msra.mxu0 0.0
    %3653 = vmatprep.subr.mxu0 0.0
    %3654 = vmatpush2.xpose.msra.mxu0 0.0
    %3655 = vmatprep.mubr.f32.mxu0 0.0
    %3656 = vmatmul.mubr.f32.gmra.mxu0 %v3587
    %v3657 = vpop.f32.mrf.mxu0
    %v3658 = vadd.f32 0.0, %v3657
    %v3659 = vpop.f32.mrf.mxu0
    %3660 = vdwg.mxu0
    %3661 = vrot.lane.b32.xlu0 %v2753, 112
    %v3662 = vpop.permute.xlu0 %3661
    %3663 = vrot.lane.b32.xlu0 %v2753, 48
    %v3664 = vpop.permute.xlu0 %3663
    %v3665 = vsel %vm2760, %v3662, 0
    %v3667 = vsel %vm2760, %v3664, 0
    %3669 = vmatprep.subr.mxu0 0.0
    %3670 = vmatpush1.xpose.msra.mxu0 0.0
    %3671 = vmatprep.subr.mxu0 0.0
    %3672 = vmatpush1.xpose.msra.mxu0 0.0
    %3673 = vmatprep.subr.mxu0 0.0
    %3674 = vmatpush1.xpose.msra.mxu0 0.0
    %3675 = vmatprep.subr.mxu0 0.0
    %3676 = vmatpush1.xpose.msra.mxu0 0.0
    %3677 = vmatprep.subr.mxu0 0.0
    %3678 = vmatpush1.xpose.msra.mxu0 0.0
    %3679 = vmatprep.subr.mxu0 0.0
    %3680 = vmatpush1.xpose.msra.mxu0 0.0
    %3681 = vmatprep.subr.mxu0 0.0
    %3682 = vmatpush1.xpose.msra.mxu0 0.0
    %3683 = vmatprep.subr.mxu0 0.0
    %3684 = vmatpush1.xpose.msra.mxu0 0.0
    %3685 = vmatprep.subr.mxu0 0.0
    %3686 = vmatpush1.xpose.msra.mxu0 0.0
    %3687 = vmatprep.subr.mxu0 0.0
    %3688 = vmatpush1.xpose.msra.mxu0 0.0
    %3689 = vmatprep.subr.mxu0 0.0
    %3690 = vmatpush1.xpose.msra.mxu0 0.0
    %3691 = vmatprep.subr.mxu0 0.0
    %3692 = vmatpush1.xpose.msra.mxu0 0.0
    %3693 = vmatprep.subr.mxu0 0.0
    %3694 = vmatpush1.xpose.msra.mxu0 0.0
    %3695 = vmatprep.subr.mxu0 0.0
    %3696 = vmatpush1.xpose.msra.mxu0 0.0
    %3697 = vmatprep.subr.mxu0 0.0
    %3698 = vmatpush1.xpose.msra.mxu0 0.0
    %3699 = vmatprep.subr.mxu0 0.0
    %3700 = vmatpush1.xpose.msra.mxu0 %v3667
    %3701 = vmatprep.subr.mxu0 0.0
    %3702 = vmatpush2.xpose.msra.mxu0 0.0
    %3703 = vmatprep.subr.mxu0 0.0
    %3704 = vmatpush2.xpose.msra.mxu0 0.0
    %3705 = vmatprep.subr.mxu0 0.0
    %3706 = vmatpush2.xpose.msra.mxu0 0.0
    %3707 = vmatprep.subr.mxu0 0.0
    %3708 = vmatpush2.xpose.msra.mxu0 0.0
    %3709 = vmatprep.subr.mxu0 0.0
    %3710 = vmatpush2.xpose.msra.mxu0 0.0
    %3711 = vmatprep.subr.mxu0 0.0
    %3712 = vmatpush2.xpose.msra.mxu0 0.0
    %3713 = vmatprep.subr.mxu0 0.0
    %3714 = vmatpush2.xpose.msra.mxu0 0.0
    %3715 = vmatprep.subr.mxu0 0.0
    %3716 = vmatpush2.xpose.msra.mxu0 0.0
    %3717 = vmatprep.subr.mxu0 0.0
    %3718 = vmatpush2.xpose.msra.mxu0 0.0
    %3719 = vmatprep.subr.mxu0 0.0
    %3720 = vmatpush2.xpose.msra.mxu0 0.0
    %3721 = vmatprep.subr.mxu0 0.0
    %3722 = vmatpush2.xpose.msra.mxu0 0.0
    %3723 = vmatprep.subr.mxu0 0.0
    %3724 = vmatpush2.xpose.msra.mxu0 0.0
    %3725 = vmatprep.subr.mxu0 0.0
    %3726 = vmatpush2.xpose.msra.mxu0 0.0
    %3727 = vmatprep.subr.mxu0 0.0
    %3728 = vmatpush2.xpose.msra.mxu0 0.0
    %3729 = vmatprep.subr.mxu0 0.0
    %3730 = vmatpush2.xpose.msra.mxu0 0.0
    %3731 = vmatprep.subr.mxu0 0.0
    %3732 = vmatpush2.xpose.msra.mxu0 0.0
    %3733 = vmatprep.mubr.f32.mxu0 0.0
    %3734 = vmatmul.mubr.f32.gmra.mxu0 %v3665
    %v3735 = vpop.f32.mrf.mxu0
    %v3736 = vadd.f32 0.0, %v3735
    %v3737 = vpop.f32.mrf.mxu0
    %3738 = vdwg.mxu0
    %v3739 = vmul.f32 %v3658, 0.125
    %v3740 = vmul.f32 %v3736, 0.125
    %v3741 = vsel %vm2760, %v3739, -inf
    %3742 = vmax.xlane.f32.xlu0 %v3741
    %v3743 = vpop.xlane.xlu0 %3742
    %v3744 = vsel %vm2760, %v3740, -inf
    %3745 = vmax.xlane.f32.xlu0 %v3744
    %v3746 = vpop.xlane.xlu0 %3745
    %v3747 = vsub.f32 %v3739, %v3743
    %v3748 = vsub.f32 %v3740, %v3746
    %v3749 = vmul.f32 %v3747, 1.442695
    %v3750 = vpow.pop %v3749
    %v3751 = vmul.f32 %v3748, 1.442695
    %v3752 = vpow.pop %v3751
    %v3753 = vsel %vm2760, %v3750, 0.0
    %3754 = vadd.xlane.f32.xlu0 %v3753
    %v3755 = vpop.xlane.xlu0 %3754
    %v3756 = vsel %vm2760, %v3752, 0.0
    %3757 = vadd.xlane.f32.xlu0 %v3756
    %v3758 = vpop.xlane.xlu0 %3757
    %v3759 = vrcp.pop %v3755
    %v3760 = vmul.f32 %v3750, %v3759
    %v3761 = vrcp.pop %v3758
    %v3762 = vmul.f32 %v3752, %v3761
    %s3763 = scalar_lea.vmem [#allocation4], 16
    %3764 = vst.msk [vmem:[%s3763] sm:$0xff] %vm2760, %v3760
    %3765 = vst.msk [vmem:[%s3763 + $0x40] sm:$0xff] %vm2760, %v3762
    %3766 = vrot.lane.b32.xlu0 %v2749, 112
    %v3767 = vpop.permute.xlu0 %3766
    %v3770 = vsel %vm2760, %v3760, 0
    %3772 = vmatprep.subr.mxu0 0.0
    %3773 = vmatpush1.msra.mxu0 0.0
    %3774 = vmatprep.subr.mxu0 0.0
    %3775 = vmatpush1.msra.mxu0 0.0
    %3776 = vmatprep.subr.mxu0 0.0
    %3777 = vmatpush1.msra.mxu0 0.0
    %3778 = vmatprep.subr.mxu0 0.0
    %3779 = vmatpush1.msra.mxu0 0.0
    %3780 = vmatprep.subr.mxu0 0.0
    %3781 = vmatpush1.msra.mxu0 0.0
    %3782 = vmatprep.subr.mxu0 0.0
    %3783 = vmatpush1.msra.mxu0 0.0
    %3784 = vmatprep.subr.mxu0 0.0
    %3785 = vmatpush1.msra.mxu0 0.0
    %3786 = vmatprep.subr.mxu0 0.0
    %3787 = vmatpush1.msra.mxu0 0.0
    %3788 = vmatprep.subr.mxu0 0.0
    %3789 = vmatpush1.msra.mxu0 0.0
    %3790 = vmatprep.subr.mxu0 0.0
    %3791 = vmatpush1.msra.mxu0 0.0
    %3792 = vmatprep.subr.mxu0 0.0
    %3793 = vmatpush1.msra.mxu0 0.0
    %3794 = vmatprep.subr.mxu0 0.0
    %3795 = vmatpush1.msra.mxu0 0.0
    %3796 = vmatprep.subr.mxu0 0.0
    %3797 = vmatpush1.msra.mxu0 0.0
    %3798 = vmatprep.subr.mxu0 0.0
    %3799 = vmatpush1.msra.mxu0 0.0
    %3800 = vmatprep.subr.mxu0 0.0
    %3801 = vmatpush1.msra.mxu0 0.0
    %3802 = vmatprep.subr.mxu0 0.0
    %3803 = vmatpush1.msra.mxu0 %v3767
    %3804 = vmatprep.subr.mxu0 0.0
    %3805 = vmatpush2.msra.mxu0 0.0
    %3806 = vmatprep.subr.mxu0 0.0
    %3807 = vmatpush2.msra.mxu0 0.0
    %3808 = vmatprep.subr.mxu0 0.0
    %3809 = vmatpush2.msra.mxu0 0.0
    %3810 = vmatprep.subr.mxu0 0.0
    %3811 = vmatpush2.msra.mxu0 0.0
    %3812 = vmatprep.subr.mxu0 0.0
    %3813 = vmatpush2.msra.mxu0 0.0
    %3814 = vmatprep.subr.mxu0 0.0
    %3815 = vmatpush2.msra.mxu0 0.0
    %3816 = vmatprep.subr.mxu0 0.0
    %3817 = vmatpush2.msra.mxu0 0.0
    %3818 = vmatprep.subr.mxu0 0.0
    %3819 = vmatpush2.msra.mxu0 0.0
    %3820 = vmatprep.subr.mxu0 0.0
    %3821 = vmatpush2.msra.mxu0 0.0
    %3822 = vmatprep.subr.mxu0 0.0
    %3823 = vmatpush2.msra.mxu0 0.0
    %3824 = vmatprep.subr.mxu0 0.0
    %3825 = vmatpush2.msra.mxu0 0.0
    %3826 = vmatprep.subr.mxu0 0.0
    %3827 = vmatpush2.msra.mxu0 0.0
    %3828 = vmatprep.subr.mxu0 0.0
    %3829 = vmatpush2.msra.mxu0 0.0
    %3830 = vmatprep.subr.mxu0 0.0
    %3831 = vmatpush2.msra.mxu0 0.0
    %3832 = vmatprep.subr.mxu0 0.0
    %3833 = vmatpush2.msra.mxu0 0.0
    %3834 = vmatprep.subr.mxu0 0.0
    %3835 = vmatpush2.msra.mxu0 0.0
    %3836 = vmatprep.mubr.f32.mxu0 0.0
    %3837 = vmatmul.mubr.f32.gmra.mxu0 %v3770
    %v3838 = vpop.f32.mrf.mxu0
    %v3839 = vadd.f32 0.0, %v3838
    %v3840 = vpop.f32.mrf.mxu0
    %3841 = vdwg.mxu0
    %3842 = vrot.lane.b32.xlu0 %v2755, 112
    %v3843 = vpop.permute.xlu0 %3842
    %v3846 = vsel %vm2760, %v3762, 0
    %3848 = vmatprep.subr.mxu0 0.0
    %3849 = vmatpush1.msra.mxu0 0.0
    %3850 = vmatprep.subr.mxu0 0.0
    %3851 = vmatpush1.msra.mxu0 0.0
    %3852 = vmatprep.subr.mxu0 0.0
    %3853 = vmatpush1.msra.mxu0 0.0
    %3854 = vmatprep.subr.mxu0 0.0
    %3855 = vmatpush1.msra.mxu0 0.0
    %3856 = vmatprep.subr.mxu0 0.0
    %3857 = vmatpush1.msra.mxu0 0.0
    %3858 = vmatprep.subr.mxu0 0.0
    %3859 = vmatpush1.msra.mxu0 0.0
    %3860 = vmatprep.subr.mxu0 0.0
    %3861 = vmatpush1.msra.mxu0 0.0
    %3862 = vmatprep.subr.mxu0 0.0
    %3863 = vmatpush1.msra.mxu0 0.0
    %3864 = vmatprep.subr.mxu0 0.0
    %3865 = vmatpush1.msra.mxu0 0.0
    %3866 = vmatprep.subr.mxu0 0.0
    %3867 = vmatpush1.msra.mxu0 0.0
    %3868 = vmatprep.subr.mxu0 0.0
    %3869 = vmatpush1.msra.mxu0 0.0
    %3870 = vmatprep.subr.mxu0 0.0
    %3871 = vmatpush1.msra.mxu0 0.0
    %3872 = vmatprep.subr.mxu0 0.0
    %3873 = vmatpush1.msra.mxu0 0.0
    %3874 = vmatprep.subr.mxu0 0.0
    %3875 = vmatpush1.msra.mxu0 0.0
    %3876 = vmatprep.subr.mxu0 0.0
    %3877 = vmatpush1.msra.mxu0 0.0
    %3878 = vmatprep.subr.mxu0 0.0
    %3879 = vmatpush1.msra.mxu0 %v3843
    %3880 = vmatprep.subr.mxu0 0.0
    %3881 = vmatpush2.msra.mxu0 0.0
    %3882 = vmatprep.subr.mxu0 0.0
    %3883 = vmatpush2.msra.mxu0 0.0
    %3884 = vmatprep.subr.mxu0 0.0
    %3885 = vmatpush2.msra.mxu0 0.0
    %3886 = vmatprep.subr.mxu0 0.0
    %3887 = vmatpush2.msra.mxu0 0.0
    %3888 = vmatprep.subr.mxu0 0.0
    %3889 = vmatpush2.msra.mxu0 0.0
    %3890 = vmatprep.subr.mxu0 0.0
    %3891 = vmatpush2.msra.mxu0 0.0
    %3892 = vmatprep.subr.mxu0 0.0
    %3893 = vmatpush2.msra.mxu0 0.0
    %3894 = vmatprep.subr.mxu0 0.0
    %3895 = vmatpush2.msra.mxu0 0.0
    %3896 = vmatprep.subr.mxu0 0.0
    %3897 = vmatpush2.msra.mxu0 0.0
    %3898 = vmatprep.subr.mxu0 0.0
    %3899 = vmatpush2.msra.mxu0 0.0
    %3900 = vmatprep.subr.mxu0 0.0
    %3901 = vmatpush2.msra.mxu0 0.0
    %3902 = vmatprep.subr.mxu0 0.0
    %3903 = vmatpush2.msra.mxu0 0.0
    %3904 = vmatprep.subr.mxu0 0.0
    %3905 = vmatpush2.msra.mxu0 0.0
    %3906 = vmatprep.subr.mxu0 0.0
    %3907 = vmatpush2.msra.mxu0 0.0
    %3908 = vmatprep.subr.mxu0 0.0
    %3909 = vmatpush2.msra.mxu0 0.0
    %3910 = vmatprep.subr.mxu0 0.0
    %3911 = vmatpush2.msra.mxu0 0.0
    %3912 = vmatprep.mubr.f32.mxu0 0.0
    %3913 = vmatmul.mubr.f32.gmra.mxu0 %v3846
    %v3914 = vpop.f32.mrf.mxu0
    %v3915 = vadd.f32 0.0, %v3914
    %v3916 = vpop.f32.mrf.mxu0
    %3917 = vdwg.mxu0
    %v3919 = vsel %vm2760, %v3839, 0
    %v3922 = vsel %vm2760, %v3915, 0
    %3924 = vmatprep.subr.mxu0 0.0
    %3925 = vmatpush1.msra.mxu0 0.0
    %3926 = vmatprep.subr.mxu0 0.0
    %3927 = vmatpush1.msra.mxu0 0.0
    %3928 = vmatprep.subr.mxu0 0.0
    %3929 = vmatpush1.msra.mxu0 0.0
    %3930 = vmatprep.subr.mxu0 0.0
    %3931 = vmatpush1.msra.mxu0 0.0
    %3932 = vmatprep.subr.mxu0 0.0
    %3933 = vmatpush1.msra.mxu0 0.0
    %3934 = vmatprep.subr.mxu0 0.0
    %3935 = vmatpush1.msra.mxu0 0.0
    %3936 = vmatprep.subr.mxu0 0.0
    %3937 = vmatpush1.msra.mxu0 0.0
    %3938 = vmatprep.subr.mxu0 0.0
    %3939 = vmatpush1.msra.mxu0 0.0
    %3940 = vmatprep.subr.mxu0 0.0
    %3941 = vmatpush1.msra.mxu0 0.0
    %3942 = vmatprep.subr.mxu0 0.0
    %3943 = vmatpush1.msra.mxu0 0.0
    %3944 = vmatprep.subr.mxu0 0.0
    %3945 = vmatpush1.msra.mxu0 0.0
    %3946 = vmatprep.subr.mxu0 0.0
    %3947 = vmatpush1.msra.mxu0 0.0
    %3948 = vmatprep.subr.mxu0 0.0
    %3949 = vmatpush1.msra.mxu0 0.0
    %3950 = vmatprep.subr.mxu0 0.0
    %3951 = vmatpush1.msra.mxu0 0.0
    %3952 = vmatprep.subr.mxu0 0.0
    %3953 = vmatpush1.msra.mxu0 0.0
    %3954 = vmatprep.subr.mxu0 0.0
    %3955 = vmatpush1.msra.mxu0 %v2652
    %3956 = vmatprep.subr.mxu0 0.0
    %3957 = vmatpush2.msra.mxu0 0.0
    %3958 = vmatprep.subr.mxu0 0.0
    %3959 = vmatpush2.msra.mxu0 0.0
    %3960 = vmatprep.subr.mxu0 0.0
    %3961 = vmatpush2.msra.mxu0 0.0
    %3962 = vmatprep.subr.mxu0 0.0
    %3963 = vmatpush2.msra.mxu0 0.0
    %3964 = vmatprep.subr.mxu0 0.0
    %3965 = vmatpush2.msra.mxu0 0.0
    %3966 = vmatprep.subr.mxu0 0.0
    %3967 = vmatpush2.msra.mxu0 0.0
    %3968 = vmatprep.subr.mxu0 0.0
    %3969 = vmatpush2.msra.mxu0 0.0
    %3970 = vmatprep.subr.mxu0 0.0
    %3971 = vmatpush2.msra.mxu0 0.0
    %3972 = vmatprep.subr.mxu0 0.0
    %3973 = vmatpush2.msra.mxu0 0.0
    %3974 = vmatprep.subr.mxu0 0.0
    %3975 = vmatpush2.msra.mxu0 0.0
    %3976 = vmatprep.subr.mxu0 0.0
    %3977 = vmatpush2.msra.mxu0 0.0
    %3978 = vmatprep.subr.mxu0 0.0
    %3979 = vmatpush2.msra.mxu0 0.0
    %3980 = vmatprep.subr.mxu0 0.0
    %3981 = vmatpush2.msra.mxu0 0.0
    %3982 = vmatprep.subr.mxu0 0.0
    %3983 = vmatpush2.msra.mxu0 0.0
    %3984 = vmatprep.subr.mxu0 0.0
    %3985 = vmatpush2.msra.mxu0 0.0
    %3986 = vmatprep.subr.mxu0 0.0
    %3987 = vmatpush2.msra.mxu0 0.0
    %3988 = vmatprep.mubr.f32.mxu0 0.0
    %3989 = vmatmul.mubr.f32.gmra.mxu0 %v3919
    %v3990 = vpop.f32.mrf.mxu0
    %v3991 = vadd.f32 0.0, %v3990
    %v3992 = vpop.f32.mrf.mxu0
    %3993 = vmatprep.mubr.f32.mxu0 0.0
    %3994 = vmatmul.mubr.f32.gmra.mxu0 %v3922
    %v3995 = vpop.f32.mrf.mxu0
    %v3996 = vadd.f32 0.0, %v3995
    %v3997 = vpop.f32.mrf.mxu0
    %3998 = vdwg.mxu0
    %v3999 = vadd.f32 %v3575, %v3991
    %v4000 = vadd.f32 %v3580, %v3996
    %4001 = vrot.lane.b32.xlu0 %v2747, 104
    %v4002 = vpop.permute.xlu0 %4001
    %4003 = vrot.lane.b32.xlu0 %v2747, 40
    %v4004 = vpop.permute.xlu0 %4003
    %v4005 = vsel %vm2760, %v4002, 0
    %v4007 = vsel %vm2760, %v4004, 0
    %4009 = vmatprep.subr.mxu0 0.0
    %4010 = vmatpush1.xpose.msra.mxu0 0.0
    %4011 = vmatprep.subr.mxu0 0.0
    %4012 = vmatpush1.xpose.msra.mxu0 0.0
    %4013 = vmatprep.subr.mxu0 0.0
    %4014 = vmatpush1.xpose.msra.mxu0 0.0
    %4015 = vmatprep.subr.mxu0 0.0
    %4016 = vmatpush1.xpose.msra.mxu0 0.0
    %4017 = vmatprep.subr.mxu0 0.0
    %4018 = vmatpush1.xpose.msra.mxu0 0.0
    %4019 = vmatprep.subr.mxu0 0.0
    %4020 = vmatpush1.xpose.msra.mxu0 0.0
    %4021 = vmatprep.subr.mxu0 0.0
    %4022 = vmatpush1.xpose.msra.mxu0 0.0
    %4023 = vmatprep.subr.mxu0 0.0
    %4024 = vmatpush1.xpose.msra.mxu0 0.0
    %4025 = vmatprep.subr.mxu0 0.0
    %4026 = vmatpush1.xpose.msra.mxu0 0.0
    %4027 = vmatprep.subr.mxu0 0.0
    %4028 = vmatpush1.xpose.msra.mxu0 0.0
    %4029 = vmatprep.subr.mxu0 0.0
    %4030 = vmatpush1.xpose.msra.mxu0 0.0
    %4031 = vmatprep.subr.mxu0 0.0
    %4032 = vmatpush1.xpose.msra.mxu0 0.0
    %4033 = vmatprep.subr.mxu0 0.0
    %4034 = vmatpush1.xpose.msra.mxu0 0.0
    %4035 = vmatprep.subr.mxu0 0.0
    %4036 = vmatpush1.xpose.msra.mxu0 0.0
    %4037 = vmatprep.subr.mxu0 0.0
    %4038 = vmatpush1.xpose.msra.mxu0 0.0
    %4039 = vmatprep.subr.mxu0 0.0
    %4040 = vmatpush1.xpose.msra.mxu0 %v4007
    %4041 = vmatprep.subr.mxu0 0.0
    %4042 = vmatpush2.xpose.msra.mxu0 0.0
    %4043 = vmatprep.subr.mxu0 0.0
    %4044 = vmatpush2.xpose.msra.mxu0 0.0
    %4045 = vmatprep.subr.mxu0 0.0
    %4046 = vmatpush2.xpose.msra.mxu0 0.0
    %4047 = vmatprep.subr.mxu0 0.0
    %4048 = vmatpush2.xpose.msra.mxu0 0.0
    %4049 = vmatprep.subr.mxu0 0.0
    %4050 = vmatpush2.xpose.msra.mxu0 0.0
    %4051 = vmatprep.subr.mxu0 0.0
    %4052 = vmatpush2.xpose.msra.mxu0 0.0
    %4053 = vmatprep.subr.mxu0 0.0
    %4054 = vmatpush2.xpose.msra.mxu0 0.0
    %4055 = vmatprep.subr.mxu0 0.0
    %4056 = vmatpush2.xpose.msra.mxu0 0.0
    %4057 = vmatprep.subr.mxu0 0.0
    %4058 = vmatpush2.xpose.msra.mxu0 0.0
    %4059 = vmatprep.subr.mxu0 0.0
    %4060 = vmatpush2.xpose.msra.mxu0 0.0
    %4061 = vmatprep.subr.mxu0 0.0
    %4062 = vmatpush2.xpose.msra.mxu0 0.0
    %4063 = vmatprep.subr.mxu0 0.0
    %4064 = vmatpush2.xpose.msra.mxu0 0.0
    %4065 = vmatprep.subr.mxu0 0.0
    %4066 = vmatpush2.xpose.msra.mxu0 0.0
    %4067 = vmatprep.subr.mxu0 0.0
    %4068 = vmatpush2.xpose.msra.mxu0 0.0
    %4069 = vmatprep.subr.mxu0 0.0
    %4070 = vmatpush2.xpose.msra.mxu0 0.0
    %4071 = vmatprep.subr.mxu0 0.0
    %4072 = vmatpush2.xpose.msra.mxu0 0.0
    %4073 = vmatprep.mubr.f32.mxu0 0.0
    %4074 = vmatmul.mubr.f32.gmra.mxu0 %v4005
    %v4075 = vpop.f32.mrf.mxu0
    %v4076 = vadd.f32 0.0, %v4075
    %v4077 = vpop.f32.mrf.mxu0
    %4078 = vdwg.mxu0
    %4079 = vrot.lane.b32.xlu0 %v2753, 104
    %v4080 = vpop.permute.xlu0 %4079
    %4081 = vrot.lane.b32.xlu0 %v2753, 40
    %v4082 = vpop.permute.xlu0 %4081
    %v4083 = vsel %vm2760, %v4080, 0
    %v4085 = vsel %vm2760, %v4082, 0
    %4087 = vmatprep.subr.mxu0 0.0
    %4088 = vmatpush1.xpose.msra.mxu0 0.0
    %4089 = vmatprep.subr.mxu0 0.0
    %4090 = vmatpush1.xpose.msra.mxu0 0.0
    %4091 = vmatprep.subr.mxu0 0.0
    %4092 = vmatpush1.xpose.msra.mxu0 0.0
    %4093 = vmatprep.subr.mxu0 0.0
    %4094 = vmatpush1.xpose.msra.mxu0 0.0
    %4095 = vmatprep.subr.mxu0 0.0
    %4096 = vmatpush1.xpose.msra.mxu0 0.0
    %4097 = vmatprep.subr.mxu0 0.0
    %4098 = vmatpush1.xpose.msra.mxu0 0.0
    %4099 = vmatprep.subr.mxu0 0.0
    %4100 = vmatpush1.xpose.msra.mxu0 0.0
    %4101 = vmatprep.subr.mxu0 0.0
    %4102 = vmatpush1.xpose.msra.mxu0 0.0
    %4103 = vmatprep.subr.mxu0 0.0
    %4104 = vmatpush1.xpose.msra.mxu0 0.0
    %4105 = vmatprep.subr.mxu0 0.0
    %4106 = vmatpush1.xpose.msra.mxu0 0.0
    %4107 = vmatprep.subr.mxu0 0.0
    %4108 = vmatpush1.xpose.msra.mxu0 0.0
    %4109 = vmatprep.subr.mxu0 0.0
    %4110 = vmatpush1.xpose.msra.mxu0 0.0
    %4111 = vmatprep.subr.mxu0 0.0
    %4112 = vmatpush1.xpose.msra.mxu0 0.0
    %4113 = vmatprep.subr.mxu0 0.0
    %4114 = vmatpush1.xpose.msra.mxu0 0.0
    %4115 = vmatprep.subr.mxu0 0.0
    %4116 = vmatpush1.xpose.msra.mxu0 0.0
    %4117 = vmatprep.subr.mxu0 0.0
    %4118 = vmatpush1.xpose.msra.mxu0 %v4085
    %4119 = vmatprep.subr.mxu0 0.0
    %4120 = vmatpush2.xpose.msra.mxu0 0.0
    %4121 = vmatprep.subr.mxu0 0.0
    %4122 = vmatpush2.xpose.msra.mxu0 0.0
    %4123 = vmatprep.subr.mxu0 0.0
    %4124 = vmatpush2.xpose.msra.mxu0 0.0
    %4125 = vmatprep.subr.mxu0 0.0
    %4126 = vmatpush2.xpose.msra.mxu0 0.0
    %4127 = vmatprep.subr.mxu0 0.0
    %4128 = vmatpush2.xpose.msra.mxu0 0.0
    %4129 = vmatprep.subr.mxu0 0.0
    %4130 = vmatpush2.xpose.msra.mxu0 0.0
    %4131 = vmatprep.subr.mxu0 0.0
    %4132 = vmatpush2.xpose.msra.mxu0 0.0
    %4133 = vmatprep.subr.mxu0 0.0
    %4134 = vmatpush2.xpose.msra.mxu0 0.0
    %4135 = vmatprep.subr.mxu0 0.0
    %4136 = vmatpush2.xpose.msra.mxu0 0.0
    %4137 = vmatprep.subr.mxu0 0.0
    %4138 = vmatpush2.xpose.msra.mxu0 0.0
    %4139 = vmatprep.subr.mxu0 0.0
    %4140 = vmatpush2.xpose.msra.mxu0 0.0
    %4141 = vmatprep.subr.mxu0 0.0
    %4142 = vmatpush2.xpose.msra.mxu0 0.0
    %4143 = vmatprep.subr.mxu0 0.0
    %4144 = vmatpush2.xpose.msra.mxu0 0.0
    %4145 = vmatprep.subr.mxu0 0.0
    %4146 = vmatpush2.xpose.msra.mxu0 0.0
    %4147 = vmatprep.subr.mxu0 0.0
    %4148 = vmatpush2.xpose.msra.mxu0 0.0
    %4149 = vmatprep.subr.mxu0 0.0
    %4150 = vmatpush2.xpose.msra.mxu0 0.0
    %4151 = vmatprep.mubr.f32.mxu0 0.0
    %4152 = vmatmul.mubr.f32.gmra.mxu0 %v4083
    %v4153 = vpop.f32.mrf.mxu0
    %v4154 = vadd.f32 0.0, %v4153
    %v4155 = vpop.f32.mrf.mxu0
    %4156 = vdwg.mxu0
    %v4157 = vmul.f32 %v4076, 0.125
    %v4158 = vmul.f32 %v4154, 0.125
    %v4159 = vsel %vm2760, %v4157, -inf
    %4160 = vmax.xlane.f32.xlu0 %v4159
    %v4161 = vpop.xlane.xlu0 %4160
    %v4162 = vsel %vm2760, %v4158, -inf
    %4163 = vmax.xlane.f32.xlu0 %v4162
    %v4164 = vpop.xlane.xlu0 %4163
    %v4165 = vsub.f32 %v4157, %v4161
    %v4166 = vsub.f32 %v4158, %v4164
    %v4167 = vmul.f32 %v4165, 1.442695
    %v4168 = vpow.pop %v4167
    %v4169 = vmul.f32 %v4166, 1.442695
    %v4170 = vpow.pop %v4169
    %v4171 = vsel %vm2760, %v4168, 0.0
    %4172 = vadd.xlane.f32.xlu0 %v4171
    %v4173 = vpop.xlane.xlu0 %4172
    %v4174 = vsel %vm2760, %v4170, 0.0
    %4175 = vadd.xlane.f32.xlu0 %v4174
    %v4176 = vpop.xlane.xlu0 %4175
    %v4177 = vrcp.pop %v4173
    %v4178 = vmul.f32 %v4168, %v4177
    %v4179 = vrcp.pop %v4176
    %v4180 = vmul.f32 %v4170, %v4179
    %s4181 = scalar_lea.vmem [#allocation4], 24
    %4182 = vst.msk [vmem:[%s4181] sm:$0xff] %vm2760, %v4178
    %4183 = vst.msk [vmem:[%s4181 + $0x40] sm:$0xff] %vm2760, %v4180
    %4184 = vrot.lane.b32.xlu0 %v2749, 104
    %v4185 = vpop.permute.xlu0 %4184
    %v4188 = vsel %vm2760, %v4178, 0
    %4190 = vmatprep.subr.mxu0 0.0
    %4191 = vmatpush1.msra.mxu0 0.0
    %4192 = vmatprep.subr.mxu0 0.0
    %4193 = vmatpush1.msra.mxu0 0.0
    %4194 = vmatprep.subr.mxu0 0.0
    %4195 = vmatpush1.msra.mxu0 0.0
    %4196 = vmatprep.subr.mxu0 0.0
    %4197 = vmatpush1.msra.mxu0 0.0
    %4198 = vmatprep.subr.mxu0 0.0
    %4199 = vmatpush1.msra.mxu0 0.0
    %4200 = vmatprep.subr.mxu0 0.0
    %4201 = vmatpush1.msra.mxu0 0.0
    %4202 = vmatprep.subr.mxu0 0.0
    %4203 = vmatpush1.msra.mxu0 0.0
    %4204 = vmatprep.subr.mxu0 0.0
    %4205 = vmatpush1.msra.mxu0 0.0
    %4206 = vmatprep.subr.mxu0 0.0
    %4207 = vmatpush1.msra.mxu0 0.0
    %4208 = vmatprep.subr.mxu0 0.0
    %4209 = vmatpush1.msra.mxu0 0.0
    %4210 = vmatprep.subr.mxu0 0.0
    %4211 = vmatpush1.msra.mxu0 0.0
    %4212 = vmatprep.subr.mxu0 0.0
    %4213 = vmatpush1.msra.mxu0 0.0
    %4214 = vmatprep.subr.mxu0 0.0
    %4215 = vmatpush1.msra.mxu0 0.0
    %4216 = vmatprep.subr.mxu0 0.0
    %4217 = vmatpush1.msra.mxu0 0.0
    %4218 = vmatprep.subr.mxu0 0.0
    %4219 = vmatpush1.msra.mxu0 0.0
    %4220 = vmatprep.subr.mxu0 0.0
    %4221 = vmatpush1.msra.mxu0 %v4185
    %4222 = vmatprep.subr.mxu0 0.0
    %4223 = vmatpush2.msra.mxu0 0.0
    %4224 = vmatprep.subr.mxu0 0.0
    %4225 = vmatpush2.msra.mxu0 0.0
    %4226 = vmatprep.subr.mxu0 0.0
    %4227 = vmatpush2.msra.mxu0 0.0
    %4228 = vmatprep.subr.mxu0 0.0
    %4229 = vmatpush2.msra.mxu0 0.0
    %4230 = vmatprep.subr.mxu0 0.0
    %4231 = vmatpush2.msra.mxu0 0.0
    %4232 = vmatprep.subr.mxu0 0.0
    %4233 = vmatpush2.msra.mxu0 0.0
    %4234 = vmatprep.subr.mxu0 0.0
    %4235 = vmatpush2.msra.mxu0 0.0
    %4236 = vmatprep.subr.mxu0 0.0
    %4237 = vmatpush2.msra.mxu0 0.0
    %4238 = vmatprep.subr.mxu0 0.0
    %4239 = vmatpush2.msra.mxu0 0.0
    %4240 = vmatprep.subr.mxu0 0.0
    %4241 = vmatpush2.msra.mxu0 0.0
    %4242 = vmatprep.subr.mxu0 0.0
    %4243 = vmatpush2.msra.mxu0 0.0
    %4244 = vmatprep.subr.mxu0 0.0
    %4245 = vmatpush2.msra.mxu0 0.0
    %4246 = vmatprep.subr.mxu0 0.0
    %4247 = vmatpush2.msra.mxu0 0.0
    %4248 = vmatprep.subr.mxu0 0.0
    %4249 = vmatpush2.msra.mxu0 0.0
    %4250 = vmatprep.subr.mxu0 0.0
    %4251 = vmatpush2.msra.mxu0 0.0
    %4252 = vmatprep.subr.mxu0 0.0
    %4253 = vmatpush2.msra.mxu0 0.0
    %4254 = vmatprep.mubr.f32.mxu0 0.0
    %4255 = vmatmul.mubr.f32.gmra.mxu0 %v4188
    %v4256 = vpop.f32.mrf.mxu0
    %v4257 = vadd.f32 0.0, %v4256
    %v4258 = vpop.f32.mrf.mxu0
    %4259 = vdwg.mxu0
    %4260 = vrot.lane.b32.xlu0 %v2755, 104
    %v4261 = vpop.permute.xlu0 %4260
    %v4264 = vsel %vm2760, %v4180, 0
    %4266 = vmatprep.subr.mxu0 0.0
    %4267 = vmatpush1.msra.mxu0 0.0
    %4268 = vmatprep.subr.mxu0 0.0
    %4269 = vmatpush1.msra.mxu0 0.0
    %4270 = vmatprep.subr.mxu0 0.0
    %4271 = vmatpush1.msra.mxu0 0.0
    %4272 = vmatprep.subr.mxu0 0.0
    %4273 = vmatpush1.msra.mxu0 0.0
    %4274 = vmatprep.subr.mxu0 0.0
    %4275 = vmatpush1.msra.mxu0 0.0
    %4276 = vmatprep.subr.mxu0 0.0
    %4277 = vmatpush1.msra.mxu0 0.0
    %4278 = vmatprep.subr.mxu0 0.0
    %4279 = vmatpush1.msra.mxu0 0.0
    %4280 = vmatprep.subr.mxu0 0.0
    %4281 = vmatpush1.msra.mxu0 0.0
    %4282 = vmatprep.subr.mxu0 0.0
    %4283 = vmatpush1.msra.mxu0 0.0
    %4284 = vmatprep.subr.mxu0 0.0
    %4285 = vmatpush1.msra.mxu0 0.0
    %4286 = vmatprep.subr.mxu0 0.0
    %4287 = vmatpush1.msra.mxu0 0.0
    %4288 = vmatprep.subr.mxu0 0.0
    %4289 = vmatpush1.msra.mxu0 0.0
    %4290 = vmatprep.subr.mxu0 0.0
    %4291 = vmatpush1.msra.mxu0 0.0
    %4292 = vmatprep.subr.mxu0 0.0
    %4293 = vmatpush1.msra.mxu0 0.0
    %4294 = vmatprep.subr.mxu0 0.0
    %4295 = vmatpush1.msra.mxu0 0.0
    %4296 = vmatprep.subr.mxu0 0.0
    %4297 = vmatpush1.msra.mxu0 %v4261
    %4298 = vmatprep.subr.mxu0 0.0
    %4299 = vmatpush2.msra.mxu0 0.0
    %4300 = vmatprep.subr.mxu0 0.0
    %4301 = vmatpush2.msra.mxu0 0.0
    %4302 = vmatprep.subr.mxu0 0.0
    %4303 = vmatpush2.msra.mxu0 0.0
    %4304 = vmatprep.subr.mxu0 0.0
    %4305 = vmatpush2.msra.mxu0 0.0
    %4306 = vmatprep.subr.mxu0 0.0
    %4307 = vmatpush2.msra.mxu0 0.0
    %4308 = vmatprep.subr.mxu0 0.0
    %4309 = vmatpush2.msra.mxu0 0.0
    %4310 = vmatprep.subr.mxu0 0.0
    %4311 = vmatpush2.msra.mxu0 0.0
    %4312 = vmatprep.subr.mxu0 0.0
    %4313 = vmatpush2.msra.mxu0 0.0
    %4314 = vmatprep.subr.mxu0 0.0
    %4315 = vmatpush2.msra.mxu0 0.0
    %4316 = vmatprep.subr.mxu0 0.0
    %4317 = vmatpush2.msra.mxu0 0.0
    %4318 = vmatprep.subr.mxu0 0.0
    %4319 = vmatpush2.msra.mxu0 0.0
    %4320 = vmatprep.subr.mxu0 0.0
    %4321 = vmatpush2.msra.mxu0 0.0
    %4322 = vmatprep.subr.mxu0 0.0
    %4323 = vmatpush2.msra.mxu0 0.0
    %4324 = vmatprep.subr.mxu0 0.0
    %4325 = vmatpush2.msra.mxu0 0.0
    %4326 = vmatprep.subr.mxu0 0.0
    %4327 = vmatpush2.msra.mxu0 0.0
    %4328 = vmatprep.subr.mxu0 0.0
    %4329 = vmatpush2.msra.mxu0 0.0
    %4330 = vmatprep.mubr.f32.mxu0 0.0
    %4331 = vmatmul.mubr.f32.gmra.mxu0 %v4264
    %v4332 = vpop.f32.mrf.mxu0
    %v4333 = vadd.f32 0.0, %v4332
    %v4334 = vpop.f32.mrf.mxu0
    %4335 = vdwg.mxu0
    %v4337 = vsel %vm2760, %v4257, 0
    %v4340 = vsel %vm2760, %v4333, 0
    %4342 = vmatprep.subr.mxu0 0.0
    %4343 = vmatpush1.msra.mxu0 0.0
    %4344 = vmatprep.subr.mxu0 0.0
    %4345 = vmatpush1.msra.mxu0 0.0
    %4346 = vmatprep.subr.mxu0 0.0
    %4347 = vmatpush1.msra.mxu0 0.0
    %4348 = vmatprep.subr.mxu0 0.0
    %4349 = vmatpush1.msra.mxu0 0.0
    %4350 = vmatprep.subr.mxu0 0.0
    %4351 = vmatpush1.msra.mxu0 0.0
    %4352 = vmatprep.subr.mxu0 0.0
    %4353 = vmatpush1.msra.mxu0 0.0
    %4354 = vmatprep.subr.mxu0 0.0
    %4355 = vmatpush1.msra.mxu0 0.0
    %4356 = vmatprep.subr.mxu0 0.0
    %4357 = vmatpush1.msra.mxu0 0.0
    %4358 = vmatprep.subr.mxu0 0.0
    %4359 = vmatpush1.msra.mxu0 0.0
    %4360 = vmatprep.subr.mxu0 0.0
    %4361 = vmatpush1.msra.mxu0 0.0
    %4362 = vmatprep.subr.mxu0 0.0
    %4363 = vmatpush1.msra.mxu0 0.0
    %4364 = vmatprep.subr.mxu0 0.0
    %4365 = vmatpush1.msra.mxu0 0.0
    %4366 = vmatprep.subr.mxu0 0.0
    %4367 = vmatpush1.msra.mxu0 0.0
    %4368 = vmatprep.subr.mxu0 0.0
    %4369 = vmatpush1.msra.mxu0 0.0
    %4370 = vmatprep.subr.mxu0 0.0
    %4371 = vmatpush1.msra.mxu0 0.0
    %4372 = vmatprep.subr.mxu0 0.0
    %4373 = vmatpush1.msra.mxu0 %v2653
    %4374 = vmatprep.subr.mxu0 0.0
    %4375 = vmatpush2.msra.mxu0 0.0
    %4376 = vmatprep.subr.mxu0 0.0
    %4377 = vmatpush2.msra.mxu0 0.0
    %4378 = vmatprep.subr.mxu0 0.0
    %4379 = vmatpush2.msra.mxu0 0.0
    %4380 = vmatprep.subr.mxu0 0.0
    %4381 = vmatpush2.msra.mxu0 0.0
    %4382 = vmatprep.subr.mxu0 0.0
    %4383 = vmatpush2.msra.mxu0 0.0
    %4384 = vmatprep.subr.mxu0 0.0
    %4385 = vmatpush2.msra.mxu0 0.0
    %4386 = vmatprep.subr.mxu0 0.0
    %4387 = vmatpush2.msra.mxu0 0.0
    %4388 = vmatprep.subr.mxu0 0.0
    %4389 = vmatpush2.msra.mxu0 0.0
    %4390 = vmatprep.subr.mxu0 0.0
    %4391 = vmatpush2.msra.mxu0 0.0
    %4392 = vmatprep.subr.mxu0 0.0
    %4393 = vmatpush2.msra.mxu0 0.0
    %4394 = vmatprep.subr.mxu0 0.0
    %4395 = vmatpush2.msra.mxu0 0.0
    %4396 = vmatprep.subr.mxu0 0.0
    %4397 = vmatpush2.msra.mxu0 0.0
    %4398 = vmatprep.subr.mxu0 0.0
    %4399 = vmatpush2.msra.mxu0 0.0
    %4400 = vmatprep.subr.mxu0 0.0
    %4401 = vmatpush2.msra.mxu0 0.0
    %4402 = vmatprep.subr.mxu0 0.0
    %4403 = vmatpush2.msra.mxu0 0.0
    %4404 = vmatprep.subr.mxu0 0.0
    %4405 = vmatpush2.msra.mxu0 0.0
    %4406 = vmatprep.mubr.f32.mxu0 0.0
    %4407 = vmatmul.mubr.f32.gmra.mxu0 %v4337
    %v4408 = vpop.f32.mrf.mxu0
    %v4409 = vadd.f32 0.0, %v4408
    %v4410 = vpop.f32.mrf.mxu0
    %4411 = vmatprep.mubr.f32.mxu0 0.0
    %4412 = vmatmul.mubr.f32.gmra.mxu0 %v4340
    %v4413 = vpop.f32.mrf.mxu0
    %v4414 = vadd.f32 0.0, %v4413
    %v4415 = vpop.f32.mrf.mxu0
    %4416 = vdwg.mxu0
    %v4417 = vadd.f32 %v3999, %v4409
    %v4418 = vadd.f32 %v4000, %v4414
    %4419 = vrot.lane.b32.xlu0 %v2747, 96
    %v4420 = vpop.permute.xlu0 %4419
    %4421 = vrot.lane.b32.xlu0 %v2747, 32
    %v4422 = vpop.permute.xlu0 %4421
    %v4423 = vsel %vm2760, %v4420, 0
    %v4425 = vsel %vm2760, %v4422, 0
    %4427 = vmatprep.subr.mxu0 0.0
    %4428 = vmatpush1.xpose.msra.mxu0 0.0
    %4429 = vmatprep.subr.mxu0 0.0
    %4430 = vmatpush1.xpose.msra.mxu0 0.0
    %4431 = vmatprep.subr.mxu0 0.0
    %4432 = vmatpush1.xpose.msra.mxu0 0.0
    %4433 = vmatprep.subr.mxu0 0.0
    %4434 = vmatpush1.xpose.msra.mxu0 0.0
    %4435 = vmatprep.subr.mxu0 0.0
    %4436 = vmatpush1.xpose.msra.mxu0 0.0
    %4437 = vmatprep.subr.mxu0 0.0
    %4438 = vmatpush1.xpose.msra.mxu0 0.0
    %4439 = vmatprep.subr.mxu0 0.0
    %4440 = vmatpush1.xpose.msra.mxu0 0.0
    %4441 = vmatprep.subr.mxu0 0.0
    %4442 = vmatpush1.xpose.msra.mxu0 0.0
    %4443 = vmatprep.subr.mxu0 0.0
    %4444 = vmatpush1.xpose.msra.mxu0 0.0
    %4445 = vmatprep.subr.mxu0 0.0
    %4446 = vmatpush1.xpose.msra.mxu0 0.0
    %4447 = vmatprep.subr.mxu0 0.0
    %4448 = vmatpush1.xpose.msra.mxu0 0.0
    %4449 = vmatprep.subr.mxu0 0.0
    %4450 = vmatpush1.xpose.msra.mxu0 0.0
    %4451 = vmatprep.subr.mxu0 0.0
    %4452 = vmatpush1.xpose.msra.mxu0 0.0
    %4453 = vmatprep.subr.mxu0 0.0
    %4454 = vmatpush1.xpose.msra.mxu0 0.0
    %4455 = vmatprep.subr.mxu0 0.0
    %4456 = vmatpush1.xpose.msra.mxu0 0.0
    %4457 = vmatprep.subr.mxu0 0.0
    %4458 = vmatpush1.xpose.msra.mxu0 %v4425
    %4459 = vmatprep.subr.mxu0 0.0
    %4460 = vmatpush2.xpose.msra.mxu0 0.0
    %4461 = vmatprep.subr.mxu0 0.0
    %4462 = vmatpush2.xpose.msra.mxu0 0.0
    %4463 = vmatprep.subr.mxu0 0.0
    %4464 = vmatpush2.xpose.msra.mxu0 0.0
    %4465 = vmatprep.subr.mxu0 0.0
    %4466 = vmatpush2.xpose.msra.mxu0 0.0
    %4467 = vmatprep.subr.mxu0 0.0
    %4468 = vmatpush2.xpose.msra.mxu0 0.0
    %4469 = vmatprep.subr.mxu0 0.0
    %4470 = vmatpush2.xpose.msra.mxu0 0.0
    %4471 = vmatprep.subr.mxu0 0.0
    %4472 = vmatpush2.xpose.msra.mxu0 0.0
    %4473 = vmatprep.subr.mxu0 0.0
    %4474 = vmatpush2.xpose.msra.mxu0 0.0
    %4475 = vmatprep.subr.mxu0 0.0
    %4476 = vmatpush2.xpose.msra.mxu0 0.0
    %4477 = vmatprep.subr.mxu0 0.0
    %4478 = vmatpush2.xpose.msra.mxu0 0.0
    %4479 = vmatprep.subr.mxu0 0.0
    %4480 = vmatpush2.xpose.msra.mxu0 0.0
    %4481 = vmatprep.subr.mxu0 0.0
    %4482 = vmatpush2.xpose.msra.mxu0 0.0
    %4483 = vmatprep.subr.mxu0 0.0
    %4484 = vmatpush2.xpose.msra.mxu0 0.0
    %4485 = vmatprep.subr.mxu0 0.0
    %4486 = vmatpush2.xpose.msra.mxu0 0.0
    %4487 = vmatprep.subr.mxu0 0.0
    %4488 = vmatpush2.xpose.msra.mxu0 0.0
    %4489 = vmatprep.subr.mxu0 0.0
    %4490 = vmatpush2.xpose.msra.mxu0 0.0
    %4491 = vmatprep.mubr.f32.mxu0 0.0
    %4492 = vmatmul.mubr.f32.gmra.mxu0 %v4423
    %v4493 = vpop.f32.mrf.mxu0
    %v4494 = vadd.f32 0.0, %v4493
    %v4495 = vpop.f32.mrf.mxu0
    %4496 = vdwg.mxu0
    %4497 = vrot.lane.b32.xlu0 %v2753, 96
    %v4498 = vpop.permute.xlu0 %4497
    %4499 = vrot.lane.b32.xlu0 %v2753, 32
    %v4500 = vpop.permute.xlu0 %4499
    %v4501 = vsel %vm2760, %v4498, 0
    %v4503 = vsel %vm2760, %v4500, 0
    %4505 = vmatprep.subr.mxu0 0.0
    %4506 = vmatpush1.xpose.msra.mxu0 0.0
    %4507 = vmatprep.subr.mxu0 0.0
    %4508 = vmatpush1.xpose.msra.mxu0 0.0
    %4509 = vmatprep.subr.mxu0 0.0
    %4510 = vmatpush1.xpose.msra.mxu0 0.0
    %4511 = vmatprep.subr.mxu0 0.0
    %4512 = vmatpush1.xpose.msra.mxu0 0.0
    %4513 = vmatprep.subr.mxu0 0.0
    %4514 = vmatpush1.xpose.msra.mxu0 0.0
    %4515 = vmatprep.subr.mxu0 0.0
    %4516 = vmatpush1.xpose.msra.mxu0 0.0
    %4517 = vmatprep.subr.mxu0 0.0
    %4518 = vmatpush1.xpose.msra.mxu0 0.0
    %4519 = vmatprep.subr.mxu0 0.0
    %4520 = vmatpush1.xpose.msra.mxu0 0.0
    %4521 = vmatprep.subr.mxu0 0.0
    %4522 = vmatpush1.xpose.msra.mxu0 0.0
    %4523 = vmatprep.subr.mxu0 0.0
    %4524 = vmatpush1.xpose.msra.mxu0 0.0
    %4525 = vmatprep.subr.mxu0 0.0
    %4526 = vmatpush1.xpose.msra.mxu0 0.0
    %4527 = vmatprep.subr.mxu0 0.0
    %4528 = vmatpush1.xpose.msra.mxu0 0.0
    %4529 = vmatprep.subr.mxu0 0.0
    %4530 = vmatpush1.xpose.msra.mxu0 0.0
    %4531 = vmatprep.subr.mxu0 0.0
    %4532 = vmatpush1.xpose.msra.mxu0 0.0
    %4533 = vmatprep.subr.mxu0 0.0
    %4534 = vmatpush1.xpose.msra.mxu0 0.0
    %4535 = vmatprep.subr.mxu0 0.0
    %4536 = vmatpush1.xpose.msra.mxu0 %v4503
    %4537 = vmatprep.subr.mxu0 0.0
    %4538 = vmatpush2.xpose.msra.mxu0 0.0
    %4539 = vmatprep.subr.mxu0 0.0
    %4540 = vmatpush2.xpose.msra.mxu0 0.0
    %4541 = vmatprep.subr.mxu0 0.0
    %4542 = vmatpush2.xpose.msra.mxu0 0.0
    %4543 = vmatprep.subr.mxu0 0.0
    %4544 = vmatpush2.xpose.msra.mxu0 0.0
    %4545 = vmatprep.subr.mxu0 0.0
    %4546 = vmatpush2.xpose.msra.mxu0 0.0
    %4547 = vmatprep.subr.mxu0 0.0
    %4548 = vmatpush2.xpose.msra.mxu0 0.0
    %4549 = vmatprep.subr.mxu0 0.0
    %4550 = vmatpush2.xpose.msra.mxu0 0.0
    %4551 = vmatprep.subr.mxu0 0.0
    %4552 = vmatpush2.xpose.msra.mxu0 0.0
    %4553 = vmatprep.subr.mxu0 0.0
    %4554 = vmatpush2.xpose.msra.mxu0 0.0
    %4555 = vmatprep.subr.mxu0 0.0
    %4556 = vmatpush2.xpose.msra.mxu0 0.0
    %4557 = vmatprep.subr.mxu0 0.0
    %4558 = vmatpush2.xpose.msra.mxu0 0.0
    %4559 = vmatprep.subr.mxu0 0.0
    %4560 = vmatpush2.xpose.msra.mxu0 0.0
    %4561 = vmatprep.subr.mxu0 0.0
    %4562 = vmatpush2.xpose.msra.mxu0 0.0
    %4563 = vmatprep.subr.mxu0 0.0
    %4564 = vmatpush2.xpose.msra.mxu0 0.0
    %4565 = vmatprep.subr.mxu0 0.0
    %4566 = vmatpush2.xpose.msra.mxu0 0.0
    %4567 = vmatprep.subr.mxu0 0.0
    %4568 = vmatpush2.xpose.msra.mxu0 0.0
    %4569 = vmatprep.mubr.f32.mxu0 0.0
    %4570 = vmatmul.mubr.f32.gmra.mxu0 %v4501
    %v4571 = vpop.f32.mrf.mxu0
    %v4572 = vadd.f32 0.0, %v4571
    %v4573 = vpop.f32.mrf.mxu0
    %4574 = vdwg.mxu0
    %v4575 = vmul.f32 %v4494, 0.125
    %v4576 = vmul.f32 %v4572, 0.125
    %v4577 = vsel %vm2760, %v4575, -inf
    %4578 = vmax.xlane.f32.xlu0 %v4577
    %v4579 = vpop.xlane.xlu0 %4578
    %v4580 = vsel %vm2760, %v4576, -inf
    %4581 = vmax.xlane.f32.xlu0 %v4580
    %v4582 = vpop.xlane.xlu0 %4581
    %v4583 = vsub.f32 %v4575, %v4579
    %v4584 = vsub.f32 %v4576, %v4582
    %v4585 = vmul.f32 %v4583, 1.442695
    %v4586 = vpow.pop %v4585
    %v4587 = vmul.f32 %v4584, 1.442695
    %v4588 = vpow.pop %v4587
    %v4589 = vsel %vm2760, %v4586, 0.0
    %4590 = vadd.xlane.f32.xlu0 %v4589
    %v4591 = vpop.xlane.xlu0 %4590
    %v4592 = vsel %vm2760, %v4588, 0.0
    %4593 = vadd.xlane.f32.xlu0 %v4592
    %v4594 = vpop.xlane.xlu0 %4593
    %v4595 = vrcp.pop %v4591
    %v4596 = vmul.f32 %v4586, %v4595
    %v4597 = vrcp.pop %v4594
    %v4598 = vmul.f32 %v4588, %v4597
    %s4599 = scalar_lea.vmem [#allocation4], 32
    %4600 = vst.msk [vmem:[%s4599] sm:$0xff] %vm2760, %v4596
    %4601 = vst.msk [vmem:[%s4599 + $0x40] sm:$0xff] %vm2760, %v4598
    %4602 = vrot.lane.b32.xlu0 %v2749, 96
    %v4603 = vpop.permute.xlu0 %4602
    %v4606 = vsel %vm2760, %v4596, 0
    %4608 = vmatprep.subr.mxu0 0.0
    %4609 = vmatpush1.msra.mxu0 0.0
    %4610 = vmatprep.subr.mxu0 0.0
    %4611 = vmatpush1.msra.mxu0 0.0
    %4612 = vmatprep.subr.mxu0 0.0
    %4613 = vmatpush1.msra.mxu0 0.0
    %4614 = vmatprep.subr.mxu0 0.0
    %4615 = vmatpush1.msra.mxu0 0.0
    %4616 = vmatprep.subr.mxu0 0.0
    %4617 = vmatpush1.msra.mxu0 0.0
    %4618 = vmatprep.subr.mxu0 0.0
    %4619 = vmatpush1.msra.mxu0 0.0
    %4620 = vmatprep.subr.mxu0 0.0
    %4621 = vmatpush1.msra.mxu0 0.0
    %4622 = vmatprep.subr.mxu0 0.0
    %4623 = vmatpush1.msra.mxu0 0.0
    %4624 = vmatprep.subr.mxu0 0.0
    %4625 = vmatpush1.msra.mxu0 0.0
    %4626 = vmatprep.subr.mxu0 0.0
    %4627 = vmatpush1.msra.mxu0 0.0
    %4628 = vmatprep.subr.mxu0 0.0
    %4629 = vmatpush1.msra.mxu0 0.0
    %4630 = vmatprep.subr.mxu0 0.0
    %4631 = vmatpush1.msra.mxu0 0.0
    %4632 = vmatprep.subr.mxu0 0.0
    %4633 = vmatpush1.msra.mxu0 0.0
    %4634 = vmatprep.subr.mxu0 0.0
    %4635 = vmatpush1.msra.mxu0 0.0
    %4636 = vmatprep.subr.mxu0 0.0
    %4637 = vmatpush1.msra.mxu0 0.0
    %4638 = vmatprep.subr.mxu0 0.0
    %4639 = vmatpush1.msra.mxu0 %v4603
    %4640 = vmatprep.subr.mxu0 0.0
    %4641 = vmatpush2.msra.mxu0 0.0
    %4642 = vmatprep.subr.mxu0 0.0
    %4643 = vmatpush2.msra.mxu0 0.0
    %4644 = vmatprep.subr.mxu0 0.0
    %4645 = vmatpush2.msra.mxu0 0.0
    %4646 = vmatprep.subr.mxu0 0.0
    %4647 = vmatpush2.msra.mxu0 0.0
    %4648 = vmatprep.subr.mxu0 0.0
    %4649 = vmatpush2.msra.mxu0 0.0
    %4650 = vmatprep.subr.mxu0 0.0
    %4651 = vmatpush2.msra.mxu0 0.0
    %4652 = vmatprep.subr.mxu0 0.0
    %4653 = vmatpush2.msra.mxu0 0.0
    %4654 = vmatprep.subr.mxu0 0.0
    %4655 = vmatpush2.msra.mxu0 0.0
    %4656 = vmatprep.subr.mxu0 0.0
    %4657 = vmatpush2.msra.mxu0 0.0
    %4658 = vmatprep.subr.mxu0 0.0
    %4659 = vmatpush2.msra.mxu0 0.0
    %4660 = vmatprep.subr.mxu0 0.0
    %4661 = vmatpush2.msra.mxu0 0.0
    %4662 = vmatprep.subr.mxu0 0.0
    %4663 = vmatpush2.msra.mxu0 0.0
    %4664 = vmatprep.subr.mxu0 0.0
    %4665 = vmatpush2.msra.mxu0 0.0
    %4666 = vmatprep.subr.mxu0 0.0
    %4667 = vmatpush2.msra.mxu0 0.0
    %4668 = vmatprep.subr.mxu0 0.0
    %4669 = vmatpush2.msra.mxu0 0.0
    %4670 = vmatprep.subr.mxu0 0.0
    %4671 = vmatpush2.msra.mxu0 0.0
    %4672 = vmatprep.mubr.f32.mxu0 0.0
    %4673 = vmatmul.mubr.f32.gmra.mxu0 %v4606
    %v4674 = vpop.f32.mrf.mxu0
    %v4675 = vadd.f32 0.0, %v4674
    %v4676 = vpop.f32.mrf.mxu0
    %4677 = vdwg.mxu0
    %4678 = vrot.lane.b32.xlu0 %v2755, 96
    %v4679 = vpop.permute.xlu0 %4678
    %v4682 = vsel %vm2760, %v4598, 0
    %4684 = vmatprep.subr.mxu0 0.0
    %4685 = vmatpush1.msra.mxu0 0.0
    %4686 = vmatprep.subr.mxu0 0.0
    %4687 = vmatpush1.msra.mxu0 0.0
    %4688 = vmatprep.subr.mxu0 0.0
    %4689 = vmatpush1.msra.mxu0 0.0
    %4690 = vmatprep.subr.mxu0 0.0
    %4691 = vmatpush1.msra.mxu0 0.0
    %4692 = vmatprep.subr.mxu0 0.0
    %4693 = vmatpush1.msra.mxu0 0.0
    %4694 = vmatprep.subr.mxu0 0.0
    %4695 = vmatpush1.msra.mxu0 0.0
    %4696 = vmatprep.subr.mxu0 0.0
    %4697 = vmatpush1.msra.mxu0 0.0
    %4698 = vmatprep.subr.mxu0 0.0
    %4699 = vmatpush1.msra.mxu0 0.0
    %4700 = vmatprep.subr.mxu0 0.0
    %4701 = vmatpush1.msra.mxu0 0.0
    %4702 = vmatprep.subr.mxu0 0.0
    %4703 = vmatpush1.msra.mxu0 0.0
    %4704 = vmatprep.subr.mxu0 0.0
    %4705 = vmatpush1.msra.mxu0 0.0
    %4706 = vmatprep.subr.mxu0 0.0
    %4707 = vmatpush1.msra.mxu0 0.0
    %4708 = vmatprep.subr.mxu0 0.0
    %4709 = vmatpush1.msra.mxu0 0.0
    %4710 = vmatprep.subr.mxu0 0.0
    %4711 = vmatpush1.msra.mxu0 0.0
    %4712 = vmatprep.subr.mxu0 0.0
    %4713 = vmatpush1.msra.mxu0 0.0
    %4714 = vmatprep.subr.mxu0 0.0
    %4715 = vmatpush1.msra.mxu0 %v4679
    %4716 = vmatprep.subr.mxu0 0.0
    %4717 = vmatpush2.msra.mxu0 0.0
    %4718 = vmatprep.subr.mxu0 0.0
    %4719 = vmatpush2.msra.mxu0 0.0
    %4720 = vmatprep.subr.mxu0 0.0
    %4721 = vmatpush2.msra.mxu0 0.0
    %4722 = vmatprep.subr.mxu0 0.0
    %4723 = vmatpush2.msra.mxu0 0.0
    %4724 = vmatprep.subr.mxu0 0.0
    %4725 = vmatpush2.msra.mxu0 0.0
    %4726 = vmatprep.subr.mxu0 0.0
    %4727 = vmatpush2.msra.mxu0 0.0
    %4728 = vmatprep.subr.mxu0 0.0
    %4729 = vmatpush2.msra.mxu0 0.0
    %4730 = vmatprep.subr.mxu0 0.0
    %4731 = vmatpush2.msra.mxu0 0.0
    %4732 = vmatprep.subr.mxu0 0.0
    %4733 = vmatpush2.msra.mxu0 0.0
    %4734 = vmatprep.subr.mxu0 0.0
    %4735 = vmatpush2.msra.mxu0 0.0
    %4736 = vmatprep.subr.mxu0 0.0
    %4737 = vmatpush2.msra.mxu0 0.0
    %4738 = vmatprep.subr.mxu0 0.0
    %4739 = vmatpush2.msra.mxu0 0.0
    %4740 = vmatprep.subr.mxu0 0.0
    %4741 = vmatpush2.msra.mxu0 0.0
    %4742 = vmatprep.subr.mxu0 0.0
    %4743 = vmatpush2.msra.mxu0 0.0
    %4744 = vmatprep.subr.mxu0 0.0
    %4745 = vmatpush2.msra.mxu0 0.0
    %4746 = vmatprep.subr.mxu0 0.0
    %4747 = vmatpush2.msra.mxu0 0.0
    %4748 = vmatprep.mubr.f32.mxu0 0.0
    %4749 = vmatmul.mubr.f32.gmra.mxu0 %v4682
    %v4750 = vpop.f32.mrf.mxu0
    %v4751 = vadd.f32 0.0, %v4750
    %v4752 = vpop.f32.mrf.mxu0
    %4753 = vdwg.mxu0
    %v4755 = vsel %vm2760, %v4675, 0
    %v4758 = vsel %vm2760, %v4751, 0
    %4760 = vmatprep.subr.mxu0 0.0
    %4761 = vmatpush1.msra.mxu0 0.0
    %4762 = vmatprep.subr.mxu0 0.0
    %4763 = vmatpush1.msra.mxu0 0.0
    %4764 = vmatprep.subr.mxu0 0.0
    %4765 = vmatpush1.msra.mxu0 0.0
    %4766 = vmatprep.subr.mxu0 0.0
    %4767 = vmatpush1.msra.mxu0 0.0
    %4768 = vmatprep.subr.mxu0 0.0
    %4769 = vmatpush1.msra.mxu0 0.0
    %4770 = vmatprep.subr.mxu0 0.0
    %4771 = vmatpush1.msra.mxu0 0.0
    %4772 = vmatprep.subr.mxu0 0.0
    %4773 = vmatpush1.msra.mxu0 0.0
    %4774 = vmatprep.subr.mxu0 0.0
    %4775 = vmatpush1.msra.mxu0 0.0
    %4776 = vmatprep.subr.mxu0 0.0
    %4777 = vmatpush1.msra.mxu0 0.0
    %4778 = vmatprep.subr.mxu0 0.0
    %4779 = vmatpush1.msra.mxu0 0.0
    %4780 = vmatprep.subr.mxu0 0.0
    %4781 = vmatpush1.msra.mxu0 0.0
    %4782 = vmatprep.subr.mxu0 0.0
    %4783 = vmatpush1.msra.mxu0 0.0
    %4784 = vmatprep.subr.mxu0 0.0
    %4785 = vmatpush1.msra.mxu0 0.0
    %4786 = vmatprep.subr.mxu0 0.0
    %4787 = vmatpush1.msra.mxu0 0.0
    %4788 = vmatprep.subr.mxu0 0.0
    %4789 = vmatpush1.msra.mxu0 0.0
    %4790 = vmatprep.subr.mxu0 0.0
    %4791 = vmatpush1.msra.mxu0 %v2654
    %4792 = vmatprep.subr.mxu0 0.0
    %4793 = vmatpush2.msra.mxu0 0.0
    %4794 = vmatprep.subr.mxu0 0.0
    %4795 = vmatpush2.msra.mxu0 0.0
    %4796 = vmatprep.subr.mxu0 0.0
    %4797 = vmatpush2.msra.mxu0 0.0
    %4798 = vmatprep.subr.mxu0 0.0
    %4799 = vmatpush2.msra.mxu0 0.0
    %4800 = vmatprep.subr.mxu0 0.0
    %4801 = vmatpush2.msra.mxu0 0.0
    %4802 = vmatprep.subr.mxu0 0.0
    %4803 = vmatpush2.msra.mxu0 0.0
    %4804 = vmatprep.subr.mxu0 0.0
    %4805 = vmatpush2.msra.mxu0 0.0
    %4806 = vmatprep.subr.mxu0 0.0
    %4807 = vmatpush2.msra.mxu0 0.0
    %4808 = vmatprep.subr.mxu0 0.0
    %4809 = vmatpush2.msra.mxu0 0.0
    %4810 = vmatprep.subr.mxu0 0.0
    %4811 = vmatpush2.msra.mxu0 0.0
    %4812 = vmatprep.subr.mxu0 0.0
    %4813 = vmatpush2.msra.mxu0 0.0
    %4814 = vmatprep.subr.mxu0 0.0
    %4815 = vmatpush2.msra.mxu0 0.0
    %4816 = vmatprep.subr.mxu0 0.0
    %4817 = vmatpush2.msra.mxu0 0.0
    %4818 = vmatprep.subr.mxu0 0.0
    %4819 = vmatpush2.msra.mxu0 0.0
    %4820 = vmatprep.subr.mxu0 0.0
    %4821 = vmatpush2.msra.mxu0 0.0
    %4822 = vmatprep.subr.mxu0 0.0
    %4823 = vmatpush2.msra.mxu0 0.0
    %4824 = vmatprep.mubr.f32.mxu0 0.0
    %4825 = vmatmul.mubr.f32.gmra.mxu0 %v4755
    %v4826 = vpop.f32.mrf.mxu0
    %v4827 = vadd.f32 0.0, %v4826
    %v4828 = vpop.f32.mrf.mxu0
    %4829 = vmatprep.mubr.f32.mxu0 0.0
    %4830 = vmatmul.mubr.f32.gmra.mxu0 %v4758
    %v4831 = vpop.f32.mrf.mxu0
    %v4832 = vadd.f32 0.0, %v4831
    %v4833 = vpop.f32.mrf.mxu0
    %4834 = vdwg.mxu0
    %v4835 = vadd.f32 %v4417, %v4827
    %v4836 = vadd.f32 %v4418, %v4832
    %4837 = vrot.lane.b32.xlu0 %v2747, 88
    %v4838 = vpop.permute.xlu0 %4837
    %4839 = vrot.lane.b32.xlu0 %v2747, 24
    %v4840 = vpop.permute.xlu0 %4839
    %v4841 = vsel %vm2760, %v4838, 0
    %v4843 = vsel %vm2760, %v4840, 0
    %4845 = vmatprep.subr.mxu0 0.0
    %4846 = vmatpush1.xpose.msra.mxu0 0.0
    %4847 = vmatprep.subr.mxu0 0.0
    %4848 = vmatpush1.xpose.msra.mxu0 0.0
    %4849 = vmatprep.subr.mxu0 0.0
    %4850 = vmatpush1.xpose.msra.mxu0 0.0
    %4851 = vmatprep.subr.mxu0 0.0
    %4852 = vmatpush1.xpose.msra.mxu0 0.0
    %4853 = vmatprep.subr.mxu0 0.0
    %4854 = vmatpush1.xpose.msra.mxu0 0.0
    %4855 = vmatprep.subr.mxu0 0.0
    %4856 = vmatpush1.xpose.msra.mxu0 0.0
    %4857 = vmatprep.subr.mxu0 0.0
    %4858 = vmatpush1.xpose.msra.mxu0 0.0
    %4859 = vmatprep.subr.mxu0 0.0
    %4860 = vmatpush1.xpose.msra.mxu0 0.0
    %4861 = vmatprep.subr.mxu0 0.0
    %4862 = vmatpush1.xpose.msra.mxu0 0.0
    %4863 = vmatprep.subr.mxu0 0.0
    %4864 = vmatpush1.xpose.msra.mxu0 0.0
    %4865 = vmatprep.subr.mxu0 0.0
    %4866 = vmatpush1.xpose.msra.mxu0 0.0
    %4867 = vmatprep.subr.mxu0 0.0
    %4868 = vmatpush1.xpose.msra.mxu0 0.0
    %4869 = vmatprep.subr.mxu0 0.0
    %4870 = vmatpush1.xpose.msra.mxu0 0.0
    %4871 = vmatprep.subr.mxu0 0.0
    %4872 = vmatpush1.xpose.msra.mxu0 0.0
    %4873 = vmatprep.subr.mxu0 0.0
    %4874 = vmatpush1.xpose.msra.mxu0 0.0
    %4875 = vmatprep.subr.mxu0 0.0
    %4876 = vmatpush1.xpose.msra.mxu0 %v4843
    %4877 = vmatprep.subr.mxu0 0.0
    %4878 = vmatpush2.xpose.msra.mxu0 0.0
    %4879 = vmatprep.subr.mxu0 0.0
    %4880 = vmatpush2.xpose.msra.mxu0 0.0
    %4881 = vmatprep.subr.mxu0 0.0
    %4882 = vmatpush2.xpose.msra.mxu0 0.0
    %4883 = vmatprep.subr.mxu0 0.0
    %4884 = vmatpush2.xpose.msra.mxu0 0.0
    %4885 = vmatprep.subr.mxu0 0.0
    %4886 = vmatpush2.xpose.msra.mxu0 0.0
    %4887 = vmatprep.subr.mxu0 0.0
    %4888 = vmatpush2.xpose.msra.mxu0 0.0
    %4889 = vmatprep.subr.mxu0 0.0
    %4890 = vmatpush2.xpose.msra.mxu0 0.0
    %4891 = vmatprep.subr.mxu0 0.0
    %4892 = vmatpush2.xpose.msra.mxu0 0.0
    %4893 = vmatprep.subr.mxu0 0.0
    %4894 = vmatpush2.xpose.msra.mxu0 0.0
    %4895 = vmatprep.subr.mxu0 0.0
    %4896 = vmatpush2.xpose.msra.mxu0 0.0
    %4897 = vmatprep.subr.mxu0 0.0
    %4898 = vmatpush2.xpose.msra.mxu0 0.0
    %4899 = vmatprep.subr.mxu0 0.0
    %4900 = vmatpush2.xpose.msra.mxu0 0.0
    %4901 = vmatprep.subr.mxu0 0.0
    %4902 = vmatpush2.xpose.msra.mxu0 0.0
    %4903 = vmatprep.subr.mxu0 0.0
    %4904 = vmatpush2.xpose.msra.mxu0 0.0
    %4905 = vmatprep.subr.mxu0 0.0
    %4906 = vmatpush2.xpose.msra.mxu0 0.0
    %4907 = vmatprep.subr.mxu0 0.0
    %4908 = vmatpush2.xpose.msra.mxu0 0.0
    %4909 = vmatprep.mubr.f32.mxu0 0.0
    %4910 = vmatmul.mubr.f32.gmra.mxu0 %v4841
    %v4911 = vpop.f32.mrf.mxu0
    %v4912 = vadd.f32 0.0, %v4911
    %v4913 = vpop.f32.mrf.mxu0
    %4914 = vdwg.mxu0
    %4915 = vrot.lane.b32.xlu0 %v2753, 88
    %v4916 = vpop.permute.xlu0 %4915
    %4917 = vrot.lane.b32.xlu0 %v2753, 24
    %v4918 = vpop.permute.xlu0 %4917
    %v4919 = vsel %vm2760, %v4916, 0
    %v4921 = vsel %vm2760, %v4918, 0
    %4923 = vmatprep.subr.mxu0 0.0
    %4924 = vmatpush1.xpose.msra.mxu0 0.0
    %4925 = vmatprep.subr.mxu0 0.0
    %4926 = vmatpush1.xpose.msra.mxu0 0.0
    %4927 = vmatprep.subr.mxu0 0.0
    %4928 = vmatpush1.xpose.msra.mxu0 0.0
    %4929 = vmatprep.subr.mxu0 0.0
    %4930 = vmatpush1.xpose.msra.mxu0 0.0
    %4931 = vmatprep.subr.mxu0 0.0
    %4932 = vmatpush1.xpose.msra.mxu0 0.0
    %4933 = vmatprep.subr.mxu0 0.0
    %4934 = vmatpush1.xpose.msra.mxu0 0.0
    %4935 = vmatprep.subr.mxu0 0.0
    %4936 = vmatpush1.xpose.msra.mxu0 0.0
    %4937 = vmatprep.subr.mxu0 0.0
    %4938 = vmatpush1.xpose.msra.mxu0 0.0
    %4939 = vmatprep.subr.mxu0 0.0
    %4940 = vmatpush1.xpose.msra.mxu0 0.0
    %4941 = vmatprep.subr.mxu0 0.0
    %4942 = vmatpush1.xpose.msra.mxu0 0.0
    %4943 = vmatprep.subr.mxu0 0.0
    %4944 = vmatpush1.xpose.msra.mxu0 0.0
    %4945 = vmatprep.subr.mxu0 0.0
    %4946 = vmatpush1.xpose.msra.mxu0 0.0
    %4947 = vmatprep.subr.mxu0 0.0
    %4948 = vmatpush1.xpose.msra.mxu0 0.0
    %4949 = vmatprep.subr.mxu0 0.0
    %4950 = vmatpush1.xpose.msra.mxu0 0.0
    %4951 = vmatprep.subr.mxu0 0.0
    %4952 = vmatpush1.xpose.msra.mxu0 0.0
    %4953 = vmatprep.subr.mxu0 0.0
    %4954 = vmatpush1.xpose.msra.mxu0 %v4921
    %4955 = vmatprep.subr.mxu0 0.0
    %4956 = vmatpush2.xpose.msra.mxu0 0.0
    %4957 = vmatprep.subr.mxu0 0.0
    %4958 = vmatpush2.xpose.msra.mxu0 0.0
    %4959 = vmatprep.subr.mxu0 0.0
    %4960 = vmatpush2.xpose.msra.mxu0 0.0
    %4961 = vmatprep.subr.mxu0 0.0
    %4962 = vmatpush2.xpose.msra.mxu0 0.0
    %4963 = vmatprep.subr.mxu0 0.0
    %4964 = vmatpush2.xpose.msra.mxu0 0.0
    %4965 = vmatprep.subr.mxu0 0.0
    %4966 = vmatpush2.xpose.msra.mxu0 0.0
    %4967 = vmatprep.subr.mxu0 0.0
    %4968 = vmatpush2.xpose.msra.mxu0 0.0
    %4969 = vmatprep.subr.mxu0 0.0
    %4970 = vmatpush2.xpose.msra.mxu0 0.0
    %4971 = vmatprep.subr.mxu0 0.0
    %4972 = vmatpush2.xpose.msra.mxu0 0.0
    %4973 = vmatprep.subr.mxu0 0.0
    %4974 = vmatpush2.xpose.msra.mxu0 0.0
    %4975 = vmatprep.subr.mxu0 0.0
    %4976 = vmatpush2.xpose.msra.mxu0 0.0
    %4977 = vmatprep.subr.mxu0 0.0
    %4978 = vmatpush2.xpose.msra.mxu0 0.0
    %4979 = vmatprep.subr.mxu0 0.0
    %4980 = vmatpush2.xpose.msra.mxu0 0.0
    %4981 = vmatprep.subr.mxu0 0.0
    %4982 = vmatpush2.xpose.msra.mxu0 0.0
    %4983 = vmatprep.subr.mxu0 0.0
    %4984 = vmatpush2.xpose.msra.mxu0 0.0
    %4985 = vmatprep.subr.mxu0 0.0
    %4986 = vmatpush2.xpose.msra.mxu0 0.0
    %4987 = vmatprep.mubr.f32.mxu0 0.0
    %4988 = vmatmul.mubr.f32.gmra.mxu0 %v4919
    %v4989 = vpop.f32.mrf.mxu0
    %v4990 = vadd.f32 0.0, %v4989
    %v4991 = vpop.f32.mrf.mxu0
    %4992 = vdwg.mxu0
    %v4993 = vmul.f32 %v4912, 0.125
    %v4994 = vmul.f32 %v4990, 0.125
    %v4995 = vsel %vm2760, %v4993, -inf
    %4996 = vmax.xlane.f32.xlu0 %v4995
    %v4997 = vpop.xlane.xlu0 %4996
    %v4998 = vsel %vm2760, %v4994, -inf
    %4999 = vmax.xlane.f32.xlu0 %v4998
    %v5000 = vpop.xlane.xlu0 %4999
    %v5001 = vsub.f32 %v4993, %v4997
    %v5002 = vsub.f32 %v4994, %v5000
    %v5003 = vmul.f32 %v5001, 1.442695
    %v5004 = vpow.pop %v5003
    %v5005 = vmul.f32 %v5002, 1.442695
    %v5006 = vpow.pop %v5005
    %v5007 = vsel %vm2760, %v5004, 0.0
    %5008 = vadd.xlane.f32.xlu0 %v5007
    %v5009 = vpop.xlane.xlu0 %5008
    %v5010 = vsel %vm2760, %v5006, 0.0
    %5011 = vadd.xlane.f32.xlu0 %v5010
    %v5012 = vpop.xlane.xlu0 %5011
    %v5013 = vrcp.pop %v5009
    %v5014 = vmul.f32 %v5004, %v5013
    %v5015 = vrcp.pop %v5012
    %v5016 = vmul.f32 %v5006, %v5015
    %s5017 = scalar_lea.vmem [#allocation4], 40
    %5018 = vst.msk [vmem:[%s5017] sm:$0xff] %vm2760, %v5014
    %5019 = vst.msk [vmem:[%s5017 + $0x40] sm:$0xff] %vm2760, %v5016
    %5020 = vrot.lane.b32.xlu0 %v2749, 88
    %v5021 = vpop.permute.xlu0 %5020
    %v5024 = vsel %vm2760, %v5014, 0
    %5026 = vmatprep.subr.mxu0 0.0
    %5027 = vmatpush1.msra.mxu0 0.0
    %5028 = vmatprep.subr.mxu0 0.0
    %5029 = vmatpush1.msra.mxu0 0.0
    %5030 = vmatprep.subr.mxu0 0.0
    %5031 = vmatpush1.msra.mxu0 0.0
    %5032 = vmatprep.subr.mxu0 0.0
    %5033 = vmatpush1.msra.mxu0 0.0
    %5034 = vmatprep.subr.mxu0 0.0
    %5035 = vmatpush1.msra.mxu0 0.0
    %5036 = vmatprep.subr.mxu0 0.0
    %5037 = vmatpush1.msra.mxu0 0.0
    %5038 = vmatprep.subr.mxu0 0.0
    %5039 = vmatpush1.msra.mxu0 0.0
    %5040 = vmatprep.subr.mxu0 0.0
    %5041 = vmatpush1.msra.mxu0 0.0
    %5042 = vmatprep.subr.mxu0 0.0
    %5043 = vmatpush1.msra.mxu0 0.0
    %5044 = vmatprep.subr.mxu0 0.0
    %5045 = vmatpush1.msra.mxu0 0.0
    %5046 = vmatprep.subr.mxu0 0.0
    %5047 = vmatpush1.msra.mxu0 0.0
    %5048 = vmatprep.subr.mxu0 0.0
    %5049 = vmatpush1.msra.mxu0 0.0
    %5050 = vmatprep.subr.mxu0 0.0
    %5051 = vmatpush1.msra.mxu0 0.0
    %5052 = vmatprep.subr.mxu0 0.0
    %5053 = vmatpush1.msra.mxu0 0.0
    %5054 = vmatprep.subr.mxu0 0.0
    %5055 = vmatpush1.msra.mxu0 0.0
    %5056 = vmatprep.subr.mxu0 0.0
    %5057 = vmatpush1.msra.mxu0 %v5021
    %5058 = vmatprep.subr.mxu0 0.0
    %5059 = vmatpush2.msra.mxu0 0.0
    %5060 = vmatprep.subr.mxu0 0.0
    %5061 = vmatpush2.msra.mxu0 0.0
    %5062 = vmatprep.subr.mxu0 0.0
    %5063 = vmatpush2.msra.mxu0 0.0
    %5064 = vmatprep.subr.mxu0 0.0
    %5065 = vmatpush2.msra.mxu0 0.0
    %5066 = vmatprep.subr.mxu0 0.0
    %5067 = vmatpush2.msra.mxu0 0.0
    %5068 = vmatprep.subr.mxu0 0.0
    %5069 = vmatpush2.msra.mxu0 0.0
    %5070 = vmatprep.subr.mxu0 0.0
    %5071 = vmatpush2.msra.mxu0 0.0
    %5072 = vmatprep.subr.mxu0 0.0
    %5073 = vmatpush2.msra.mxu0 0.0
    %5074 = vmatprep.subr.mxu0 0.0
    %5075 = vmatpush2.msra.mxu0 0.0
    %5076 = vmatprep.subr.mxu0 0.0
    %5077 = vmatpush2.msra.mxu0 0.0
    %5078 = vmatprep.subr.mxu0 0.0
    %5079 = vmatpush2.msra.mxu0 0.0
    %5080 = vmatprep.subr.mxu0 0.0
    %5081 = vmatpush2.msra.mxu0 0.0
    %5082 = vmatprep.subr.mxu0 0.0
    %5083 = vmatpush2.msra.mxu0 0.0
    %5084 = vmatprep.subr.mxu0 0.0
    %5085 = vmatpush2.msra.mxu0 0.0
    %5086 = vmatprep.subr.mxu0 0.0
    %5087 = vmatpush2.msra.mxu0 0.0
    %5088 = vmatprep.subr.mxu0 0.0
    %5089 = vmatpush2.msra.mxu0 0.0
    %5090 = vmatprep.mubr.f32.mxu0 0.0
    %5091 = vmatmul.mubr.f32.gmra.mxu0 %v5024
    %v5092 = vpop.f32.mrf.mxu0
    %v5093 = vadd.f32 0.0, %v5092
    %v5094 = vpop.f32.mrf.mxu0
    %5095 = vdwg.mxu0
    %5096 = vrot.lane.b32.xlu0 %v2755, 88
    %v5097 = vpop.permute.xlu0 %5096
    %v5100 = vsel %vm2760, %v5016, 0
    %5102 = vmatprep.subr.mxu0 0.0
    %5103 = vmatpush1.msra.mxu0 0.0
    %5104 = vmatprep.subr.mxu0 0.0
    %5105 = vmatpush1.msra.mxu0 0.0
    %5106 = vmatprep.subr.mxu0 0.0
    %5107 = vmatpush1.msra.mxu0 0.0
    %5108 = vmatprep.subr.mxu0 0.0
    %5109 = vmatpush1.msra.mxu0 0.0
    %5110 = vmatprep.subr.mxu0 0.0
    %5111 = vmatpush1.msra.mxu0 0.0
    %5112 = vmatprep.subr.mxu0 0.0
    %5113 = vmatpush1.msra.mxu0 0.0
    %5114 = vmatprep.subr.mxu0 0.0
    %5115 = vmatpush1.msra.mxu0 0.0
    %5116 = vmatprep.subr.mxu0 0.0
    %5117 = vmatpush1.msra.mxu0 0.0
    %5118 = vmatprep.subr.mxu0 0.0
    %5119 = vmatpush1.msra.mxu0 0.0
    %5120 = vmatprep.subr.mxu0 0.0
    %5121 = vmatpush1.msra.mxu0 0.0
    %5122 = vmatprep.subr.mxu0 0.0
    %5123 = vmatpush1.msra.mxu0 0.0
    %5124 = vmatprep.subr.mxu0 0.0
    %5125 = vmatpush1.msra.mxu0 0.0
    %5126 = vmatprep.subr.mxu0 0.0
    %5127 = vmatpush1.msra.mxu0 0.0
    %5128 = vmatprep.subr.mxu0 0.0
    %5129 = vmatpush1.msra.mxu0 0.0
    %5130 = vmatprep.subr.mxu0 0.0
    %5131 = vmatpush1.msra.mxu0 0.0
    %5132 = vmatprep.subr.mxu0 0.0
    %5133 = vmatpush1.msra.mxu0 %v5097
    %5134 = vmatprep.subr.mxu0 0.0
    %5135 = vmatpush2.msra.mxu0 0.0
    %5136 = vmatprep.subr.mxu0 0.0
    %5137 = vmatpush2.msra.mxu0 0.0
    %5138 = vmatprep.subr.mxu0 0.0
    %5139 = vmatpush2.msra.mxu0 0.0
    %5140 = vmatprep.subr.mxu0 0.0
    %5141 = vmatpush2.msra.mxu0 0.0
    %5142 = vmatprep.subr.mxu0 0.0
    %5143 = vmatpush2.msra.mxu0 0.0
    %5144 = vmatprep.subr.mxu0 0.0
    %5145 = vmatpush2.msra.mxu0 0.0
    %5146 = vmatprep.subr.mxu0 0.0
    %5147 = vmatpush2.msra.mxu0 0.0
    %5148 = vmatprep.subr.mxu0 0.0
    %5149 = vmatpush2.msra.mxu0 0.0
    %5150 = vmatprep.subr.mxu0 0.0
    %5151 = vmatpush2.msra.mxu0 0.0
    %5152 = vmatprep.subr.mxu0 0.0
    %5153 = vmatpush2.msra.mxu0 0.0
    %5154 = vmatprep.subr.mxu0 0.0
    %5155 = vmatpush2.msra.mxu0 0.0
    %5156 = vmatprep.subr.mxu0 0.0
    %5157 = vmatpush2.msra.mxu0 0.0
    %5158 = vmatprep.subr.mxu0 0.0
    %5159 = vmatpush2.msra.mxu0 0.0
    %5160 = vmatprep.subr.mxu0 0.0
    %5161 = vmatpush2.msra.mxu0 0.0
    %5162 = vmatprep.subr.mxu0 0.0
    %5163 = vmatpush2.msra.mxu0 0.0
    %5164 = vmatprep.subr.mxu0 0.0
    %5165 = vmatpush2.msra.mxu0 0.0
    %5166 = vmatprep.mubr.f32.mxu0 0.0
    %5167 = vmatmul.mubr.f32.gmra.mxu0 %v5100
    %v5168 = vpop.f32.mrf.mxu0
    %v5169 = vadd.f32 0.0, %v5168
    %v5170 = vpop.f32.mrf.mxu0
    %5171 = vdwg.mxu0
    %v5173 = vsel %vm2760, %v5093, 0
    %v5176 = vsel %vm2760, %v5169, 0
    %5178 = vmatprep.subr.mxu0 0.0
    %5179 = vmatpush1.msra.mxu0 0.0
    %5180 = vmatprep.subr.mxu0 0.0
    %5181 = vmatpush1.msra.mxu0 0.0
    %5182 = vmatprep.subr.mxu0 0.0
    %5183 = vmatpush1.msra.mxu0 0.0
    %5184 = vmatprep.subr.mxu0 0.0
    %5185 = vmatpush1.msra.mxu0 0.0
    %5186 = vmatprep.subr.mxu0 0.0
    %5187 = vmatpush1.msra.mxu0 0.0
    %5188 = vmatprep.subr.mxu0 0.0
    %5189 = vmatpush1.msra.mxu0 0.0
    %5190 = vmatprep.subr.mxu0 0.0
    %5191 = vmatpush1.msra.mxu0 0.0
    %5192 = vmatprep.subr.mxu0 0.0
    %5193 = vmatpush1.msra.mxu0 0.0
    %5194 = vmatprep.subr.mxu0 0.0
    %5195 = vmatpush1.msra.mxu0 0.0
    %5196 = vmatprep.subr.mxu0 0.0
    %5197 = vmatpush1.msra.mxu0 0.0
    %5198 = vmatprep.subr.mxu0 0.0
    %5199 = vmatpush1.msra.mxu0 0.0
    %5200 = vmatprep.subr.mxu0 0.0
    %5201 = vmatpush1.msra.mxu0 0.0
    %5202 = vmatprep.subr.mxu0 0.0
    %5203 = vmatpush1.msra.mxu0 0.0
    %5204 = vmatprep.subr.mxu0 0.0
    %5205 = vmatpush1.msra.mxu0 0.0
    %5206 = vmatprep.subr.mxu0 0.0
    %5207 = vmatpush1.msra.mxu0 0.0
    %5208 = vmatprep.subr.mxu0 0.0
    %5209 = vmatpush1.msra.mxu0 %v2655
    %5210 = vmatprep.subr.mxu0 0.0
    %5211 = vmatpush2.msra.mxu0 0.0
    %5212 = vmatprep.subr.mxu0 0.0
    %5213 = vmatpush2.msra.mxu0 0.0
    %5214 = vmatprep.subr.mxu0 0.0
    %5215 = vmatpush2.msra.mxu0 0.0
    %5216 = vmatprep.subr.mxu0 0.0
    %5217 = vmatpush2.msra.mxu0 0.0
    %5218 = vmatprep.subr.mxu0 0.0
    %5219 = vmatpush2.msra.mxu0 0.0
    %5220 = vmatprep.subr.mxu0 0.0
    %5221 = vmatpush2.msra.mxu0 0.0
    %5222 = vmatprep.subr.mxu0 0.0
    %5223 = vmatpush2.msra.mxu0 0.0
    %5224 = vmatprep.subr.mxu0 0.0
    %5225 = vmatpush2.msra.mxu0 0.0
    %5226 = vmatprep.subr.mxu0 0.0
    %5227 = vmatpush2.msra.mxu0 0.0
    %5228 = vmatprep.subr.mxu0 0.0
    %5229 = vmatpush2.msra.mxu0 0.0
    %5230 = vmatprep.subr.mxu0 0.0
    %5231 = vmatpush2.msra.mxu0 0.0
    %5232 = vmatprep.subr.mxu0 0.0
    %5233 = vmatpush2.msra.mxu0 0.0
    %5234 = vmatprep.subr.mxu0 0.0
    %5235 = vmatpush2.msra.mxu0 0.0
    %5236 = vmatprep.subr.mxu0 0.0
    %5237 = vmatpush2.msra.mxu0 0.0
    %5238 = vmatprep.subr.mxu0 0.0
    %5239 = vmatpush2.msra.mxu0 0.0
    %5240 = vmatprep.subr.mxu0 0.0
    %5241 = vmatpush2.msra.mxu0 0.0
    %5242 = vmatprep.mubr.f32.mxu0 0.0
    %5243 = vmatmul.mubr.f32.gmra.mxu0 %v5173
    %v5244 = vpop.f32.mrf.mxu0
    %v5245 = vadd.f32 0.0, %v5244
    %v5246 = vpop.f32.mrf.mxu0
    %5247 = vmatprep.mubr.f32.mxu0 0.0
    %5248 = vmatmul.mubr.f32.gmra.mxu0 %v5176
    %v5249 = vpop.f32.mrf.mxu0
    %v5250 = vadd.f32 0.0, %v5249
    %v5251 = vpop.f32.mrf.mxu0
    %5252 = vdwg.mxu0
    %v5253 = vadd.f32 %v4835, %v5245
    %v5254 = vadd.f32 %v4836, %v5250
    %5255 = vrot.lane.b32.xlu0 %v2747, 80
    %v5256 = vpop.permute.xlu0 %5255
    %5257 = vrot.lane.b32.xlu0 %v2747, 16
    %v5258 = vpop.permute.xlu0 %5257
    %v5259 = vsel %vm2760, %v5256, 0
    %v5261 = vsel %vm2760, %v5258, 0
    %5263 = vmatprep.subr.mxu0 0.0
    %5264 = vmatpush1.xpose.msra.mxu0 0.0
    %5265 = vmatprep.subr.mxu0 0.0
    %5266 = vmatpush1.xpose.msra.mxu0 0.0
    %5267 = vmatprep.subr.mxu0 0.0
    %5268 = vmatpush1.xpose.msra.mxu0 0.0
    %5269 = vmatprep.subr.mxu0 0.0
    %5270 = vmatpush1.xpose.msra.mxu0 0.0
    %5271 = vmatprep.subr.mxu0 0.0
    %5272 = vmatpush1.xpose.msra.mxu0 0.0
    %5273 = vmatprep.subr.mxu0 0.0
    %5274 = vmatpush1.xpose.msra.mxu0 0.0
    %5275 = vmatprep.subr.mxu0 0.0
    %5276 = vmatpush1.xpose.msra.mxu0 0.0
    %5277 = vmatprep.subr.mxu0 0.0
    %5278 = vmatpush1.xpose.msra.mxu0 0.0
    %5279 = vmatprep.subr.mxu0 0.0
    %5280 = vmatpush1.xpose.msra.mxu0 0.0
    %5281 = vmatprep.subr.mxu0 0.0
    %5282 = vmatpush1.xpose.msra.mxu0 0.0
    %5283 = vmatprep.subr.mxu0 0.0
    %5284 = vmatpush1.xpose.msra.mxu0 0.0
    %5285 = vmatprep.subr.mxu0 0.0
    %5286 = vmatpush1.xpose.msra.mxu0 0.0
    %5287 = vmatprep.subr.mxu0 0.0
    %5288 = vmatpush1.xpose.msra.mxu0 0.0
    %5289 = vmatprep.subr.mxu0 0.0
    %5290 = vmatpush1.xpose.msra.mxu0 0.0
    %5291 = vmatprep.subr.mxu0 0.0
    %5292 = vmatpush1.xpose.msra.mxu0 0.0
    %5293 = vmatprep.subr.mxu0 0.0
    %5294 = vmatpush1.xpose.msra.mxu0 %v5261
    %5295 = vmatprep.subr.mxu0 0.0
    %5296 = vmatpush2.xpose.msra.mxu0 0.0
    %5297 = vmatprep.subr.mxu0 0.0
    %5298 = vmatpush2.xpose.msra.mxu0 0.0
    %5299 = vmatprep.subr.mxu0 0.0
    %5300 = vmatpush2.xpose.msra.mxu0 0.0
    %5301 = vmatprep.subr.mxu0 0.0
    %5302 = vmatpush2.xpose.msra.mxu0 0.0
    %5303 = vmatprep.subr.mxu0 0.0
    %5304 = vmatpush2.xpose.msra.mxu0 0.0
    %5305 = vmatprep.subr.mxu0 0.0
    %5306 = vmatpush2.xpose.msra.mxu0 0.0
    %5307 = vmatprep.subr.mxu0 0.0
    %5308 = vmatpush2.xpose.msra.mxu0 0.0
    %5309 = vmatprep.subr.mxu0 0.0
    %5310 = vmatpush2.xpose.msra.mxu0 0.0
    %5311 = vmatprep.subr.mxu0 0.0
    %5312 = vmatpush2.xpose.msra.mxu0 0.0
    %5313 = vmatprep.subr.mxu0 0.0
    %5314 = vmatpush2.xpose.msra.mxu0 0.0
    %5315 = vmatprep.subr.mxu0 0.0
    %5316 = vmatpush2.xpose.msra.mxu0 0.0
    %5317 = vmatprep.subr.mxu0 0.0
    %5318 = vmatpush2.xpose.msra.mxu0 0.0
    %5319 = vmatprep.subr.mxu0 0.0
    %5320 = vmatpush2.xpose.msra.mxu0 0.0
    %5321 = vmatprep.subr.mxu0 0.0
    %5322 = vmatpush2.xpose.msra.mxu0 0.0
    %5323 = vmatprep.subr.mxu0 0.0
    %5324 = vmatpush2.xpose.msra.mxu0 0.0
    %5325 = vmatprep.subr.mxu0 0.0
    %5326 = vmatpush2.xpose.msra.mxu0 0.0
    %5327 = vmatprep.mubr.f32.mxu0 0.0
    %5328 = vmatmul.mubr.f32.gmra.mxu0 %v5259
    %v5329 = vpop.f32.mrf.mxu0
    %v5330 = vadd.f32 0.0, %v5329
    %v5331 = vpop.f32.mrf.mxu0
    %5332 = vdwg.mxu0
    %5333 = vrot.lane.b32.xlu0 %v2753, 80
    %v5334 = vpop.permute.xlu0 %5333
    %5335 = vrot.lane.b32.xlu0 %v2753, 16
    %v5336 = vpop.permute.xlu0 %5335
    %v5337 = vsel %vm2760, %v5334, 0
    %v5339 = vsel %vm2760, %v5336, 0
    %5341 = vmatprep.subr.mxu0 0.0
    %5342 = vmatpush1.xpose.msra.mxu0 0.0
    %5343 = vmatprep.subr.mxu0 0.0
    %5344 = vmatpush1.xpose.msra.mxu0 0.0
    %5345 = vmatprep.subr.mxu0 0.0
    %5346 = vmatpush1.xpose.msra.mxu0 0.0
    %5347 = vmatprep.subr.mxu0 0.0
    %5348 = vmatpush1.xpose.msra.mxu0 0.0
    %5349 = vmatprep.subr.mxu0 0.0
    %5350 = vmatpush1.xpose.msra.mxu0 0.0
    %5351 = vmatprep.subr.mxu0 0.0
    %5352 = vmatpush1.xpose.msra.mxu0 0.0
    %5353 = vmatprep.subr.mxu0 0.0
    %5354 = vmatpush1.xpose.msra.mxu0 0.0
    %5355 = vmatprep.subr.mxu0 0.0
    %5356 = vmatpush1.xpose.msra.mxu0 0.0
    %5357 = vmatprep.subr.mxu0 0.0
    %5358 = vmatpush1.xpose.msra.mxu0 0.0
    %5359 = vmatprep.subr.mxu0 0.0
    %5360 = vmatpush1.xpose.msra.mxu0 0.0
    %5361 = vmatprep.subr.mxu0 0.0
    %5362 = vmatpush1.xpose.msra.mxu0 0.0
    %5363 = vmatprep.subr.mxu0 0.0
    %5364 = vmatpush1.xpose.msra.mxu0 0.0
    %5365 = vmatprep.subr.mxu0 0.0
    %5366 = vmatpush1.xpose.msra.mxu0 0.0
    %5367 = vmatprep.subr.mxu0 0.0
    %5368 = vmatpush1.xpose.msra.mxu0 0.0
    %5369 = vmatprep.subr.mxu0 0.0
    %5370 = vmatpush1.xpose.msra.mxu0 0.0
    %5371 = vmatprep.subr.mxu0 0.0
    %5372 = vmatpush1.xpose.msra.mxu0 %v5339
    %5373 = vmatprep.subr.mxu0 0.0
    %5374 = vmatpush2.xpose.msra.mxu0 0.0
    %5375 = vmatprep.subr.mxu0 0.0
    %5376 = vmatpush2.xpose.msra.mxu0 0.0
    %5377 = vmatprep.subr.mxu0 0.0
    %5378 = vmatpush2.xpose.msra.mxu0 0.0
    %5379 = vmatprep.subr.mxu0 0.0
    %5380 = vmatpush2.xpose.msra.mxu0 0.0
    %5381 = vmatprep.subr.mxu0 0.0
    %5382 = vmatpush2.xpose.msra.mxu0 0.0
    %5383 = vmatprep.subr.mxu0 0.0
    %5384 = vmatpush2.xpose.msra.mxu0 0.0
    %5385 = vmatprep.subr.mxu0 0.0
    %5386 = vmatpush2.xpose.msra.mxu0 0.0
    %5387 = vmatprep.subr.mxu0 0.0
    %5388 = vmatpush2.xpose.msra.mxu0 0.0
    %5389 = vmatprep.subr.mxu0 0.0
    %5390 = vmatpush2.xpose.msra.mxu0 0.0
    %5391 = vmatprep.subr.mxu0 0.0
    %5392 = vmatpush2.xpose.msra.mxu0 0.0
    %5393 = vmatprep.subr.mxu0 0.0
    %5394 = vmatpush2.xpose.msra.mxu0 0.0
    %5395 = vmatprep.subr.mxu0 0.0
    %5396 = vmatpush2.xpose.msra.mxu0 0.0
    %5397 = vmatprep.subr.mxu0 0.0
    %5398 = vmatpush2.xpose.msra.mxu0 0.0
    %5399 = vmatprep.subr.mxu0 0.0
    %5400 = vmatpush2.xpose.msra.mxu0 0.0
    %5401 = vmatprep.subr.mxu0 0.0
    %5402 = vmatpush2.xpose.msra.mxu0 0.0
    %5403 = vmatprep.subr.mxu0 0.0
    %5404 = vmatpush2.xpose.msra.mxu0 0.0
    %5405 = vmatprep.mubr.f32.mxu0 0.0
    %5406 = vmatmul.mubr.f32.gmra.mxu0 %v5337
    %v5407 = vpop.f32.mrf.mxu0
    %v5408 = vadd.f32 0.0, %v5407
    %v5409 = vpop.f32.mrf.mxu0
    %5410 = vdwg.mxu0
    %v5411 = vmul.f32 %v5330, 0.125
    %v5412 = vmul.f32 %v5408, 0.125
    %v5413 = vsel %vm2760, %v5411, -inf
    %5414 = vmax.xlane.f32.xlu0 %v5413
    %v5415 = vpop.xlane.xlu0 %5414
    %v5416 = vsel %vm2760, %v5412, -inf
    %5417 = vmax.xlane.f32.xlu0 %v5416
    %v5418 = vpop.xlane.xlu0 %5417
    %v5419 = vsub.f32 %v5411, %v5415
    %v5420 = vsub.f32 %v5412, %v5418
    %v5421 = vmul.f32 %v5419, 1.442695
    %v5422 = vpow.pop %v5421
    %v5423 = vmul.f32 %v5420, 1.442695
    %v5424 = vpow.pop %v5423
    %v5425 = vsel %vm2760, %v5422, 0.0
    %5426 = vadd.xlane.f32.xlu0 %v5425
    %v5427 = vpop.xlane.xlu0 %5426
    %v5428 = vsel %vm2760, %v5424, 0.0
    %5429 = vadd.xlane.f32.xlu0 %v5428
    %v5430 = vpop.xlane.xlu0 %5429
    %v5431 = vrcp.pop %v5427
    %v5432 = vmul.f32 %v5422, %v5431
    %v5433 = vrcp.pop %v5430
    %v5434 = vmul.f32 %v5424, %v5433
    %s5435 = scalar_lea.vmem [#allocation4], 48
    %5436 = vst.msk [vmem:[%s5435] sm:$0xff] %vm2760, %v5432
    %5437 = vst.msk [vmem:[%s5435 + $0x40] sm:$0xff] %vm2760, %v5434
    %5438 = vrot.lane.b32.xlu0 %v2749, 80
    %v5439 = vpop.permute.xlu0 %5438
    %v5442 = vsel %vm2760, %v5432, 0
    %5444 = vmatprep.subr.mxu0 0.0
    %5445 = vmatpush1.msra.mxu0 0.0
    %5446 = vmatprep.subr.mxu0 0.0
    %5447 = vmatpush1.msra.mxu0 0.0
    %5448 = vmatprep.subr.mxu0 0.0
    %5449 = vmatpush1.msra.mxu0 0.0
    %5450 = vmatprep.subr.mxu0 0.0
    %5451 = vmatpush1.msra.mxu0 0.0
    %5452 = vmatprep.subr.mxu0 0.0
    %5453 = vmatpush1.msra.mxu0 0.0
    %5454 = vmatprep.subr.mxu0 0.0
    %5455 = vmatpush1.msra.mxu0 0.0
    %5456 = vmatprep.subr.mxu0 0.0
    %5457 = vmatpush1.msra.mxu0 0.0
    %5458 = vmatprep.subr.mxu0 0.0
    %5459 = vmatpush1.msra.mxu0 0.0
    %5460 = vmatprep.subr.mxu0 0.0
    %5461 = vmatpush1.msra.mxu0 0.0
    %5462 = vmatprep.subr.mxu0 0.0
    %5463 = vmatpush1.msra.mxu0 0.0
    %5464 = vmatprep.subr.mxu0 0.0
    %5465 = vmatpush1.msra.mxu0 0.0
    %5466 = vmatprep.subr.mxu0 0.0
    %5467 = vmatpush1.msra.mxu0 0.0
    %5468 = vmatprep.subr.mxu0 0.0
    %5469 = vmatpush1.msra.mxu0 0.0
    %5470 = vmatprep.subr.mxu0 0.0
    %5471 = vmatpush1.msra.mxu0 0.0
    %5472 = vmatprep.subr.mxu0 0.0
    %5473 = vmatpush1.msra.mxu0 0.0
    %5474 = vmatprep.subr.mxu0 0.0
    %5475 = vmatpush1.msra.mxu0 %v5439
    %5476 = vmatprep.subr.mxu0 0.0
    %5477 = vmatpush2.msra.mxu0 0.0
    %5478 = vmatprep.subr.mxu0 0.0
    %5479 = vmatpush2.msra.mxu0 0.0
    %5480 = vmatprep.subr.mxu0 0.0
    %5481 = vmatpush2.msra.mxu0 0.0
    %5482 = vmatprep.subr.mxu0 0.0
    %5483 = vmatpush2.msra.mxu0 0.0
    %5484 = vmatprep.subr.mxu0 0.0
    %5485 = vmatpush2.msra.mxu0 0.0
    %5486 = vmatprep.subr.mxu0 0.0
    %5487 = vmatpush2.msra.mxu0 0.0
    %5488 = vmatprep.subr.mxu0 0.0
    %5489 = vmatpush2.msra.mxu0 0.0
    %5490 = vmatprep.subr.mxu0 0.0
    %5491 = vmatpush2.msra.mxu0 0.0
    %5492 = vmatprep.subr.mxu0 0.0
    %5493 = vmatpush2.msra.mxu0 0.0
    %5494 = vmatprep.subr.mxu0 0.0
    %5495 = vmatpush2.msra.mxu0 0.0
    %5496 = vmatprep.subr.mxu0 0.0
    %5497 = vmatpush2.msra.mxu0 0.0
    %5498 = vmatprep.subr.mxu0 0.0
    %5499 = vmatpush2.msra.mxu0 0.0
    %5500 = vmatprep.subr.mxu0 0.0
    %5501 = vmatpush2.msra.mxu0 0.0
    %5502 = vmatprep.subr.mxu0 0.0
    %5503 = vmatpush2.msra.mxu0 0.0
    %5504 = vmatprep.subr.mxu0 0.0
    %5505 = vmatpush2.msra.mxu0 0.0
    %5506 = vmatprep.subr.mxu0 0.0
    %5507 = vmatpush2.msra.mxu0 0.0
    %5508 = vmatprep.mubr.f32.mxu0 0.0
    %5509 = vmatmul.mubr.f32.gmra.mxu0 %v5442
    %v5510 = vpop.f32.mrf.mxu0
    %v5511 = vadd.f32 0.0, %v5510
    %v5512 = vpop.f32.mrf.mxu0
    %5513 = vdwg.mxu0
    %5514 = vrot.lane.b32.xlu0 %v2755, 80
    %v5515 = vpop.permute.xlu0 %5514
    %v5518 = vsel %vm2760, %v5434, 0
    %5520 = vmatprep.subr.mxu0 0.0
    %5521 = vmatpush1.msra.mxu0 0.0
    %5522 = vmatprep.subr.mxu0 0.0
    %5523 = vmatpush1.msra.mxu0 0.0
    %5524 = vmatprep.subr.mxu0 0.0
    %5525 = vmatpush1.msra.mxu0 0.0
    %5526 = vmatprep.subr.mxu0 0.0
    %5527 = vmatpush1.msra.mxu0 0.0
    %5528 = vmatprep.subr.mxu0 0.0
    %5529 = vmatpush1.msra.mxu0 0.0
    %5530 = vmatprep.subr.mxu0 0.0
    %5531 = vmatpush1.msra.mxu0 0.0
    %5532 = vmatprep.subr.mxu0 0.0
    %5533 = vmatpush1.msra.mxu0 0.0
    %5534 = vmatprep.subr.mxu0 0.0
    %5535 = vmatpush1.msra.mxu0 0.0
    %5536 = vmatprep.subr.mxu0 0.0
    %5537 = vmatpush1.msra.mxu0 0.0
    %5538 = vmatprep.subr.mxu0 0.0
    %5539 = vmatpush1.msra.mxu0 0.0
    %5540 = vmatprep.subr.mxu0 0.0
    %5541 = vmatpush1.msra.mxu0 0.0
    %5542 = vmatprep.subr.mxu0 0.0
    %5543 = vmatpush1.msra.mxu0 0.0
    %5544 = vmatprep.subr.mxu0 0.0
    %5545 = vmatpush1.msra.mxu0 0.0
    %5546 = vmatprep.subr.mxu0 0.0
    %5547 = vmatpush1.msra.mxu0 0.0
    %5548 = vmatprep.subr.mxu0 0.0
    %5549 = vmatpush1.msra.mxu0 0.0
    %5550 = vmatprep.subr.mxu0 0.0
    %5551 = vmatpush1.msra.mxu0 %v5515
    %5552 = vmatprep.subr.mxu0 0.0
    %5553 = vmatpush2.msra.mxu0 0.0
    %5554 = vmatprep.subr.mxu0 0.0
    %5555 = vmatpush2.msra.mxu0 0.0
    %5556 = vmatprep.subr.mxu0 0.0
    %5557 = vmatpush2.msra.mxu0 0.0
    %5558 = vmatprep.subr.mxu0 0.0
    %5559 = vmatpush2.msra.mxu0 0.0
    %5560 = vmatprep.subr.mxu0 0.0
    %5561 = vmatpush2.msra.mxu0 0.0
    %5562 = vmatprep.subr.mxu0 0.0
    %5563 = vmatpush2.msra.mxu0 0.0
    %5564 = vmatprep.subr.mxu0 0.0
    %5565 = vmatpush2.msra.mxu0 0.0
    %5566 = vmatprep.subr.mxu0 0.0
    %5567 = vmatpush2.msra.mxu0 0.0
    %5568 = vmatprep.subr.mxu0 0.0
    %5569 = vmatpush2.msra.mxu0 0.0
    %5570 = vmatprep.subr.mxu0 0.0
    %5571 = vmatpush2.msra.mxu0 0.0
    %5572 = vmatprep.subr.mxu0 0.0
    %5573 = vmatpush2.msra.mxu0 0.0
    %5574 = vmatprep.subr.mxu0 0.0
    %5575 = vmatpush2.msra.mxu0 0.0
    %5576 = vmatprep.subr.mxu0 0.0
    %5577 = vmatpush2.msra.mxu0 0.0
    %5578 = vmatprep.subr.mxu0 0.0
    %5579 = vmatpush2.msra.mxu0 0.0
    %5580 = vmatprep.subr.mxu0 0.0
    %5581 = vmatpush2.msra.mxu0 0.0
    %5582 = vmatprep.subr.mxu0 0.0
    %5583 = vmatpush2.msra.mxu0 0.0
    %5584 = vmatprep.mubr.f32.mxu0 0.0
    %5585 = vmatmul.mubr.f32.gmra.mxu0 %v5518
    %v5586 = vpop.f32.mrf.mxu0
    %v5587 = vadd.f32 0.0, %v5586
    %v5588 = vpop.f32.mrf.mxu0
    %5589 = vdwg.mxu0
    %v5591 = vsel %vm2760, %v5511, 0
    %v5594 = vsel %vm2760, %v5587, 0
    %5596 = vmatprep.subr.mxu0 0.0
    %5597 = vmatpush1.msra.mxu0 0.0
    %5598 = vmatprep.subr.mxu0 0.0
    %5599 = vmatpush1.msra.mxu0 0.0
    %5600 = vmatprep.subr.mxu0 0.0
    %5601 = vmatpush1.msra.mxu0 0.0
    %5602 = vmatprep.subr.mxu0 0.0
    %5603 = vmatpush1.msra.mxu0 0.0
    %5604 = vmatprep.subr.mxu0 0.0
    %5605 = vmatpush1.msra.mxu0 0.0
    %5606 = vmatprep.subr.mxu0 0.0
    %5607 = vmatpush1.msra.mxu0 0.0
    %5608 = vmatprep.subr.mxu0 0.0
    %5609 = vmatpush1.msra.mxu0 0.0
    %5610 = vmatprep.subr.mxu0 0.0
    %5611 = vmatpush1.msra.mxu0 0.0
    %5612 = vmatprep.subr.mxu0 0.0
    %5613 = vmatpush1.msra.mxu0 0.0
    %5614 = vmatprep.subr.mxu0 0.0
    %5615 = vmatpush1.msra.mxu0 0.0
    %5616 = vmatprep.subr.mxu0 0.0
    %5617 = vmatpush1.msra.mxu0 0.0
    %5618 = vmatprep.subr.mxu0 0.0
    %5619 = vmatpush1.msra.mxu0 0.0
    %5620 = vmatprep.subr.mxu0 0.0
    %5621 = vmatpush1.msra.mxu0 0.0
    %5622 = vmatprep.subr.mxu0 0.0
    %5623 = vmatpush1.msra.mxu0 0.0
    %5624 = vmatprep.subr.mxu0 0.0
    %5625 = vmatpush1.msra.mxu0 0.0
    %5626 = vmatprep.subr.mxu0 0.0
    %5627 = vmatpush1.msra.mxu0 %v2656
    %5628 = vmatprep.subr.mxu0 0.0
    %5629 = vmatpush2.msra.mxu0 0.0
    %5630 = vmatprep.subr.mxu0 0.0
    %5631 = vmatpush2.msra.mxu0 0.0
    %5632 = vmatprep.subr.mxu0 0.0
    %5633 = vmatpush2.msra.mxu0 0.0
    %5634 = vmatprep.subr.mxu0 0.0
    %5635 = vmatpush2.msra.mxu0 0.0
    %5636 = vmatprep.subr.mxu0 0.0
    %5637 = vmatpush2.msra.mxu0 0.0
    %5638 = vmatprep.subr.mxu0 0.0
    %5639 = vmatpush2.msra.mxu0 0.0
    %5640 = vmatprep.subr.mxu0 0.0
    %5641 = vmatpush2.msra.mxu0 0.0
    %5642 = vmatprep.subr.mxu0 0.0
    %5643 = vmatpush2.msra.mxu0 0.0
    %5644 = vmatprep.subr.mxu0 0.0
    %5645 = vmatpush2.msra.mxu0 0.0
    %5646 = vmatprep.subr.mxu0 0.0
    %5647 = vmatpush2.msra.mxu0 0.0
    %5648 = vmatprep.subr.mxu0 0.0
    %5649 = vmatpush2.msra.mxu0 0.0
    %5650 = vmatprep.subr.mxu0 0.0
    %5651 = vmatpush2.msra.mxu0 0.0
    %5652 = vmatprep.subr.mxu0 0.0
    %5653 = vmatpush2.msra.mxu0 0.0
    %5654 = vmatprep.subr.mxu0 0.0
    %5655 = vmatpush2.msra.mxu0 0.0
    %5656 = vmatprep.subr.mxu0 0.0
    %5657 = vmatpush2.msra.mxu0 0.0
    %5658 = vmatprep.subr.mxu0 0.0
    %5659 = vmatpush2.msra.mxu0 0.0
    %5660 = vmatprep.mubr.f32.mxu0 0.0
    %5661 = vmatmul.mubr.f32.gmra.mxu0 %v5591
    %v5662 = vpop.f32.mrf.mxu0
    %v5663 = vadd.f32 0.0, %v5662
    %v5664 = vpop.f32.mrf.mxu0
    %5665 = vmatprep.mubr.f32.mxu0 0.0
    %5666 = vmatmul.mubr.f32.gmra.mxu0 %v5594
    %v5667 = vpop.f32.mrf.mxu0
    %v5668 = vadd.f32 0.0, %v5667
    %v5669 = vpop.f32.mrf.mxu0
    %5670 = vdwg.mxu0
    %v5671 = vadd.f32 %v5253, %v5663
    %v5672 = vadd.f32 %v5254, %v5668
    %5673 = vrot.lane.b32.xlu0 %v2747, 72
    %v5674 = vpop.permute.xlu0 %5673
    %5675 = vrot.lane.b32.xlu0 %v2747, 8
    %v5676 = vpop.permute.xlu0 %5675
    %v5677 = vsel %vm2760, %v5674, 0
    %v5679 = vsel %vm2760, %v5676, 0
    %5681 = vmatprep.subr.mxu0 0.0
    %5682 = vmatpush1.xpose.msra.mxu0 0.0
    %5683 = vmatprep.subr.mxu0 0.0
    %5684 = vmatpush1.xpose.msra.mxu0 0.0
    %5685 = vmatprep.subr.mxu0 0.0
    %5686 = vmatpush1.xpose.msra.mxu0 0.0
    %5687 = vmatprep.subr.mxu0 0.0
    %5688 = vmatpush1.xpose.msra.mxu0 0.0
    %5689 = vmatprep.subr.mxu0 0.0
    %5690 = vmatpush1.xpose.msra.mxu0 0.0
    %5691 = vmatprep.subr.mxu0 0.0
    %5692 = vmatpush1.xpose.msra.mxu0 0.0
    %5693 = vmatprep.subr.mxu0 0.0
    %5694 = vmatpush1.xpose.msra.mxu0 0.0
    %5695 = vmatprep.subr.mxu0 0.0
    %5696 = vmatpush1.xpose.msra.mxu0 0.0
    %5697 = vmatprep.subr.mxu0 0.0
    %5698 = vmatpush1.xpose.msra.mxu0 0.0
    %5699 = vmatprep.subr.mxu0 0.0
    %5700 = vmatpush1.xpose.msra.mxu0 0.0
    %5701 = vmatprep.subr.mxu0 0.0
    %5702 = vmatpush1.xpose.msra.mxu0 0.0
    %5703 = vmatprep.subr.mxu0 0.0
    %5704 = vmatpush1.xpose.msra.mxu0 0.0
    %5705 = vmatprep.subr.mxu0 0.0
    %5706 = vmatpush1.xpose.msra.mxu0 0.0
    %5707 = vmatprep.subr.mxu0 0.0
    %5708 = vmatpush1.xpose.msra.mxu0 0.0
    %5709 = vmatprep.subr.mxu0 0.0
    %5710 = vmatpush1.xpose.msra.mxu0 0.0
    %5711 = vmatprep.subr.mxu0 0.0
    %5712 = vmatpush1.xpose.msra.mxu0 %v5679
    %5713 = vmatprep.subr.mxu0 0.0
    %5714 = vmatpush2.xpose.msra.mxu0 0.0
    %5715 = vmatprep.subr.mxu0 0.0
    %5716 = vmatpush2.xpose.msra.mxu0 0.0
    %5717 = vmatprep.subr.mxu0 0.0
    %5718 = vmatpush2.xpose.msra.mxu0 0.0
    %5719 = vmatprep.subr.mxu0 0.0
    %5720 = vmatpush2.xpose.msra.mxu0 0.0
    %5721 = vmatprep.subr.mxu0 0.0
    %5722 = vmatpush2.xpose.msra.mxu0 0.0
    %5723 = vmatprep.subr.mxu0 0.0
    %5724 = vmatpush2.xpose.msra.mxu0 0.0
    %5725 = vmatprep.subr.mxu0 0.0
    %5726 = vmatpush2.xpose.msra.mxu0 0.0
    %5727 = vmatprep.subr.mxu0 0.0
    %5728 = vmatpush2.xpose.msra.mxu0 0.0
    %5729 = vmatprep.subr.mxu0 0.0
    %5730 = vmatpush2.xpose.msra.mxu0 0.0
    %5731 = vmatprep.subr.mxu0 0.0
    %5732 = vmatpush2.xpose.msra.mxu0 0.0
    %5733 = vmatprep.subr.mxu0 0.0
    %5734 = vmatpush2.xpose.msra.mxu0 0.0
    %5735 = vmatprep.subr.mxu0 0.0
    %5736 = vmatpush2.xpose.msra.mxu0 0.0
    %5737 = vmatprep.subr.mxu0 0.0
    %5738 = vmatpush2.xpose.msra.mxu0 0.0
    %5739 = vmatprep.subr.mxu0 0.0
    %5740 = vmatpush2.xpose.msra.mxu0 0.0
    %5741 = vmatprep.subr.mxu0 0.0
    %5742 = vmatpush2.xpose.msra.mxu0 0.0
    %5743 = vmatprep.subr.mxu0 0.0
    %5744 = vmatpush2.xpose.msra.mxu0 0.0
    %5745 = vmatprep.mubr.f32.mxu0 0.0
    %5746 = vmatmul.mubr.f32.gmra.mxu0 %v5677
    %v5747 = vpop.f32.mrf.mxu0
    %v5748 = vadd.f32 0.0, %v5747
    %v5749 = vpop.f32.mrf.mxu0
    %5750 = vdwg.mxu0
    %5751 = vrot.lane.b32.xlu0 %v2753, 72
    %v5752 = vpop.permute.xlu0 %5751
    %5753 = vrot.lane.b32.xlu0 %v2753, 8
    %v5754 = vpop.permute.xlu0 %5753
    %v5755 = vsel %vm2760, %v5752, 0
    %v5757 = vsel %vm2760, %v5754, 0
    %5759 = vmatprep.subr.mxu0 0.0
    %5760 = vmatpush1.xpose.msra.mxu0 0.0
    %5761 = vmatprep.subr.mxu0 0.0
    %5762 = vmatpush1.xpose.msra.mxu0 0.0
    %5763 = vmatprep.subr.mxu0 0.0
    %5764 = vmatpush1.xpose.msra.mxu0 0.0
    %5765 = vmatprep.subr.mxu0 0.0
    %5766 = vmatpush1.xpose.msra.mxu0 0.0
    %5767 = vmatprep.subr.mxu0 0.0
    %5768 = vmatpush1.xpose.msra.mxu0 0.0
    %5769 = vmatprep.subr.mxu0 0.0
    %5770 = vmatpush1.xpose.msra.mxu0 0.0
    %5771 = vmatprep.subr.mxu0 0.0
    %5772 = vmatpush1.xpose.msra.mxu0 0.0
    %5773 = vmatprep.subr.mxu0 0.0
    %5774 = vmatpush1.xpose.msra.mxu0 0.0
    %5775 = vmatprep.subr.mxu0 0.0
    %5776 = vmatpush1.xpose.msra.mxu0 0.0
    %5777 = vmatprep.subr.mxu0 0.0
    %5778 = vmatpush1.xpose.msra.mxu0 0.0
    %5779 = vmatprep.subr.mxu0 0.0
    %5780 = vmatpush1.xpose.msra.mxu0 0.0
    %5781 = vmatprep.subr.mxu0 0.0
    %5782 = vmatpush1.xpose.msra.mxu0 0.0
    %5783 = vmatprep.subr.mxu0 0.0
    %5784 = vmatpush1.xpose.msra.mxu0 0.0
    %5785 = vmatprep.subr.mxu0 0.0
    %5786 = vmatpush1.xpose.msra.mxu0 0.0
    %5787 = vmatprep.subr.mxu0 0.0
    %5788 = vmatpush1.xpose.msra.mxu0 0.0
    %5789 = vmatprep.subr.mxu0 0.0
    %5790 = vmatpush1.xpose.msra.mxu0 %v5757
    %5791 = vmatprep.subr.mxu0 0.0
    %5792 = vmatpush2.xpose.msra.mxu0 0.0
    %5793 = vmatprep.subr.mxu0 0.0
    %5794 = vmatpush2.xpose.msra.mxu0 0.0
    %5795 = vmatprep.subr.mxu0 0.0
    %5796 = vmatpush2.xpose.msra.mxu0 0.0
    %5797 = vmatprep.subr.mxu0 0.0
    %5798 = vmatpush2.xpose.msra.mxu0 0.0
    %5799 = vmatprep.subr.mxu0 0.0
    %5800 = vmatpush2.xpose.msra.mxu0 0.0
    %5801 = vmatprep.subr.mxu0 0.0
    %5802 = vmatpush2.xpose.msra.mxu0 0.0
    %5803 = vmatprep.subr.mxu0 0.0
    %5804 = vmatpush2.xpose.msra.mxu0 0.0
    %5805 = vmatprep.subr.mxu0 0.0
    %5806 = vmatpush2.xpose.msra.mxu0 0.0
    %5807 = vmatprep.subr.mxu0 0.0
    %5808 = vmatpush2.xpose.msra.mxu0 0.0
    %5809 = vmatprep.subr.mxu0 0.0
    %5810 = vmatpush2.xpose.msra.mxu0 0.0
    %5811 = vmatprep.subr.mxu0 0.0
    %5812 = vmatpush2.xpose.msra.mxu0 0.0
    %5813 = vmatprep.subr.mxu0 0.0
    %5814 = vmatpush2.xpose.msra.mxu0 0.0
    %5815 = vmatprep.subr.mxu0 0.0
    %5816 = vmatpush2.xpose.msra.mxu0 0.0
    %5817 = vmatprep.subr.mxu0 0.0
    %5818 = vmatpush2.xpose.msra.mxu0 0.0
    %5819 = vmatprep.subr.mxu0 0.0
    %5820 = vmatpush2.xpose.msra.mxu0 0.0
    %5821 = vmatprep.subr.mxu0 0.0
    %5822 = vmatpush2.xpose.msra.mxu0 0.0
    %5823 = vmatprep.mubr.f32.mxu0 0.0
    %5824 = vmatmul.mubr.f32.gmra.mxu0 %v5755
    %v5825 = vpop.f32.mrf.mxu0
    %v5826 = vadd.f32 0.0, %v5825
    %v5827 = vpop.f32.mrf.mxu0
    %5828 = vdwg.mxu0
    %v5829 = vmul.f32 %v5748, 0.125
    %v5830 = vmul.f32 %v5826, 0.125
    %v5831 = vsel %vm2760, %v5829, -inf
    %5832 = vmax.xlane.f32.xlu0 %v5831
    %v5833 = vpop.xlane.xlu0 %5832
    %v5834 = vsel %vm2760, %v5830, -inf
    %5835 = vmax.xlane.f32.xlu0 %v5834
    %v5836 = vpop.xlane.xlu0 %5835
    %v5837 = vsub.f32 %v5829, %v5833
    %v5838 = vsub.f32 %v5830, %v5836
    %v5839 = vmul.f32 %v5837, 1.442695
    %v5840 = vpow.pop %v5839
    %v5841 = vmul.f32 %v5838, 1.442695
    %v5842 = vpow.pop %v5841
    %v5843 = vsel %vm2760, %v5840, 0.0
    %5844 = vadd.xlane.f32.xlu0 %v5843
    %v5845 = vpop.xlane.xlu0 %5844
    %v5846 = vsel %vm2760, %v5842, 0.0
    %5847 = vadd.xlane.f32.xlu0 %v5846
    %v5848 = vpop.xlane.xlu0 %5847
    %v5849 = vrcp.pop %v5845
    %v5850 = vmul.f32 %v5840, %v5849
    %v5851 = vrcp.pop %v5848
    %v5852 = vmul.f32 %v5842, %v5851
    %s5853 = scalar_lea.vmem [#allocation4], 56
    %5854 = vst.msk [vmem:[%s5853] sm:$0xff] %vm2760, %v5850
    %5855 = vst.msk [vmem:[%s5853 + $0x40] sm:$0xff] %vm2760, %v5852
    %5856 = vrot.lane.b32.xlu0 %v2749, 72
    %v5857 = vpop.permute.xlu0 %5856
    %v5860 = vsel %vm2760, %v5850, 0
    %5862 = vmatprep.subr.mxu0 0.0
    %5863 = vmatpush1.msra.mxu0 0.0
    %5864 = vmatprep.subr.mxu0 0.0
    %5865 = vmatpush1.msra.mxu0 0.0
    %5866 = vmatprep.subr.mxu0 0.0
    %5867 = vmatpush1.msra.mxu0 0.0
    %5868 = vmatprep.subr.mxu0 0.0
    %5869 = vmatpush1.msra.mxu0 0.0
    %5870 = vmatprep.subr.mxu0 0.0
    %5871 = vmatpush1.msra.mxu0 0.0
    %5872 = vmatprep.subr.mxu0 0.0
    %5873 = vmatpush1.msra.mxu0 0.0
    %5874 = vmatprep.subr.mxu0 0.0
    %5875 = vmatpush1.msra.mxu0 0.0
    %5876 = vmatprep.subr.mxu0 0.0
    %5877 = vmatpush1.msra.mxu0 0.0
    %5878 = vmatprep.subr.mxu0 0.0
    %5879 = vmatpush1.msra.mxu0 0.0
    %5880 = vmatprep.subr.mxu0 0.0
    %5881 = vmatpush1.msra.mxu0 0.0
    %5882 = vmatprep.subr.mxu0 0.0
    %5883 = vmatpush1.msra.mxu0 0.0
    %5884 = vmatprep.subr.mxu0 0.0
    %5885 = vmatpush1.msra.mxu0 0.0
    %5886 = vmatprep.subr.mxu0 0.0
    %5887 = vmatpush1.msra.mxu0 0.0
    %5888 = vmatprep.subr.mxu0 0.0
    %5889 = vmatpush1.msra.mxu0 0.0
    %5890 = vmatprep.subr.mxu0 0.0
    %5891 = vmatpush1.msra.mxu0 0.0
    %5892 = vmatprep.subr.mxu0 0.0
    %5893 = vmatpush1.msra.mxu0 %v5857
    %5894 = vmatprep.subr.mxu0 0.0
    %5895 = vmatpush2.msra.mxu0 0.0
    %5896 = vmatprep.subr.mxu0 0.0
    %5897 = vmatpush2.msra.mxu0 0.0
    %5898 = vmatprep.subr.mxu0 0.0
    %5899 = vmatpush2.msra.mxu0 0.0
    %5900 = vmatprep.subr.mxu0 0.0
    %5901 = vmatpush2.msra.mxu0 0.0
    %5902 = vmatprep.subr.mxu0 0.0
    %5903 = vmatpush2.msra.mxu0 0.0
    %5904 = vmatprep.subr.mxu0 0.0
    %5905 = vmatpush2.msra.mxu0 0.0
    %5906 = vmatprep.subr.mxu0 0.0
    %5907 = vmatpush2.msra.mxu0 0.0
    %5908 = vmatprep.subr.mxu0 0.0
    %5909 = vmatpush2.msra.mxu0 0.0
    %5910 = vmatprep.subr.mxu0 0.0
    %5911 = vmatpush2.msra.mxu0 0.0
    %5912 = vmatprep.subr.mxu0 0.0
    %5913 = vmatpush2.msra.mxu0 0.0
    %5914 = vmatprep.subr.mxu0 0.0
    %5915 = vmatpush2.msra.mxu0 0.0
    %5916 = vmatprep.subr.mxu0 0.0
    %5917 = vmatpush2.msra.mxu0 0.0
    %5918 = vmatprep.subr.mxu0 0.0
    %5919 = vmatpush2.msra.mxu0 0.0
    %5920 = vmatprep.subr.mxu0 0.0
    %5921 = vmatpush2.msra.mxu0 0.0
    %5922 = vmatprep.subr.mxu0 0.0
    %5923 = vmatpush2.msra.mxu0 0.0
    %5924 = vmatprep.subr.mxu0 0.0
    %5925 = vmatpush2.msra.mxu0 0.0
    %5926 = vmatprep.mubr.f32.mxu0 0.0
    %5927 = vmatmul.mubr.f32.gmra.mxu0 %v5860
    %v5928 = vpop.f32.mrf.mxu0
    %v5929 = vadd.f32 0.0, %v5928
    %v5930 = vpop.f32.mrf.mxu0
    %5931 = vdwg.mxu0
    %5932 = vrot.lane.b32.xlu0 %v2755, 72
    %v5933 = vpop.permute.xlu0 %5932
    %v5936 = vsel %vm2760, %v5852, 0
    %5938 = vmatprep.subr.mxu0 0.0
    %5939 = vmatpush1.msra.mxu0 0.0
    %5940 = vmatprep.subr.mxu0 0.0
    %5941 = vmatpush1.msra.mxu0 0.0
    %5942 = vmatprep.subr.mxu0 0.0
    %5943 = vmatpush1.msra.mxu0 0.0
    %5944 = vmatprep.subr.mxu0 0.0
    %5945 = vmatpush1.msra.mxu0 0.0
    %5946 = vmatprep.subr.mxu0 0.0
    %5947 = vmatpush1.msra.mxu0 0.0
    %5948 = vmatprep.subr.mxu0 0.0
    %5949 = vmatpush1.msra.mxu0 0.0
    %5950 = vmatprep.subr.mxu0 0.0
    %5951 = vmatpush1.msra.mxu0 0.0
    %5952 = vmatprep.subr.mxu0 0.0
    %5953 = vmatpush1.msra.mxu0 0.0
    %5954 = vmatprep.subr.mxu0 0.0
    %5955 = vmatpush1.msra.mxu0 0.0
    %5956 = vmatprep.subr.mxu0 0.0
    %5957 = vmatpush1.msra.mxu0 0.0
    %5958 = vmatprep.subr.mxu0 0.0
    %5959 = vmatpush1.msra.mxu0 0.0
    %5960 = vmatprep.subr.mxu0 0.0
    %5961 = vmatpush1.msra.mxu0 0.0
    %5962 = vmatprep.subr.mxu0 0.0
    %5963 = vmatpush1.msra.mxu0 0.0
    %5964 = vmatprep.subr.mxu0 0.0
    %5965 = vmatpush1.msra.mxu0 0.0
    %5966 = vmatprep.subr.mxu0 0.0
    %5967 = vmatpush1.msra.mxu0 0.0
    %5968 = vmatprep.subr.mxu0 0.0
    %5969 = vmatpush1.msra.mxu0 %v5933
    %5970 = vmatprep.subr.mxu0 0.0
    %5971 = vmatpush2.msra.mxu0 0.0
    %5972 = vmatprep.subr.mxu0 0.0
    %5973 = vmatpush2.msra.mxu0 0.0
    %5974 = vmatprep.subr.mxu0 0.0
    %5975 = vmatpush2.msra.mxu0 0.0
    %5976 = vmatprep.subr.mxu0 0.0
    %5977 = vmatpush2.msra.mxu0 0.0
    %5978 = vmatprep.subr.mxu0 0.0
    %5979 = vmatpush2.msra.mxu0 0.0
    %5980 = vmatprep.subr.mxu0 0.0
    %5981 = vmatpush2.msra.mxu0 0.0
    %5982 = vmatprep.subr.mxu0 0.0
    %5983 = vmatpush2.msra.mxu0 0.0
    %5984 = vmatprep.subr.mxu0 0.0
    %5985 = vmatpush2.msra.mxu0 0.0
    %5986 = vmatprep.subr.mxu0 0.0
    %5987 = vmatpush2.msra.mxu0 0.0
    %5988 = vmatprep.subr.mxu0 0.0
    %5989 = vmatpush2.msra.mxu0 0.0
    %5990 = vmatprep.subr.mxu0 0.0
    %5991 = vmatpush2.msra.mxu0 0.0
    %5992 = vmatprep.subr.mxu0 0.0
    %5993 = vmatpush2.msra.mxu0 0.0
    %5994 = vmatprep.subr.mxu0 0.0
    %5995 = vmatpush2.msra.mxu0 0.0
    %5996 = vmatprep.subr.mxu0 0.0
    %5997 = vmatpush2.msra.mxu0 0.0
    %5998 = vmatprep.subr.mxu0 0.0
    %5999 = vmatpush2.msra.mxu0 0.0
    %6000 = vmatprep.subr.mxu0 0.0
    %6001 = vmatpush2.msra.mxu0 0.0
    %6002 = vmatprep.mubr.f32.mxu0 0.0
    %6003 = vmatmul.mubr.f32.gmra.mxu0 %v5936
    %v6004 = vpop.f32.mrf.mxu0
    %v6005 = vadd.f32 0.0, %v6004
    %v6006 = vpop.f32.mrf.mxu0
    %6007 = vdwg.mxu0
    %v6009 = vsel %vm2760, %v5929, 0
    %v6012 = vsel %vm2760, %v6005, 0
    %6014 = vmatprep.subr.mxu0 0.0
    %6015 = vmatpush1.msra.mxu0 0.0
    %6016 = vmatprep.subr.mxu0 0.0
    %6017 = vmatpush1.msra.mxu0 0.0
    %6018 = vmatprep.subr.mxu0 0.0
    %6019 = vmatpush1.msra.mxu0 0.0
    %6020 = vmatprep.subr.mxu0 0.0
    %6021 = vmatpush1.msra.mxu0 0.0
    %6022 = vmatprep.subr.mxu0 0.0
    %6023 = vmatpush1.msra.mxu0 0.0
    %6024 = vmatprep.subr.mxu0 0.0
    %6025 = vmatpush1.msra.mxu0 0.0
    %6026 = vmatprep.subr.mxu0 0.0
    %6027 = vmatpush1.msra.mxu0 0.0
    %6028 = vmatprep.subr.mxu0 0.0
    %6029 = vmatpush1.msra.mxu0 0.0
    %6030 = vmatprep.subr.mxu0 0.0
    %6031 = vmatpush1.msra.mxu0 0.0
    %6032 = vmatprep.subr.mxu0 0.0
    %6033 = vmatpush1.msra.mxu0 0.0
    %6034 = vmatprep.subr.mxu0 0.0
    %6035 = vmatpush1.msra.mxu0 0.0
    %6036 = vmatprep.subr.mxu0 0.0
    %6037 = vmatpush1.msra.mxu0 0.0
    %6038 = vmatprep.subr.mxu0 0.0
    %6039 = vmatpush1.msra.mxu0 0.0
    %6040 = vmatprep.subr.mxu0 0.0
    %6041 = vmatpush1.msra.mxu0 0.0
    %6042 = vmatprep.subr.mxu0 0.0
    %6043 = vmatpush1.msra.mxu0 0.0
    %6044 = vmatprep.subr.mxu0 0.0
    %6045 = vmatpush1.msra.mxu0 %v2657
    %6046 = vmatprep.subr.mxu0 0.0
    %6047 = vmatpush2.msra.mxu0 0.0
    %6048 = vmatprep.subr.mxu0 0.0
    %6049 = vmatpush2.msra.mxu0 0.0
    %6050 = vmatprep.subr.mxu0 0.0
    %6051 = vmatpush2.msra.mxu0 0.0
    %6052 = vmatprep.subr.mxu0 0.0
    %6053 = vmatpush2.msra.mxu0 0.0
    %6054 = vmatprep.subr.mxu0 0.0
    %6055 = vmatpush2.msra.mxu0 0.0
    %6056 = vmatprep.subr.mxu0 0.0
    %6057 = vmatpush2.msra.mxu0 0.0
    %6058 = vmatprep.subr.mxu0 0.0
    %6059 = vmatpush2.msra.mxu0 0.0
    %6060 = vmatprep.subr.mxu0 0.0
    %6061 = vmatpush2.msra.mxu0 0.0
    %6062 = vmatprep.subr.mxu0 0.0
    %6063 = vmatpush2.msra.mxu0 0.0
    %6064 = vmatprep.subr.mxu0 0.0
    %6065 = vmatpush2.msra.mxu0 0.0
    %6066 = vmatprep.subr.mxu0 0.0
    %6067 = vmatpush2.msra.mxu0 0.0
    %6068 = vmatprep.subr.mxu0 0.0
    %6069 = vmatpush2.msra.mxu0 0.0
    %6070 = vmatprep.subr.mxu0 0.0
    %6071 = vmatpush2.msra.mxu0 0.0
    %6072 = vmatprep.subr.mxu0 0.0
    %6073 = vmatpush2.msra.mxu0 0.0
    %6074 = vmatprep.subr.mxu0 0.0
    %6075 = vmatpush2.msra.mxu0 0.0
    %6076 = vmatprep.subr.mxu0 0.0
    %6077 = vmatpush2.msra.mxu0 0.0
    %6078 = vmatprep.mubr.f32.mxu0 0.0
    %6079 = vmatmul.mubr.f32.gmra.mxu0 %v6009
    %v6080 = vpop.f32.mrf.mxu0
    %v6081 = vadd.f32 0.0, %v6080
    %v6082 = vpop.f32.mrf.mxu0
    %6083 = vmatprep.mubr.f32.mxu0 0.0
    %6084 = vmatmul.mubr.f32.gmra.mxu0 %v6012
    %v6085 = vpop.f32.mrf.mxu0
    %v6086 = vadd.f32 0.0, %v6085
    %v6087 = vpop.f32.mrf.mxu0
    %6088 = vdwg.mxu0
    %v6089 = vadd.f32 %v5671, %v6081
    %v6090 = vadd.f32 %v5672, %v6086
    %v6091 = vadd.f32 %v6089, %v2660
    %v6092 = vadd.f32 %v6090, %v2660
    %v6093 = vld [vmem:[%s3 + $0x100] sm:$0x7f]
    %v6094 = vld [vmem:[%s3 + $0x110] sm:$0xff]
    %v6095 = vld [vmem:[%s3 + $0x120] sm:$0xff]
    %v6096 = vld [vmem:[%s3 + $0x130] sm:$0xff]
    %v6097 = vld [vmem:[%s3 + $0x140] sm:$0xff]
    %v6098 = vld [vmem:[%s3 + $0x150] sm:$0xff]
    %v6099 = vld [vmem:[%s3 + $0x160] sm:$0xff]
    %v6100 = vld [vmem:[%s3 + $0x170] sm:$0xff]
    %v6101 = vld [vmem:[%s3 + $0x180] sm:$0xff]
    %v6102 = vld [vmem:[%s3 + $0x190] sm:$0xff]
    %v6103 = vld [vmem:[%s3 + $0x1a0] sm:$0xff]
    %v6104 = vld [vmem:[%s3 + $0x1b0] sm:$0xff]
    %v6105 = vld [vmem:[%s3 + $0x1c0] sm:$0xff]
    %v6106 = vld [vmem:[%s3 + $0x1d0] sm:$0xff]
    %v6107 = vld [vmem:[%s3 + $0x1e0] sm:$0xff]
    %v6108 = vld [vmem:[%s3 + $0x1f0] sm:$0xff]
    %v6109 = vld [vmem:[%s3 + $0x200] sm:$0xff]
    %v6110 = vld [vmem:[%s3 + $0x210] sm:$0xff]
    %v6111 = vld [vmem:[%s3 + $0x220] sm:$0xff]
    %v6112 = vld [vmem:[%s3 + $0x230] sm:$0xff]
    %v6113 = vld [vmem:[%s3 + $0x240] sm:$0xff]
    %v6114 = vld [vmem:[%s3 + $0x250] sm:$0xff]
    %v6115 = vld [vmem:[%s3 + $0x260] sm:$0xff]
    %v6116 = vld [vmem:[%s3 + $0x270] sm:$0xff]
    %v6117 = vld [vmem:[%s3 + $0x280] sm:$0xff]
    %v6118 = vld [vmem:[%s3 + $0x290] sm:$0xff]
    %v6119 = vld [vmem:[%s3 + $0x2a0] sm:$0xff]
    %v6120 = vld [vmem:[%s3 + $0x2b0] sm:$0xff]
    %v6121 = vld [vmem:[%s3 + $0x2c0] sm:$0xff]
    %v6122 = vld [vmem:[%s3 + $0x2d0] sm:$0xff]
    %v6123 = vld [vmem:[%s3 + $0x2e0] sm:$0xff]
    %v6124 = vld [vmem:[%s3 + $0x2f0] sm:$0xff]
    %v6125 = vld [vmem:[%s3 + $0x300] sm:$0xff]
    %v6126 = vld [vmem:[%s3 + $0x310] sm:$0xff]
    %v6127 = vld [vmem:[%s3 + $0x320] sm:$0xff]
    %v6128 = vld [vmem:[%s3 + $0x330] sm:$0xff]
    %v6129 = vld [vmem:[%s3 + $0x340] sm:$0xff]
    %v6130 = vld [vmem:[%s3 + $0x350] sm:$0xff]
    %v6131 = vld [vmem:[%s3 + $0x360] sm:$0xff]
    %v6132 = vld [vmem:[%s3 + $0x370] sm:$0xff]
    %v6133 = vld [vmem:[%s3 + $0x380] sm:$0xff]
    %v6134 = vld [vmem:[%s3 + $0x390] sm:$0xff]
    %v6135 = vld [vmem:[%s3 + $0x3a0] sm:$0xff]
    %v6136 = vld [vmem:[%s3 + $0x3b0] sm:$0xff]
    %v6137 = vld [vmem:[%s3 + $0x3c0] sm:$0xff]
    %v6138 = vld [vmem:[%s4 + $0x4] ss:$0 sm:$0xff]
    %v6139 = vld [vmem:[%s4 + $0x5] ss:$0 sm:$0xff]
    %v6140 = vld [vmem:[%s4 + $0x6] ss:$0 sm:$0xff]
    %v6141 = vld [vmem:[%s4 + $0x7] ss:$0 sm:$0xff]
    %v6142 = vld [vmem:[%s4 + $0x10] ss:$0 sm:$0xff]
    %v6143 = vsel %vm228, %v6091, 0.0
    %v6144 = vrot.slane %v6143, 4
    %v6145 = vadd.f32 %v6143, %v6144
    %v6146 = vrot.slane %v6145, 2
    %v6147 = vadd.f32 %v6145, %v6146
    %v6148 = vrot.slane %v6147, 1
    %v6149 = vadd.f32 %v6147, %v6148
    %v6150 = vsel %vm228, %v6092, 0.0
    %v6151 = vrot.slane %v6150, 4
    %v6152 = vadd.f32 %v6150, %v6151
    %v6153 = vrot.slane %v6152, 2
    %v6154 = vadd.f32 %v6152, %v6153
    %v6155 = vrot.slane %v6154, 1
    %v6156 = vadd.f32 %v6154, %v6155
    %v6157 = vrcp.pop 8.0
    %v6158 = vmul.f32 %v6149, %v6157
    %v6159 = vmul.f32 %v6156, %v6157
    %v6160 = vld [vmem:[%s1] sm:$0x3]
    %vm6161 = vcmask 56320
    %v6163 = vsel %vm6161, %v6160, 0
    %vm6165 = vcmask 1046528
    %v6167 = vsel %vm6165, %v6093, 0
    %6169 = vmatprep.subr.mxu0 0.0
    %6170 = vmatpush1.msra.mxu0 0.0
    %6171 = vmatprep.subr.mxu0 0.0
    %6172 = vmatpush1.msra.mxu0 0.0
    %6173 = vmatprep.subr.mxu0 0.0
    %6174 = vmatpush1.msra.mxu0 0.0
    %6175 = vmatprep.subr.mxu0 0.0
    %6176 = vmatpush1.msra.mxu0 0.0
    %6177 = vmatprep.subr.mxu0 0.0
    %6178 = vmatpush1.msra.mxu0 0.0
    %6179 = vmatprep.subr.mxu0 0.0
    %6180 = vmatpush1.msra.mxu0 0.0
    %6181 = vmatprep.subr.mxu0 0.0
    %6182 = vmatpush1.msra.mxu0 0.0
    %6183 = vmatprep.subr.mxu0 0.0
    %6184 = vmatpush1.msra.mxu0 0.0
    %6185 = vmatprep.subr.mxu0 0.0
    %6186 = vmatpush1.msra.mxu0 0.0
    %6187 = vmatprep.subr.mxu0 0.0
    %6188 = vmatpush1.msra.mxu0 0.0
    %6189 = vmatprep.subr.mxu0 0.0
    %6190 = vmatpush1.msra.mxu0 0.0
    %6191 = vmatprep.subr.mxu0 0.0
    %6192 = vmatpush1.msra.mxu0 0.0
    %6193 = vmatprep.subr.mxu0 0.0
    %6194 = vmatpush1.msra.mxu0 0.0
    %6195 = vmatprep.subr.mxu0 0.0
    %6196 = vmatpush1.msra.mxu0 0.0
    %6197 = vmatprep.subr.mxu0 0.0
    %6198 = vmatpush1.msra.mxu0 0.0
    %6199 = vmatprep.subr.mxu0 0.0
    %6200 = vmatpush1.msra.mxu0 %v6167
    %6201 = vmatprep.subr.mxu0 0.0
    %6202 = vmatpush2.msra.mxu0 0.0
    %6203 = vmatprep.subr.mxu0 0.0
    %6204 = vmatpush2.msra.mxu0 0.0
    %6205 = vmatprep.subr.mxu0 0.0
    %6206 = vmatpush2.msra.mxu0 0.0
    %6207 = vmatprep.subr.mxu0 0.0
    %6208 = vmatpush2.msra.mxu0 0.0
    %6209 = vmatprep.subr.mxu0 0.0
    %6210 = vmatpush2.msra.mxu0 0.0
    %6211 = vmatprep.subr.mxu0 0.0
    %6212 = vmatpush2.msra.mxu0 0.0
    %6213 = vmatprep.subr.mxu0 0.0
    %6214 = vmatpush2.msra.mxu0 0.0
    %6215 = vmatprep.subr.mxu0 0.0
    %6216 = vmatpush2.msra.mxu0 0.0
    %6217 = vmatprep.subr.mxu0 0.0
    %6218 = vmatpush2.msra.mxu0 0.0
    %6219 = vmatprep.subr.mxu0 0.0
    %6220 = vmatpush2.msra.mxu0 0.0
    %6221 = vmatprep.subr.mxu0 0.0
    %6222 = vmatpush2.msra.mxu0 0.0
    %6223 = vmatprep.subr.mxu0 0.0
    %6224 = vmatpush2.msra.mxu0 0.0
    %6225 = vmatprep.subr.mxu0 0.0
    %6226 = vmatpush2.msra.mxu0 0.0
    %6227 = vmatprep.subr.mxu0 0.0
    %6228 = vmatpush2.msra.mxu0 0.0
    %6229 = vmatprep.subr.mxu0 0.0
    %6230 = vmatpush2.msra.mxu0 0.0
    %6231 = vmatprep.subr.mxu0 0.0
    %6232 = vmatpush2.msra.mxu0 0.0
    %6233 = vmatprep.mubr.f32.mxu0 0.0
    %6234 = vmatmul.mubr.f32.gmra.mxu0 %v6163
    %v6235 = vpop.f32.mrf.mxu0
    %v6236 = vadd.f32 %v6138, %v6235
    %v6237 = vpop.f32.mrf.mxu0
    %6238 = vdwg.mxu0
    %v6239 = vmax.f32 %v6236, 0.0
    %v6241 = vsel %vm228, %v6239, 0
    %6243 = vmatprep.subr.mxu0 0.0
    %6244 = vmatpush1.msra.mxu0 0.0
    %6245 = vmatprep.subr.mxu0 0.0
    %6246 = vmatpush1.msra.mxu0 0.0
    %6247 = vmatprep.subr.mxu0 0.0
    %6248 = vmatpush1.msra.mxu0 0.0
    %6249 = vmatprep.subr.mxu0 0.0
    %6250 = vmatpush1.msra.mxu0 0.0
    %6251 = vmatprep.subr.mxu0 0.0
    %6252 = vmatpush1.msra.mxu0 0.0
    %6253 = vmatprep.subr.mxu0 0.0
    %6254 = vmatpush1.msra.mxu0 0.0
    %6255 = vmatprep.subr.mxu0 0.0
    %6256 = vmatpush1.msra.mxu0 0.0
    %6257 = vmatprep.subr.mxu0 0.0
    %6258 = vmatpush1.msra.mxu0 0.0
    %6259 = vmatprep.subr.mxu0 0.0
    %6260 = vmatpush1.msra.mxu0 %v6109
    %6261 = vmatprep.subr.mxu0 0.0
    %6262 = vmatpush1.msra.mxu0 %v6108
    %6263 = vmatprep.subr.mxu0 0.0
    %6264 = vmatpush1.msra.mxu0 %v6107
    %6265 = vmatprep.subr.mxu0 0.0
    %6266 = vmatpush1.msra.mxu0 %v6106
    %6267 = vmatprep.subr.mxu0 0.0
    %6268 = vmatpush1.msra.mxu0 %v6105
    %6269 = vmatprep.subr.mxu0 0.0
    %6270 = vmatpush1.msra.mxu0 %v6104
    %6271 = vmatprep.subr.mxu0 0.0
    %6272 = vmatpush1.msra.mxu0 %v6103
    %6273 = vmatprep.subr.mxu0 0.0
    %6274 = vmatpush1.msra.mxu0 %v6102
    %6275 = vmatprep.subr.mxu0 0.0
    %6276 = vmatpush2.msra.mxu0 0.0
    %6277 = vmatprep.subr.mxu0 0.0
    %6278 = vmatpush2.msra.mxu0 0.0
    %6279 = vmatprep.subr.mxu0 0.0
    %6280 = vmatpush2.msra.mxu0 0.0
    %6281 = vmatprep.subr.mxu0 0.0
    %6282 = vmatpush2.msra.mxu0 0.0
    %6283 = vmatprep.subr.mxu0 0.0
    %6284 = vmatpush2.msra.mxu0 0.0
    %6285 = vmatprep.subr.mxu0 0.0
    %6286 = vmatpush2.msra.mxu0 0.0
    %6287 = vmatprep.subr.mxu0 0.0
    %6288 = vmatpush2.msra.mxu0 0.0
    %6289 = vmatprep.subr.mxu0 0.0
    %6290 = vmatpush2.msra.mxu0 0.0
    %6291 = vmatprep.subr.mxu0 0.0
    %6292 = vmatpush2.msra.mxu0 0.0
    %6293 = vmatprep.subr.mxu0 0.0
    %6294 = vmatpush2.msra.mxu0 0.0
    %6295 = vmatprep.subr.mxu0 0.0
    %6296 = vmatpush2.msra.mxu0 0.0
    %6297 = vmatprep.subr.mxu0 0.0
    %6298 = vmatpush2.msra.mxu0 0.0
    %6299 = vmatprep.subr.mxu0 0.0
    %6300 = vmatpush2.msra.mxu0 0.0
    %6301 = vmatprep.subr.mxu0 0.0
    %6302 = vmatpush2.msra.mxu0 0.0
    %6303 = vmatprep.subr.mxu0 0.0
    %6304 = vmatpush2.msra.mxu0 0.0
    %6305 = vmatprep.subr.mxu0 0.0
    %6306 = vmatpush2.msra.mxu0 0.0
    %6307 = vmatprep.mubr.f32.mxu0 0.0
    %6308 = vmatmul.mubr.f32.gmra.mxu0 %v6241
    %v6309 = vpop.f32.mrf.mxu0
    %v6310 = vadd.f32 0.0, %v6309
    %v6311 = vpop.f32.mrf.mxu0
    %6312 = vdwg.mxu0
    %v6315 = vsel %vm366, %v6159, %v6158
    %v6316 = vsel %vm228, %v6315, 0
    %6318 = vmatprep.subr.mxu0 0.0
    %6319 = vmatpush1.msra.mxu0 0.0
    %6320 = vmatprep.subr.mxu0 0.0
    %6321 = vmatpush1.msra.mxu0 0.0
    %6322 = vmatprep.subr.mxu0 0.0
    %6323 = vmatpush1.msra.mxu0 0.0
    %6324 = vmatprep.subr.mxu0 0.0
    %6325 = vmatpush1.msra.mxu0 0.0
    %6326 = vmatprep.subr.mxu0 0.0
    %6327 = vmatpush1.msra.mxu0 0.0
    %6328 = vmatprep.subr.mxu0 0.0
    %6329 = vmatpush1.msra.mxu0 0.0
    %6330 = vmatprep.subr.mxu0 0.0
    %6331 = vmatpush1.msra.mxu0 0.0
    %6332 = vmatprep.subr.mxu0 0.0
    %6333 = vmatpush1.msra.mxu0 0.0
    %6334 = vmatprep.subr.mxu0 0.0
    %6335 = vmatpush1.msra.mxu0 %v6101
    %6336 = vmatprep.subr.mxu0 0.0
    %6337 = vmatpush1.msra.mxu0 %v6100
    %6338 = vmatprep.subr.mxu0 0.0
    %6339 = vmatpush1.msra.mxu0 %v6099
    %6340 = vmatprep.subr.mxu0 0.0
    %6341 = vmatpush1.msra.mxu0 %v6098
    %6342 = vmatprep.subr.mxu0 0.0
    %6343 = vmatpush1.msra.mxu0 %v6097
    %6344 = vmatprep.subr.mxu0 0.0
    %6345 = vmatpush1.msra.mxu0 %v6096
    %6346 = vmatprep.subr.mxu0 0.0
    %6347 = vmatpush1.msra.mxu0 %v6095
    %6348 = vmatprep.subr.mxu0 0.0
    %6349 = vmatpush1.msra.mxu0 %v6094
    %6350 = vmatprep.subr.mxu0 0.0
    %6351 = vmatpush2.msra.mxu0 0.0
    %6352 = vmatprep.subr.mxu0 0.0
    %6353 = vmatpush2.msra.mxu0 0.0
    %6354 = vmatprep.subr.mxu0 0.0
    %6355 = vmatpush2.msra.mxu0 0.0
    %6356 = vmatprep.subr.mxu0 0.0
    %6357 = vmatpush2.msra.mxu0 0.0
    %6358 = vmatprep.subr.mxu0 0.0
    %6359 = vmatpush2.msra.mxu0 0.0
    %6360 = vmatprep.subr.mxu0 0.0
    %6361 = vmatpush2.msra.mxu0 0.0
    %6362 = vmatprep.subr.mxu0 0.0
    %6363 = vmatpush2.msra.mxu0 0.0
    %6364 = vmatprep.subr.mxu0 0.0
    %6365 = vmatpush2.msra.mxu0 0.0
    %6366 = vmatprep.subr.mxu0 0.0
    %6367 = vmatpush2.msra.mxu0 0.0
    %6368 = vmatprep.subr.mxu0 0.0
    %6369 = vmatpush2.msra.mxu0 0.0
    %6370 = vmatprep.subr.mxu0 0.0
    %6371 = vmatpush2.msra.mxu0 0.0
    %6372 = vmatprep.subr.mxu0 0.0
    %6373 = vmatpush2.msra.mxu0 0.0
    %6374 = vmatprep.subr.mxu0 0.0
    %6375 = vmatpush2.msra.mxu0 0.0
    %6376 = vmatprep.subr.mxu0 0.0
    %6377 = vmatpush2.msra.mxu0 0.0
    %6378 = vmatprep.subr.mxu0 0.0
    %6379 = vmatpush2.msra.mxu0 0.0
    %6380 = vmatprep.subr.mxu0 0.0
    %6381 = vmatpush2.msra.mxu0 0.0
    %6382 = vmatprep.mubr.f32.mxu0 0.0
    %6383 = vmatmul.mubr.f32.gmra.mxu0 %v6316
    %v6384 = vpop.f32.mrf.mxu0
    %v6385 = vadd.f32 %v6310, %v6384
    %v6386 = vpop.f32.mrf.mxu0
    %6387 = vdwg.mxu0
    %v6388 = vadd.f32 %v6385, %v6139
    %v6389 = vmax.f32 %v6388, 0.0
    %6390 = vmatprep.subr.mxu0 0.0
    %6391 = vmatpush1.msra.mxu0 %v6125
    %6392 = vmatprep.subr.mxu0 0.0
    %6393 = vmatpush1.msra.mxu0 %v6124
    %6394 = vmatprep.subr.mxu0 0.0
    %6395 = vmatpush1.msra.mxu0 %v6123
    %6396 = vmatprep.subr.mxu0 0.0
    %6397 = vmatpush1.msra.mxu0 %v6122
    %6398 = vmatprep.subr.mxu0 0.0
    %6399 = vmatpush1.msra.mxu0 %v6121
    %6400 = vmatprep.subr.mxu0 0.0
    %6401 = vmatpush1.msra.mxu0 %v6120
    %6402 = vmatprep.subr.mxu0 0.0
    %6403 = vmatpush1.msra.mxu0 %v6119
    %6404 = vmatprep.subr.mxu0 0.0
    %6405 = vmatpush1.msra.mxu0 %v6118
    %6406 = vmatprep.subr.mxu0 0.0
    %6407 = vmatpush1.msra.mxu0 %v6117
    %6408 = vmatprep.subr.mxu0 0.0
    %6409 = vmatpush1.msra.mxu0 %v6116
    %6410 = vmatprep.subr.mxu0 0.0
    %6411 = vmatpush1.msra.mxu0 %v6115
    %6412 = vmatprep.subr.mxu0 0.0
    %6413 = vmatpush1.msra.mxu0 %v6114
    %6414 = vmatprep.subr.mxu0 0.0
    %6415 = vmatpush1.msra.mxu0 %v6113
    %6416 = vmatprep.subr.mxu0 0.0
    %6417 = vmatpush1.msra.mxu0 %v6112
    %6418 = vmatprep.subr.mxu0 0.0
    %6419 = vmatpush1.msra.mxu0 %v6111
    %6420 = vmatprep.subr.mxu0 0.0
    %6421 = vmatpush1.msra.mxu0 %v6110
    %6422 = vmatprep.subr.mxu0 0.0
    %6423 = vmatpush2.msra.mxu0 0.0
    %6424 = vmatprep.subr.mxu0 0.0
    %6425 = vmatpush2.msra.mxu0 0.0
    %6426 = vmatprep.subr.mxu0 0.0
    %6427 = vmatpush2.msra.mxu0 0.0
    %6428 = vmatprep.subr.mxu0 0.0
    %6429 = vmatpush2.msra.mxu0 0.0
    %6430 = vmatprep.subr.mxu0 0.0
    %6431 = vmatpush2.msra.mxu0 0.0
    %6432 = vmatprep.subr.mxu0 0.0
    %6433 = vmatpush2.msra.mxu0 0.0
    %6434 = vmatprep.subr.mxu0 0.0
    %6435 = vmatpush2.msra.mxu0 0.0
    %6436 = vmatprep.subr.mxu0 0.0
    %6437 = vmatpush2.msra.mxu0 0.0
    %6438 = vmatprep.subr.mxu0 0.0
    %6439 = vmatpush2.msra.mxu0 0.0
    %6440 = vmatprep.subr.mxu0 0.0
    %6441 = vmatpush2.msra.mxu0 0.0
    %6442 = vmatprep.subr.mxu0 0.0
    %6443 = vmatpush2.msra.mxu0 0.0
    %6444 = vmatprep.subr.mxu0 0.0
    %6445 = vmatpush2.msra.mxu0 0.0
    %6446 = vmatprep.subr.mxu0 0.0
    %6447 = vmatpush2.msra.mxu0 0.0
    %6448 = vmatprep.subr.mxu0 0.0
    %6449 = vmatpush2.msra.mxu0 0.0
    %6450 = vmatprep.subr.mxu0 0.0
    %6451 = vmatpush2.msra.mxu0 0.0
    %6452 = vmatprep.subr.mxu0 0.0
    %6453 = vmatpush2.msra.mxu0 0.0
    %6454 = vmatprep.mubr.f32.mxu0 0.0
    %6455 = vmatmul.mubr.f32.gmra.mxu0 %v6389
    %v6456 = vpop.f32.mrf.mxu0
    %v6457 = vadd.f32 %v6140, %v6456
    %v6458 = vpop.f32.mrf.mxu0
    %6459 = vdwg.mxu0
    %v6460 = vmax.f32 %v6457, 0.0
    %v6462 = vsel %vm228, %v6460, 0
    %6464 = vmatprep.subr.mxu0 0.0
    %6465 = vmatpush1.msra.mxu0 0.0
    %6466 = vmatprep.subr.mxu0 0.0
    %6467 = vmatpush1.msra.mxu0 0.0
    %6468 = vmatprep.subr.mxu0 0.0
    %6469 = vmatpush1.msra.mxu0 0.0
    %6470 = vmatprep.subr.mxu0 0.0
    %6471 = vmatpush1.msra.mxu0 0.0
    %6472 = vmatprep.subr.mxu0 0.0
    %6473 = vmatpush1.msra.mxu0 0.0
    %6474 = vmatprep.subr.mxu0 0.0
    %6475 = vmatpush1.msra.mxu0 0.0
    %6476 = vmatprep.subr.mxu0 0.0
    %6477 = vmatpush1.msra.mxu0 0.0
    %6478 = vmatprep.subr.mxu0 0.0
    %6479 = vmatpush1.msra.mxu0 0.0
    %6480 = vmatprep.subr.mxu0 0.0
    %6481 = vmatpush1.msra.mxu0 %v6133
    %6482 = vmatprep.subr.mxu0 0.0
    %6483 = vmatpush1.msra.mxu0 %v6132
    %6484 = vmatprep.subr.mxu0 0.0
    %6485 = vmatpush1.msra.mxu0 %v6131
    %6486 = vmatprep.subr.mxu0 0.0
    %6487 = vmatpush1.msra.mxu0 %v6130
    %6488 = vmatprep.subr.mxu0 0.0
    %6489 = vmatpush1.msra.mxu0 %v6129
    %6490 = vmatprep.subr.mxu0 0.0
    %6491 = vmatpush1.msra.mxu0 %v6128
    %6492 = vmatprep.subr.mxu0 0.0
    %6493 = vmatpush1.msra.mxu0 %v6127
    %6494 = vmatprep.subr.mxu0 0.0
    %6495 = vmatpush1.msra.mxu0 %v6126
    %6496 = vmatprep.subr.mxu0 0.0
    %6497 = vmatpush2.msra.mxu0 0.0
    %6498 = vmatprep.subr.mxu0 0.0
    %6499 = vmatpush2.msra.mxu0 0.0
    %6500 = vmatprep.subr.mxu0 0.0
    %6501 = vmatpush2.msra.mxu0 0.0
    %6502 = vmatprep.subr.mxu0 0.0
    %6503 = vmatpush2.msra.mxu0 0.0
    %6504 = vmatprep.subr.mxu0 0.0
    %6505 = vmatpush2.msra.mxu0 0.0
    %6506 = vmatprep.subr.mxu0 0.0
    %6507 = vmatpush2.msra.mxu0 0.0
    %6508 = vmatprep.subr.mxu0 0.0
    %6509 = vmatpush2.msra.mxu0 0.0
    %6510 = vmatprep.subr.mxu0 0.0
    %6511 = vmatpush2.msra.mxu0 0.0
    %6512 = vmatprep.subr.mxu0 0.0
    %6513 = vmatpush2.msra.mxu0 0.0
    %6514 = vmatprep.subr.mxu0 0.0
    %6515 = vmatpush2.msra.mxu0 0.0
    %6516 = vmatprep.subr.mxu0 0.0
    %6517 = vmatpush2.msra.mxu0 0.0
    %6518 = vmatprep.subr.mxu0 0.0
    %6519 = vmatpush2.msra.mxu0 0.0
    %6520 = vmatprep.subr.mxu0 0.0
    %6521 = vmatpush2.msra.mxu0 0.0
    %6522 = vmatprep.subr.mxu0 0.0
    %6523 = vmatpush2.msra.mxu0 0.0
    %6524 = vmatprep.subr.mxu0 0.0
    %6525 = vmatpush2.msra.mxu0 0.0
    %6526 = vmatprep.subr.mxu0 0.0
    %6527 = vmatpush2.msra.mxu0 0.0
    %6528 = vmatprep.mubr.f32.mxu0 0.0
    %6529 = vmatmul.mubr.f32.gmra.mxu0 %v6462
    %v6530 = vpop.f32.mrf.mxu0
    %v6531 = vadd.f32 %v6141, %v6530
    %v6532 = vpop.f32.mrf.mxu0
    %6533 = vdwg.mxu0
    %v6534 = vmax.f32 %v6531, 0.0
    %vm6535 = vcmask 261120
    %v6537 = vsel %vm6535, %v6534, 0
    %6539 = vmatprep.subr.mxu0 0.0
    %6540 = vmatpush1.msra.mxu0 0.0
    %6541 = vmatprep.subr.mxu0 0.0
    %6542 = vmatpush1.msra.mxu0 0.0
    %6543 = vmatprep.subr.mxu0 0.0
    %6544 = vmatpush1.msra.mxu0 0.0
    %6545 = vmatprep.subr.mxu0 0.0
    %6546 = vmatpush1.msra.mxu0 0.0
    %6547 = vmatprep.subr.mxu0 0.0
    %6548 = vmatpush1.msra.mxu0 0.0
    %6549 = vmatprep.subr.mxu0 0.0
    %6550 = vmatpush1.msra.mxu0 0.0
    %6551 = vmatprep.subr.mxu0 0.0
    %6552 = vmatpush1.msra.mxu0 0.0
    %6553 = vmatprep.subr.mxu0 0.0
    %6554 = vmatpush1.msra.mxu0 0.0
    %6555 = vmatprep.subr.mxu0 0.0
    %6556 = vmatpush1.msra.mxu0 0.0
    %6557 = vmatprep.subr.mxu0 0.0
    %6558 = vmatpush1.msra.mxu0 0.0
    %6559 = vmatprep.subr.mxu0 0.0
    %6560 = vmatpush1.msra.mxu0 0.0
    %6561 = vmatprep.subr.mxu0 0.0
    %6562 = vmatpush1.msra.mxu0 0.0
    %6563 = vmatprep.subr.mxu0 0.0
    %6564 = vmatpush1.msra.mxu0 %v6137
    %6565 = vmatprep.subr.mxu0 0.0
    %6566 = vmatpush1.msra.mxu0 %v6136
    %6567 = vmatprep.subr.mxu0 0.0
    %6568 = vmatpush1.msra.mxu0 %v6135
    %6569 = vmatprep.subr.mxu0 0.0
    %6570 = vmatpush1.msra.mxu0 %v6134
    %6571 = vmatprep.subr.mxu0 0.0
    %6572 = vmatpush2.msra.mxu0 0.0
    %6573 = vmatprep.subr.mxu0 0.0
    %6574 = vmatpush2.msra.mxu0 0.0
    %6575 = vmatprep.subr.mxu0 0.0
    %6576 = vmatpush2.msra.mxu0 0.0
    %6577 = vmatprep.subr.mxu0 0.0
    %6578 = vmatpush2.msra.mxu0 0.0
    %6579 = vmatprep.subr.mxu0 0.0
    %6580 = vmatpush2.msra.mxu0 0.0
    %6581 = vmatprep.subr.mxu0 0.0
    %6582 = vmatpush2.msra.mxu0 0.0
    %6583 = vmatprep.subr.mxu0 0.0
    %6584 = vmatpush2.msra.mxu0 0.0
    %6585 = vmatprep.subr.mxu0 0.0
    %6586 = vmatpush2.msra.mxu0 0.0
    %6587 = vmatprep.subr.mxu0 0.0
    %6588 = vmatpush2.msra.mxu0 0.0
    %6589 = vmatprep.subr.mxu0 0.0
    %6590 = vmatpush2.msra.mxu0 0.0
    %6591 = vmatprep.subr.mxu0 0.0
    %6592 = vmatpush2.msra.mxu0 0.0
    %6593 = vmatprep.subr.mxu0 0.0
    %6594 = vmatpush2.msra.mxu0 0.0
    %6595 = vmatprep.subr.mxu0 0.0
    %6596 = vmatpush2.msra.mxu0 0.0
    %6597 = vmatprep.subr.mxu0 0.0
    %6598 = vmatpush2.msra.mxu0 0.0
    %6599 = vmatprep.subr.mxu0 0.0
    %6600 = vmatpush2.msra.mxu0 0.0
    %6601 = vmatprep.subr.mxu0 0.0
    %6602 = vmatpush2.msra.mxu0 0.0
    %6603 = vmatprep.mubr.f32.mxu0 0.0
    %6604 = vmatmul.mubr.f32.gmra.mxu0 %v6537
    %v6605 = vpop.f32.mrf.mxu0
    %v6606 = vadd.f32 %v6142, %v6605
    %v6607 = vpop.f32.mrf.mxu0
    %6608 = vdwg.mxu0
    %vm6609 = vcmask 50176
    %v6610 = vsel %vm6609, %v6606, -inf
    %6611 = vmax.xlane.f32.xlu0 %v6610
    %v6612 = vpop.xlane.xlu0 %6611
    %v6613 = vsub.f32 %v6606, %v6612
    %v6614 = vmul.f32 %v6613, 1.442695
    %v6615 = vpow.pop %v6614
    %v6616 = vsel %vm6609, %v6615, 0.0
    %6617 = vadd.xlane.f32.xlu0 %v6616
    %v6618 = vpop.xlane.xlu0 %6617
    %v6619 = vrcp.pop %v6618
    %v6620 = vmul.f32 %v6615, %v6619
    %6621 = vst.msk [vmem:[%s5] sm:$0x3] %vm6609, %v6620
    %v6622 = vmax.f32 %v6606, 0.0
    %v6623 = vand.u32 2147483647, %v6606
    %v6624 = vsub.f32 0.0, %v6623
    %v6625 = vmul.f32 %v6624, 1.442695
    %v6626 = vpow.pop %v6625
    %v6627 = vadd.f32 %v6626, 1.0
    %v6628 = vlog2.pop %v6627
    %v6629 = vmul.f32 %v6628, 0.6931472
    %v6630 = vadd.f32 %v6622, %v6629
    %vm6631 = vcmask 107576
    %6632 = vst.msk [vmem:[%s5] sm:$0x3] %vm6631, %v6630
    // Predicated region
    $region22: #{abundance_forward.1} parent=1 // pred_check
      _
    $region23: #{abundance_forward.1} parent=1 // pred_check_branch
      %6634 = sbr.rel (0) target = $region25
    $region24: #{abundance_forward.1} parent=1 // pred_region
      _
    $region25: #{abundance_forward.1} parent=1 // pred_fallthru
      _
    // Predicated region
    $region26: #{abundance_forward.1} parent=1 // pred_check
      _
    $region27: #{abundance_forward.1} parent=1 // pred_check_branch
      %6636 = sbr.rel (0) target = $region29
    $region28: #{abundance_forward.1} parent=1 // pred_region
      %s6638 = ssub.s32 2048, 2048
      %6639 = vsyncadd [#allocation5], %s6638
      %s6640 = sshll.u32 [#allocation4], 4
      %s6641 = int_to_ptr.vmem [resolvable:$true] %s6640
      %6646 = dma.vmem_to_hbm [thread:$0]  %s6641, 2048, %s6, [#allocation5], 128, 128, 8
    $region29: #{abundance_forward.1} parent=1 // pred_fallthru
      _
    // Predicated region
    $region30: #{abundance_forward.1} parent=1 // pred_check
      _
    $region31: #{abundance_forward.1} parent=1 // pred_check_branch
      %6648 = sbr.rel (0) target = $region33
    $region32: #{abundance_forward.1} parent=1 // pred_region
      _
    $region33: #{abundance_forward.1} parent=1 // pred_fallthru
      _
    // Predicated region
    $region34: #{abundance_forward.1} parent=1 // pred_check
      _
    $region35: #{abundance_forward.1} parent=1 // pred_check_branch
      %6650 = sbr.rel (0) target = $region37
    $region36: #{abundance_forward.1} parent=1 // pred_region
      %6651 = dma.done [#allocation5], 2048
    $region37: #{abundance_forward.1} parent=1 // pred_fallthru
      _
    %6652 = vsyncpa [#allocation5], 1

</llo_original>
